<compile_context>
chip_gen: v6e
topology: v6e:2x2x1
jax: 0.10.0
libtpu: 0.0.40
codegen_flags: <defaults>
</compile_context>

<pallas_src>
import functools

import jax
import jax.numpy as jnp
from jax.experimental import pallas as pl
from jax.experimental.pallas import tpu as pltpu


# ----------------------------- fused Pallas kernel ------------------------------

def _stad_fused_kernel(
    x_ref,                                            # (N, K)  one batch element
    gw1_ref, gw2_ref, gbl_ref, ga_ref, gbias_ref,     # GATv2 params
    twi_ref, twh_ref, tbrz_ref, tbin_ref, tbhn_ref,   # time GRU (fused gates)
    fw1_ref, fb1_ref, fw2_ref, fb2_ref,               # forecast MLP
    rwi_ref, rwh_ref, rbrz_ref, rbin_ref, rbhn_ref,   # recon GRU (fused gates), wi as (K,2N,3RH)
    rfw_ref, rfb_ref,                                 # final linear
    pred_ref,                                         # (TD, K) out
    recon_ref,                                        # (N, TD) out
    tseq_ref,                                         # (K, N)  VMEM scratch: time-GRU hidden_seq
    dec_ref,                                          # (N, RH) VMEM scratch: decoder hidden states
    *, alpha, window_size, features_num, recon_hidden,
):
    N = window_size
    K = features_num
    H = N                                             # time-GRU hidden == window_size
    RH = recon_hidden

    x = x_ref[...].T                                  # (K, N): feature-node layout

    # ---------------- StructureFeatureLayer: GATv2 over K feature nodes -----
    p = jnp.dot(x, gw1_ref[...], preferred_element_type=jnp.float32)            # (K, E)
    q = jnp.dot(x, gw2_ref[...], preferred_element_type=jnp.float32) + gbl_ref[...]
    s = p[:, None, :] + q[None, :, :]                                            # (K, K, E)
    s = jnp.where(s > 0, s, alpha * s)                                           # LeakyReLU
    e = jnp.sum(s * ga_ref[...][None, :, :], axis=-1) + gbias_ref[...]           # (K, K)
    e_max = jnp.max(e, axis=-1, keepdims=True)
    w = jnp.exp(e - e_max)
    att = w * pl.reciprocal(jnp.sum(w, axis=-1, keepdims=True), approx=True)     # softmax
    structed = jax.nn.sigmoid(
        jnp.dot(att, x, preferred_element_type=jnp.float32))                     # (K, N)

    # ---------------- TimeFeatureLayer: GRU over node axis (T=K, in=N, hid=N)
    # Input projections hoisted out of the recurrence, gates fused [r|z|n].
    gi_all = jnp.dot(x, twi_ref[...], preferred_element_type=jnp.float32)        # (K, 3H)
    wh = twh_ref[...]
    brz = tbrz_ref[...]
    b_in = tbin_ref[...]
    b_hn = tbhn_ref[...]
    h = jnp.zeros((1, H), jnp.float32)
    for t in range(K):                                 # static, fully unrolled
        gi = gi_all[t:t + 1, :]                                                  # (1, 3H)
        gh = jnp.dot(h, wh, preferred_element_type=jnp.float32)                  # (1, 3H)
        rz = jax.nn.sigmoid(gi[:, :2 * H] + gh[:, :2 * H] + brz)                 # (1, 2H)
        r = rz[:, :H]
        z = rz[:, H:]
        cand = jnp.tanh(gi[:, 2 * H:] + b_in + r * (gh[:, 2 * H:] + b_hn))
        h = (1.0 - z) * cand + z * h
        tseq_ref[pl.ds(t, 1), :] = h
    time_hidden = tseq_ref[...]                                                  # (K, N)

    # ---------------- Features = concat on last dim --------------------------
    feats = jnp.concatenate([structed, time_hidden], axis=1)                     # (K, 2N)

    # ---------------- ForecastModule: 2N -> FH -> TD per node ----------------
    hmlp = jnp.maximum(
        jnp.dot(feats, fw1_ref[...], preferred_element_type=jnp.float32) + fb1_ref[...], 0.0)
    preds = jnp.dot(hmlp, fw2_ref[...], preferred_element_type=jnp.float32) + fb2_ref[...]
    pred_ref[...] = preds.T                                                      # (TD, K)

    # ---------------- ReconstructionModule: GRU decoder + Linear -------------
    # Decoder input = flattened Features, identical at every timestep, so the
    # input projection is computed once.  flatten(feats) @ Wi is evaluated as
    # sum_k feats[k] @ Wi[k] against the (K, 2N, 3RH) host-side view of Wi,
    # avoiding any in-kernel reshape.
    gi_r = jnp.dot(feats[0:1, :], rwi_ref[0], preferred_element_type=jnp.float32)  # (1, 3RH)
    for k2 in range(1, K):
        gi_r = gi_r + jnp.dot(feats[k2:k2 + 1, :], rwi_ref[k2],
                              preferred_element_type=jnp.float32)

    rwh = rwh_ref[...]
    rbrz = rbrz_ref[...]
    rb_in = rbin_ref[...]
    rb_hn = rbhn_ref[...]
    hr = jnp.zeros((1, RH), jnp.float32)
    for t in range(N):                                 # static, fully unrolled
        gh = jnp.dot(hr, rwh, preferred_element_type=jnp.float32)                # (1, 3RH)
        rz = jax.nn.sigmoid(gi_r[:, :2 * RH] + gh[:, :2 * RH] + rbrz)
        r = rz[:, :RH]
        z = rz[:, RH:]
        cand = jnp.tanh(gi_r[:, 2 * RH:] + rb_in + r * (gh[:, 2 * RH:] + rb_hn))
        hr = (1.0 - z) * cand + z * hr
        dec_ref[pl.ds(t, 1), :] = hr
    # Final linear fused as an epilogue on the (N, RH) slab.
    recon_ref[...] = (jnp.dot(dec_ref[...], rfw_ref[...], preferred_element_type=jnp.float32)
                      + rfb_ref[...])


# ------------------------------- wrapper -------------------------------------

def pt_stad_forward(x, params, alpha):
    """x: (B, window_size, features_num). Returns (predictions, recons)."""
    B, N, K = x.shape
    gp = params["gat"]
    tp = params["time_gru"]
    fp = params["forecast"]
    rp = params["recon_gru"]
    cp = params["recon_fc"]

    E = gp["w1t"].shape[1]
    FH = fp["w1t"].shape[1]
    TD = fp["w2t"].shape[1]
    RH = rp["wh"].shape[0]

    # Host-side (free, contiguous) view of the recon input weight: (K*2N, 3RH) -> (K, 2N, 3RH)
    rwi3 = rp["wi"].reshape(K, 2 * N, 3 * RH)

    kern = functools.partial(_stad_fused_kernel, alpha=alpha,
                             window_size=N, features_num=K, recon_hidden=RH)
    const2 = lambda b: (0, 0)
    const3 = lambda b: (0, 0, 0)

    preds, recons = pl.pallas_call(
        kern,
        out_shape=(jax.ShapeDtypeStruct((B, TD, K), jnp.float32),
                   jax.ShapeDtypeStruct((B, N, TD), jnp.float32)),
        grid=(B,),
        in_specs=[
            pl.BlockSpec((None, N, K), lambda b: (b, 0, 0)),
            # GATv2
            pl.BlockSpec((N, E), const2),
            pl.BlockSpec((N, E), const2),
            pl.BlockSpec((1, E), const2),
            pl.BlockSpec((1, E), const2),
            pl.BlockSpec((K, K), const2),
            # time GRU
            pl.BlockSpec((N, 3 * N), const2),
            pl.BlockSpec((N, 3 * N), const2),
            pl.BlockSpec((1, 2 * N), const2),
            pl.BlockSpec((1, N), const2),
            pl.BlockSpec((1, N), const2),
            # forecast MLP
            pl.BlockSpec((2 * N, FH), const2),
            pl.BlockSpec((1, FH), const2),
            pl.BlockSpec((FH, TD), const2),
            pl.BlockSpec((1, TD), const2),
            # recon GRU
            pl.BlockSpec((K, 2 * N, 3 * RH), const3),
            pl.BlockSpec((RH, 3 * RH), const2),
            pl.BlockSpec((1, 2 * RH), const2),
            pl.BlockSpec((1, RH), const2),
            pl.BlockSpec((1, RH), const2),
            # recon final linear
            pl.BlockSpec((RH, TD), const2),
            pl.BlockSpec((1, TD), const2),
        ],
        out_specs=(
            pl.BlockSpec((None, TD, K), lambda b: (b, 0, 0)),
            pl.BlockSpec((None, N, TD), lambda b: (b, 0, 0)),
        ),
        scratch_shapes=[pltpu.VMEM((K, N), jnp.float32),
                        pltpu.VMEM((N, RH), jnp.float32)],
        compiler_params=pltpu.CompilerParams(dimension_semantics=("parallel",)),
    )(x,
      gp["w1t"], gp["w2t"], gp["blin"], gp["a"], gp["bias"],
      tp["wi"], tp["wh"], tp["brz"], tp["bin"], tp["bhn"],
      fp["w1t"], fp["b1"], fp["w2t"], fp["b2"],
      rwi3, rp["wh"], rp["brz"], rp["bin"], rp["bhn"],
      cp["wt"], cp["b"])

    return preds, recons


# ------------------------- deterministic parameter init ---------------------

def _uniform(key, shape, scale):
    return jax.random.uniform(key, shape, dtype=jnp.float32, minval=-scale, maxval=scale)


def init_gat_params(key, k, n):
    e = 2 * n                                   # GATv2 embed dim
    k1, k2, k3, k4 = jax.random.split(key, 4)
    s = 1.0 / float(n ** 0.5)
    w = _uniform(k1, (e, 2 * n), s)             # nn.Linear(2*window, embed_dim).weight
    b = _uniform(k2, (e,), s)
    a = _uniform(k3, (e, 1), 0.5)               # attention vector
    bias_kk = _uniform(k4, (k, k), 0.1)
    return dict(w1t=w[:, :n].T, w2t=w[:, n:].T, blin=b.reshape(1, e),
                a=a.reshape(1, e), bias=bias_kk)


def init_gru_params(key, in_dim, hid):
    """PyTorch-style GRU params, pre-fused host-side into [r|z|n] blocks."""
    ks = jax.random.split(key, 10)
    s = 1.0 / float(hid ** 0.5)
    wir = _uniform(ks[0], (hid, in_dim), s)
    wiz = _uniform(ks[1], (hid, in_dim), s)
    win = _uniform(ks[2], (hid, in_dim), s)
    whr = _uniform(ks[3], (hid, hid), s)
    whz = _uniform(ks[4], (hid, hid), s)
    whn = _uniform(ks[5], (hid, hid), s)
    b_ir, b_hr = _uniform(ks[6], (hid,), s), _uniform(ks[7], (hid,), s)
    b_iz, b_hz = _uniform(ks[8], (hid,), s), _uniform(ks[9], (hid,), s)
    b_in = jnp.zeros((hid,), jnp.float32)
    b_hn = jnp.zeros((hid,), jnp.float32)
    wi = jnp.concatenate([wir.T, wiz.T, win.T], axis=1)        # (in_dim, 3H)
    wh = jnp.concatenate([whr.T, whz.T, whn.T], axis=1)        # (H, 3H)
    brz = jnp.concatenate([b_ir + b_hr, b_iz + b_hz]).reshape(1, 2 * hid)
    return dict(wi=wi, wh=wh, brz=brz,
                bin=b_in.reshape(1, hid), bhn=b_hn.reshape(1, hid))


def init_mlp_params(key, in_dim, hid, out):
    k1, k2, k3, k4 = jax.random.split(key, 4)
    s1, s2 = 1.0 / float(in_dim ** 0.5), 1.0 / float(hid ** 0.5)
    return dict(w1t=_uniform(k1, (hid, in_dim), s1).T, b1=_uniform(k2, (hid,), s1).reshape(1, hid),
                w2t=_uniform(k3, (out, hid), s2).T, b2=_uniform(k4, (out,), s2).reshape(1, out))


def init_linear_params(key, in_dim, out):
    k1, k2 = jax.random.split(key, 2)
    s = 1.0 / float(in_dim ** 0.5)
    return dict(wt=_uniform(k1, (out, in_dim), s).T, b=_uniform(k2, (out,), s).reshape(1, out))


# ----------------------------------- main ------------------------------------

if __name__ == "__main__":
    B, N, K = 2, 16, 8            # batch, window_size, features_num
    TARGET = K                    # target_dims
    FORECAST_HID = 32
    RECON_HID = 32
    ALPHA = 0.2

    key = jax.random.PRNGKey(0)
    kx, kg, kt, kf, kr, kfc = jax.random.split(key, 6)
    x = jax.random.normal(kx, (B, N, K), dtype=jnp.float32)

    params = dict(
        gat=init_gat_params(kg, K, N),
        time_gru=init_gru_params(kt, N, N),                       # in=window, hid=window
        forecast=init_mlp_params(kf, 2 * N, FORECAST_HID, TARGET),
        recon_gru=init_gru_params(kr, K * 2 * N, RECON_HID),
        recon_fc=init_linear_params(kfc, RECON_HID, TARGET),
    )

    fwd = jax.jit(lambda xx, pp: pt_stad_forward(xx, pp, ALPHA))
    preds, recons = fwd(x, params)
    jax.block_until_ready(preds)
    jax.block_until_ready(recons)

    assert preds.shape == (B, TARGET, K), preds.shape
    assert recons.shape == (B, N, TARGET), recons.shape
    assert bool(jnp.all(jnp.isfinite(preds))) and bool(jnp.all(jnp.isfinite(recons)))
    print("KERNEL_OK")
</pallas_src>

<mosaic_0001>
module attributes {stable_mosaic.version = 11 : i64} {
  func.func @_stad_fused_kernel(%arg0: i32, %arg1: memref<1x16x8xf32, #tpu.memory_space<vmem>>, %arg2: memref<16x32xf32, #tpu.memory_space<vmem>>, %arg3: memref<16x32xf32, #tpu.memory_space<vmem>>, %arg4: memref<1x32xf32, #tpu.memory_space<vmem>>, %arg5: memref<1x32xf32, #tpu.memory_space<vmem>>, %arg6: memref<8x8xf32, #tpu.memory_space<vmem>>, %arg7: memref<16x48xf32, #tpu.memory_space<vmem>>, %arg8: memref<16x48xf32, #tpu.memory_space<vmem>>, %arg9: memref<1x32xf32, #tpu.memory_space<vmem>>, %arg10: memref<1x16xf32, #tpu.memory_space<vmem>>, %arg11: memref<1x16xf32, #tpu.memory_space<vmem>>, %arg12: memref<32x32xf32, #tpu.memory_space<vmem>>, %arg13: memref<1x32xf32, #tpu.memory_space<vmem>>, %arg14: memref<32x8xf32, #tpu.memory_space<vmem>>, %arg15: memref<1x8xf32, #tpu.memory_space<vmem>>, %arg16: memref<8x32x96xf32, #tpu.memory_space<vmem>>, %arg17: memref<32x96xf32, #tpu.memory_space<vmem>>, %arg18: memref<1x64xf32, #tpu.memory_space<vmem>>, %arg19: memref<1x32xf32, #tpu.memory_space<vmem>>, %arg20: memref<1x32xf32, #tpu.memory_space<vmem>>, %arg21: memref<32x8xf32, #tpu.memory_space<vmem>>, %arg22: memref<1x8xf32, #tpu.memory_space<vmem>>, %arg23: memref<1x8x8xf32, #tpu.memory_space<vmem>>, %arg24: memref<1x16x8xf32, #tpu.memory_space<vmem>>, %arg25: memref<8x16xf32, #tpu.memory_space<vmem>>, %arg26: memref<16x32xf32, #tpu.memory_space<vmem>>) attributes {dimension_semantics = [#tpu.dimension_semantics<parallel>], iteration_bounds = array<i64: 2>, scalar_prefetch = 0 : i64, scratch_operands = 2 : i64, tpu.core_type = #tpu.core_type<tc>, window_params = [{transform_indices = @transform_0, window_bounds = array<i64: 1, 16, 8>}, {pipeline_mode = #tpu.pipeline_mode<synchronous>, transform_indices = @transform_1, window_bounds = array<i64: 16, 32>}, {pipeline_mode = #tpu.pipeline_mode<synchronous>, transform_indices = @transform_2, window_bounds = array<i64: 16, 32>}, {pipeline_mode = #tpu.pipeline_mode<synchronous>, transform_indices = @transform_3, window_bounds = array<i64: 1, 32>}, {pipeline_mode = #tpu.pipeline_mode<synchronous>, transform_indices = @transform_4, window_bounds = array<i64: 1, 32>}, {pipeline_mode = #tpu.pipeline_mode<synchronous>, transform_indices = @transform_5, window_bounds = array<i64: 8, 8>}, {pipeline_mode = #tpu.pipeline_mode<synchronous>, transform_indices = @transform_6, window_bounds = array<i64: 16, 48>}, {pipeline_mode = #tpu.pipeline_mode<synchronous>, transform_indices = @transform_7, window_bounds = array<i64: 16, 48>}, {pipeline_mode = #tpu.pipeline_mode<synchronous>, transform_indices = @transform_8, window_bounds = array<i64: 1, 32>}, {pipeline_mode = #tpu.pipeline_mode<synchronous>, transform_indices = @transform_9, window_bounds = array<i64: 1, 16>}, {pipeline_mode = #tpu.pipeline_mode<synchronous>, transform_indices = @transform_10, window_bounds = array<i64: 1, 16>}, {pipeline_mode = #tpu.pipeline_mode<synchronous>, transform_indices = @transform_11, window_bounds = array<i64: 32, 32>}, {pipeline_mode = #tpu.pipeline_mode<synchronous>, transform_indices = @transform_12, window_bounds = array<i64: 1, 32>}, {pipeline_mode = #tpu.pipeline_mode<synchronous>, transform_indices = @transform_13, window_bounds = array<i64: 32, 8>}, {pipeline_mode = #tpu.pipeline_mode<synchronous>, transform_indices = @transform_14, window_bounds = array<i64: 1, 8>}, {pipeline_mode = #tpu.pipeline_mode<synchronous>, transform_indices = @transform_15, window_bounds = array<i64: 8, 32, 96>}, {pipeline_mode = #tpu.pipeline_mode<synchronous>, transform_indices = @transform_16, window_bounds = array<i64: 32, 96>}, {pipeline_mode = #tpu.pipeline_mode<synchronous>, transform_indices = @transform_17, window_bounds = array<i64: 1, 64>}, {pipeline_mode = #tpu.pipeline_mode<synchronous>, transform_indices = @transform_18, window_bounds = array<i64: 1, 32>}, {pipeline_mode = #tpu.pipeline_mode<synchronous>, transform_indices = @transform_19, window_bounds = array<i64: 1, 32>}, {pipeline_mode = #tpu.pipeline_mode<synchronous>, transform_indices = @transform_20, window_bounds = array<i64: 32, 8>}, {pipeline_mode = #tpu.pipeline_mode<synchronous>, transform_indices = @transform_21, window_bounds = array<i64: 1, 8>}, {transform_indices = @transform_22, window_bounds = array<i64: 1, 8, 8>}, {transform_indices = @transform_23, window_bounds = array<i64: 1, 16, 8>}]} {
    %c0 = arith.constant 0 : index
    %c0_0 = arith.constant 0 : index
    %c0_1 = arith.constant 0 : index
    %0 = vector.load %arg1[%c0, %c0_0, %c0_1] : memref<1x16x8xf32, #tpu.memory_space<vmem>>, vector<1x16x8xf32>
    %1 = vector.shape_cast %0 : vector<1x16x8xf32> to vector<16x8xf32>
    %2 = tpu.transpose %1, [1, 0] : vector<16x8xf32> -> vector<8x16xf32>
    %c0_2 = arith.constant 0 : index
    %c0_3 = arith.constant 0 : index
    %3 = vector.load %arg2[%c0_2, %c0_3] : memref<16x32xf32, #tpu.memory_space<vmem>>, vector<16x32xf32>
    %cst = arith.constant dense<0.000000e+00> : vector<8x32xf32>
    %4 = tpu.matmul %2, %3, %cst {dimension_numbers = #tpu.dot_dimension_numbers<[1], [0], [0], [1], [0, 0, 1, 1], [], []>} : vector<8x16xf32>, vector<16x32xf32>, vector<8x32xf32> -> vector<8x32xf32>
    %c0_4 = arith.constant 0 : index
    %c0_5 = arith.constant 0 : index
    %5 = vector.load %arg3[%c0_4, %c0_5] : memref<16x32xf32, #tpu.memory_space<vmem>>, vector<16x32xf32>
    %cst_6 = arith.constant dense<0.000000e+00> : vector<8x32xf32>
    %6 = tpu.matmul %2, %5, %cst_6 {dimension_numbers = #tpu.dot_dimension_numbers<[1], [0], [0], [1], [0, 0, 1, 1], [], []>} : vector<8x16xf32>, vector<16x32xf32>, vector<8x32xf32> -> vector<8x32xf32>
    %c0_7 = arith.constant 0 : index
    %c0_8 = arith.constant 0 : index
    %7 = vector.load %arg4[%c0_7, %c0_8] : memref<1x32xf32, #tpu.memory_space<vmem>>, vector<1x32xf32>
    %8 = vector.broadcast %7 : vector<1x32xf32> to vector<8x32xf32>
    %9 = arith.addf %6, %8 : vector<8x32xf32>
    %10 = vector.shape_cast %4 : vector<8x32xf32> to vector<8x1x32xf32>
    %11 = vector.shape_cast %9 : vector<8x32xf32> to vector<1x8x32xf32>
    %12 = vector.broadcast %10 : vector<8x1x32xf32> to vector<8x8x32xf32>
    %13 = vector.broadcast %11 : vector<1x8x32xf32> to vector<8x8x32xf32>
    %14 = arith.addf %12, %13 : vector<8x8x32xf32>
    %cst_9 = arith.constant 0.000000e+00 : f32
    %15 = vector.broadcast %cst_9 : f32 to vector<8x8x32xf32>
    %16 = arith.cmpf ogt, %14, %15 : vector<8x8x32xf32>
    %cst_10 = arith.constant 2.000000e-01 : f32
    %17 = vector.broadcast %cst_10 : f32 to vector<8x8x32xf32>
    %18 = arith.mulf %17, %14 : vector<8x8x32xf32>
    %19 = arith.select %16, %14, %18 : vector<8x8x32xi1>, vector<8x8x32xf32>
    %c0_11 = arith.constant 0 : index
    %c0_12 = arith.constant 0 : index
    %20 = vector.load %arg5[%c0_11, %c0_12] : memref<1x32xf32, #tpu.memory_space<vmem>>, vector<1x32xf32>
    %21 = vector.shape_cast %20 : vector<1x32xf32> to vector<1x1x32xf32>
    %22 = vector.broadcast %21 : vector<1x1x32xf32> to vector<8x8x32xf32>
    %23 = arith.mulf %19, %22 : vector<8x8x32xf32>
    %cst_13 = arith.constant dense<0.000000e+00> : vector<8x8xf32>
    %24 = vector.multi_reduction <add>, %23, %cst_13 [2] : vector<8x8x32xf32> to vector<8x8xf32>
    %c0_14 = arith.constant 0 : index
    %c0_15 = arith.constant 0 : index
    %25 = vector.load %arg6[%c0_14, %c0_15] : memref<8x8xf32, #tpu.memory_space<vmem>>, vector<8x8xf32>
    %26 = arith.addf %24, %25 : vector<8x8xf32>
    %cst_16 = arith.constant dense<0xFF800000> : vector<8xf32>
    %27 = vector.multi_reduction <maximumf>, %26, %cst_16 [1] : vector<8x8xf32> to vector<8xf32>
    %28 = vector.shape_cast %27 : vector<8xf32> to vector<8x1xf32>
    %29 = vector.broadcast %28 : vector<8x1xf32> to vector<8x8xf32>
    %30 = arith.subf %26, %29 : vector<8x8xf32>
    %31 = math.exp %30 : vector<8x8xf32>
    %cst_17 = arith.constant dense<0.000000e+00> : vector<8xf32>
    %32 = vector.multi_reduction <add>, %31, %cst_17 [1] : vector<8x8xf32> to vector<8xf32>
    %33 = vector.shape_cast %32 : vector<8xf32> to vector<8x1xf32>
    %34 = tpu.reciprocal %33 {approx = true} : vector<8x1xf32> -> vector<8x1xf32>
    %35 = vector.broadcast %34 : vector<8x1xf32> to vector<8x8xf32>
    %36 = arith.mulf %31, %35 : vector<8x8xf32>
    %cst_18 = arith.constant dense<0.000000e+00> : vector<8x16xf32>
    %37 = tpu.matmul %36, %2, %cst_18 {dimension_numbers = #tpu.dot_dimension_numbers<[1], [0], [0], [1], [0, 0, 1, 1], [], []>} : vector<8x8xf32>, vector<8x16xf32>, vector<8x16xf32> -> vector<8x16xf32>
    %38 = arith.negf %37 : vector<8x16xf32>
    %39 = math.exp %38 : vector<8x16xf32>
    %cst_19 = arith.constant 1.000000e+00 : f32
    %40 = vector.broadcast %cst_19 : f32 to vector<8x16xf32>
    %41 = arith.addf %40, %39 : vector<8x16xf32>
    %42 = arith.divf %40, %41 : vector<8x16xf32>
    %c0_20 = arith.constant 0 : index
    %c0_21 = arith.constant 0 : index
    %43 = vector.load %arg7[%c0_20, %c0_21] : memref<16x48xf32, #tpu.memory_space<vmem>>, vector<16x48xf32>
    %cst_22 = arith.constant dense<0.000000e+00> : vector<8x48xf32>
    %44 = tpu.matmul %2, %43, %cst_22 {dimension_numbers = #tpu.dot_dimension_numbers<[1], [0], [0], [1], [0, 0, 1, 1], [], []>} : vector<8x16xf32>, vector<16x48xf32>, vector<8x48xf32> -> vector<8x48xf32>
    %c0_23 = arith.constant 0 : index
    %c0_24 = arith.constant 0 : index
    %45 = vector.load %arg8[%c0_23, %c0_24] : memref<16x48xf32, #tpu.memory_space<vmem>>, vector<16x48xf32>
    %c0_25 = arith.constant 0 : index
    %c0_26 = arith.constant 0 : index
    %46 = vector.load %arg9[%c0_25, %c0_26] : memref<1x32xf32, #tpu.memory_space<vmem>>, vector<1x32xf32>
    %c0_27 = arith.constant 0 : index
    %c0_28 = arith.constant 0 : index
    %47 = vector.load %arg10[%c0_27, %c0_28] : memref<1x16xf32, #tpu.memory_space<vmem>>, vector<1x16xf32>
    %c0_29 = arith.constant 0 : index
    %c0_30 = arith.constant 0 : index
    %48 = vector.load %arg11[%c0_29, %c0_30] : memref<1x16xf32, #tpu.memory_space<vmem>>, vector<1x16xf32>
    %cst_31 = arith.constant 0.000000e+00 : f32
    %49 = vector.broadcast %cst_31 : f32 to vector<1x16xf32>
    %50 = vector.extract_strided_slice %44 {offsets = [0, 0], sizes = [1, 48], strides = [1, 1]} : vector<8x48xf32> to vector<1x48xf32>
    %cst_32 = arith.constant dense<0.000000e+00> : vector<1x48xf32>
    %51 = tpu.matmul %49, %45, %cst_32 {dimension_numbers = #tpu.dot_dimension_numbers<[1], [0], [0], [1], [0, 0, 1, 1], [], []>} : vector<1x16xf32>, vector<16x48xf32>, vector<1x48xf32> -> vector<1x48xf32>
    %52 = vector.extract_strided_slice %50 {offsets = [0, 0], sizes = [1, 32], strides = [1, 1]} : vector<1x48xf32> to vector<1x32xf32>
    %53 = vector.extract_strided_slice %51 {offsets = [0, 0], sizes = [1, 32], strides = [1, 1]} : vector<1x48xf32> to vector<1x32xf32>
    %54 = arith.addf %52, %53 : vector<1x32xf32>
    %55 = arith.addf %54, %46 : vector<1x32xf32>
    %56 = arith.negf %55 : vector<1x32xf32>
    %57 = math.exp %56 : vector<1x32xf32>
    %cst_33 = arith.constant 1.000000e+00 : f32
    %58 = vector.broadcast %cst_33 : f32 to vector<1x32xf32>
    %59 = arith.addf %58, %57 : vector<1x32xf32>
    %60 = arith.divf %58, %59 : vector<1x32xf32>
    %61 = vector.extract_strided_slice %60 {offsets = [0, 0], sizes = [1, 16], strides = [1, 1]} : vector<1x32xf32> to vector<1x16xf32>
    %62 = vector.extract_strided_slice %60 {offsets = [0, 16], sizes = [1, 16], strides = [1, 1]} : vector<1x32xf32> to vector<1x16xf32>
    %63 = vector.extract_strided_slice %50 {offsets = [0, 32], sizes = [1, 16], strides = [1, 1]} : vector<1x48xf32> to vector<1x16xf32>
    %64 = arith.addf %63, %47 : vector<1x16xf32>
    %65 = vector.extract_strided_slice %51 {offsets = [0, 32], sizes = [1, 16], strides = [1, 1]} : vector<1x48xf32> to vector<1x16xf32>
    %66 = arith.addf %65, %48 : vector<1x16xf32>
    %67 = arith.mulf %61, %66 : vector<1x16xf32>
    %68 = arith.addf %64, %67 : vector<1x16xf32>
    %69 = math.tanh %68 : vector<1x16xf32>
    %cst_34 = arith.constant 1.000000e+00 : f32
    %70 = vector.broadcast %cst_34 : f32 to vector<1x16xf32>
    %71 = arith.subf %70, %62 : vector<1x16xf32>
    %72 = arith.mulf %71, %69 : vector<1x16xf32>
    %73 = arith.mulf %62, %49 : vector<1x16xf32>
    %74 = arith.addf %72, %73 : vector<1x16xf32>
    %c0_35 = arith.constant 0 : index
    %c0_36 = arith.constant 0 : index
    %75 = vector.load %arg25[%c0_35, %c0_36] : memref<8x16xf32, #tpu.memory_space<vmem>>, vector<1x16xf32>
    tpu.vector_store %arg25[%c0_35, %c0_36], %74 {strides = array<i32>} : memref<8x16xf32, #tpu.memory_space<vmem>>, vector<1x16xf32>,
    %76 = vector.extract_strided_slice %44 {offsets = [1, 0], sizes = [1, 48], strides = [1, 1]} : vector<8x48xf32> to vector<1x48xf32>
    %cst_37 = arith.constant dense<0.000000e+00> : vector<1x48xf32>
    %77 = tpu.matmul %74, %45, %cst_37 {dimension_numbers = #tpu.dot_dimension_numbers<[1], [0], [0], [1], [0, 0, 1, 1], [], []>} : vector<1x16xf32>, vector<16x48xf32>, vector<1x48xf32> -> vector<1x48xf32>
    %78 = vector.extract_strided_slice %76 {offsets = [0, 0], sizes = [1, 32], strides = [1, 1]} : vector<1x48xf32> to vector<1x32xf32>
    %79 = vector.extract_strided_slice %77 {offsets = [0, 0], sizes = [1, 32], strides = [1, 1]} : vector<1x48xf32> to vector<1x32xf32>
    %80 = arith.addf %78, %79 : vector<1x32xf32>
    %81 = arith.addf %80, %46 : vector<1x32xf32>
    %82 = arith.negf %81 : vector<1x32xf32>
    %83 = math.exp %82 : vector<1x32xf32>
    %cst_38 = arith.constant 1.000000e+00 : f32
    %84 = vector.broadcast %cst_38 : f32 to vector<1x32xf32>
    %85 = arith.addf %84, %83 : vector<1x32xf32>
    %86 = arith.divf %84, %85 : vector<1x32xf32>
    %87 = vector.extract_strided_slice %86 {offsets = [0, 0], sizes = [1, 16], strides = [1, 1]} : vector<1x32xf32> to vector<1x16xf32>
    %88 = vector.extract_strided_slice %86 {offsets = [0, 16], sizes = [1, 16], strides = [1, 1]} : vector<1x32xf32> to vector<1x16xf32>
    %89 = vector.extract_strided_slice %76 {offsets = [0, 32], sizes = [1, 16], strides = [1, 1]} : vector<1x48xf32> to vector<1x16xf32>
    %90 = arith.addf %89, %47 : vector<1x16xf32>
    %91 = vector.extract_strided_slice %77 {offsets = [0, 32], sizes = [1, 16], strides = [1, 1]} : vector<1x48xf32> to vector<1x16xf32>
    %92 = arith.addf %91, %48 : vector<1x16xf32>
    %93 = arith.mulf %87, %92 : vector<1x16xf32>
    %94 = arith.addf %90, %93 : vector<1x16xf32>
    %95 = math.tanh %94 : vector<1x16xf32>
    %cst_39 = arith.constant 1.000000e+00 : f32
    %96 = vector.broadcast %cst_39 : f32 to vector<1x16xf32>
    %97 = arith.subf %96, %88 : vector<1x16xf32>
    %98 = arith.mulf %97, %95 : vector<1x16xf32>
    %99 = arith.mulf %88, %74 : vector<1x16xf32>
    %100 = arith.addf %98, %99 : vector<1x16xf32>
    %c1 = arith.constant 1 : index
    %c0_40 = arith.constant 0 : index
    %101 = vector.load %arg25[%c1, %c0_40] : memref<8x16xf32, #tpu.memory_space<vmem>>, vector<1x16xf32>
    tpu.vector_store %arg25[%c1, %c0_40], %100 {strides = array<i32>} : memref<8x16xf32, #tpu.memory_space<vmem>>, vector<1x16xf32>,
    %102 = vector.extract_strided_slice %44 {offsets = [2, 0], sizes = [1, 48], strides = [1, 1]} : vector<8x48xf32> to vector<1x48xf32>
    %cst_41 = arith.constant dense<0.000000e+00> : vector<1x48xf32>
    %103 = tpu.matmul %100, %45, %cst_41 {dimension_numbers = #tpu.dot_dimension_numbers<[1], [0], [0], [1], [0, 0, 1, 1], [], []>} : vector<1x16xf32>, vector<16x48xf32>, vector<1x48xf32> -> vector<1x48xf32>
    %104 = vector.extract_strided_slice %102 {offsets = [0, 0], sizes = [1, 32], strides = [1, 1]} : vector<1x48xf32> to vector<1x32xf32>
    %105 = vector.extract_strided_slice %103 {offsets = [0, 0], sizes = [1, 32], strides = [1, 1]} : vector<1x48xf32> to vector<1x32xf32>
    %106 = arith.addf %104, %105 : vector<1x32xf32>
    %107 = arith.addf %106, %46 : vector<1x32xf32>
    %108 = arith.negf %107 : vector<1x32xf32>
    %109 = math.exp %108 : vector<1x32xf32>
    %cst_42 = arith.constant 1.000000e+00 : f32
    %110 = vector.broadcast %cst_42 : f32 to vector<1x32xf32>
    %111 = arith.addf %110, %109 : vector<1x32xf32>
    %112 = arith.divf %110, %111 : vector<1x32xf32>
    %113 = vector.extract_strided_slice %112 {offsets = [0, 0], sizes = [1, 16], strides = [1, 1]} : vector<1x32xf32> to vector<1x16xf32>
    %114 = vector.extract_strided_slice %112 {offsets = [0, 16], sizes = [1, 16], strides = [1, 1]} : vector<1x32xf32> to vector<1x16xf32>
    %115 = vector.extract_strided_slice %102 {offsets = [0, 32], sizes = [1, 16], strides = [1, 1]} : vector<1x48xf32> to vector<1x16xf32>
    %116 = arith.addf %115, %47 : vector<1x16xf32>
    %117 = vector.extract_strided_slice %103 {offsets = [0, 32], sizes = [1, 16], strides = [1, 1]} : vector<1x48xf32> to vector<1x16xf32>
    %118 = arith.addf %117, %48 : vector<1x16xf32>
    %119 = arith.mulf %113, %118 : vector<1x16xf32>
    %120 = arith.addf %116, %119 : vector<1x16xf32>
    %121 = math.tanh %120 : vector<1x16xf32>
    %cst_43 = arith.constant 1.000000e+00 : f32
    %122 = vector.broadcast %cst_43 : f32 to vector<1x16xf32>
    %123 = arith.subf %122, %114 : vector<1x16xf32>
    %124 = arith.mulf %123, %121 : vector<1x16xf32>
    %125 = arith.mulf %114, %100 : vector<1x16xf32>
    %126 = arith.addf %124, %125 : vector<1x16xf32>
    %c2 = arith.constant 2 : index
    %c0_44 = arith.constant 0 : index
    %127 = vector.load %arg25[%c2, %c0_44] : memref<8x16xf32, #tpu.memory_space<vmem>>, vector<1x16xf32>
    tpu.vector_store %arg25[%c2, %c0_44], %126 {strides = array<i32>} : memref<8x16xf32, #tpu.memory_space<vmem>>, vector<1x16xf32>,
    %128 = vector.extract_strided_slice %44 {offsets = [3, 0], sizes = [1, 48], strides = [1, 1]} : vector<8x48xf32> to vector<1x48xf32>
    %cst_45 = arith.constant dense<0.000000e+00> : vector<1x48xf32>
    %129 = tpu.matmul %126, %45, %cst_45 {dimension_numbers = #tpu.dot_dimension_numbers<[1], [0], [0], [1], [0, 0, 1, 1], [], []>} : vector<1x16xf32>, vector<16x48xf32>, vector<1x48xf32> -> vector<1x48xf32>
    %130 = vector.extract_strided_slice %128 {offsets = [0, 0], sizes = [1, 32], strides = [1, 1]} : vector<1x48xf32> to vector<1x32xf32>
    %131 = vector.extract_strided_slice %129 {offsets = [0, 0], sizes = [1, 32], strides = [1, 1]} : vector<1x48xf32> to vector<1x32xf32>
    %132 = arith.addf %130, %131 : vector<1x32xf32>
    %133 = arith.addf %132, %46 : vector<1x32xf32>
    %134 = arith.negf %133 : vector<1x32xf32>
    %135 = math.exp %134 : vector<1x32xf32>
    %cst_46 = arith.constant 1.000000e+00 : f32
    %136 = vector.broadcast %cst_46 : f32 to vector<1x32xf32>
    %137 = arith.addf %136, %135 : vector<1x32xf32>
    %138 = arith.divf %136, %137 : vector<1x32xf32>
    %139 = vector.extract_strided_slice %138 {offsets = [0, 0], sizes = [1, 16], strides = [1, 1]} : vector<1x32xf32> to vector<1x16xf32>
    %140 = vector.extract_strided_slice %138 {offsets = [0, 16], sizes = [1, 16], strides = [1, 1]} : vector<1x32xf32> to vector<1x16xf32>
    %141 = vector.extract_strided_slice %128 {offsets = [0, 32], sizes = [1, 16], strides = [1, 1]} : vector<1x48xf32> to vector<1x16xf32>
    %142 = arith.addf %141, %47 : vector<1x16xf32>
    %143 = vector.extract_strided_slice %129 {offsets = [0, 32], sizes = [1, 16], strides = [1, 1]} : vector<1x48xf32> to vector<1x16xf32>
    %144 = arith.addf %143, %48 : vector<1x16xf32>
    %145 = arith.mulf %139, %144 : vector<1x16xf32>
    %146 = arith.addf %142, %145 : vector<1x16xf32>
    %147 = math.tanh %146 : vector<1x16xf32>
    %cst_47 = arith.constant 1.000000e+00 : f32
    %148 = vector.broadcast %cst_47 : f32 to vector<1x16xf32>
    %149 = arith.subf %148, %140 : vector<1x16xf32>
    %150 = arith.mulf %149, %147 : vector<1x16xf32>
    %151 = arith.mulf %140, %126 : vector<1x16xf32>
    %152 = arith.addf %150, %151 : vector<1x16xf32>
    %c3 = arith.constant 3 : index
    %c0_48 = arith.constant 0 : index
    %153 = vector.load %arg25[%c3, %c0_48] : memref<8x16xf32, #tpu.memory_space<vmem>>, vector<1x16xf32>
    tpu.vector_store %arg25[%c3, %c0_48], %152 {strides = array<i32>} : memref<8x16xf32, #tpu.memory_space<vmem>>, vector<1x16xf32>,
    %154 = vector.extract_strided_slice %44 {offsets = [4, 0], sizes = [1, 48], strides = [1, 1]} : vector<8x48xf32> to vector<1x48xf32>
    %cst_49 = arith.constant dense<0.000000e+00> : vector<1x48xf32>
    %155 = tpu.matmul %152, %45, %cst_49 {dimension_numbers = #tpu.dot_dimension_numbers<[1], [0], [0], [1], [0, 0, 1, 1], [], []>} : vector<1x16xf32>, vector<16x48xf32>, vector<1x48xf32> -> vector<1x48xf32>
    %156 = vector.extract_strided_slice %154 {offsets = [0, 0], sizes = [1, 32], strides = [1, 1]} : vector<1x48xf32> to vector<1x32xf32>
    %157 = vector.extract_strided_slice %155 {offsets = [0, 0], sizes = [1, 32], strides = [1, 1]} : vector<1x48xf32> to vector<1x32xf32>
    %158 = arith.addf %156, %157 : vector<1x32xf32>
    %159 = arith.addf %158, %46 : vector<1x32xf32>
    %160 = arith.negf %159 : vector<1x32xf32>
    %161 = math.exp %160 : vector<1x32xf32>
    %cst_50 = arith.constant 1.000000e+00 : f32
    %162 = vector.broadcast %cst_50 : f32 to vector<1x32xf32>
    %163 = arith.addf %162, %161 : vector<1x32xf32>
    %164 = arith.divf %162, %163 : vector<1x32xf32>
    %165 = vector.extract_strided_slice %164 {offsets = [0, 0], sizes = [1, 16], strides = [1, 1]} : vector<1x32xf32> to vector<1x16xf32>
    %166 = vector.extract_strided_slice %164 {offsets = [0, 16], sizes = [1, 16], strides = [1, 1]} : vector<1x32xf32> to vector<1x16xf32>
    %167 = vector.extract_strided_slice %154 {offsets = [0, 32], sizes = [1, 16], strides = [1, 1]} : vector<1x48xf32> to vector<1x16xf32>
    %168 = arith.addf %167, %47 : vector<1x16xf32>
    %169 = vector.extract_strided_slice %155 {offsets = [0, 32], sizes = [1, 16], strides = [1, 1]} : vector<1x48xf32> to vector<1x16xf32>
    %170 = arith.addf %169, %48 : vector<1x16xf32>
    %171 = arith.mulf %165, %170 : vector<1x16xf32>
    %172 = arith.addf %168, %171 : vector<1x16xf32>
    %173 = math.tanh %172 : vector<1x16xf32>
    %cst_51 = arith.constant 1.000000e+00 : f32
    %174 = vector.broadcast %cst_51 : f32 to vector<1x16xf32>
    %175 = arith.subf %174, %166 : vector<1x16xf32>
    %176 = arith.mulf %175, %173 : vector<1x16xf32>
    %177 = arith.mulf %166, %152 : vector<1x16xf32>
    %178 = arith.addf %176, %177 : vector<1x16xf32>
    %c4 = arith.constant 4 : index
    %c0_52 = arith.constant 0 : index
    %179 = vector.load %arg25[%c4, %c0_52] : memref<8x16xf32, #tpu.memory_space<vmem>>, vector<1x16xf32>
    tpu.vector_store %arg25[%c4, %c0_52], %178 {strides = array<i32>} : memref<8x16xf32, #tpu.memory_space<vmem>>, vector<1x16xf32>,
    %180 = vector.extract_strided_slice %44 {offsets = [5, 0], sizes = [1, 48], strides = [1, 1]} : vector<8x48xf32> to vector<1x48xf32>
    %cst_53 = arith.constant dense<0.000000e+00> : vector<1x48xf32>
    %181 = tpu.matmul %178, %45, %cst_53 {dimension_numbers = #tpu.dot_dimension_numbers<[1], [0], [0], [1], [0, 0, 1, 1], [], []>} : vector<1x16xf32>, vector<16x48xf32>, vector<1x48xf32> -> vector<1x48xf32>
    %182 = vector.extract_strided_slice %180 {offsets = [0, 0], sizes = [1, 32], strides = [1, 1]} : vector<1x48xf32> to vector<1x32xf32>
    %183 = vector.extract_strided_slice %181 {offsets = [0, 0], sizes = [1, 32], strides = [1, 1]} : vector<1x48xf32> to vector<1x32xf32>
    %184 = arith.addf %182, %183 : vector<1x32xf32>
    %185 = arith.addf %184, %46 : vector<1x32xf32>
    %186 = arith.negf %185 : vector<1x32xf32>
    %187 = math.exp %186 : vector<1x32xf32>
    %cst_54 = arith.constant 1.000000e+00 : f32
    %188 = vector.broadcast %cst_54 : f32 to vector<1x32xf32>
    %189 = arith.addf %188, %187 : vector<1x32xf32>
    %190 = arith.divf %188, %189 : vector<1x32xf32>
    %191 = vector.extract_strided_slice %190 {offsets = [0, 0], sizes = [1, 16], strides = [1, 1]} : vector<1x32xf32> to vector<1x16xf32>
    %192 = vector.extract_strided_slice %190 {offsets = [0, 16], sizes = [1, 16], strides = [1, 1]} : vector<1x32xf32> to vector<1x16xf32>
    %193 = vector.extract_strided_slice %180 {offsets = [0, 32], sizes = [1, 16], strides = [1, 1]} : vector<1x48xf32> to vector<1x16xf32>
    %194 = arith.addf %193, %47 : vector<1x16xf32>
    %195 = vector.extract_strided_slice %181 {offsets = [0, 32], sizes = [1, 16], strides = [1, 1]} : vector<1x48xf32> to vector<1x16xf32>
    %196 = arith.addf %195, %48 : vector<1x16xf32>
    %197 = arith.mulf %191, %196 : vector<1x16xf32>
    %198 = arith.addf %194, %197 : vector<1x16xf32>
    %199 = math.tanh %198 : vector<1x16xf32>
    %cst_55 = arith.constant 1.000000e+00 : f32
    %200 = vector.broadcast %cst_55 : f32 to vector<1x16xf32>
    %201 = arith.subf %200, %192 : vector<1x16xf32>
    %202 = arith.mulf %201, %199 : vector<1x16xf32>
    %203 = arith.mulf %192, %178 : vector<1x16xf32>
    %204 = arith.addf %202, %203 : vector<1x16xf32>
    %c5 = arith.constant 5 : index
    %c0_56 = arith.constant 0 : index
    %205 = vector.load %arg25[%c5, %c0_56] : memref<8x16xf32, #tpu.memory_space<vmem>>, vector<1x16xf32>
    tpu.vector_store %arg25[%c5, %c0_56], %204 {strides = array<i32>} : memref<8x16xf32, #tpu.memory_space<vmem>>, vector<1x16xf32>,
    %206 = vector.extract_strided_slice %44 {offsets = [6, 0], sizes = [1, 48], strides = [1, 1]} : vector<8x48xf32> to vector<1x48xf32>
    %cst_57 = arith.constant dense<0.000000e+00> : vector<1x48xf32>
    %207 = tpu.matmul %204, %45, %cst_57 {dimension_numbers = #tpu.dot_dimension_numbers<[1], [0], [0], [1], [0, 0, 1, 1], [], []>} : vector<1x16xf32>, vector<16x48xf32>, vector<1x48xf32> -> vector<1x48xf32>
    %208 = vector.extract_strided_slice %206 {offsets = [0, 0], sizes = [1, 32], strides = [1, 1]} : vector<1x48xf32> to vector<1x32xf32>
    %209 = vector.extract_strided_slice %207 {offsets = [0, 0], sizes = [1, 32], strides = [1, 1]} : vector<1x48xf32> to vector<1x32xf32>
    %210 = arith.addf %208, %209 : vector<1x32xf32>
    %211 = arith.addf %210, %46 : vector<1x32xf32>
    %212 = arith.negf %211 : vector<1x32xf32>
    %213 = math.exp %212 : vector<1x32xf32>
    %cst_58 = arith.constant 1.000000e+00 : f32
    %214 = vector.broadcast %cst_58 : f32 to vector<1x32xf32>
    %215 = arith.addf %214, %213 : vector<1x32xf32>
    %216 = arith.divf %214, %215 : vector<1x32xf32>
    %217 = vector.extract_strided_slice %216 {offsets = [0, 0], sizes = [1, 16], strides = [1, 1]} : vector<1x32xf32> to vector<1x16xf32>
    %218 = vector.extract_strided_slice %216 {offsets = [0, 16], sizes = [1, 16], strides = [1, 1]} : vector<1x32xf32> to vector<1x16xf32>
    %219 = vector.extract_strided_slice %206 {offsets = [0, 32], sizes = [1, 16], strides = [1, 1]} : vector<1x48xf32> to vector<1x16xf32>
    %220 = arith.addf %219, %47 : vector<1x16xf32>
    %221 = vector.extract_strided_slice %207 {offsets = [0, 32], sizes = [1, 16], strides = [1, 1]} : vector<1x48xf32> to vector<1x16xf32>
    %222 = arith.addf %221, %48 : vector<1x16xf32>
    %223 = arith.mulf %217, %222 : vector<1x16xf32>
    %224 = arith.addf %220, %223 : vector<1x16xf32>
    %225 = math.tanh %224 : vector<1x16xf32>
    %cst_59 = arith.constant 1.000000e+00 : f32
    %226 = vector.broadcast %cst_59 : f32 to vector<1x16xf32>
    %227 = arith.subf %226, %218 : vector<1x16xf32>
    %228 = arith.mulf %227, %225 : vector<1x16xf32>
    %229 = arith.mulf %218, %204 : vector<1x16xf32>
    %230 = arith.addf %228, %229 : vector<1x16xf32>
    %c6 = arith.constant 6 : index
    %c0_60 = arith.constant 0 : index
    %231 = vector.load %arg25[%c6, %c0_60] : memref<8x16xf32, #tpu.memory_space<vmem>>, vector<1x16xf32>
    tpu.vector_store %arg25[%c6, %c0_60], %230 {strides = array<i32>} : memref<8x16xf32, #tpu.memory_space<vmem>>, vector<1x16xf32>,
    %232 = vector.extract_strided_slice %44 {offsets = [7, 0], sizes = [1, 48], strides = [1, 1]} : vector<8x48xf32> to vector<1x48xf32>
    %cst_61 = arith.constant dense<0.000000e+00> : vector<1x48xf32>
    %233 = tpu.matmul %230, %45, %cst_61 {dimension_numbers = #tpu.dot_dimension_numbers<[1], [0], [0], [1], [0, 0, 1, 1], [], []>} : vector<1x16xf32>, vector<16x48xf32>, vector<1x48xf32> -> vector<1x48xf32>
    %234 = vector.extract_strided_slice %232 {offsets = [0, 0], sizes = [1, 32], strides = [1, 1]} : vector<1x48xf32> to vector<1x32xf32>
    %235 = vector.extract_strided_slice %233 {offsets = [0, 0], sizes = [1, 32], strides = [1, 1]} : vector<1x48xf32> to vector<1x32xf32>
    %236 = arith.addf %234, %235 : vector<1x32xf32>
    %237 = arith.addf %236, %46 : vector<1x32xf32>
    %238 = arith.negf %237 : vector<1x32xf32>
    %239 = math.exp %238 : vector<1x32xf32>
    %cst_62 = arith.constant 1.000000e+00 : f32
    %240 = vector.broadcast %cst_62 : f32 to vector<1x32xf32>
    %241 = arith.addf %240, %239 : vector<1x32xf32>
    %242 = arith.divf %240, %241 : vector<1x32xf32>
    %243 = vector.extract_strided_slice %242 {offsets = [0, 0], sizes = [1, 16], strides = [1, 1]} : vector<1x32xf32> to vector<1x16xf32>
    %244 = vector.extract_strided_slice %242 {offsets = [0, 16], sizes = [1, 16], strides = [1, 1]} : vector<1x32xf32> to vector<1x16xf32>
    %245 = vector.extract_strided_slice %232 {offsets = [0, 32], sizes = [1, 16], strides = [1, 1]} : vector<1x48xf32> to vector<1x16xf32>
    %246 = arith.addf %245, %47 : vector<1x16xf32>
    %247 = vector.extract_strided_slice %233 {offsets = [0, 32], sizes = [1, 16], strides = [1, 1]} : vector<1x48xf32> to vector<1x16xf32>
    %248 = arith.addf %247, %48 : vector<1x16xf32>
    %249 = arith.mulf %243, %248 : vector<1x16xf32>
    %250 = arith.addf %246, %249 : vector<1x16xf32>
    %251 = math.tanh %250 : vector<1x16xf32>
    %cst_63 = arith.constant 1.000000e+00 : f32
    %252 = vector.broadcast %cst_63 : f32 to vector<1x16xf32>
    %253 = arith.subf %252, %244 : vector<1x16xf32>
    %254 = arith.mulf %253, %251 : vector<1x16xf32>
    %255 = arith.mulf %244, %230 : vector<1x16xf32>
    %256 = arith.addf %254, %255 : vector<1x16xf32>
    %c7 = arith.constant 7 : index
    %c0_64 = arith.constant 0 : index
    %257 = vector.load %arg25[%c7, %c0_64] : memref<8x16xf32, #tpu.memory_space<vmem>>, vector<1x16xf32>
    tpu.vector_store %arg25[%c7, %c0_64], %256 {strides = array<i32>} : memref<8x16xf32, #tpu.memory_space<vmem>>, vector<1x16xf32>,
    %c0_65 = arith.constant 0 : index
    %c0_66 = arith.constant 0 : index
    %258 = vector.load %arg25[%c0_65, %c0_66] : memref<8x16xf32, #tpu.memory_space<vmem>>, vector<8x16xf32>
    %259 = tpu.concatenate %42, %258 in 1 : vector<8x16xf32>, vector<8x16xf32> -> vector<8x32xf32>
    %c0_67 = arith.constant 0 : index
    %c0_68 = arith.constant 0 : index
    %260 = vector.load %arg12[%c0_67, %c0_68] : memref<32x32xf32, #tpu.memory_space<vmem>>, vector<32x32xf32>
    %cst_69 = arith.constant dense<0.000000e+00> : vector<8x32xf32>
    %261 = tpu.matmul %259, %260, %cst_69 {dimension_numbers = #tpu.dot_dimension_numbers<[1], [0], [0], [1], [0, 0, 1, 1], [], []>} : vector<8x32xf32>, vector<32x32xf32>, vector<8x32xf32> -> vector<8x32xf32>
    %c0_70 = arith.constant 0 : index
    %c0_71 = arith.constant 0 : index
    %262 = vector.load %arg13[%c0_70, %c0_71] : memref<1x32xf32, #tpu.memory_space<vmem>>, vector<1x32xf32>
    %263 = vector.broadcast %262 : vector<1x32xf32> to vector<8x32xf32>
    %264 = arith.addf %261, %263 : vector<8x32xf32>
    %cst_72 = arith.constant 0.000000e+00 : f32
    %265 = vector.broadcast %cst_72 : f32 to vector<8x32xf32>
    %266 = arith.maximumf %264, %265 : vector<8x32xf32>
    %c0_73 = arith.constant 0 : index
    %c0_74 = arith.constant 0 : index
    %267 = vector.load %arg14[%c0_73, %c0_74] : memref<32x8xf32, #tpu.memory_space<vmem>>, vector<32x8xf32>
    %cst_75 = arith.constant dense<0.000000e+00> : vector<8x8xf32>
    %268 = tpu.matmul %266, %267, %cst_75 {dimension_numbers = #tpu.dot_dimension_numbers<[1], [0], [0], [1], [0, 0, 1, 1], [], []>} : vector<8x32xf32>, vector<32x8xf32>, vector<8x8xf32> -> vector<8x8xf32>
    %c0_76 = arith.constant 0 : index
    %c0_77 = arith.constant 0 : index
    %269 = vector.load %arg15[%c0_76, %c0_77] : memref<1x8xf32, #tpu.memory_space<vmem>>, vector<1x8xf32>
    %270 = vector.broadcast %269 : vector<1x8xf32> to vector<8x8xf32>
    %271 = arith.addf %268, %270 : vector<8x8xf32>
    %272 = tpu.transpose %271, [1, 0] : vector<8x8xf32> -> vector<8x8xf32>
    %c0_78 = arith.constant 0 : index
    %c0_79 = arith.constant 0 : index
    %c0_80 = arith.constant 0 : index
    %273 = vector.load %arg23[%c0_78, %c0_79, %c0_80] : memref<1x8x8xf32, #tpu.memory_space<vmem>>, vector<1x8x8xf32>
    %274 = vector.shape_cast %273 : vector<1x8x8xf32> to vector<8x8xf32>
    %275 = vector.shape_cast %272 : vector<8x8xf32> to vector<1x8x8xf32>
    tpu.vector_store %arg23[%c0_78, %c0_79, %c0_80], %275 {strides = array<i32>} : memref<1x8x8xf32, #tpu.memory_space<vmem>>, vector<1x8x8xf32>,
    %276 = vector.extract_strided_slice %259 {offsets = [0, 0], sizes = [1, 32], strides = [1, 1]} : vector<8x32xf32> to vector<1x32xf32>
    %c0_81 = arith.constant 0 : index
    %c0_82 = arith.constant 0 : index
    %c0_83 = arith.constant 0 : index
    %277 = vector.load %arg16[%c0_81, %c0_82, %c0_83] : memref<8x32x96xf32, #tpu.memory_space<vmem>>, vector<1x32x96xf32>
    %278 = vector.shape_cast %277 : vector<1x32x96xf32> to vector<32x96xf32>
    %cst_84 = arith.constant dense<0.000000e+00> : vector<1x96xf32>
    %279 = tpu.matmul %276, %278, %cst_84 {dimension_numbers = #tpu.dot_dimension_numbers<[1], [0], [0], [1], [0, 0, 1, 1], [], []>} : vector<1x32xf32>, vector<32x96xf32>, vector<1x96xf32> -> vector<1x96xf32>
    %280 = vector.extract_strided_slice %259 {offsets = [1, 0], sizes = [1, 32], strides = [1, 1]} : vector<8x32xf32> to vector<1x32xf32>
    %c1_85 = arith.constant 1 : index
    %c0_86 = arith.constant 0 : index
    %c0_87 = arith.constant 0 : index
    %281 = vector.load %arg16[%c1_85, %c0_86, %c0_87] : memref<8x32x96xf32, #tpu.memory_space<vmem>>, vector<1x32x96xf32>
    %282 = vector.shape_cast %281 : vector<1x32x96xf32> to vector<32x96xf32>
    %cst_88 = arith.constant dense<0.000000e+00> : vector<1x96xf32>
    %283 = tpu.matmul %280, %282, %cst_88 {dimension_numbers = #tpu.dot_dimension_numbers<[1], [0], [0], [1], [0, 0, 1, 1], [], []>} : vector<1x32xf32>, vector<32x96xf32>, vector<1x96xf32> -> vector<1x96xf32>
    %284 = arith.addf %279, %283 : vector<1x96xf32>
    %285 = vector.extract_strided_slice %259 {offsets = [2, 0], sizes = [1, 32], strides = [1, 1]} : vector<8x32xf32> to vector<1x32xf32>
    %c2_89 = arith.constant 2 : index
    %c0_90 = arith.constant 0 : index
    %c0_91 = arith.constant 0 : index
    %286 = vector.load %arg16[%c2_89, %c0_90, %c0_91] : memref<8x32x96xf32, #tpu.memory_space<vmem>>, vector<1x32x96xf32>
    %287 = vector.shape_cast %286 : vector<1x32x96xf32> to vector<32x96xf32>
    %cst_92 = arith.constant dense<0.000000e+00> : vector<1x96xf32>
    %288 = tpu.matmul %285, %287, %cst_92 {dimension_numbers = #tpu.dot_dimension_numbers<[1], [0], [0], [1], [0, 0, 1, 1], [], []>} : vector<1x32xf32>, vector<32x96xf32>, vector<1x96xf32> -> vector<1x96xf32>
    %289 = arith.addf %284, %288 : vector<1x96xf32>
    %290 = vector.extract_strided_slice %259 {offsets = [3, 0], sizes = [1, 32], strides = [1, 1]} : vector<8x32xf32> to vector<1x32xf32>
    %c3_93 = arith.constant 3 : index
    %c0_94 = arith.constant 0 : index
    %c0_95 = arith.constant 0 : index
    %291 = vector.load %arg16[%c3_93, %c0_94, %c0_95] : memref<8x32x96xf32, #tpu.memory_space<vmem>>, vector<1x32x96xf32>
    %292 = vector.shape_cast %291 : vector<1x32x96xf32> to vector<32x96xf32>
    %cst_96 = arith.constant dense<0.000000e+00> : vector<1x96xf32>
    %293 = tpu.matmul %290, %292, %cst_96 {dimension_numbers = #tpu.dot_dimension_numbers<[1], [0], [0], [1], [0, 0, 1, 1], [], []>} : vector<1x32xf32>, vector<32x96xf32>, vector<1x96xf32> -> vector<1x96xf32>
    %294 = arith.addf %289, %293 : vector<1x96xf32>
    %295 = vector.extract_strided_slice %259 {offsets = [4, 0], sizes = [1, 32], strides = [1, 1]} : vector<8x32xf32> to vector<1x32xf32>
    %c4_97 = arith.constant 4 : index
    %c0_98 = arith.constant 0 : index
    %c0_99 = arith.constant 0 : index
    %296 = vector.load %arg16[%c4_97, %c0_98, %c0_99] : memref<8x32x96xf32, #tpu.memory_space<vmem>>, vector<1x32x96xf32>
    %297 = vector.shape_cast %296 : vector<1x32x96xf32> to vector<32x96xf32>
    %cst_100 = arith.constant dense<0.000000e+00> : vector<1x96xf32>
    %298 = tpu.matmul %295, %297, %cst_100 {dimension_numbers = #tpu.dot_dimension_numbers<[1], [0], [0], [1], [0, 0, 1, 1], [], []>} : vector<1x32xf32>, vector<32x96xf32>, vector<1x96xf32> -> vector<1x96xf32>
    %299 = arith.addf %294, %298 : vector<1x96xf32>
    %300 = vector.extract_strided_slice %259 {offsets = [5, 0], sizes = [1, 32], strides = [1, 1]} : vector<8x32xf32> to vector<1x32xf32>
    %c5_101 = arith.constant 5 : index
    %c0_102 = arith.constant 0 : index
    %c0_103 = arith.constant 0 : index
    %301 = vector.load %arg16[%c5_101, %c0_102, %c0_103] : memref<8x32x96xf32, #tpu.memory_space<vmem>>, vector<1x32x96xf32>
    %302 = vector.shape_cast %301 : vector<1x32x96xf32> to vector<32x96xf32>
    %cst_104 = arith.constant dense<0.000000e+00> : vector<1x96xf32>
    %303 = tpu.matmul %300, %302, %cst_104 {dimension_numbers = #tpu.dot_dimension_numbers<[1], [0], [0], [1], [0, 0, 1, 1], [], []>} : vector<1x32xf32>, vector<32x96xf32>, vector<1x96xf32> -> vector<1x96xf32>
    %304 = arith.addf %299, %303 : vector<1x96xf32>
    %305 = vector.extract_strided_slice %259 {offsets = [6, 0], sizes = [1, 32], strides = [1, 1]} : vector<8x32xf32> to vector<1x32xf32>
    %c6_105 = arith.constant 6 : index
    %c0_106 = arith.constant 0 : index
    %c0_107 = arith.constant 0 : index
    %306 = vector.load %arg16[%c6_105, %c0_106, %c0_107] : memref<8x32x96xf32, #tpu.memory_space<vmem>>, vector<1x32x96xf32>
    %307 = vector.shape_cast %306 : vector<1x32x96xf32> to vector<32x96xf32>
    %cst_108 = arith.constant dense<0.000000e+00> : vector<1x96xf32>
    %308 = tpu.matmul %305, %307, %cst_108 {dimension_numbers = #tpu.dot_dimension_numbers<[1], [0], [0], [1], [0, 0, 1, 1], [], []>} : vector<1x32xf32>, vector<32x96xf32>, vector<1x96xf32> -> vector<1x96xf32>
    %309 = arith.addf %304, %308 : vector<1x96xf32>
    %310 = vector.extract_strided_slice %259 {offsets = [7, 0], sizes = [1, 32], strides = [1, 1]} : vector<8x32xf32> to vector<1x32xf32>
    %c7_109 = arith.constant 7 : index
    %c0_110 = arith.constant 0 : index
    %c0_111 = arith.constant 0 : index
    %311 = vector.load %arg16[%c7_109, %c0_110, %c0_111] : memref<8x32x96xf32, #tpu.memory_space<vmem>>, vector<1x32x96xf32>
    %312 = vector.shape_cast %311 : vector<1x32x96xf32> to vector<32x96xf32>
    %cst_112 = arith.constant dense<0.000000e+00> : vector<1x96xf32>
    %313 = tpu.matmul %310, %312, %cst_112 {dimension_numbers = #tpu.dot_dimension_numbers<[1], [0], [0], [1], [0, 0, 1, 1], [], []>} : vector<1x32xf32>, vector<32x96xf32>, vector<1x96xf32> -> vector<1x96xf32>
    %314 = arith.addf %309, %313 : vector<1x96xf32>
    %c0_113 = arith.constant 0 : index
    %c0_114 = arith.constant 0 : index
    %315 = vector.load %arg17[%c0_113, %c0_114] : memref<32x96xf32, #tpu.memory_space<vmem>>, vector<32x96xf32>
    %c0_115 = arith.constant 0 : index
    %c0_116 = arith.constant 0 : index
    %316 = vector.load %arg18[%c0_115, %c0_116] : memref<1x64xf32, #tpu.memory_space<vmem>>, vector<1x64xf32>
    %c0_117 = arith.constant 0 : index
    %c0_118 = arith.constant 0 : index
    %317 = vector.load %arg19[%c0_117, %c0_118] : memref<1x32xf32, #tpu.memory_space<vmem>>, vector<1x32xf32>
    %c0_119 = arith.constant 0 : index
    %c0_120 = arith.constant 0 : index
    %318 = vector.load %arg20[%c0_119, %c0_120] : memref<1x32xf32, #tpu.memory_space<vmem>>, vector<1x32xf32>
    %cst_121 = arith.constant 0.000000e+00 : f32
    %319 = vector.broadcast %cst_121 : f32 to vector<1x32xf32>
    %cst_122 = arith.constant dense<0.000000e+00> : vector<1x96xf32>
    %320 = tpu.matmul %319, %315, %cst_122 {dimension_numbers = #tpu.dot_dimension_numbers<[1], [0], [0], [1], [0, 0, 1, 1], [], []>} : vector<1x32xf32>, vector<32x96xf32>, vector<1x96xf32> -> vector<1x96xf32>
    %321 = vector.extract_strided_slice %314 {offsets = [0, 0], sizes = [1, 64], strides = [1, 1]} : vector<1x96xf32> to vector<1x64xf32>
    %322 = vector.extract_strided_slice %320 {offsets = [0, 0], sizes = [1, 64], strides = [1, 1]} : vector<1x96xf32> to vector<1x64xf32>
    %323 = arith.addf %321, %322 : vector<1x64xf32>
    %324 = arith.addf %323, %316 : vector<1x64xf32>
    %325 = arith.negf %324 : vector<1x64xf32>
    %326 = math.exp %325 : vector<1x64xf32>
    %cst_123 = arith.constant 1.000000e+00 : f32
    %327 = vector.broadcast %cst_123 : f32 to vector<1x64xf32>
    %328 = arith.addf %327, %326 : vector<1x64xf32>
    %329 = arith.divf %327, %328 : vector<1x64xf32>
    %330 = vector.extract_strided_slice %329 {offsets = [0, 0], sizes = [1, 32], strides = [1, 1]} : vector<1x64xf32> to vector<1x32xf32>
    %331 = vector.extract_strided_slice %329 {offsets = [0, 32], sizes = [1, 32], strides = [1, 1]} : vector<1x64xf32> to vector<1x32xf32>
    %332 = vector.extract_strided_slice %314 {offsets = [0, 64], sizes = [1, 32], strides = [1, 1]} : vector<1x96xf32> to vector<1x32xf32>
    %333 = arith.addf %332, %317 : vector<1x32xf32>
    %334 = vector.extract_strided_slice %320 {offsets = [0, 64], sizes = [1, 32], strides = [1, 1]} : vector<1x96xf32> to vector<1x32xf32>
    %335 = arith.addf %334, %318 : vector<1x32xf32>
    %336 = arith.mulf %330, %335 : vector<1x32xf32>
    %337 = arith.addf %333, %336 : vector<1x32xf32>
    %338 = math.tanh %337 : vector<1x32xf32>
    %cst_124 = arith.constant 1.000000e+00 : f32
    %339 = vector.broadcast %cst_124 : f32 to vector<1x32xf32>
    %340 = arith.subf %339, %331 : vector<1x32xf32>
    %341 = arith.mulf %340, %338 : vector<1x32xf32>
    %342 = arith.mulf %331, %319 : vector<1x32xf32>
    %343 = arith.addf %341, %342 : vector<1x32xf32>
    %c0_125 = arith.constant 0 : index
    %c0_126 = arith.constant 0 : index
    %344 = vector.load %arg26[%c0_125, %c0_126] : memref<16x32xf32, #tpu.memory_space<vmem>>, vector<1x32xf32>
    tpu.vector_store %arg26[%c0_125, %c0_126], %343 {strides = array<i32>} : memref<16x32xf32, #tpu.memory_space<vmem>>, vector<1x32xf32>,
    %cst_127 = arith.constant dense<0.000000e+00> : vector<1x96xf32>
    %345 = tpu.matmul %343, %315, %cst_127 {dimension_numbers = #tpu.dot_dimension_numbers<[1], [0], [0], [1], [0, 0, 1, 1], [], []>} : vector<1x32xf32>, vector<32x96xf32>, vector<1x96xf32> -> vector<1x96xf32>
    %346 = vector.extract_strided_slice %314 {offsets = [0, 0], sizes = [1, 64], strides = [1, 1]} : vector<1x96xf32> to vector<1x64xf32>
    %347 = vector.extract_strided_slice %345 {offsets = [0, 0], sizes = [1, 64], strides = [1, 1]} : vector<1x96xf32> to vector<1x64xf32>
    %348 = arith.addf %346, %347 : vector<1x64xf32>
    %349 = arith.addf %348, %316 : vector<1x64xf32>
    %350 = arith.negf %349 : vector<1x64xf32>
    %351 = math.exp %350 : vector<1x64xf32>
    %cst_128 = arith.constant 1.000000e+00 : f32
    %352 = vector.broadcast %cst_128 : f32 to vector<1x64xf32>
    %353 = arith.addf %352, %351 : vector<1x64xf32>
    %354 = arith.divf %352, %353 : vector<1x64xf32>
    %355 = vector.extract_strided_slice %354 {offsets = [0, 0], sizes = [1, 32], strides = [1, 1]} : vector<1x64xf32> to vector<1x32xf32>
    %356 = vector.extract_strided_slice %354 {offsets = [0, 32], sizes = [1, 32], strides = [1, 1]} : vector<1x64xf32> to vector<1x32xf32>
    %357 = vector.extract_strided_slice %314 {offsets = [0, 64], sizes = [1, 32], strides = [1, 1]} : vector<1x96xf32> to vector<1x32xf32>
    %358 = arith.addf %357, %317 : vector<1x32xf32>
    %359 = vector.extract_strided_slice %345 {offsets = [0, 64], sizes = [1, 32], strides = [1, 1]} : vector<1x96xf32> to vector<1x32xf32>
    %360 = arith.addf %359, %318 : vector<1x32xf32>
    %361 = arith.mulf %355, %360 : vector<1x32xf32>
    %362 = arith.addf %358, %361 : vector<1x32xf32>
    %363 = math.tanh %362 : vector<1x32xf32>
    %cst_129 = arith.constant 1.000000e+00 : f32
    %364 = vector.broadcast %cst_129 : f32 to vector<1x32xf32>
    %365 = arith.subf %364, %356 : vector<1x32xf32>
    %366 = arith.mulf %365, %363 : vector<1x32xf32>
    %367 = arith.mulf %356, %343 : vector<1x32xf32>
    %368 = arith.addf %366, %367 : vector<1x32xf32>
    %c1_130 = arith.constant 1 : index
    %c0_131 = arith.constant 0 : index
    %369 = vector.load %arg26[%c1_130, %c0_131] : memref<16x32xf32, #tpu.memory_space<vmem>>, vector<1x32xf32>
    tpu.vector_store %arg26[%c1_130, %c0_131], %368 {strides = array<i32>} : memref<16x32xf32, #tpu.memory_space<vmem>>, vector<1x32xf32>,
    %cst_132 = arith.constant dense<0.000000e+00> : vector<1x96xf32>
    %370 = tpu.matmul %368, %315, %cst_132 {dimension_numbers = #tpu.dot_dimension_numbers<[1], [0], [0], [1], [0, 0, 1, 1], [], []>} : vector<1x32xf32>, vector<32x96xf32>, vector<1x96xf32> -> vector<1x96xf32>
    %371 = vector.extract_strided_slice %314 {offsets = [0, 0], sizes = [1, 64], strides = [1, 1]} : vector<1x96xf32> to vector<1x64xf32>
    %372 = vector.extract_strided_slice %370 {offsets = [0, 0], sizes = [1, 64], strides = [1, 1]} : vector<1x96xf32> to vector<1x64xf32>
    %373 = arith.addf %371, %372 : vector<1x64xf32>
    %374 = arith.addf %373, %316 : vector<1x64xf32>
    %375 = arith.negf %374 : vector<1x64xf32>
    %376 = math.exp %375 : vector<1x64xf32>
    %cst_133 = arith.constant 1.000000e+00 : f32
    %377 = vector.broadcast %cst_133 : f32 to vector<1x64xf32>
    %378 = arith.addf %377, %376 : vector<1x64xf32>
    %379 = arith.divf %377, %378 : vector<1x64xf32>
    %380 = vector.extract_strided_slice %379 {offsets = [0, 0], sizes = [1, 32], strides = [1, 1]} : vector<1x64xf32> to vector<1x32xf32>
    %381 = vector.extract_strided_slice %379 {offsets = [0, 32], sizes = [1, 32], strides = [1, 1]} : vector<1x64xf32> to vector<1x32xf32>
    %382 = vector.extract_strided_slice %314 {offsets = [0, 64], sizes = [1, 32], strides = [1, 1]} : vector<1x96xf32> to vector<1x32xf32>
    %383 = arith.addf %382, %317 : vector<1x32xf32>
    %384 = vector.extract_strided_slice %370 {offsets = [0, 64], sizes = [1, 32], strides = [1, 1]} : vector<1x96xf32> to vector<1x32xf32>
    %385 = arith.addf %384, %318 : vector<1x32xf32>
    %386 = arith.mulf %380, %385 : vector<1x32xf32>
    %387 = arith.addf %383, %386 : vector<1x32xf32>
    %388 = math.tanh %387 : vector<1x32xf32>
    %cst_134 = arith.constant 1.000000e+00 : f32
    %389 = vector.broadcast %cst_134 : f32 to vector<1x32xf32>
    %390 = arith.subf %389, %381 : vector<1x32xf32>
    %391 = arith.mulf %390, %388 : vector<1x32xf32>
    %392 = arith.mulf %381, %368 : vector<1x32xf32>
    %393 = arith.addf %391, %392 : vector<1x32xf32>
    %c2_135 = arith.constant 2 : index
    %c0_136 = arith.constant 0 : index
    %394 = vector.load %arg26[%c2_135, %c0_136] : memref<16x32xf32, #tpu.memory_space<vmem>>, vector<1x32xf32>
    tpu.vector_store %arg26[%c2_135, %c0_136], %393 {strides = array<i32>} : memref<16x32xf32, #tpu.memory_space<vmem>>, vector<1x32xf32>,
    %cst_137 = arith.constant dense<0.000000e+00> : vector<1x96xf32>
    %395 = tpu.matmul %393, %315, %cst_137 {dimension_numbers = #tpu.dot_dimension_numbers<[1], [0], [0], [1], [0, 0, 1, 1], [], []>} : vector<1x32xf32>, vector<32x96xf32>, vector<1x96xf32> -> vector<1x96xf32>
    %396 = vector.extract_strided_slice %314 {offsets = [0, 0], sizes = [1, 64], strides = [1, 1]} : vector<1x96xf32> to vector<1x64xf32>
    %397 = vector.extract_strided_slice %395 {offsets = [0, 0], sizes = [1, 64], strides = [1, 1]} : vector<1x96xf32> to vector<1x64xf32>
    %398 = arith.addf %396, %397 : vector<1x64xf32>
    %399 = arith.addf %398, %316 : vector<1x64xf32>
    %400 = arith.negf %399 : vector<1x64xf32>
    %401 = math.exp %400 : vector<1x64xf32>
    %cst_138 = arith.constant 1.000000e+00 : f32
    %402 = vector.broadcast %cst_138 : f32 to vector<1x64xf32>
    %403 = arith.addf %402, %401 : vector<1x64xf32>
    %404 = arith.divf %402, %403 : vector<1x64xf32>
    %405 = vector.extract_strided_slice %404 {offsets = [0, 0], sizes = [1, 32], strides = [1, 1]} : vector<1x64xf32> to vector<1x32xf32>
    %406 = vector.extract_strided_slice %404 {offsets = [0, 32], sizes = [1, 32], strides = [1, 1]} : vector<1x64xf32> to vector<1x32xf32>
    %407 = vector.extract_strided_slice %314 {offsets = [0, 64], sizes = [1, 32], strides = [1, 1]} : vector<1x96xf32> to vector<1x32xf32>
    %408 = arith.addf %407, %317 : vector<1x32xf32>
    %409 = vector.extract_strided_slice %395 {offsets = [0, 64], sizes = [1, 32], strides = [1, 1]} : vector<1x96xf32> to vector<1x32xf32>
    %410 = arith.addf %409, %318 : vector<1x32xf32>
    %411 = arith.mulf %405, %410 : vector<1x32xf32>
    %412 = arith.addf %408, %411 : vector<1x32xf32>
    %413 = math.tanh %412 : vector<1x32xf32>
    %cst_139 = arith.constant 1.000000e+00 : f32
    %414 = vector.broadcast %cst_139 : f32 to vector<1x32xf32>
    %415 = arith.subf %414, %406 : vector<1x32xf32>
    %416 = arith.mulf %415, %413 : vector<1x32xf32>
    %417 = arith.mulf %406, %393 : vector<1x32xf32>
    %418 = arith.addf %416, %417 : vector<1x32xf32>
    %c3_140 = arith.constant 3 : index
    %c0_141 = arith.constant 0 : index
    %419 = vector.load %arg26[%c3_140, %c0_141] : memref<16x32xf32, #tpu.memory_space<vmem>>, vector<1x32xf32>
    tpu.vector_store %arg26[%c3_140, %c0_141], %418 {strides = array<i32>} : memref<16x32xf32, #tpu.memory_space<vmem>>, vector<1x32xf32>,
    %cst_142 = arith.constant dense<0.000000e+00> : vector<1x96xf32>
    %420 = tpu.matmul %418, %315, %cst_142 {dimension_numbers = #tpu.dot_dimension_numbers<[1], [0], [0], [1], [0, 0, 1, 1], [], []>} : vector<1x32xf32>, vector<32x96xf32>, vector<1x96xf32> -> vector<1x96xf32>
    %421 = vector.extract_strided_slice %314 {offsets = [0, 0], sizes = [1, 64], strides = [1, 1]} : vector<1x96xf32> to vector<1x64xf32>
    %422 = vector.extract_strided_slice %420 {offsets = [0, 0], sizes = [1, 64], strides = [1, 1]} : vector<1x96xf32> to vector<1x64xf32>
    %423 = arith.addf %421, %422 : vector<1x64xf32>
    %424 = arith.addf %423, %316 : vector<1x64xf32>
    %425 = arith.negf %424 : vector<1x64xf32>
    %426 = math.exp %425 : vector<1x64xf32>
    %cst_143 = arith.constant 1.000000e+00 : f32
    %427 = vector.broadcast %cst_143 : f32 to vector<1x64xf32>
    %428 = arith.addf %427, %426 : vector<1x64xf32>
    %429 = arith.divf %427, %428 : vector<1x64xf32>
    %430 = vector.extract_strided_slice %429 {offsets = [0, 0], sizes = [1, 32], strides = [1, 1]} : vector<1x64xf32> to vector<1x32xf32>
    %431 = vector.extract_strided_slice %429 {offsets = [0, 32], sizes = [1, 32], strides = [1, 1]} : vector<1x64xf32> to vector<1x32xf32>
    %432 = vector.extract_strided_slice %314 {offsets = [0, 64], sizes = [1, 32], strides = [1, 1]} : vector<1x96xf32> to vector<1x32xf32>
    %433 = arith.addf %432, %317 : vector<1x32xf32>
    %434 = vector.extract_strided_slice %420 {offsets = [0, 64], sizes = [1, 32], strides = [1, 1]} : vector<1x96xf32> to vector<1x32xf32>
    %435 = arith.addf %434, %318 : vector<1x32xf32>
    %436 = arith.mulf %430, %435 : vector<1x32xf32>
    %437 = arith.addf %433, %436 : vector<1x32xf32>
    %438 = math.tanh %437 : vector<1x32xf32>
    %cst_144 = arith.constant 1.000000e+00 : f32
    %439 = vector.broadcast %cst_144 : f32 to vector<1x32xf32>
    %440 = arith.subf %439, %431 : vector<1x32xf32>
    %441 = arith.mulf %440, %438 : vector<1x32xf32>
    %442 = arith.mulf %431, %418 : vector<1x32xf32>
    %443 = arith.addf %441, %442 : vector<1x32xf32>
    %c4_145 = arith.constant 4 : index
    %c0_146 = arith.constant 0 : index
    %444 = vector.load %arg26[%c4_145, %c0_146] : memref<16x32xf32, #tpu.memory_space<vmem>>, vector<1x32xf32>
    tpu.vector_store %arg26[%c4_145, %c0_146], %443 {strides = array<i32>} : memref<16x32xf32, #tpu.memory_space<vmem>>, vector<1x32xf32>,
    %cst_147 = arith.constant dense<0.000000e+00> : vector<1x96xf32>
    %445 = tpu.matmul %443, %315, %cst_147 {dimension_numbers = #tpu.dot_dimension_numbers<[1], [0], [0], [1], [0, 0, 1, 1], [], []>} : vector<1x32xf32>, vector<32x96xf32>, vector<1x96xf32> -> vector<1x96xf32>
    %446 = vector.extract_strided_slice %314 {offsets = [0, 0], sizes = [1, 64], strides = [1, 1]} : vector<1x96xf32> to vector<1x64xf32>
    %447 = vector.extract_strided_slice %445 {offsets = [0, 0], sizes = [1, 64], strides = [1, 1]} : vector<1x96xf32> to vector<1x64xf32>
    %448 = arith.addf %446, %447 : vector<1x64xf32>
    %449 = arith.addf %448, %316 : vector<1x64xf32>
    %450 = arith.negf %449 : vector<1x64xf32>
    %451 = math.exp %450 : vector<1x64xf32>
    %cst_148 = arith.constant 1.000000e+00 : f32
    %452 = vector.broadcast %cst_148 : f32 to vector<1x64xf32>
    %453 = arith.addf %452, %451 : vector<1x64xf32>
    %454 = arith.divf %452, %453 : vector<1x64xf32>
    %455 = vector.extract_strided_slice %454 {offsets = [0, 0], sizes = [1, 32], strides = [1, 1]} : vector<1x64xf32> to vector<1x32xf32>
    %456 = vector.extract_strided_slice %454 {offsets = [0, 32], sizes = [1, 32], strides = [1, 1]} : vector<1x64xf32> to vector<1x32xf32>
    %457 = vector.extract_strided_slice %314 {offsets = [0, 64], sizes = [1, 32], strides = [1, 1]} : vector<1x96xf32> to vector<1x32xf32>
    %458 = arith.addf %457, %317 : vector<1x32xf32>
    %459 = vector.extract_strided_slice %445 {offsets = [0, 64], sizes = [1, 32], strides = [1, 1]} : vector<1x96xf32> to vector<1x32xf32>
    %460 = arith.addf %459, %318 : vector<1x32xf32>
    %461 = arith.mulf %455, %460 : vector<1x32xf32>
    %462 = arith.addf %458, %461 : vector<1x32xf32>
    %463 = math.tanh %462 : vector<1x32xf32>
    %cst_149 = arith.constant 1.000000e+00 : f32
    %464 = vector.broadcast %cst_149 : f32 to vector<1x32xf32>
    %465 = arith.subf %464, %456 : vector<1x32xf32>
    %466 = arith.mulf %465, %463 : vector<1x32xf32>
    %467 = arith.mulf %456, %443 : vector<1x32xf32>
    %468 = arith.addf %466, %467 : vector<1x32xf32>
    %c5_150 = arith.constant 5 : index
    %c0_151 = arith.constant 0 : index
    %469 = vector.load %arg26[%c5_150, %c0_151] : memref<16x32xf32, #tpu.memory_space<vmem>>, vector<1x32xf32>
    tpu.vector_store %arg26[%c5_150, %c0_151], %468 {strides = array<i32>} : memref<16x32xf32, #tpu.memory_space<vmem>>, vector<1x32xf32>,
    %cst_152 = arith.constant dense<0.000000e+00> : vector<1x96xf32>
    %470 = tpu.matmul %468, %315, %cst_152 {dimension_numbers = #tpu.dot_dimension_numbers<[1], [0], [0], [1], [0, 0, 1, 1], [], []>} : vector<1x32xf32>, vector<32x96xf32>, vector<1x96xf32> -> vector<1x96xf32>
    %471 = vector.extract_strided_slice %314 {offsets = [0, 0], sizes = [1, 64], strides = [1, 1]} : vector<1x96xf32> to vector<1x64xf32>
    %472 = vector.extract_strided_slice %470 {offsets = [0, 0], sizes = [1, 64], strides = [1, 1]} : vector<1x96xf32> to vector<1x64xf32>
    %473 = arith.addf %471, %472 : vector<1x64xf32>
    %474 = arith.addf %473, %316 : vector<1x64xf32>
    %475 = arith.negf %474 : vector<1x64xf32>
    %476 = math.exp %475 : vector<1x64xf32>
    %cst_153 = arith.constant 1.000000e+00 : f32
    %477 = vector.broadcast %cst_153 : f32 to vector<1x64xf32>
    %478 = arith.addf %477, %476 : vector<1x64xf32>
    %479 = arith.divf %477, %478 : vector<1x64xf32>
    %480 = vector.extract_strided_slice %479 {offsets = [0, 0], sizes = [1, 32], strides = [1, 1]} : vector<1x64xf32> to vector<1x32xf32>
    %481 = vector.extract_strided_slice %479 {offsets = [0, 32], sizes = [1, 32], strides = [1, 1]} : vector<1x64xf32> to vector<1x32xf32>
    %482 = vector.extract_strided_slice %314 {offsets = [0, 64], sizes = [1, 32], strides = [1, 1]} : vector<1x96xf32> to vector<1x32xf32>
    %483 = arith.addf %482, %317 : vector<1x32xf32>
    %484 = vector.extract_strided_slice %470 {offsets = [0, 64], sizes = [1, 32], strides = [1, 1]} : vector<1x96xf32> to vector<1x32xf32>
    %485 = arith.addf %484, %318 : vector<1x32xf32>
    %486 = arith.mulf %480, %485 : vector<1x32xf32>
    %487 = arith.addf %483, %486 : vector<1x32xf32>
    %488 = math.tanh %487 : vector<1x32xf32>
    %cst_154 = arith.constant 1.000000e+00 : f32
    %489 = vector.broadcast %cst_154 : f32 to vector<1x32xf32>
    %490 = arith.subf %489, %481 : vector<1x32xf32>
    %491 = arith.mulf %490, %488 : vector<1x32xf32>
    %492 = arith.mulf %481, %468 : vector<1x32xf32>
    %493 = arith.addf %491, %492 : vector<1x32xf32>
    %c6_155 = arith.constant 6 : index
    %c0_156 = arith.constant 0 : index
    %494 = vector.load %arg26[%c6_155, %c0_156] : memref<16x32xf32, #tpu.memory_space<vmem>>, vector<1x32xf32>
    tpu.vector_store %arg26[%c6_155, %c0_156], %493 {strides = array<i32>} : memref<16x32xf32, #tpu.memory_space<vmem>>, vector<1x32xf32>,
    %cst_157 = arith.constant dense<0.000000e+00> : vector<1x96xf32>
    %495 = tpu.matmul %493, %315, %cst_157 {dimension_numbers = #tpu.dot_dimension_numbers<[1], [0], [0], [1], [0, 0, 1, 1], [], []>} : vector<1x32xf32>, vector<32x96xf32>, vector<1x96xf32> -> vector<1x96xf32>
    %496 = vector.extract_strided_slice %314 {offsets = [0, 0], sizes = [1, 64], strides = [1, 1]} : vector<1x96xf32> to vector<1x64xf32>
    %497 = vector.extract_strided_slice %495 {offsets = [0, 0], sizes = [1, 64], strides = [1, 1]} : vector<1x96xf32> to vector<1x64xf32>
    %498 = arith.addf %496, %497 : vector<1x64xf32>
    %499 = arith.addf %498, %316 : vector<1x64xf32>
    %500 = arith.negf %499 : vector<1x64xf32>
    %501 = math.exp %500 : vector<1x64xf32>
    %cst_158 = arith.constant 1.000000e+00 : f32
    %502 = vector.broadcast %cst_158 : f32 to vector<1x64xf32>
    %503 = arith.addf %502, %501 : vector<1x64xf32>
    %504 = arith.divf %502, %503 : vector<1x64xf32>
    %505 = vector.extract_strided_slice %504 {offsets = [0, 0], sizes = [1, 32], strides = [1, 1]} : vector<1x64xf32> to vector<1x32xf32>
    %506 = vector.extract_strided_slice %504 {offsets = [0, 32], sizes = [1, 32], strides = [1, 1]} : vector<1x64xf32> to vector<1x32xf32>
    %507 = vector.extract_strided_slice %314 {offsets = [0, 64], sizes = [1, 32], strides = [1, 1]} : vector<1x96xf32> to vector<1x32xf32>
    %508 = arith.addf %507, %317 : vector<1x32xf32>
    %509 = vector.extract_strided_slice %495 {offsets = [0, 64], sizes = [1, 32], strides = [1, 1]} : vector<1x96xf32> to vector<1x32xf32>
    %510 = arith.addf %509, %318 : vector<1x32xf32>
    %511 = arith.mulf %505, %510 : vector<1x32xf32>
    %512 = arith.addf %508, %511 : vector<1x32xf32>
    %513 = math.tanh %512 : vector<1x32xf32>
    %cst_159 = arith.constant 1.000000e+00 : f32
    %514 = vector.broadcast %cst_159 : f32 to vector<1x32xf32>
    %515 = arith.subf %514, %506 : vector<1x32xf32>
    %516 = arith.mulf %515, %513 : vector<1x32xf32>
    %517 = arith.mulf %506, %493 : vector<1x32xf32>
    %518 = arith.addf %516, %517 : vector<1x32xf32>
    %c7_160 = arith.constant 7 : index
    %c0_161 = arith.constant 0 : index
    %519 = vector.load %arg26[%c7_160, %c0_161] : memref<16x32xf32, #tpu.memory_space<vmem>>, vector<1x32xf32>
    tpu.vector_store %arg26[%c7_160, %c0_161], %518 {strides = array<i32>} : memref<16x32xf32, #tpu.memory_space<vmem>>, vector<1x32xf32>,
    %cst_162 = arith.constant dense<0.000000e+00> : vector<1x96xf32>
    %520 = tpu.matmul %518, %315, %cst_162 {dimension_numbers = #tpu.dot_dimension_numbers<[1], [0], [0], [1], [0, 0, 1, 1], [], []>} : vector<1x32xf32>, vector<32x96xf32>, vector<1x96xf32> -> vector<1x96xf32>
    %521 = vector.extract_strided_slice %314 {offsets = [0, 0], sizes = [1, 64], strides = [1, 1]} : vector<1x96xf32> to vector<1x64xf32>
    %522 = vector.extract_strided_slice %520 {offsets = [0, 0], sizes = [1, 64], strides = [1, 1]} : vector<1x96xf32> to vector<1x64xf32>
    %523 = arith.addf %521, %522 : vector<1x64xf32>
    %524 = arith.addf %523, %316 : vector<1x64xf32>
    %525 = arith.negf %524 : vector<1x64xf32>
    %526 = math.exp %525 : vector<1x64xf32>
    %cst_163 = arith.constant 1.000000e+00 : f32
    %527 = vector.broadcast %cst_163 : f32 to vector<1x64xf32>
    %528 = arith.addf %527, %526 : vector<1x64xf32>
    %529 = arith.divf %527, %528 : vector<1x64xf32>
    %530 = vector.extract_strided_slice %529 {offsets = [0, 0], sizes = [1, 32], strides = [1, 1]} : vector<1x64xf32> to vector<1x32xf32>
    %531 = vector.extract_strided_slice %529 {offsets = [0, 32], sizes = [1, 32], strides = [1, 1]} : vector<1x64xf32> to vector<1x32xf32>
    %532 = vector.extract_strided_slice %314 {offsets = [0, 64], sizes = [1, 32], strides = [1, 1]} : vector<1x96xf32> to vector<1x32xf32>
    %533 = arith.addf %532, %317 : vector<1x32xf32>
    %534 = vector.extract_strided_slice %520 {offsets = [0, 64], sizes = [1, 32], strides = [1, 1]} : vector<1x96xf32> to vector<1x32xf32>
    %535 = arith.addf %534, %318 : vector<1x32xf32>
    %536 = arith.mulf %530, %535 : vector<1x32xf32>
    %537 = arith.addf %533, %536 : vector<1x32xf32>
    %538 = math.tanh %537 : vector<1x32xf32>
    %cst_164 = arith.constant 1.000000e+00 : f32
    %539 = vector.broadcast %cst_164 : f32 to vector<1x32xf32>
    %540 = arith.subf %539, %531 : vector<1x32xf32>
    %541 = arith.mulf %540, %538 : vector<1x32xf32>
    %542 = arith.mulf %531, %518 : vector<1x32xf32>
    %543 = arith.addf %541, %542 : vector<1x32xf32>
    %c8 = arith.constant 8 : index
    %c0_165 = arith.constant 0 : index
    %544 = vector.load %arg26[%c8, %c0_165] : memref<16x32xf32, #tpu.memory_space<vmem>>, vector<1x32xf32>
    tpu.vector_store %arg26[%c8, %c0_165], %543 {strides = array<i32>} : memref<16x32xf32, #tpu.memory_space<vmem>>, vector<1x32xf32>,
    %cst_166 = arith.constant dense<0.000000e+00> : vector<1x96xf32>
    %545 = tpu.matmul %543, %315, %cst_166 {dimension_numbers = #tpu.dot_dimension_numbers<[1], [0], [0], [1], [0, 0, 1, 1], [], []>} : vector<1x32xf32>, vector<32x96xf32>, vector<1x96xf32> -> vector<1x96xf32>
    %546 = vector.extract_strided_slice %314 {offsets = [0, 0], sizes = [1, 64], strides = [1, 1]} : vector<1x96xf32> to vector<1x64xf32>
    %547 = vector.extract_strided_slice %545 {offsets = [0, 0], sizes = [1, 64], strides = [1, 1]} : vector<1x96xf32> to vector<1x64xf32>
    %548 = arith.addf %546, %547 : vector<1x64xf32>
    %549 = arith.addf %548, %316 : vector<1x64xf32>
    %550 = arith.negf %549 : vector<1x64xf32>
    %551 = math.exp %550 : vector<1x64xf32>
    %cst_167 = arith.constant 1.000000e+00 : f32
    %552 = vector.broadcast %cst_167 : f32 to vector<1x64xf32>
    %553 = arith.addf %552, %551 : vector<1x64xf32>
    %554 = arith.divf %552, %553 : vector<1x64xf32>
    %555 = vector.extract_strided_slice %554 {offsets = [0, 0], sizes = [1, 32], strides = [1, 1]} : vector<1x64xf32> to vector<1x32xf32>
    %556 = vector.extract_strided_slice %554 {offsets = [0, 32], sizes = [1, 32], strides = [1, 1]} : vector<1x64xf32> to vector<1x32xf32>
    %557 = vector.extract_strided_slice %314 {offsets = [0, 64], sizes = [1, 32], strides = [1, 1]} : vector<1x96xf32> to vector<1x32xf32>
    %558 = arith.addf %557, %317 : vector<1x32xf32>
    %559 = vector.extract_strided_slice %545 {offsets = [0, 64], sizes = [1, 32], strides = [1, 1]} : vector<1x96xf32> to vector<1x32xf32>
    %560 = arith.addf %559, %318 : vector<1x32xf32>
    %561 = arith.mulf %555, %560 : vector<1x32xf32>
    %562 = arith.addf %558, %561 : vector<1x32xf32>
    %563 = math.tanh %562 : vector<1x32xf32>
    %cst_168 = arith.constant 1.000000e+00 : f32
    %564 = vector.broadcast %cst_168 : f32 to vector<1x32xf32>
    %565 = arith.subf %564, %556 : vector<1x32xf32>
    %566 = arith.mulf %565, %563 : vector<1x32xf32>
    %567 = arith.mulf %556, %543 : vector<1x32xf32>
    %568 = arith.addf %566, %567 : vector<1x32xf32>
    %c9 = arith.constant 9 : index
    %c0_169 = arith.constant 0 : index
    %569 = vector.load %arg26[%c9, %c0_169] : memref<16x32xf32, #tpu.memory_space<vmem>>, vector<1x32xf32>
    tpu.vector_store %arg26[%c9, %c0_169], %568 {strides = array<i32>} : memref<16x32xf32, #tpu.memory_space<vmem>>, vector<1x32xf32>,
    %cst_170 = arith.constant dense<0.000000e+00> : vector<1x96xf32>
    %570 = tpu.matmul %568, %315, %cst_170 {dimension_numbers = #tpu.dot_dimension_numbers<[1], [0], [0], [1], [0, 0, 1, 1], [], []>} : vector<1x32xf32>, vector<32x96xf32>, vector<1x96xf32> -> vector<1x96xf32>
    %571 = vector.extract_strided_slice %314 {offsets = [0, 0], sizes = [1, 64], strides = [1, 1]} : vector<1x96xf32> to vector<1x64xf32>
    %572 = vector.extract_strided_slice %570 {offsets = [0, 0], sizes = [1, 64], strides = [1, 1]} : vector<1x96xf32> to vector<1x64xf32>
    %573 = arith.addf %571, %572 : vector<1x64xf32>
    %574 = arith.addf %573, %316 : vector<1x64xf32>
    %575 = arith.negf %574 : vector<1x64xf32>
    %576 = math.exp %575 : vector<1x64xf32>
    %cst_171 = arith.constant 1.000000e+00 : f32
    %577 = vector.broadcast %cst_171 : f32 to vector<1x64xf32>
    %578 = arith.addf %577, %576 : vector<1x64xf32>
    %579 = arith.divf %577, %578 : vector<1x64xf32>
    %580 = vector.extract_strided_slice %579 {offsets = [0, 0], sizes = [1, 32], strides = [1, 1]} : vector<1x64xf32> to vector<1x32xf32>
    %581 = vector.extract_strided_slice %579 {offsets = [0, 32], sizes = [1, 32], strides = [1, 1]} : vector<1x64xf32> to vector<1x32xf32>
    %582 = vector.extract_strided_slice %314 {offsets = [0, 64], sizes = [1, 32], strides = [1, 1]} : vector<1x96xf32> to vector<1x32xf32>
    %583 = arith.addf %582, %317 : vector<1x32xf32>
    %584 = vector.extract_strided_slice %570 {offsets = [0, 64], sizes = [1, 32], strides = [1, 1]} : vector<1x96xf32> to vector<1x32xf32>
    %585 = arith.addf %584, %318 : vector<1x32xf32>
    %586 = arith.mulf %580, %585 : vector<1x32xf32>
    %587 = arith.addf %583, %586 : vector<1x32xf32>
    %588 = math.tanh %587 : vector<1x32xf32>
    %cst_172 = arith.constant 1.000000e+00 : f32
    %589 = vector.broadcast %cst_172 : f32 to vector<1x32xf32>
    %590 = arith.subf %589, %581 : vector<1x32xf32>
    %591 = arith.mulf %590, %588 : vector<1x32xf32>
    %592 = arith.mulf %581, %568 : vector<1x32xf32>
    %593 = arith.addf %591, %592 : vector<1x32xf32>
    %c10 = arith.constant 10 : index
    %c0_173 = arith.constant 0 : index
    %594 = vector.load %arg26[%c10, %c0_173] : memref<16x32xf32, #tpu.memory_space<vmem>>, vector<1x32xf32>
    tpu.vector_store %arg26[%c10, %c0_173], %593 {strides = array<i32>} : memref<16x32xf32, #tpu.memory_space<vmem>>, vector<1x32xf32>,
    %cst_174 = arith.constant dense<0.000000e+00> : vector<1x96xf32>
    %595 = tpu.matmul %593, %315, %cst_174 {dimension_numbers = #tpu.dot_dimension_numbers<[1], [0], [0], [1], [0, 0, 1, 1], [], []>} : vector<1x32xf32>, vector<32x96xf32>, vector<1x96xf32> -> vector<1x96xf32>
    %596 = vector.extract_strided_slice %314 {offsets = [0, 0], sizes = [1, 64], strides = [1, 1]} : vector<1x96xf32> to vector<1x64xf32>
    %597 = vector.extract_strided_slice %595 {offsets = [0, 0], sizes = [1, 64], strides = [1, 1]} : vector<1x96xf32> to vector<1x64xf32>
    %598 = arith.addf %596, %597 : vector<1x64xf32>
    %599 = arith.addf %598, %316 : vector<1x64xf32>
    %600 = arith.negf %599 : vector<1x64xf32>
    %601 = math.exp %600 : vector<1x64xf32>
    %cst_175 = arith.constant 1.000000e+00 : f32
    %602 = vector.broadcast %cst_175 : f32 to vector<1x64xf32>
    %603 = arith.addf %602, %601 : vector<1x64xf32>
    %604 = arith.divf %602, %603 : vector<1x64xf32>
    %605 = vector.extract_strided_slice %604 {offsets = [0, 0], sizes = [1, 32], strides = [1, 1]} : vector<1x64xf32> to vector<1x32xf32>
    %606 = vector.extract_strided_slice %604 {offsets = [0, 32], sizes = [1, 32], strides = [1, 1]} : vector<1x64xf32> to vector<1x32xf32>
    %607 = vector.extract_strided_slice %314 {offsets = [0, 64], sizes = [1, 32], strides = [1, 1]} : vector<1x96xf32> to vector<1x32xf32>
    %608 = arith.addf %607, %317 : vector<1x32xf32>
    %609 = vector.extract_strided_slice %595 {offsets = [0, 64], sizes = [1, 32], strides = [1, 1]} : vector<1x96xf32> to vector<1x32xf32>
    %610 = arith.addf %609, %318 : vector<1x32xf32>
    %611 = arith.mulf %605, %610 : vector<1x32xf32>
    %612 = arith.addf %608, %611 : vector<1x32xf32>
    %613 = math.tanh %612 : vector<1x32xf32>
    %cst_176 = arith.constant 1.000000e+00 : f32
    %614 = vector.broadcast %cst_176 : f32 to vector<1x32xf32>
    %615 = arith.subf %614, %606 : vector<1x32xf32>
    %616 = arith.mulf %615, %613 : vector<1x32xf32>
    %617 = arith.mulf %606, %593 : vector<1x32xf32>
    %618 = arith.addf %616, %617 : vector<1x32xf32>
    %c11 = arith.constant 11 : index
    %c0_177 = arith.constant 0 : index
    %619 = vector.load %arg26[%c11, %c0_177] : memref<16x32xf32, #tpu.memory_space<vmem>>, vector<1x32xf32>
    tpu.vector_store %arg26[%c11, %c0_177], %618 {strides = array<i32>} : memref<16x32xf32, #tpu.memory_space<vmem>>, vector<1x32xf32>,
    %cst_178 = arith.constant dense<0.000000e+00> : vector<1x96xf32>
    %620 = tpu.matmul %618, %315, %cst_178 {dimension_numbers = #tpu.dot_dimension_numbers<[1], [0], [0], [1], [0, 0, 1, 1], [], []>} : vector<1x32xf32>, vector<32x96xf32>, vector<1x96xf32> -> vector<1x96xf32>
    %621 = vector.extract_strided_slice %314 {offsets = [0, 0], sizes = [1, 64], strides = [1, 1]} : vector<1x96xf32> to vector<1x64xf32>
    %622 = vector.extract_strided_slice %620 {offsets = [0, 0], sizes = [1, 64], strides = [1, 1]} : vector<1x96xf32> to vector<1x64xf32>
    %623 = arith.addf %621, %622 : vector<1x64xf32>
    %624 = arith.addf %623, %316 : vector<1x64xf32>
    %625 = arith.negf %624 : vector<1x64xf32>
    %626 = math.exp %625 : vector<1x64xf32>
    %cst_179 = arith.constant 1.000000e+00 : f32
    %627 = vector.broadcast %cst_179 : f32 to vector<1x64xf32>
    %628 = arith.addf %627, %626 : vector<1x64xf32>
    %629 = arith.divf %627, %628 : vector<1x64xf32>
    %630 = vector.extract_strided_slice %629 {offsets = [0, 0], sizes = [1, 32], strides = [1, 1]} : vector<1x64xf32> to vector<1x32xf32>
    %631 = vector.extract_strided_slice %629 {offsets = [0, 32], sizes = [1, 32], strides = [1, 1]} : vector<1x64xf32> to vector<1x32xf32>
    %632 = vector.extract_strided_slice %314 {offsets = [0, 64], sizes = [1, 32], strides = [1, 1]} : vector<1x96xf32> to vector<1x32xf32>
    %633 = arith.addf %632, %317 : vector<1x32xf32>
    %634 = vector.extract_strided_slice %620 {offsets = [0, 64], sizes = [1, 32], strides = [1, 1]} : vector<1x96xf32> to vector<1x32xf32>
    %635 = arith.addf %634, %318 : vector<1x32xf32>
    %636 = arith.mulf %630, %635 : vector<1x32xf32>
    %637 = arith.addf %633, %636 : vector<1x32xf32>
    %638 = math.tanh %637 : vector<1x32xf32>
    %cst_180 = arith.constant 1.000000e+00 : f32
    %639 = vector.broadcast %cst_180 : f32 to vector<1x32xf32>
    %640 = arith.subf %639, %631 : vector<1x32xf32>
    %641 = arith.mulf %640, %638 : vector<1x32xf32>
    %642 = arith.mulf %631, %618 : vector<1x32xf32>
    %643 = arith.addf %641, %642 : vector<1x32xf32>
    %c12 = arith.constant 12 : index
    %c0_181 = arith.constant 0 : index
    %644 = vector.load %arg26[%c12, %c0_181] : memref<16x32xf32, #tpu.memory_space<vmem>>, vector<1x32xf32>
    tpu.vector_store %arg26[%c12, %c0_181], %643 {strides = array<i32>} : memref<16x32xf32, #tpu.memory_space<vmem>>, vector<1x32xf32>,
    %cst_182 = arith.constant dense<0.000000e+00> : vector<1x96xf32>
    %645 = tpu.matmul %643, %315, %cst_182 {dimension_numbers = #tpu.dot_dimension_numbers<[1], [0], [0], [1], [0, 0, 1, 1], [], []>} : vector<1x32xf32>, vector<32x96xf32>, vector<1x96xf32> -> vector<1x96xf32>
    %646 = vector.extract_strided_slice %314 {offsets = [0, 0], sizes = [1, 64], strides = [1, 1]} : vector<1x96xf32> to vector<1x64xf32>
    %647 = vector.extract_strided_slice %645 {offsets = [0, 0], sizes = [1, 64], strides = [1, 1]} : vector<1x96xf32> to vector<1x64xf32>
    %648 = arith.addf %646, %647 : vector<1x64xf32>
    %649 = arith.addf %648, %316 : vector<1x64xf32>
    %650 = arith.negf %649 : vector<1x64xf32>
    %651 = math.exp %650 : vector<1x64xf32>
    %cst_183 = arith.constant 1.000000e+00 : f32
    %652 = vector.broadcast %cst_183 : f32 to vector<1x64xf32>
    %653 = arith.addf %652, %651 : vector<1x64xf32>
    %654 = arith.divf %652, %653 : vector<1x64xf32>
    %655 = vector.extract_strided_slice %654 {offsets = [0, 0], sizes = [1, 32], strides = [1, 1]} : vector<1x64xf32> to vector<1x32xf32>
    %656 = vector.extract_strided_slice %654 {offsets = [0, 32], sizes = [1, 32], strides = [1, 1]} : vector<1x64xf32> to vector<1x32xf32>
    %657 = vector.extract_strided_slice %314 {offsets = [0, 64], sizes = [1, 32], strides = [1, 1]} : vector<1x96xf32> to vector<1x32xf32>
    %658 = arith.addf %657, %317 : vector<1x32xf32>
    %659 = vector.extract_strided_slice %645 {offsets = [0, 64], sizes = [1, 32], strides = [1, 1]} : vector<1x96xf32> to vector<1x32xf32>
    %660 = arith.addf %659, %318 : vector<1x32xf32>
    %661 = arith.mulf %655, %660 : vector<1x32xf32>
    %662 = arith.addf %658, %661 : vector<1x32xf32>
    %663 = math.tanh %662 : vector<1x32xf32>
    %cst_184 = arith.constant 1.000000e+00 : f32
    %664 = vector.broadcast %cst_184 : f32 to vector<1x32xf32>
    %665 = arith.subf %664, %656 : vector<1x32xf32>
    %666 = arith.mulf %665, %663 : vector<1x32xf32>
    %667 = arith.mulf %656, %643 : vector<1x32xf32>
    %668 = arith.addf %666, %667 : vector<1x32xf32>
    %c13 = arith.constant 13 : index
    %c0_185 = arith.constant 0 : index
    %669 = vector.load %arg26[%c13, %c0_185] : memref<16x32xf32, #tpu.memory_space<vmem>>, vector<1x32xf32>
    tpu.vector_store %arg26[%c13, %c0_185], %668 {strides = array<i32>} : memref<16x32xf32, #tpu.memory_space<vmem>>, vector<1x32xf32>,
    %cst_186 = arith.constant dense<0.000000e+00> : vector<1x96xf32>
    %670 = tpu.matmul %668, %315, %cst_186 {dimension_numbers = #tpu.dot_dimension_numbers<[1], [0], [0], [1], [0, 0, 1, 1], [], []>} : vector<1x32xf32>, vector<32x96xf32>, vector<1x96xf32> -> vector<1x96xf32>
    %671 = vector.extract_strided_slice %314 {offsets = [0, 0], sizes = [1, 64], strides = [1, 1]} : vector<1x96xf32> to vector<1x64xf32>
    %672 = vector.extract_strided_slice %670 {offsets = [0, 0], sizes = [1, 64], strides = [1, 1]} : vector<1x96xf32> to vector<1x64xf32>
    %673 = arith.addf %671, %672 : vector<1x64xf32>
    %674 = arith.addf %673, %316 : vector<1x64xf32>
    %675 = arith.negf %674 : vector<1x64xf32>
    %676 = math.exp %675 : vector<1x64xf32>
    %cst_187 = arith.constant 1.000000e+00 : f32
    %677 = vector.broadcast %cst_187 : f32 to vector<1x64xf32>
    %678 = arith.addf %677, %676 : vector<1x64xf32>
    %679 = arith.divf %677, %678 : vector<1x64xf32>
    %680 = vector.extract_strided_slice %679 {offsets = [0, 0], sizes = [1, 32], strides = [1, 1]} : vector<1x64xf32> to vector<1x32xf32>
    %681 = vector.extract_strided_slice %679 {offsets = [0, 32], sizes = [1, 32], strides = [1, 1]} : vector<1x64xf32> to vector<1x32xf32>
    %682 = vector.extract_strided_slice %314 {offsets = [0, 64], sizes = [1, 32], strides = [1, 1]} : vector<1x96xf32> to vector<1x32xf32>
    %683 = arith.addf %682, %317 : vector<1x32xf32>
    %684 = vector.extract_strided_slice %670 {offsets = [0, 64], sizes = [1, 32], strides = [1, 1]} : vector<1x96xf32> to vector<1x32xf32>
    %685 = arith.addf %684, %318 : vector<1x32xf32>
    %686 = arith.mulf %680, %685 : vector<1x32xf32>
    %687 = arith.addf %683, %686 : vector<1x32xf32>
    %688 = math.tanh %687 : vector<1x32xf32>
    %cst_188 = arith.constant 1.000000e+00 : f32
    %689 = vector.broadcast %cst_188 : f32 to vector<1x32xf32>
    %690 = arith.subf %689, %681 : vector<1x32xf32>
    %691 = arith.mulf %690, %688 : vector<1x32xf32>
    %692 = arith.mulf %681, %668 : vector<1x32xf32>
    %693 = arith.addf %691, %692 : vector<1x32xf32>
    %c14 = arith.constant 14 : index
    %c0_189 = arith.constant 0 : index
    %694 = vector.load %arg26[%c14, %c0_189] : memref<16x32xf32, #tpu.memory_space<vmem>>, vector<1x32xf32>
    tpu.vector_store %arg26[%c14, %c0_189], %693 {strides = array<i32>} : memref<16x32xf32, #tpu.memory_space<vmem>>, vector<1x32xf32>,
    %cst_190 = arith.constant dense<0.000000e+00> : vector<1x96xf32>
    %695 = tpu.matmul %693, %315, %cst_190 {dimension_numbers = #tpu.dot_dimension_numbers<[1], [0], [0], [1], [0, 0, 1, 1], [], []>} : vector<1x32xf32>, vector<32x96xf32>, vector<1x96xf32> -> vector<1x96xf32>
    %696 = vector.extract_strided_slice %314 {offsets = [0, 0], sizes = [1, 64], strides = [1, 1]} : vector<1x96xf32> to vector<1x64xf32>
    %697 = vector.extract_strided_slice %695 {offsets = [0, 0], sizes = [1, 64], strides = [1, 1]} : vector<1x96xf32> to vector<1x64xf32>
    %698 = arith.addf %696, %697 : vector<1x64xf32>
    %699 = arith.addf %698, %316 : vector<1x64xf32>
    %700 = arith.negf %699 : vector<1x64xf32>
    %701 = math.exp %700 : vector<1x64xf32>
    %cst_191 = arith.constant 1.000000e+00 : f32
    %702 = vector.broadcast %cst_191 : f32 to vector<1x64xf32>
    %703 = arith.addf %702, %701 : vector<1x64xf32>
    %704 = arith.divf %702, %703 : vector<1x64xf32>
    %705 = vector.extract_strided_slice %704 {offsets = [0, 0], sizes = [1, 32], strides = [1, 1]} : vector<1x64xf32> to vector<1x32xf32>
    %706 = vector.extract_strided_slice %704 {offsets = [0, 32], sizes = [1, 32], strides = [1, 1]} : vector<1x64xf32> to vector<1x32xf32>
    %707 = vector.extract_strided_slice %314 {offsets = [0, 64], sizes = [1, 32], strides = [1, 1]} : vector<1x96xf32> to vector<1x32xf32>
    %708 = arith.addf %707, %317 : vector<1x32xf32>
    %709 = vector.extract_strided_slice %695 {offsets = [0, 64], sizes = [1, 32], strides = [1, 1]} : vector<1x96xf32> to vector<1x32xf32>
    %710 = arith.addf %709, %318 : vector<1x32xf32>
    %711 = arith.mulf %705, %710 : vector<1x32xf32>
    %712 = arith.addf %708, %711 : vector<1x32xf32>
    %713 = math.tanh %712 : vector<1x32xf32>
    %cst_192 = arith.constant 1.000000e+00 : f32
    %714 = vector.broadcast %cst_192 : f32 to vector<1x32xf32>
    %715 = arith.subf %714, %706 : vector<1x32xf32>
    %716 = arith.mulf %715, %713 : vector<1x32xf32>
    %717 = arith.mulf %706, %693 : vector<1x32xf32>
    %718 = arith.addf %716, %717 : vector<1x32xf32>
    %c15 = arith.constant 15 : index
    %c0_193 = arith.constant 0 : index
    %719 = vector.load %arg26[%c15, %c0_193] : memref<16x32xf32, #tpu.memory_space<vmem>>, vector<1x32xf32>
    tpu.vector_store %arg26[%c15, %c0_193], %718 {strides = array<i32>} : memref<16x32xf32, #tpu.memory_space<vmem>>, vector<1x32xf32>,
    %c0_194 = arith.constant 0 : index
    %c0_195 = arith.constant 0 : index
    %720 = vector.load %arg26[%c0_194, %c0_195] : memref<16x32xf32, #tpu.memory_space<vmem>>, vector<16x32xf32>
    %c0_196 = arith.constant 0 : index
    %c0_197 = arith.constant 0 : index
    %721 = vector.load %arg21[%c0_196, %c0_197] : memref<32x8xf32, #tpu.memory_space<vmem>>, vector<32x8xf32>
    %cst_198 = arith.constant dense<0.000000e+00> : vector<16x8xf32>
    %722 = tpu.matmul %720, %721, %cst_198 {dimension_numbers = #tpu.dot_dimension_numbers<[1], [0], [0], [1], [0, 0, 1, 1], [], []>} : vector<16x32xf32>, vector<32x8xf32>, vector<16x8xf32> -> vector<16x8xf32>
    %c0_199 = arith.constant 0 : index
    %c0_200 = arith.constant 0 : index
    %723 = vector.load %arg22[%c0_199, %c0_200] : memref<1x8xf32, #tpu.memory_space<vmem>>, vector<1x8xf32>
    %724 = vector.broadcast %723 : vector<1x8xf32> to vector<16x8xf32>
    %725 = arith.addf %722, %724 : vector<16x8xf32>
    %c0_201 = arith.constant 0 : index
    %c0_202 = arith.constant 0 : index
    %c0_203 = arith.constant 0 : index
    %726 = vector.load %arg24[%c0_201, %c0_202, %c0_203] : memref<1x16x8xf32, #tpu.memory_space<vmem>>, vector<1x16x8xf32>
    %727 = vector.shape_cast %726 : vector<1x16x8xf32> to vector<16x8xf32>
    %728 = vector.shape_cast %725 : vector<16x8xf32> to vector<1x16x8xf32>
    tpu.vector_store %arg24[%c0_201, %c0_202, %c0_203], %728 {strides = array<i32>} : memref<1x16x8xf32, #tpu.memory_space<vmem>>, vector<1x16x8xf32>,
    return
  }
  func.func @transform_0(%arg0: i32) -> (i32, i32, i32) {
    %c0_i32 = arith.constant 0 : i32
    %c0_i32_0 = arith.constant 0 : i32
    %c0_i32_1 = arith.constant 0 : i32
    return %arg0, %c0_i32, %c0_i32_0 : i32, i32, i32
  }
  func.func @transform_1(%arg0: i32) -> (i32, i32) {
    %c0_i32 = arith.constant 0 : i32
    %c0_i32_0 = arith.constant 0 : i32
    %c0_i32_1 = arith.constant 0 : i32
    return %c0_i32, %c0_i32_0 : i32, i32
  }
  func.func @transform_2(%arg0: i32) -> (i32, i32) {
    %c0_i32 = arith.constant 0 : i32
    %c0_i32_0 = arith.constant 0 : i32
    %c0_i32_1 = arith.constant 0 : i32
    return %c0_i32, %c0_i32_0 : i32, i32
  }
  func.func @transform_3(%arg0: i32) -> (i32, i32) {
    %c0_i32 = arith.constant 0 : i32
    %c0_i32_0 = arith.constant 0 : i32
    %c0_i32_1 = arith.constant 0 : i32
    return %c0_i32, %c0_i32_0 : i32, i32
  }
  func.func @transform_4(%arg0: i32) -> (i32, i32) {
    %c0_i32 = arith.constant 0 : i32
    %c0_i32_0 = arith.constant 0 : i32
    %c0_i32_1 = arith.constant 0 : i32
    return %c0_i32, %c0_i32_0 : i32, i32
  }
  func.func @transform_5(%arg0: i32) -> (i32, i32) {
    %c0_i32 = arith.constant 0 : i32
    %c0_i32_0 = arith.constant 0 : i32
    %c0_i32_1 = arith.constant 0 : i32
    return %c0_i32, %c0_i32_0 : i32, i32
  }
  func.func @transform_6(%arg0: i32) -> (i32, i32) {
    %c0_i32 = arith.constant 0 : i32
    %c0_i32_0 = arith.constant 0 : i32
    %c0_i32_1 = arith.constant 0 : i32
    return %c0_i32, %c0_i32_0 : i32, i32
  }
  func.func @transform_7(%arg0: i32) -> (i32, i32) {
    %c0_i32 = arith.constant 0 : i32
    %c0_i32_0 = arith.constant 0 : i32
    %c0_i32_1 = arith.constant 0 : i32
    return %c0_i32, %c0_i32_0 : i32, i32
  }
  func.func @transform_8(%arg0: i32) -> (i32, i32) {
    %c0_i32 = arith.constant 0 : i32
    %c0_i32_0 = arith.constant 0 : i32
    %c0_i32_1 = arith.constant 0 : i32
    return %c0_i32, %c0_i32_0 : i32, i32
  }
  func.func @transform_9(%arg0: i32) -> (i32, i32) {
    %c0_i32 = arith.constant 0 : i32
    %c0_i32_0 = arith.constant 0 : i32
    %c0_i32_1 = arith.constant 0 : i32
    return %c0_i32, %c0_i32_0 : i32, i32
  }
  func.func @transform_10(%arg0: i32) -> (i32, i32) {
    %c0_i32 = arith.constant 0 : i32
    %c0_i32_0 = arith.constant 0 : i32
    %c0_i32_1 = arith.constant 0 : i32
    return %c0_i32, %c0_i32_0 : i32, i32
  }
  func.func @transform_11(%arg0: i32) -> (i32, i32) {
    %c0_i32 = arith.constant 0 : i32
    %c0_i32_0 = arith.constant 0 : i32
    %c0_i32_1 = arith.constant 0 : i32
    return %c0_i32, %c0_i32_0 : i32, i32
  }
  func.func @transform_12(%arg0: i32) -> (i32, i32) {
    %c0_i32 = arith.constant 0 : i32
    %c0_i32_0 = arith.constant 0 : i32
    %c0_i32_1 = arith.constant 0 : i32
    return %c0_i32, %c0_i32_0 : i32, i32
  }
  func.func @transform_13(%arg0: i32) -> (i32, i32) {
    %c0_i32 = arith.constant 0 : i32
    %c0_i32_0 = arith.constant 0 : i32
    %c0_i32_1 = arith.constant 0 : i32
    return %c0_i32, %c0_i32_0 : i32, i32
  }
  func.func @transform_14(%arg0: i32) -> (i32, i32) {
    %c0_i32 = arith.constant 0 : i32
    %c0_i32_0 = arith.constant 0 : i32
    %c0_i32_1 = arith.constant 0 : i32
    return %c0_i32, %c0_i32_0 : i32, i32
  }
  func.func @transform_15(%arg0: i32) -> (i32, i32, i32) {
    %c0_i32 = arith.constant 0 : i32
    %c0_i32_0 = arith.constant 0 : i32
    %c0_i32_1 = arith.constant 0 : i32
    %c0_i32_2 = arith.constant 0 : i32
    return %c0_i32, %c0_i32_0, %c0_i32_1 : i32, i32, i32
  }
  func.func @transform_16(%arg0: i32) -> (i32, i32) {
    %c0_i32 = arith.constant 0 : i32
    %c0_i32_0 = arith.constant 0 : i32
    %c0_i32_1 = arith.constant 0 : i32
    return %c0_i32, %c0_i32_0 : i32, i32
  }
  func.func @transform_17(%arg0: i32) -> (i32, i32) {
    %c0_i32 = arith.constant 0 : i32
    %c0_i32_0 = arith.constant 0 : i32
    %c0_i32_1 = arith.constant 0 : i32
    return %c0_i32, %c0_i32_0 : i32, i32
  }
  func.func @transform_18(%arg0: i32) -> (i32, i32) {
    %c0_i32 = arith.constant 0 : i32
    %c0_i32_0 = arith.constant 0 : i32
    %c0_i32_1 = arith.constant 0 : i32
    return %c0_i32, %c0_i32_0 : i32, i32
  }
  func.func @transform_19(%arg0: i32) -> (i32, i32) {
    %c0_i32 = arith.constant 0 : i32
    %c0_i32_0 = arith.constant 0 : i32
    %c0_i32_1 = arith.constant 0 : i32
    return %c0_i32, %c0_i32_0 : i32, i32
  }
  func.func @transform_20(%arg0: i32) -> (i32, i32) {
    %c0_i32 = arith.constant 0 : i32
    %c0_i32_0 = arith.constant 0 : i32
    %c0_i32_1 = arith.constant 0 : i32
    return %c0_i32, %c0_i32_0 : i32, i32
  }
  func.func @transform_21(%arg0: i32) -> (i32, i32) {
    %c0_i32 = arith.constant 0 : i32
    %c0_i32_0 = arith.constant 0 : i32
    %c0_i32_1 = arith.constant 0 : i32
    return %c0_i32, %c0_i32_0 : i32, i32
  }
  func.func @transform_22(%arg0: i32) -> (i32, i32, i32) {
    %c0_i32 = arith.constant 0 : i32
    %c0_i32_0 = arith.constant 0 : i32
    %c0_i32_1 = arith.constant 0 : i32
    return %arg0, %c0_i32, %c0_i32_0 : i32, i32, i32
  }
  func.func @transform_23(%arg0: i32) -> (i32, i32, i32) {
    %c0_i32 = arith.constant 0 : i32
    %c0_i32_0 = arith.constant 0 : i32
    %c0_i32_1 = arith.constant 0 : i32
    return %arg0, %c0_i32, %c0_i32_0 : i32, i32, i32
  }
}

</mosaic_0001>

<llo_original>
// kernel: _lambda_.1
$region0: #{_lambda_.1}
  #allocation0 [shape = 'u32[]', space=smem, size = 0x4, offset = 0x4, fixed_abs, tag = 'smem constant byte address 0x4 - core index']
  #allocation1 [shape = 'u32[144,128]{1,0:T(1,128)}', space=vmem, size = 0x12000, scoped, tag = 'internal scratch']
  #allocation2 [shape = 'f32[8,16]{1,0:T(8,128)}', space=vmem, size = 0x1000, scoped, tag = 'scratch operand']
  #allocation3 [shape = 'f32[16,32]{1,0:T(8,128)}', space=vmem, size = 0x2000, scoped, tag = 'scratch operand']
  %s0 = inlined_call_operand.vmem [shape: f32[2,16,8], index: 0, kind: input, shape index: {}]
  %s1 = inlined_call_operand.vmem [shape: f32[16,32], index: 1, kind: input, shape index: {}]
  %s2 = inlined_call_operand.vmem [shape: f32[16,32], index: 2, kind: input, shape index: {}]
  %s3 = inlined_call_operand.vmem [shape: f32[1,32], index: 3, kind: input, shape index: {}]
  %s4 = inlined_call_operand.vmem [shape: f32[1,32], index: 4, kind: input, shape index: {}]
  %s5 = inlined_call_operand.vmem [shape: f32[8,8], index: 5, kind: input, shape index: {}]
  %s6 = inlined_call_operand.vmem [shape: f32[16,48], index: 6, kind: input, shape index: {}]
  %s7 = inlined_call_operand.vmem [shape: f32[16,48], index: 7, kind: input, shape index: {}]
  %s8 = inlined_call_operand.vmem [shape: f32[1,32], index: 8, kind: input, shape index: {}]
  %s9 = inlined_call_operand.vmem [shape: f32[1,16], index: 9, kind: input, shape index: {}]
  %s10 = inlined_call_operand.vmem [shape: f32[1,16], index: 10, kind: input, shape index: {}]
  %s11 = inlined_call_operand.vmem [shape: f32[32,32], index: 11, kind: input, shape index: {}]
  %s12 = inlined_call_operand.vmem [shape: f32[1,32], index: 12, kind: input, shape index: {}]
  %s13 = inlined_call_operand.vmem [shape: f32[32,8], index: 13, kind: input, shape index: {}]
  %s14 = inlined_call_operand.vmem [shape: f32[1,8], index: 14, kind: input, shape index: {}]
  %s15 = inlined_call_operand.vmem [shape: f32[8,32,96], index: 15, kind: input, shape index: {}]
  %s16 = inlined_call_operand.vmem [shape: f32[32,96], index: 16, kind: input, shape index: {}]
  %s17 = inlined_call_operand.vmem [shape: f32[1,64], index: 17, kind: input, shape index: {}]
  %s18 = inlined_call_operand.vmem [shape: f32[1,32], index: 18, kind: input, shape index: {}]
  %s19 = inlined_call_operand.vmem [shape: f32[1,32], index: 19, kind: input, shape index: {}]
  %s20 = inlined_call_operand.vmem [shape: f32[32,8], index: 20, kind: input, shape index: {}]
  %s21 = inlined_call_operand.vmem [shape: f32[1,8], index: 21, kind: input, shape index: {}]
  %s22 = inlined_call_operand.hbm [shape: f32[2,8,8], index: 22, kind: output, shape index: {0}]
  %s23 = inlined_call_operand.vmem [shape: f32[2,16,8], index: 23, kind: output, shape index: {1}]
  %24 = xla_tuple %s22, %s23
  %s25 = sld [smem:[#allocation0]]
  $region129: #{_lambda_.1} parent=0
    _
  %s27 = ssub.s32 1, %s25
  %s28 = scalar_select 0, %s27, %s25
  $region1: #{_lambda_.1} parent=0
    #allocation4 [shape = 'u8[8192]{0}', space=vmem, size = 0x2000, scoped, tag = 'output window, operand 0']
    #allocation5 [shape = 's32[2]{0}', space=sflag, size = 0x8, scoped, tag = 'scoped memory for _lambda_.1']
    %29 = vsyncpa [#allocation5], 0
    %s30 = scalar_lea.sflag [#allocation5], 1
    %31 = vsyncpa %s30, 0
    loop: start=0, step=1, limit=4
    $region2: #{_lambda_.1} parent=1 // loop_pre_header
      _
    $region3: #{_lambda_.1} parent=1 // loop_header
      %s33 = sphi 0, %s37
      %p34 = scmp.ge.s32.totalorder %s33, 4
      %s43 = sphi 0, %s45
      %s46 = sphi 0, %s43
      %s47 = sphi 0, %s46
      %s63 = sphi 0, %s47
      %s67 = sphi 0, %s67
      %s69 = sphi 0, %s67
      %s70 = sphi 0, %s69
      %s84 = sphi 0, %s70
      %s88 = sphi 0, %s88
      %s90 = sphi 0, %s88
      %s91 = sphi 0, %s90
      %s105 = sphi 0, %s91
      %s109 = sphi 0, %s109
      %s111 = sphi 0, %s109
      %s112 = sphi 0, %s111
      %s126 = sphi 0, %s112
      %s130 = sphi 0, %s130
      %s132 = sphi 0, %s130
      %s133 = sphi 0, %s132
      %s147 = sphi 0, %s133
      %s151 = sphi 0, %s151
      %s153 = sphi 0, %s151
      %s154 = sphi 0, %s153
      %s168 = sphi 0, %s154
      %s172 = sphi 0, %s172
      %s174 = sphi 0, %s172
      %s175 = sphi 0, %s174
      %s189 = sphi 0, %s175
      %s193 = sphi 0, %s193
      %s195 = sphi 0, %s193
      %s196 = sphi 0, %s195
      %s210 = sphi 0, %s196
      %s214 = sphi 0, %s214
      %s216 = sphi 0, %s214
      %s217 = sphi 0, %s216
      %s231 = sphi 0, %s217
      %s235 = sphi 0, %s235
      %s237 = sphi 0, %s235
      %s238 = sphi 0, %s237
      %s252 = sphi 0, %s238
      %s256 = sphi 0, %s256
      %s258 = sphi 0, %s256
      %s259 = sphi 0, %s258
      %s273 = sphi 0, %s259
      %s277 = sphi 0, %s277
      %s279 = sphi 0, %s277
      %s280 = sphi 0, %s279
      %s294 = sphi 0, %s280
      %s298 = sphi 0, %s298
      %s300 = sphi 0, %s298
      %s301 = sphi 0, %s300
      %s315 = sphi 0, %s301
      %s319 = sphi 0, %s319
      %s321 = sphi 0, %s319
      %s322 = sphi 0, %s321
      %s336 = sphi 0, %s322
      %s340 = sphi 0, %s340
      %s342 = sphi 0, %s340
      %s343 = sphi 0, %s342
      %s357 = sphi 0, %s343
      %s361 = sphi 0, %s361
      %s363 = sphi 0, %s361
      %s364 = sphi 0, %s363
      %s378 = sphi 0, %s364
      %s382 = sphi 0, %s382
      %s384 = sphi 0, %s382
      %s385 = sphi 0, %s384
      %s399 = sphi 0, %s385
      %s403 = sphi 0, %s403
      %s405 = sphi 0, %s403
      %s406 = sphi 0, %s405
      %s420 = sphi 0, %s406
      %s424 = sphi 0, %s424
      %s426 = sphi 0, %s424
      %s427 = sphi 0, %s426
      %s441 = sphi 0, %s427
      %s445 = sphi 0, %s445
      %s447 = sphi 0, %s445
      %s448 = sphi 0, %s447
      %s462 = sphi 0, %s448
      %s466 = sphi 0, %s466
      %s468 = sphi 0, %s466
      %s469 = sphi 0, %s468
      %s483 = sphi 0, %s469
      %s487 = sphi 0, %s487
      %s489 = sphi 0, %s487
      %s490 = sphi 0, %s489
      %s504 = sphi 0, %s490
      %s510 = sphi 0, %s512
      %s513 = sphi 0, %s510
      %s514 = sphi 0, %s513
      %s530 = sphi 0, %s514
      %s536 = sphi 0, %s538
      %s539 = sphi 0, %s536
      %s540 = sphi 0, %s539
      %s556 = sphi 0, %s540
    $region4: #{_lambda_.1} parent=1 // loop_header_branch
      %36 = sbr.rel (%p34) target = $region8
    $region5: #{_lambda_.1} parent=1 // loop_body
      %s38 = ssub.s32 %s33, 1
      %s39 = ssub.s32 %s33, 2
      %s40 = sadd.s32 %s33, 1
      %s41 = ssub.s32 %s33, %s40
      %p42 = scmp.eq.s32.totalorder %s41, 0
      %s44 = sadd.s32 %s43, 1
      %s45 = scalar_select %p42, %s43, %s44
      %p48 = pneg %p42
      %p49 = scmp.eq.s32.totalorder %s33, 1
      %p50 = por %p48, %p49
      %p51 = scmp.ne.s32.totalorder %s43, %s46
      %p52 = scmp.eq.s32.totalorder %s33, 0
      %p53 = por %p51, %p52
      %p54 = scmp.ne.s32.totalorder %s43, %s46
      %p55 = scmp.eq.s32.totalorder %s38, 1
      %p56 = por %p54, %p55
      %p57 = scmp.ne.s32.totalorder %s46, %s47
      %p58 = scmp.eq.s32.totalorder %s38, 0
      %p59 = por %p57, %p58
      %p60 = scmp.ne.s32.totalorder %s46, %s47
      %p61 = scmp.eq.s32.totalorder %s39, 1
      %p62 = por %p60, %p61
      %p64 = scmp.ne.s32.totalorder %s47, %s63
      %p65 = scmp.eq.s32.totalorder %s39, 0
      %p66 = por %p64, %p65
      %s68 = sadd.s32 %s67, 1
      %p71 = scmp.eq.s32.totalorder %s33, 1
      %p72 = scmp.ne.s32.totalorder %s67, %s69
      %p73 = scmp.eq.s32.totalorder %s33, 0
      %p74 = por %p72, %p73
      %p75 = scmp.ne.s32.totalorder %s67, %s69
      %p76 = scmp.eq.s32.totalorder %s38, 1
      %p77 = por %p75, %p76
      %p78 = scmp.ne.s32.totalorder %s69, %s70
      %p79 = scmp.eq.s32.totalorder %s38, 0
      %p80 = por %p78, %p79
      %p81 = scmp.ne.s32.totalorder %s69, %s70
      %p82 = scmp.eq.s32.totalorder %s39, 1
      %p83 = por %p81, %p82
      %p85 = scmp.ne.s32.totalorder %s70, %s84
      %p86 = scmp.eq.s32.totalorder %s39, 0
      %p87 = por %p85, %p86
      %s89 = sadd.s32 %s88, 1
      %p92 = scmp.eq.s32.totalorder %s33, 1
      %p93 = scmp.ne.s32.totalorder %s88, %s90
      %p94 = scmp.eq.s32.totalorder %s33, 0
      %p95 = por %p93, %p94
      %p96 = scmp.ne.s32.totalorder %s88, %s90
      %p97 = scmp.eq.s32.totalorder %s38, 1
      %p98 = por %p96, %p97
      %p99 = scmp.ne.s32.totalorder %s90, %s91
      %p100 = scmp.eq.s32.totalorder %s38, 0
      %p101 = por %p99, %p100
      %p102 = scmp.ne.s32.totalorder %s90, %s91
      %p103 = scmp.eq.s32.totalorder %s39, 1
      %p104 = por %p102, %p103
      %p106 = scmp.ne.s32.totalorder %s91, %s105
      %p107 = scmp.eq.s32.totalorder %s39, 0
      %p108 = por %p106, %p107
      %s110 = sadd.s32 %s109, 1
      %p113 = scmp.eq.s32.totalorder %s33, 1
      %p114 = scmp.ne.s32.totalorder %s109, %s111
      %p115 = scmp.eq.s32.totalorder %s33, 0
      %p116 = por %p114, %p115
      %p117 = scmp.ne.s32.totalorder %s109, %s111
      %p118 = scmp.eq.s32.totalorder %s38, 1
      %p119 = por %p117, %p118
      %p120 = scmp.ne.s32.totalorder %s111, %s112
      %p121 = scmp.eq.s32.totalorder %s38, 0
      %p122 = por %p120, %p121
      %p123 = scmp.ne.s32.totalorder %s111, %s112
      %p124 = scmp.eq.s32.totalorder %s39, 1
      %p125 = por %p123, %p124
      %p127 = scmp.ne.s32.totalorder %s112, %s126
      %p128 = scmp.eq.s32.totalorder %s39, 0
      %p129 = por %p127, %p128
      %s131 = sadd.s32 %s130, 1
      %p134 = scmp.eq.s32.totalorder %s33, 1
      %p135 = scmp.ne.s32.totalorder %s130, %s132
      %p136 = scmp.eq.s32.totalorder %s33, 0
      %p137 = por %p135, %p136
      %p138 = scmp.ne.s32.totalorder %s130, %s132
      %p139 = scmp.eq.s32.totalorder %s38, 1
      %p140 = por %p138, %p139
      %p141 = scmp.ne.s32.totalorder %s132, %s133
      %p142 = scmp.eq.s32.totalorder %s38, 0
      %p143 = por %p141, %p142
      %p144 = scmp.ne.s32.totalorder %s132, %s133
      %p145 = scmp.eq.s32.totalorder %s39, 1
      %p146 = por %p144, %p145
      %p148 = scmp.ne.s32.totalorder %s133, %s147
      %p149 = scmp.eq.s32.totalorder %s39, 0
      %p150 = por %p148, %p149
      %s152 = sadd.s32 %s151, 1
      %p155 = scmp.eq.s32.totalorder %s33, 1
      %p156 = scmp.ne.s32.totalorder %s151, %s153
      %p157 = scmp.eq.s32.totalorder %s33, 0
      %p158 = por %p156, %p157
      %p159 = scmp.ne.s32.totalorder %s151, %s153
      %p160 = scmp.eq.s32.totalorder %s38, 1
      %p161 = por %p159, %p160
      %p162 = scmp.ne.s32.totalorder %s153, %s154
      %p163 = scmp.eq.s32.totalorder %s38, 0
      %p164 = por %p162, %p163
      %p165 = scmp.ne.s32.totalorder %s153, %s154
      %p166 = scmp.eq.s32.totalorder %s39, 1
      %p167 = por %p165, %p166
      %p169 = scmp.ne.s32.totalorder %s154, %s168
      %p170 = scmp.eq.s32.totalorder %s39, 0
      %p171 = por %p169, %p170
      %s173 = sadd.s32 %s172, 1
      %p176 = scmp.eq.s32.totalorder %s33, 1
      %p177 = scmp.ne.s32.totalorder %s172, %s174
      %p178 = scmp.eq.s32.totalorder %s33, 0
      %p179 = por %p177, %p178
      %p180 = scmp.ne.s32.totalorder %s172, %s174
      %p181 = scmp.eq.s32.totalorder %s38, 1
      %p182 = por %p180, %p181
      %p183 = scmp.ne.s32.totalorder %s174, %s175
      %p184 = scmp.eq.s32.totalorder %s38, 0
      %p185 = por %p183, %p184
      %p186 = scmp.ne.s32.totalorder %s174, %s175
      %p187 = scmp.eq.s32.totalorder %s39, 1
      %p188 = por %p186, %p187
      %p190 = scmp.ne.s32.totalorder %s175, %s189
      %p191 = scmp.eq.s32.totalorder %s39, 0
      %p192 = por %p190, %p191
      %s194 = sadd.s32 %s193, 1
      %p197 = scmp.eq.s32.totalorder %s33, 1
      %p198 = scmp.ne.s32.totalorder %s193, %s195
      %p199 = scmp.eq.s32.totalorder %s33, 0
      %p200 = por %p198, %p199
      %p201 = scmp.ne.s32.totalorder %s193, %s195
      %p202 = scmp.eq.s32.totalorder %s38, 1
      %p203 = por %p201, %p202
      %p204 = scmp.ne.s32.totalorder %s195, %s196
      %p205 = scmp.eq.s32.totalorder %s38, 0
      %p206 = por %p204, %p205
      %p207 = scmp.ne.s32.totalorder %s195, %s196
      %p208 = scmp.eq.s32.totalorder %s39, 1
      %p209 = por %p207, %p208
      %p211 = scmp.ne.s32.totalorder %s196, %s210
      %p212 = scmp.eq.s32.totalorder %s39, 0
      %p213 = por %p211, %p212
      %s215 = sadd.s32 %s214, 1
      %p218 = scmp.eq.s32.totalorder %s33, 1
      %p219 = scmp.ne.s32.totalorder %s214, %s216
      %p220 = scmp.eq.s32.totalorder %s33, 0
      %p221 = por %p219, %p220
      %p222 = scmp.ne.s32.totalorder %s214, %s216
      %p223 = scmp.eq.s32.totalorder %s38, 1
      %p224 = por %p222, %p223
      %p225 = scmp.ne.s32.totalorder %s216, %s217
      %p226 = scmp.eq.s32.totalorder %s38, 0
      %p227 = por %p225, %p226
      %p228 = scmp.ne.s32.totalorder %s216, %s217
      %p229 = scmp.eq.s32.totalorder %s39, 1
      %p230 = por %p228, %p229
      %p232 = scmp.ne.s32.totalorder %s217, %s231
      %p233 = scmp.eq.s32.totalorder %s39, 0
      %p234 = por %p232, %p233
      %s236 = sadd.s32 %s235, 1
      %p239 = scmp.eq.s32.totalorder %s33, 1
      %p240 = scmp.ne.s32.totalorder %s235, %s237
      %p241 = scmp.eq.s32.totalorder %s33, 0
      %p242 = por %p240, %p241
      %p243 = scmp.ne.s32.totalorder %s235, %s237
      %p244 = scmp.eq.s32.totalorder %s38, 1
      %p245 = por %p243, %p244
      %p246 = scmp.ne.s32.totalorder %s237, %s238
      %p247 = scmp.eq.s32.totalorder %s38, 0
      %p248 = por %p246, %p247
      %p249 = scmp.ne.s32.totalorder %s237, %s238
      %p250 = scmp.eq.s32.totalorder %s39, 1
      %p251 = por %p249, %p250
      %p253 = scmp.ne.s32.totalorder %s238, %s252
      %p254 = scmp.eq.s32.totalorder %s39, 0
      %p255 = por %p253, %p254
      %s257 = sadd.s32 %s256, 1
      %p260 = scmp.eq.s32.totalorder %s33, 1
      %p261 = scmp.ne.s32.totalorder %s256, %s258
      %p262 = scmp.eq.s32.totalorder %s33, 0
      %p263 = por %p261, %p262
      %p264 = scmp.ne.s32.totalorder %s256, %s258
      %p265 = scmp.eq.s32.totalorder %s38, 1
      %p266 = por %p264, %p265
      %p267 = scmp.ne.s32.totalorder %s258, %s259
      %p268 = scmp.eq.s32.totalorder %s38, 0
      %p269 = por %p267, %p268
      %p270 = scmp.ne.s32.totalorder %s258, %s259
      %p271 = scmp.eq.s32.totalorder %s39, 1
      %p272 = por %p270, %p271
      %p274 = scmp.ne.s32.totalorder %s259, %s273
      %p275 = scmp.eq.s32.totalorder %s39, 0
      %p276 = por %p274, %p275
      %s278 = sadd.s32 %s277, 1
      %p281 = scmp.eq.s32.totalorder %s33, 1
      %p282 = scmp.ne.s32.totalorder %s277, %s279
      %p283 = scmp.eq.s32.totalorder %s33, 0
      %p284 = por %p282, %p283
      %p285 = scmp.ne.s32.totalorder %s277, %s279
      %p286 = scmp.eq.s32.totalorder %s38, 1
      %p287 = por %p285, %p286
      %p288 = scmp.ne.s32.totalorder %s279, %s280
      %p289 = scmp.eq.s32.totalorder %s38, 0
      %p290 = por %p288, %p289
      %p291 = scmp.ne.s32.totalorder %s279, %s280
      %p292 = scmp.eq.s32.totalorder %s39, 1
      %p293 = por %p291, %p292
      %p295 = scmp.ne.s32.totalorder %s280, %s294
      %p296 = scmp.eq.s32.totalorder %s39, 0
      %p297 = por %p295, %p296
      %s299 = sadd.s32 %s298, 1
      %p302 = scmp.eq.s32.totalorder %s33, 1
      %p303 = scmp.ne.s32.totalorder %s298, %s300
      %p304 = scmp.eq.s32.totalorder %s33, 0
      %p305 = por %p303, %p304
      %p306 = scmp.ne.s32.totalorder %s298, %s300
      %p307 = scmp.eq.s32.totalorder %s38, 1
      %p308 = por %p306, %p307
      %p309 = scmp.ne.s32.totalorder %s300, %s301
      %p310 = scmp.eq.s32.totalorder %s38, 0
      %p311 = por %p309, %p310
      %p312 = scmp.ne.s32.totalorder %s300, %s301
      %p313 = scmp.eq.s32.totalorder %s39, 1
      %p314 = por %p312, %p313
      %p316 = scmp.ne.s32.totalorder %s301, %s315
      %p317 = scmp.eq.s32.totalorder %s39, 0
      %p318 = por %p316, %p317
      %s320 = sadd.s32 %s319, 1
      %p323 = scmp.eq.s32.totalorder %s33, 1
      %p324 = scmp.ne.s32.totalorder %s319, %s321
      %p325 = scmp.eq.s32.totalorder %s33, 0
      %p326 = por %p324, %p325
      %p327 = scmp.ne.s32.totalorder %s319, %s321
      %p328 = scmp.eq.s32.totalorder %s38, 1
      %p329 = por %p327, %p328
      %p330 = scmp.ne.s32.totalorder %s321, %s322
      %p331 = scmp.eq.s32.totalorder %s38, 0
      %p332 = por %p330, %p331
      %p333 = scmp.ne.s32.totalorder %s321, %s322
      %p334 = scmp.eq.s32.totalorder %s39, 1
      %p335 = por %p333, %p334
      %p337 = scmp.ne.s32.totalorder %s322, %s336
      %p338 = scmp.eq.s32.totalorder %s39, 0
      %p339 = por %p337, %p338
      %s341 = sadd.s32 %s340, 1
      %p344 = scmp.eq.s32.totalorder %s33, 1
      %p345 = scmp.ne.s32.totalorder %s340, %s342
      %p346 = scmp.eq.s32.totalorder %s33, 0
      %p347 = por %p345, %p346
      %p348 = scmp.ne.s32.totalorder %s340, %s342
      %p349 = scmp.eq.s32.totalorder %s38, 1
      %p350 = por %p348, %p349
      %p351 = scmp.ne.s32.totalorder %s342, %s343
      %p352 = scmp.eq.s32.totalorder %s38, 0
      %p353 = por %p351, %p352
      %p354 = scmp.ne.s32.totalorder %s342, %s343
      %p355 = scmp.eq.s32.totalorder %s39, 1
      %p356 = por %p354, %p355
      %p358 = scmp.ne.s32.totalorder %s343, %s357
      %p359 = scmp.eq.s32.totalorder %s39, 0
      %p360 = por %p358, %p359
      %s362 = sadd.s32 %s361, 1
      %p365 = scmp.eq.s32.totalorder %s33, 1
      %p366 = scmp.ne.s32.totalorder %s361, %s363
      %p367 = scmp.eq.s32.totalorder %s33, 0
      %p368 = por %p366, %p367
      %p369 = scmp.ne.s32.totalorder %s361, %s363
      %p370 = scmp.eq.s32.totalorder %s38, 1
      %p371 = por %p369, %p370
      %p372 = scmp.ne.s32.totalorder %s363, %s364
      %p373 = scmp.eq.s32.totalorder %s38, 0
      %p374 = por %p372, %p373
      %p375 = scmp.ne.s32.totalorder %s363, %s364
      %p376 = scmp.eq.s32.totalorder %s39, 1
      %p377 = por %p375, %p376
      %p379 = scmp.ne.s32.totalorder %s364, %s378
      %p380 = scmp.eq.s32.totalorder %s39, 0
      %p381 = por %p379, %p380
      %s383 = sadd.s32 %s382, 1
      %p386 = scmp.eq.s32.totalorder %s33, 1
      %p387 = scmp.ne.s32.totalorder %s382, %s384
      %p388 = scmp.eq.s32.totalorder %s33, 0
      %p389 = por %p387, %p388
      %p390 = scmp.ne.s32.totalorder %s382, %s384
      %p391 = scmp.eq.s32.totalorder %s38, 1
      %p392 = por %p390, %p391
      %p393 = scmp.ne.s32.totalorder %s384, %s385
      %p394 = scmp.eq.s32.totalorder %s38, 0
      %p395 = por %p393, %p394
      %p396 = scmp.ne.s32.totalorder %s384, %s385
      %p397 = scmp.eq.s32.totalorder %s39, 1
      %p398 = por %p396, %p397
      %p400 = scmp.ne.s32.totalorder %s385, %s399
      %p401 = scmp.eq.s32.totalorder %s39, 0
      %p402 = por %p400, %p401
      %s404 = sadd.s32 %s403, 1
      %p407 = scmp.eq.s32.totalorder %s33, 1
      %p408 = scmp.ne.s32.totalorder %s403, %s405
      %p409 = scmp.eq.s32.totalorder %s33, 0
      %p410 = por %p408, %p409
      %p411 = scmp.ne.s32.totalorder %s403, %s405
      %p412 = scmp.eq.s32.totalorder %s38, 1
      %p413 = por %p411, %p412
      %p414 = scmp.ne.s32.totalorder %s405, %s406
      %p415 = scmp.eq.s32.totalorder %s38, 0
      %p416 = por %p414, %p415
      %p417 = scmp.ne.s32.totalorder %s405, %s406
      %p418 = scmp.eq.s32.totalorder %s39, 1
      %p419 = por %p417, %p418
      %p421 = scmp.ne.s32.totalorder %s406, %s420
      %p422 = scmp.eq.s32.totalorder %s39, 0
      %p423 = por %p421, %p422
      %s425 = sadd.s32 %s424, 1
      %p428 = scmp.eq.s32.totalorder %s33, 1
      %p429 = scmp.ne.s32.totalorder %s424, %s426
      %p430 = scmp.eq.s32.totalorder %s33, 0
      %p431 = por %p429, %p430
      %p432 = scmp.ne.s32.totalorder %s424, %s426
      %p433 = scmp.eq.s32.totalorder %s38, 1
      %p434 = por %p432, %p433
      %p435 = scmp.ne.s32.totalorder %s426, %s427
      %p436 = scmp.eq.s32.totalorder %s38, 0
      %p437 = por %p435, %p436
      %p438 = scmp.ne.s32.totalorder %s426, %s427
      %p439 = scmp.eq.s32.totalorder %s39, 1
      %p440 = por %p438, %p439
      %p442 = scmp.ne.s32.totalorder %s427, %s441
      %p443 = scmp.eq.s32.totalorder %s39, 0
      %p444 = por %p442, %p443
      %s446 = sadd.s32 %s445, 1
      %p449 = scmp.eq.s32.totalorder %s33, 1
      %p450 = scmp.ne.s32.totalorder %s445, %s447
      %p451 = scmp.eq.s32.totalorder %s33, 0
      %p452 = por %p450, %p451
      %p453 = scmp.ne.s32.totalorder %s445, %s447
      %p454 = scmp.eq.s32.totalorder %s38, 1
      %p455 = por %p453, %p454
      %p456 = scmp.ne.s32.totalorder %s447, %s448
      %p457 = scmp.eq.s32.totalorder %s38, 0
      %p458 = por %p456, %p457
      %p459 = scmp.ne.s32.totalorder %s447, %s448
      %p460 = scmp.eq.s32.totalorder %s39, 1
      %p461 = por %p459, %p460
      %p463 = scmp.ne.s32.totalorder %s448, %s462
      %p464 = scmp.eq.s32.totalorder %s39, 0
      %p465 = por %p463, %p464
      %s467 = sadd.s32 %s466, 1
      %p470 = scmp.eq.s32.totalorder %s33, 1
      %p471 = scmp.ne.s32.totalorder %s466, %s468
      %p472 = scmp.eq.s32.totalorder %s33, 0
      %p473 = por %p471, %p472
      %p474 = scmp.ne.s32.totalorder %s466, %s468
      %p475 = scmp.eq.s32.totalorder %s38, 1
      %p476 = por %p474, %p475
      %p477 = scmp.ne.s32.totalorder %s468, %s469
      %p478 = scmp.eq.s32.totalorder %s38, 0
      %p479 = por %p477, %p478
      %p480 = scmp.ne.s32.totalorder %s468, %s469
      %p481 = scmp.eq.s32.totalorder %s39, 1
      %p482 = por %p480, %p481
      %p484 = scmp.ne.s32.totalorder %s469, %s483
      %p485 = scmp.eq.s32.totalorder %s39, 0
      %p486 = por %p484, %p485
      %s488 = sadd.s32 %s487, 1
      %p491 = scmp.eq.s32.totalorder %s33, 1
      %p492 = scmp.ne.s32.totalorder %s487, %s489
      %p493 = scmp.eq.s32.totalorder %s33, 0
      %p494 = por %p492, %p493
      %p495 = scmp.ne.s32.totalorder %s487, %s489
      %p496 = scmp.eq.s32.totalorder %s38, 1
      %p497 = por %p495, %p496
      %p498 = scmp.ne.s32.totalorder %s489, %s490
      %p499 = scmp.eq.s32.totalorder %s38, 0
      %p500 = por %p498, %p499
      %p501 = scmp.ne.s32.totalorder %s489, %s490
      %p502 = scmp.eq.s32.totalorder %s39, 1
      %p503 = por %p501, %p502
      %p505 = scmp.ne.s32.totalorder %s490, %s504
      %p506 = scmp.eq.s32.totalorder %s39, 0
      %p507 = por %p505, %p506
      %s508 = ssub.s32 %s33, %s40
      %p509 = scmp.eq.s32.totalorder %s508, 0
      %s511 = sadd.s32 %s510, 1
      %s512 = scalar_select %p509, %s510, %s511
      %p515 = pneg %p509
      %p516 = scmp.eq.s32.totalorder %s33, 1
      %p517 = por %p515, %p516
      %p518 = scmp.ne.s32.totalorder %s510, %s513
      %p519 = scmp.eq.s32.totalorder %s33, 0
      %p520 = por %p518, %p519
      %p521 = scmp.ne.s32.totalorder %s510, %s513
      %p522 = scmp.eq.s32.totalorder %s38, 1
      %p523 = por %p521, %p522
      %p524 = scmp.ne.s32.totalorder %s513, %s514
      %p525 = scmp.eq.s32.totalorder %s38, 0
      %p526 = por %p524, %p525
      %p527 = scmp.ne.s32.totalorder %s513, %s514
      %p528 = scmp.eq.s32.totalorder %s39, 1
      %p529 = por %p527, %p528
      %p531 = scmp.ne.s32.totalorder %s514, %s530
      %p532 = scmp.eq.s32.totalorder %s39, 0
      %p533 = por %p531, %p532
      %s534 = ssub.s32 %s33, %s40
      %p535 = scmp.eq.s32.totalorder %s534, 0
      %s537 = sadd.s32 %s536, 1
      %s538 = scalar_select %p535, %s536, %s537
      %p541 = pneg %p535
      %p542 = scmp.eq.s32.totalorder %s33, 1
      %p543 = por %p541, %p542
      %p544 = scmp.ne.s32.totalorder %s536, %s539
      %p545 = scmp.eq.s32.totalorder %s33, 0
      %p546 = por %p544, %p545
      %p547 = scmp.ne.s32.totalorder %s536, %s539
      %p548 = scmp.eq.s32.totalorder %s38, 1
      %p549 = por %p547, %p548
      %p550 = scmp.ne.s32.totalorder %s539, %s540
      %p551 = scmp.eq.s32.totalorder %s38, 0
      %p552 = por %p550, %p551
      %p553 = scmp.ne.s32.totalorder %s539, %s540
      %p554 = scmp.eq.s32.totalorder %s39, 1
      %p555 = por %p553, %p554
      %p557 = scmp.ne.s32.totalorder %s540, %s556
      %p558 = scmp.eq.s32.totalorder %s39, 0
      %p559 = por %p557, %p558
      %p560 = scmp.le.s32.totalorder 1, %s33
      %p561 = scmp.lt.s32.totalorder %s33, 3
      %p562 = pnand %p560, %p561
      %p563 = pneg %p562
      // Predicated region
      $region9: #{_lambda_.1} parent=5 // pred_check
        _
      $region10: #{_lambda_.1} parent=5 // pred_check_branch
        %565 = sbr.rel (%p562) target = $region12
      $region11: #{_lambda_.1} parent=5 // pred_region
        %s566 = ssub.s32 %s33, 1
        // Predicated region
        $region13: #{_lambda_.1} parent=11 // pred_check
          %p567 = pneg %p80
        $region14: #{_lambda_.1} parent=11 // pred_check_branch
          %569 = sbr.rel (%p567) target = $region16
        $region15: #{_lambda_.1} parent=11 // pred_region
          _
        $region16: #{_lambda_.1} parent=11 // pred_fallthru
          _
        // Predicated region
        $region17: #{_lambda_.1} parent=11 // pred_check
          %p570 = pneg %p101
        $region18: #{_lambda_.1} parent=11 // pred_check_branch
          %572 = sbr.rel (%p570) target = $region20
        $region19: #{_lambda_.1} parent=11 // pred_region
          _
        $region20: #{_lambda_.1} parent=11 // pred_fallthru
          _
        // Predicated region
        $region21: #{_lambda_.1} parent=11 // pred_check
          %p573 = pneg %p122
        $region22: #{_lambda_.1} parent=11 // pred_check_branch
          %575 = sbr.rel (%p573) target = $region24
        $region23: #{_lambda_.1} parent=11 // pred_region
          _
        $region24: #{_lambda_.1} parent=11 // pred_fallthru
          _
        // Predicated region
        $region25: #{_lambda_.1} parent=11 // pred_check
          %p576 = pneg %p143
        $region26: #{_lambda_.1} parent=11 // pred_check_branch
          %578 = sbr.rel (%p576) target = $region28
        $region27: #{_lambda_.1} parent=11 // pred_region
          _
        $region28: #{_lambda_.1} parent=11 // pred_fallthru
          _
        // Predicated region
        $region29: #{_lambda_.1} parent=11 // pred_check
          %p579 = pneg %p164
        $region30: #{_lambda_.1} parent=11 // pred_check_branch
          %581 = sbr.rel (%p579) target = $region32
        $region31: #{_lambda_.1} parent=11 // pred_region
          _
        $region32: #{_lambda_.1} parent=11 // pred_fallthru
          _
        // Predicated region
        $region33: #{_lambda_.1} parent=11 // pred_check
          %p582 = pneg %p185
        $region34: #{_lambda_.1} parent=11 // pred_check_branch
          %584 = sbr.rel (%p582) target = $region36
        $region35: #{_lambda_.1} parent=11 // pred_region
          _
        $region36: #{_lambda_.1} parent=11 // pred_fallthru
          _
        // Predicated region
        $region37: #{_lambda_.1} parent=11 // pred_check
          %p585 = pneg %p206
        $region38: #{_lambda_.1} parent=11 // pred_check_branch
          %587 = sbr.rel (%p585) target = $region40
        $region39: #{_lambda_.1} parent=11 // pred_region
          _
        $region40: #{_lambda_.1} parent=11 // pred_fallthru
          _
        // Predicated region
        $region41: #{_lambda_.1} parent=11 // pred_check
          %p588 = pneg %p227
        $region42: #{_lambda_.1} parent=11 // pred_check_branch
          %590 = sbr.rel (%p588) target = $region44
        $region43: #{_lambda_.1} parent=11 // pred_region
          _
        $region44: #{_lambda_.1} parent=11 // pred_fallthru
          _
        // Predicated region
        $region45: #{_lambda_.1} parent=11 // pred_check
          %p591 = pneg %p248
        $region46: #{_lambda_.1} parent=11 // pred_check_branch
          %593 = sbr.rel (%p591) target = $region48
        $region47: #{_lambda_.1} parent=11 // pred_region
          _
        $region48: #{_lambda_.1} parent=11 // pred_fallthru
          _
        // Predicated region
        $region49: #{_lambda_.1} parent=11 // pred_check
          %p594 = pneg %p269
        $region50: #{_lambda_.1} parent=11 // pred_check_branch
          %596 = sbr.rel (%p594) target = $region52
        $region51: #{_lambda_.1} parent=11 // pred_region
          _
        $region52: #{_lambda_.1} parent=11 // pred_fallthru
          _
        // Predicated region
        $region53: #{_lambda_.1} parent=11 // pred_check
          %p597 = pneg %p290
        $region54: #{_lambda_.1} parent=11 // pred_check_branch
          %599 = sbr.rel (%p597) target = $region56
        $region55: #{_lambda_.1} parent=11 // pred_region
          _
        $region56: #{_lambda_.1} parent=11 // pred_fallthru
          _
        // Predicated region
        $region57: #{_lambda_.1} parent=11 // pred_check
          %p600 = pneg %p311
        $region58: #{_lambda_.1} parent=11 // pred_check_branch
          %602 = sbr.rel (%p600) target = $region60
        $region59: #{_lambda_.1} parent=11 // pred_region
          _
        $region60: #{_lambda_.1} parent=11 // pred_fallthru
          _
        // Predicated region
        $region61: #{_lambda_.1} parent=11 // pred_check
          %p603 = pneg %p332
        $region62: #{_lambda_.1} parent=11 // pred_check_branch
          %605 = sbr.rel (%p603) target = $region64
        $region63: #{_lambda_.1} parent=11 // pred_region
          _
        $region64: #{_lambda_.1} parent=11 // pred_fallthru
          _
        // Predicated region
        $region65: #{_lambda_.1} parent=11 // pred_check
          %p606 = pneg %p353
        $region66: #{_lambda_.1} parent=11 // pred_check_branch
          %608 = sbr.rel (%p606) target = $region68
        $region67: #{_lambda_.1} parent=11 // pred_region
          _
        $region68: #{_lambda_.1} parent=11 // pred_fallthru
          _
        // Predicated region
        $region69: #{_lambda_.1} parent=11 // pred_check
          %p609 = pneg %p374
        $region70: #{_lambda_.1} parent=11 // pred_check_branch
          %611 = sbr.rel (%p609) target = $region72
        $region71: #{_lambda_.1} parent=11 // pred_region
          _
        $region72: #{_lambda_.1} parent=11 // pred_fallthru
          _
        // Predicated region
        $region73: #{_lambda_.1} parent=11 // pred_check
          %p612 = pneg %p395
        $region74: #{_lambda_.1} parent=11 // pred_check_branch
          %614 = sbr.rel (%p612) target = $region76
        $region75: #{_lambda_.1} parent=11 // pred_region
          _
        $region76: #{_lambda_.1} parent=11 // pred_fallthru
          _
        // Predicated region
        $region77: #{_lambda_.1} parent=11 // pred_check
          %p615 = pneg %p416
        $region78: #{_lambda_.1} parent=11 // pred_check_branch
          %617 = sbr.rel (%p615) target = $region80
        $region79: #{_lambda_.1} parent=11 // pred_region
          _
        $region80: #{_lambda_.1} parent=11 // pred_fallthru
          _
        // Predicated region
        $region81: #{_lambda_.1} parent=11 // pred_check
          %p618 = pneg %p437
        $region82: #{_lambda_.1} parent=11 // pred_check_branch
          %620 = sbr.rel (%p618) target = $region84
        $region83: #{_lambda_.1} parent=11 // pred_region
          _
        $region84: #{_lambda_.1} parent=11 // pred_fallthru
          _
        // Predicated region
        $region85: #{_lambda_.1} parent=11 // pred_check
          %p621 = pneg %p458
        $region86: #{_lambda_.1} parent=11 // pred_check_branch
          %623 = sbr.rel (%p621) target = $region88
        $region87: #{_lambda_.1} parent=11 // pred_region
          _
        $region88: #{_lambda_.1} parent=11 // pred_fallthru
          _
        // Predicated region
        $region89: #{_lambda_.1} parent=11 // pred_check
          %p624 = pneg %p479
        $region90: #{_lambda_.1} parent=11 // pred_check_branch
          %626 = sbr.rel (%p624) target = $region92
        $region91: #{_lambda_.1} parent=11 // pred_region
          _
        $region92: #{_lambda_.1} parent=11 // pred_fallthru
          _
        // Predicated region
        $region93: #{_lambda_.1} parent=11 // pred_check
          %p627 = pneg %p500
        $region94: #{_lambda_.1} parent=11 // pred_check_branch
          %629 = sbr.rel (%p627) target = $region96
        $region95: #{_lambda_.1} parent=11 // pred_region
          _
        $region96: #{_lambda_.1} parent=11 // pred_fallthru
          _
      $region12: #{_lambda_.1} parent=5 // pred_fallthru
        _
      %p630 = scmp.lt.s32.totalorder %s33, 2
      // Predicated region
      $region97: #{_lambda_.1} parent=5 // pred_check
        %p631 = pneg %p630
      $region98: #{_lambda_.1} parent=5 // pred_check_branch
        %633 = sbr.rel (%p631) target = $region100
      $region99: #{_lambda_.1} parent=5 // pred_region
        // Predicated region
        $region101: #{_lambda_.1} parent=99 // pred_check
          %p634 = pneg %p53
        $region102: #{_lambda_.1} parent=99 // pred_check_branch
          %636 = sbr.rel (%p634) target = $region104
        $region103: #{_lambda_.1} parent=99 // pred_region
          %p637 = scmp.lt.s32.totalorder %s33, 1
          %s638 = scalar_select %p637, %s33, 1
          %s639 = smul.addr %s638, 2
          %s640 = smul.addr %s639, 8
          %s641 = scalar_lea.vmem %s0, %s640
        $region104: #{_lambda_.1} parent=99 // pred_fallthru
          _
      $region100: #{_lambda_.1} parent=5 // pred_fallthru
        _
      %p642 = scmp.le.s32.totalorder 1, %s33
      %p643 = scmp.lt.s32.totalorder %s33, 3
      %p644 = pnand %p642, %p643
      %p645 = pneg %p644
      // Predicated region
      $region105: #{_lambda_.1} parent=5 // pred_check
        _
      $region106: #{_lambda_.1} parent=5 // pred_check_branch
        %647 = sbr.rel (%p644) target = $region108
      $region107: #{_lambda_.1} parent=5 // pred_region
        %s648 = ssub.s32 %s33, 1
        %p649 = scmp.lt.s32.totalorder %s38, 1
        %s650 = scalar_select %p649, %s38, 1
        %s651 = smul.addr %s650, 2
        %s652 = smul.addr %s651, 8
        %s653 = scalar_lea.vmem %s0, %s652
        %p654 = pneg %p59
        %p655 = pneg %p56
        %p656 = pneg %p80
        %p657 = pneg %p77
        %p658 = pneg %p101
        %p659 = pneg %p98
        %p660 = pneg %p122
        %p661 = pneg %p119
        %p662 = pneg %p143
        %p663 = pneg %p140
        %p664 = pneg %p164
        %p665 = pneg %p161
        %p666 = pneg %p185
        %p667 = pneg %p182
        %p668 = pneg %p206
        %p669 = pneg %p203
        %p670 = pneg %p227
        %p671 = pneg %p224
        %p672 = pneg %p248
        %p673 = pneg %p245
        %p674 = pneg %p269
        %p675 = pneg %p266
        %p676 = pneg %p290
        %p677 = pneg %p287
        %p678 = pneg %p311
        %p679 = pneg %p308
        %p680 = pneg %p332
        %p681 = pneg %p329
        %p682 = pneg %p353
        %p683 = pneg %p350
        %p684 = pneg %p374
        %p685 = pneg %p371
        %p686 = pneg %p395
        %p687 = pneg %p392
        %p688 = pneg %p416
        %p689 = pneg %p413
        %p690 = pneg %p437
        %p691 = pneg %p434
        %p692 = pneg %p458
        %p693 = pneg %p455
        %p694 = pneg %p479
        %p695 = pneg %p476
        %p696 = pneg %p500
        %p697 = pneg %p497
        %p698 = pneg %p526
        %p699 = pneg %p523
        %s700 = sand.u32 %s513, 1
        %s701 = scalar_lea.sflag [#allocation5], %s700
        %s702 = sand.u32 %s513, 1
        %s703 = smul.addr %s702, 8
        %s704 = scalar_lea.vmem [#allocation4], %s703
        %p705 = pneg %p552
        %p706 = pneg %p549
        %p707 = scmp.lt.s32.totalorder %s38, 1
        %s708 = scalar_select %p707, %s38, 1
        %s709 = smul.addr %s708, 2
        %s710 = smul.addr %s709, 8
        %s711 = scalar_lea.vmem %s23, %s710
        %p712 = scmp.lt.s32.totalorder %s38, 1
        %s713 = scalar_select %p712, %s38, 1
        %s714 = smul.addr %s713, 2
        %s715 = smul.addr %s714, 8
        %s716 = scalar_lea.vmem %s0, %s715
        %p717 = scmp.lt.s32.totalorder %s38, 1
        %s718 = scalar_select %p717, %s38, 1
        %s719 = smul.addr %s718, 2
        %s720 = smul.addr %s719, 8
        %s721 = scalar_lea.vmem %s23, %s720
        %v722 = vld [vmem:[%s716] sm:$0xff]
        %v723 = vld [vmem:[%s716 + $0x8] sm:$0xff]
        %724 = vxpose.xlu0.b32.start [1/16] %v722, 128
        %725 = vxpose.xlu0.b32.cont [2/16] %v723, 128
        %726 = vxpose.xlu0.b32.cont [3/16] 0.0, 128
        %727 = vxpose.xlu0.b32.cont [4/16] 0.0, 128
        %728 = vxpose.xlu0.b32.cont [5/16] 0.0, 128
        %729 = vxpose.xlu0.b32.cont [6/16] 0.0, 128
        %730 = vxpose.xlu0.b32.cont [7/16] 0.0, 128
        %731 = vxpose.xlu0.b32.cont [8/16] 0.0, 128
        %732 = vxpose.xlu0.b32.cont [9/16] 0.0, 128
        %733 = vxpose.xlu0.b32.cont [10/16] 0.0, 128
        %734 = vxpose.xlu0.b32.cont [11/16] 0.0, 128
        %735 = vxpose.xlu0.b32.cont [12/16] 0.0, 128
        %736 = vxpose.xlu0.b32.cont [13/16] 0.0, 128
        %737 = vxpose.xlu0.b32.cont [14/16] 0.0, 128
        %738 = vxpose.xlu0.b32.cont [15/16] 0.0, 128
        %739 = vxpose.xlu0.b32.end [16/16] 0.0, 128
        %v740 = vpop.trf.xlu0
        %v741 = vpop.trf.xlu0
        %v742 = vpop.trf.xlu0
        %v743 = vpop.trf.xlu0
        %v744 = vpop.trf.xlu0
        %v745 = vpop.trf.xlu0
        %v746 = vpop.trf.xlu0
        %v747 = vpop.trf.xlu0
        %v748 = vpop.trf.xlu0
        %v749 = vpop.trf.xlu0
        %v750 = vpop.trf.xlu0
        %v751 = vpop.trf.xlu0
        %v752 = vpop.trf.xlu0
        %v753 = vpop.trf.xlu0
        %v754 = vpop.trf.xlu0
        %v755 = vpop.trf.xlu0
        %v756 = vld [vmem:[%s1] sm:$0xff]
        %v757 = vld [vmem:[%s1 + $0x8] sm:$0xff]
        %vm758 = vcmask 130048
        %v760 = vsel %vm758, %v740, 0
        %762 = vmatprep.subr.mxu0 0.0
        %763 = vmatpush1.msra.mxu0 0.0
        %764 = vmatprep.subr.mxu0 0.0
        %765 = vmatpush1.msra.mxu0 0.0
        %766 = vmatprep.subr.mxu0 0.0
        %767 = vmatpush1.msra.mxu0 0.0
        %768 = vmatprep.subr.mxu0 0.0
        %769 = vmatpush1.msra.mxu0 0.0
        %770 = vmatprep.subr.mxu0 0.0
        %771 = vmatpush1.msra.mxu0 0.0
        %772 = vmatprep.subr.mxu0 0.0
        %773 = vmatpush1.msra.mxu0 0.0
        %774 = vmatprep.subr.mxu0 0.0
        %775 = vmatpush1.msra.mxu0 0.0
        %776 = vmatprep.subr.mxu0 0.0
        %777 = vmatpush1.msra.mxu0 0.0
        %778 = vmatprep.subr.mxu0 0.0
        %779 = vmatpush1.msra.mxu0 0.0
        %780 = vmatprep.subr.mxu0 0.0
        %781 = vmatpush1.msra.mxu0 0.0
        %782 = vmatprep.subr.mxu0 0.0
        %783 = vmatpush1.msra.mxu0 0.0
        %784 = vmatprep.subr.mxu0 0.0
        %785 = vmatpush1.msra.mxu0 0.0
        %786 = vmatprep.subr.mxu0 0.0
        %787 = vmatpush1.msra.mxu0 0.0
        %788 = vmatprep.subr.mxu0 0.0
        %789 = vmatpush1.msra.mxu0 0.0
        %790 = vmatprep.subr.mxu0 0.0
        %791 = vmatpush1.msra.mxu0 %v757
        %792 = vmatprep.subr.mxu0 0.0
        %793 = vmatpush1.msra.mxu0 %v756
        %794 = vmatprep.subr.mxu0 0.0
        %795 = vmatpush2.msra.mxu0 0.0
        %796 = vmatprep.subr.mxu0 0.0
        %797 = vmatpush2.msra.mxu0 0.0
        %798 = vmatprep.subr.mxu0 0.0
        %799 = vmatpush2.msra.mxu0 0.0
        %800 = vmatprep.subr.mxu0 0.0
        %801 = vmatpush2.msra.mxu0 0.0
        %802 = vmatprep.subr.mxu0 0.0
        %803 = vmatpush2.msra.mxu0 0.0
        %804 = vmatprep.subr.mxu0 0.0
        %805 = vmatpush2.msra.mxu0 0.0
        %806 = vmatprep.subr.mxu0 0.0
        %807 = vmatpush2.msra.mxu0 0.0
        %808 = vmatprep.subr.mxu0 0.0
        %809 = vmatpush2.msra.mxu0 0.0
        %810 = vmatprep.subr.mxu0 0.0
        %811 = vmatpush2.msra.mxu0 0.0
        %812 = vmatprep.subr.mxu0 0.0
        %813 = vmatpush2.msra.mxu0 0.0
        %814 = vmatprep.subr.mxu0 0.0
        %815 = vmatpush2.msra.mxu0 0.0
        %816 = vmatprep.subr.mxu0 0.0
        %817 = vmatpush2.msra.mxu0 0.0
        %818 = vmatprep.subr.mxu0 0.0
        %819 = vmatpush2.msra.mxu0 0.0
        %820 = vmatprep.subr.mxu0 0.0
        %821 = vmatpush2.msra.mxu0 0.0
        %822 = vmatprep.subr.mxu0 0.0
        %823 = vmatpush2.msra.mxu0 0.0
        %824 = vmatprep.subr.mxu0 0.0
        %825 = vmatpush2.msra.mxu0 0.0
        %826 = vmatprep.mubr.f32.mxu0 0.0
        %827 = vmatmul.mubr.f32.gmra.mxu0 %v760
        %v828 = vpop.f32.mrf.mxu0
        %v829 = vadd.f32 0.0, %v828
        %v830 = vpop.f32.mrf.mxu0
        %831 = vdwg.mxu0
        %v832 = vld [vmem:[%s2] sm:$0xff]
        %v833 = vld [vmem:[%s2 + $0x8] sm:$0xff]
        %v834 = vld [vmem:[%s3] sm:$0x1]
        %v836 = vlaneseq
        %v837 = vshrl.u32 %v836, 7
        %v838 = vsub.s32 0, %v837
        %v839 = vrot.slane %v834, %v838
        %841 = vmatprep.subr.mxu0 0.0
        %842 = vmatpush1.msra.mxu0 0.0
        %843 = vmatprep.subr.mxu0 0.0
        %844 = vmatpush1.msra.mxu0 0.0
        %845 = vmatprep.subr.mxu0 0.0
        %846 = vmatpush1.msra.mxu0 0.0
        %847 = vmatprep.subr.mxu0 0.0
        %848 = vmatpush1.msra.mxu0 0.0
        %849 = vmatprep.subr.mxu0 0.0
        %850 = vmatpush1.msra.mxu0 0.0
        %851 = vmatprep.subr.mxu0 0.0
        %852 = vmatpush1.msra.mxu0 0.0
        %853 = vmatprep.subr.mxu0 0.0
        %854 = vmatpush1.msra.mxu0 0.0
        %855 = vmatprep.subr.mxu0 0.0
        %856 = vmatpush1.msra.mxu0 0.0
        %857 = vmatprep.subr.mxu0 0.0
        %858 = vmatpush1.msra.mxu0 0.0
        %859 = vmatprep.subr.mxu0 0.0
        %860 = vmatpush1.msra.mxu0 0.0
        %861 = vmatprep.subr.mxu0 0.0
        %862 = vmatpush1.msra.mxu0 0.0
        %863 = vmatprep.subr.mxu0 0.0
        %864 = vmatpush1.msra.mxu0 0.0
        %865 = vmatprep.subr.mxu0 0.0
        %866 = vmatpush1.msra.mxu0 0.0
        %867 = vmatprep.subr.mxu0 0.0
        %868 = vmatpush1.msra.mxu0 0.0
        %869 = vmatprep.subr.mxu0 0.0
        %870 = vmatpush1.msra.mxu0 %v833
        %871 = vmatprep.subr.mxu0 0.0
        %872 = vmatpush1.msra.mxu0 %v832
        %873 = vmatprep.subr.mxu0 0.0
        %874 = vmatpush2.msra.mxu0 0.0
        %875 = vmatprep.subr.mxu0 0.0
        %876 = vmatpush2.msra.mxu0 0.0
        %877 = vmatprep.subr.mxu0 0.0
        %878 = vmatpush2.msra.mxu0 0.0
        %879 = vmatprep.subr.mxu0 0.0
        %880 = vmatpush2.msra.mxu0 0.0
        %881 = vmatprep.subr.mxu0 0.0
        %882 = vmatpush2.msra.mxu0 0.0
        %883 = vmatprep.subr.mxu0 0.0
        %884 = vmatpush2.msra.mxu0 0.0
        %885 = vmatprep.subr.mxu0 0.0
        %886 = vmatpush2.msra.mxu0 0.0
        %887 = vmatprep.subr.mxu0 0.0
        %888 = vmatpush2.msra.mxu0 0.0
        %889 = vmatprep.subr.mxu0 0.0
        %890 = vmatpush2.msra.mxu0 0.0
        %891 = vmatprep.subr.mxu0 0.0
        %892 = vmatpush2.msra.mxu0 0.0
        %893 = vmatprep.subr.mxu0 0.0
        %894 = vmatpush2.msra.mxu0 0.0
        %895 = vmatprep.subr.mxu0 0.0
        %896 = vmatpush2.msra.mxu0 0.0
        %897 = vmatprep.subr.mxu0 0.0
        %898 = vmatpush2.msra.mxu0 0.0
        %899 = vmatprep.subr.mxu0 0.0
        %900 = vmatpush2.msra.mxu0 0.0
        %901 = vmatprep.subr.mxu0 0.0
        %902 = vmatpush2.msra.mxu0 0.0
        %903 = vmatprep.subr.mxu0 0.0
        %904 = vmatpush2.msra.mxu0 0.0
        %905 = vmatprep.mubr.f32.mxu0 0.0
        %906 = vmatmul.mubr.f32.gmra.mxu0 %v760
        %v907 = vpop.f32.mrf.mxu0
        %v908 = vadd.f32 %v839, %v907
        %v909 = vpop.f32.mrf.mxu0
        %910 = vdwg.mxu0
        %v912 = vcombine.high %v829, %v829
        %v914 = vunpack.c.l.s4 1966171168
        %v915 = vunpack.c.0.s8 %v914
        %v916 = vlaneseq
        %v917 = vshrl.u32 %v916, 7
        %v918 = vsub.s32 %v915, %v917
        %v919 = vrot.slane %v829, %v918
        %v921 = vunpack.c.l.s4 1966171168
        %v922 = vunpack.c.0.s8 %v921
        %v923 = vlaneseq
        %v924 = vshrl.u32 %v923, 7
        %v925 = vsub.s32 %v922, %v924
        %v926 = vrot.slane %v912, %v925
        %v927 = vcombine.high %v919, %v919
        %v928 = vcombine.high %v926, %v926
        %v930 = vunpack.c.l.s4 1966171168
        %v931 = vunpack.c.0.s8 %v930
        %v932 = vlaneseq
        %v933 = vshrl.u32 %v932, 7
        %v934 = vsub.s32 %v931, %v933
        %v935 = vrot.slane %v919, %v934
        %v937 = vunpack.c.l.s4 1966171168
        %v938 = vunpack.c.0.s8 %v937
        %v939 = vlaneseq
        %v940 = vshrl.u32 %v939, 7
        %v941 = vsub.s32 %v938, %v940
        %v942 = vrot.slane %v926, %v941
        %v944 = vunpack.c.l.s4 1966171168
        %v945 = vunpack.c.0.s8 %v944
        %v946 = vlaneseq
        %v947 = vshrl.u32 %v946, 7
        %v948 = vsub.s32 %v945, %v947
        %v949 = vrot.slane %v927, %v948
        %v951 = vunpack.c.l.s4 1966171168
        %v952 = vunpack.c.0.s8 %v951
        %v953 = vlaneseq
        %v954 = vshrl.u32 %v953, 7
        %v955 = vsub.s32 %v952, %v954
        %v956 = vrot.slane %v928, %v955
        %v957 = vcombine.high %v935, %v935
        %v958 = vcombine.high %v942, %v942
        %v959 = vcombine.high %v949, %v949
        %v960 = vcombine.high %v956, %v956
        %v961 = vlaneseq
        %v962 = vshrl.u32 %v961, 7
        %v963 = vsub.s32 0, %v962
        %v964 = vrot.slane %v935, %v963
        %v965 = vlaneseq
        %v966 = vshrl.u32 %v965, 7
        %v967 = vsub.s32 0, %v966
        %v968 = vrot.slane %v949, %v967
        %v969 = vlaneseq
        %v970 = vshrl.u32 %v969, 7
        %v971 = vsub.s32 0, %v970
        %v972 = vrot.slane %v957, %v971
        %v973 = vlaneseq
        %v974 = vshrl.u32 %v973, 7
        %v975 = vsub.s32 0, %v974
        %v976 = vrot.slane %v959, %v975
        %v977 = vlaneseq
        %v978 = vshrl.u32 %v977, 7
        %v979 = vsub.s32 0, %v978
        %v980 = vrot.slane %v942, %v979
        %v981 = vlaneseq
        %v982 = vshrl.u32 %v981, 7
        %v983 = vsub.s32 0, %v982
        %v984 = vrot.slane %v956, %v983
        %v985 = vlaneseq
        %v986 = vshrl.u32 %v985, 7
        %v987 = vsub.s32 0, %v986
        %v988 = vrot.slane %v958, %v987
        %v989 = vlaneseq
        %v990 = vshrl.u32 %v989, 7
        %v991 = vsub.s32 0, %v990
        %v992 = vrot.slane %v960, %v991
        %v1001 = vadd.f32 %v964, %v908
        %v1002 = vadd.f32 %v968, %v908
        %v1003 = vadd.f32 %v972, %v908
        %v1004 = vadd.f32 %v976, %v908
        %v1005 = vadd.f32 %v980, %v908
        %v1006 = vadd.f32 %v984, %v908
        %v1007 = vadd.f32 %v988, %v908
        %v1008 = vadd.f32 %v992, %v908
        %vm1009 = vcmp.gt.f32.partialorder %v1001, 0.0
        %vm1010 = vcmp.gt.f32.partialorder %v1002, 0.0
        %vm1011 = vcmp.gt.f32.partialorder %v1003, 0.0
        %vm1012 = vcmp.gt.f32.partialorder %v1004, 0.0
        %vm1013 = vcmp.gt.f32.partialorder %v1005, 0.0
        %vm1014 = vcmp.gt.f32.partialorder %v1006, 0.0
        %vm1015 = vcmp.gt.f32.partialorder %v1007, 0.0
        %vm1016 = vcmp.gt.f32.partialorder %v1008, 0.0
        %v1017 = vmul.f32 %v1001, 0.2
        %v1018 = vmul.f32 %v1002, 0.2
        %v1019 = vmul.f32 %v1003, 0.2
        %v1020 = vmul.f32 %v1004, 0.2
        %v1021 = vmul.f32 %v1005, 0.2
        %v1022 = vmul.f32 %v1006, 0.2
        %v1023 = vmul.f32 %v1007, 0.2
        %v1024 = vmul.f32 %v1008, 0.2
        %v1025 = vsel %vm1009, %v1001, %v1017
        %v1026 = vsel %vm1010, %v1002, %v1018
        %v1027 = vsel %vm1011, %v1003, %v1019
        %v1028 = vsel %vm1012, %v1004, %v1020
        %v1029 = vsel %vm1013, %v1005, %v1021
        %v1030 = vsel %vm1014, %v1006, %v1022
        %v1031 = vsel %vm1015, %v1007, %v1023
        %v1032 = vsel %vm1016, %v1008, %v1024
        %v1033 = vld [vmem:[%s4] sm:$0x1]
        %v1035 = vlaneseq
        %v1036 = vshrl.u32 %v1035, 7
        %v1037 = vsub.s32 0, %v1036
        %v1038 = vrot.slane %v1033, %v1037
        %v1040 = vmul.f32 %v1025, %v1038
        %v1041 = vmul.f32 %v1026, %v1038
        %v1042 = vmul.f32 %v1027, %v1038
        %v1043 = vmul.f32 %v1028, %v1038
        %v1044 = vmul.f32 %v1029, %v1038
        %v1045 = vmul.f32 %v1030, %v1038
        %v1046 = vmul.f32 %v1031, %v1038
        %v1047 = vmul.f32 %v1032, %v1038
        %vm1048 = vcmask 261120
        %v1049 = vsel %vm1048, %v1040, 0.0
        %1050 = vadd.xlane.f32.xlu0 %v1049
        %v1051 = vpop.xlane.xlu0 %1050
        %v1052 = vsel %vm1048, %v1041, 0.0
        %1053 = vadd.xlane.f32.xlu0 %v1052
        %v1054 = vpop.xlane.xlu0 %1053
        %v1055 = vsel %vm1048, %v1042, 0.0
        %1056 = vadd.xlane.f32.xlu0 %v1055
        %v1057 = vpop.xlane.xlu0 %1056
        %v1058 = vsel %vm1048, %v1043, 0.0
        %1059 = vadd.xlane.f32.xlu0 %v1058
        %v1060 = vpop.xlane.xlu0 %1059
        %v1061 = vsel %vm1048, %v1044, 0.0
        %1062 = vadd.xlane.f32.xlu0 %v1061
        %v1063 = vpop.xlane.xlu0 %1062
        %v1064 = vsel %vm1048, %v1045, 0.0
        %1065 = vadd.xlane.f32.xlu0 %v1064
        %v1066 = vpop.xlane.xlu0 %1065
        %v1067 = vsel %vm1048, %v1046, 0.0
        %1068 = vadd.xlane.f32.xlu0 %v1067
        %v1069 = vpop.xlane.xlu0 %1068
        %v1070 = vsel %vm1048, %v1047, 0.0
        %1071 = vadd.xlane.f32.xlu0 %v1070
        %v1072 = vpop.xlane.xlu0 %1071
        %v1073 = vld [vmem:[%s5] sm:$0xff]
        %v1075 = vlaneseq
        %v1076 = vshrl.u32 %v1075, 7
        %v1077 = vsub.s32 0, %v1076
        %v1078 = vrot.slane %v1073, %v1077
        %1080 = vbcast.lane.b32.xlu0 %v1078, 256
        %v1081 = vpop.permute.xlu0 %1080
        %v1082 = vlaneseq
        %v1083 = vshrl.u32 %v1082, 7
        %v1084 = vsub.s32 1, %v1083
        %v1085 = vrot.slane %v1073, %v1084
        %1087 = vbcast.lane.b32.xlu0 %v1085, 256
        %v1088 = vpop.permute.xlu0 %1087
        %v1089 = vlaneseq
        %v1090 = vshrl.u32 %v1089, 7
        %v1091 = vsub.s32 2, %v1090
        %v1092 = vrot.slane %v1073, %v1091
        %1094 = vbcast.lane.b32.xlu0 %v1092, 256
        %v1095 = vpop.permute.xlu0 %1094
        %v1096 = vlaneseq
        %v1097 = vshrl.u32 %v1096, 7
        %v1098 = vsub.s32 3, %v1097
        %v1099 = vrot.slane %v1073, %v1098
        %1101 = vbcast.lane.b32.xlu0 %v1099, 256
        %v1102 = vpop.permute.xlu0 %1101
        %v1103 = vlaneseq
        %v1104 = vshrl.u32 %v1103, 7
        %v1105 = vsub.s32 4, %v1104
        %v1106 = vrot.slane %v1073, %v1105
        %1108 = vbcast.lane.b32.xlu0 %v1106, 256
        %v1109 = vpop.permute.xlu0 %1108
        %v1110 = vlaneseq
        %v1111 = vshrl.u32 %v1110, 7
        %v1112 = vsub.s32 5, %v1111
        %v1113 = vrot.slane %v1073, %v1112
        %1115 = vbcast.lane.b32.xlu0 %v1113, 256
        %v1116 = vpop.permute.xlu0 %1115
        %v1117 = vlaneseq
        %v1118 = vshrl.u32 %v1117, 7
        %v1119 = vsub.s32 6, %v1118
        %v1120 = vrot.slane %v1073, %v1119
        %1122 = vbcast.lane.b32.xlu0 %v1120, 256
        %v1123 = vpop.permute.xlu0 %1122
        %v1124 = vlaneseq
        %v1125 = vshrl.u32 %v1124, 7
        %v1126 = vsub.s32 7, %v1125
        %v1127 = vrot.slane %v1073, %v1126
        %1129 = vbcast.lane.b32.xlu0 %v1127, 256
        %v1130 = vpop.permute.xlu0 %1129
        %v1139 = vadd.f32 %v1051, %v1081
        %v1140 = vadd.f32 %v1054, %v1088
        %v1141 = vadd.f32 %v1057, %v1095
        %v1142 = vadd.f32 %v1060, %v1102
        %v1143 = vadd.f32 %v1063, %v1109
        %v1144 = vadd.f32 %v1066, %v1116
        %v1145 = vadd.f32 %v1069, %v1123
        %v1146 = vadd.f32 %v1072, %v1130
        %1155 = vset.pattern.permute.xlu0 0
        %1156 = vperm.xlu0 %1155, %v1139
        %v1157 = vpop.permute.xlu0 %1156
        %1158 = vset.pattern.permute.xlu0 0
        %1159 = vperm.xlu0 %1158, %v1140
        %v1160 = vpop.permute.xlu0 %1159
        %1161 = vset.pattern.permute.xlu0 0
        %1162 = vperm.xlu0 %1161, %v1141
        %v1163 = vpop.permute.xlu0 %1162
        %1164 = vset.pattern.permute.xlu0 0
        %1165 = vperm.xlu0 %1164, %v1142
        %v1166 = vpop.permute.xlu0 %1165
        %1167 = vset.pattern.permute.xlu0 0
        %1168 = vperm.xlu0 %1167, %v1143
        %v1169 = vpop.permute.xlu0 %1168
        %1170 = vset.pattern.permute.xlu0 0
        %1171 = vperm.xlu0 %1170, %v1144
        %v1172 = vpop.permute.xlu0 %1171
        %1173 = vset.pattern.permute.xlu0 0
        %1174 = vperm.xlu0 %1173, %v1145
        %v1175 = vpop.permute.xlu0 %1174
        %1176 = vset.pattern.permute.xlu0 0
        %1177 = vperm.xlu0 %1176, %v1146
        %v1178 = vpop.permute.xlu0 %1177
        %v1179 = vlaneseq
        %v1180 = vand.u32 %v1179, 127
        %v1181 = vlaneseq
        %v1182 = vshrl.u32 %v1181, 7
        %v1183 = vsub.s32 %v1180, %v1182
        %v1184 = vrot.slane %v1157, %v1183
        %v1185 = vlaneseq
        %v1186 = vshrl.u32 %v1185, 7
        %v1187 = vsub.s32 %v1180, %v1186
        %v1188 = vrot.slane %v1160, %v1187
        %v1189 = vlaneseq
        %v1190 = vshrl.u32 %v1189, 7
        %v1191 = vsub.s32 %v1180, %v1190
        %v1192 = vrot.slane %v1163, %v1191
        %v1193 = vlaneseq
        %v1194 = vshrl.u32 %v1193, 7
        %v1195 = vsub.s32 %v1180, %v1194
        %v1196 = vrot.slane %v1166, %v1195
        %v1197 = vlaneseq
        %v1198 = vshrl.u32 %v1197, 7
        %v1199 = vsub.s32 %v1180, %v1198
        %v1200 = vrot.slane %v1169, %v1199
        %v1201 = vlaneseq
        %v1202 = vshrl.u32 %v1201, 7
        %v1203 = vsub.s32 %v1180, %v1202
        %v1204 = vrot.slane %v1172, %v1203
        %v1205 = vlaneseq
        %v1206 = vshrl.u32 %v1205, 7
        %v1207 = vsub.s32 %v1180, %v1206
        %v1208 = vrot.slane %v1175, %v1207
        %v1209 = vlaneseq
        %v1210 = vshrl.u32 %v1209, 7
        %v1211 = vsub.s32 %v1180, %v1210
        %v1212 = vrot.slane %v1178, %v1211
        %vm1213 = vcmask 1041409
        %v1214 = vsel %vm1213, %v1188, %v1184
        %vm1215 = vcmask 1042434
        %v1216 = vsel %vm1215, %v1192, %v1214
        %vm1217 = vcmask 1043459
        %v1218 = vsel %vm1217, %v1196, %v1216
        %vm1219 = vcmask 1044484
        %v1220 = vsel %vm1219, %v1200, %v1218
        %vm1221 = vcmask 1045509
        %v1222 = vsel %vm1221, %v1204, %v1220
        %vm1223 = vcmask 1046534
        %v1224 = vsel %vm1223, %v1208, %v1222
        %vm1225 = vcmask 1047559
        %v1226 = vsel %vm1225, %v1212, %v1224
        %vm1228 = vcmask 64512
        %v1229 = vsel %vm1228, %v1226, -inf
        %1230 = vmax.xlane.f32.xlu0 %v1229
        %v1231 = vpop.xlane.xlu0 %1230
        %v1233 = vlaneseq
        %v1234 = vshrl.u32 %v1233, 7
        %v1235 = vsub.s32 0, %v1234
        %v1236 = vrot.slane %v1231, %v1235
        %v1237 = vlaneseq
        %v1238 = vshrl.u32 %v1237, 7
        %v1239 = vsub.s32 1, %v1238
        %v1240 = vrot.slane %v1231, %v1239
        %v1241 = vlaneseq
        %v1242 = vshrl.u32 %v1241, 7
        %v1243 = vsub.s32 2, %v1242
        %v1244 = vrot.slane %v1231, %v1243
        %v1245 = vlaneseq
        %v1246 = vshrl.u32 %v1245, 7
        %v1247 = vsub.s32 3, %v1246
        %v1248 = vrot.slane %v1231, %v1247
        %v1249 = vlaneseq
        %v1250 = vshrl.u32 %v1249, 7
        %v1251 = vsub.s32 4, %v1250
        %v1252 = vrot.slane %v1231, %v1251
        %v1253 = vlaneseq
        %v1254 = vshrl.u32 %v1253, 7
        %v1255 = vsub.s32 5, %v1254
        %v1256 = vrot.slane %v1231, %v1255
        %v1257 = vlaneseq
        %v1258 = vshrl.u32 %v1257, 7
        %v1259 = vsub.s32 6, %v1258
        %v1260 = vrot.slane %v1231, %v1259
        %v1261 = vlaneseq
        %v1262 = vshrl.u32 %v1261, 7
        %v1263 = vsub.s32 7, %v1262
        %v1264 = vrot.slane %v1231, %v1263
        %v1273 = vsub.f32 %v1139, %v1236
        %v1274 = vsub.f32 %v1140, %v1240
        %v1275 = vsub.f32 %v1141, %v1244
        %v1276 = vsub.f32 %v1142, %v1248
        %v1277 = vsub.f32 %v1143, %v1252
        %v1278 = vsub.f32 %v1144, %v1256
        %v1279 = vsub.f32 %v1145, %v1260
        %v1280 = vsub.f32 %v1146, %v1264
        %v1281 = vmul.f32 %v1273, 1.442695
        %v1282 = vpow.pop %v1281
        %v1283 = vmul.f32 %v1274, 1.442695
        %v1284 = vpow.pop %v1283
        %v1285 = vmul.f32 %v1275, 1.442695
        %v1286 = vpow.pop %v1285
        %v1287 = vmul.f32 %v1276, 1.442695
        %v1288 = vpow.pop %v1287
        %v1289 = vmul.f32 %v1277, 1.442695
        %v1290 = vpow.pop %v1289
        %v1291 = vmul.f32 %v1278, 1.442695
        %v1292 = vpow.pop %v1291
        %v1293 = vmul.f32 %v1279, 1.442695
        %v1294 = vpow.pop %v1293
        %v1295 = vmul.f32 %v1280, 1.442695
        %v1296 = vpow.pop %v1295
        %1305 = vset.pattern.permute.xlu0 0
        %1306 = vperm.xlu0 %1305, %v1282
        %v1307 = vpop.permute.xlu0 %1306
        %1308 = vset.pattern.permute.xlu0 0
        %1309 = vperm.xlu0 %1308, %v1284
        %v1310 = vpop.permute.xlu0 %1309
        %1311 = vset.pattern.permute.xlu0 0
        %1312 = vperm.xlu0 %1311, %v1286
        %v1313 = vpop.permute.xlu0 %1312
        %1314 = vset.pattern.permute.xlu0 0
        %1315 = vperm.xlu0 %1314, %v1288
        %v1316 = vpop.permute.xlu0 %1315
        %1317 = vset.pattern.permute.xlu0 0
        %1318 = vperm.xlu0 %1317, %v1290
        %v1319 = vpop.permute.xlu0 %1318
        %1320 = vset.pattern.permute.xlu0 0
        %1321 = vperm.xlu0 %1320, %v1292
        %v1322 = vpop.permute.xlu0 %1321
        %1323 = vset.pattern.permute.xlu0 0
        %1324 = vperm.xlu0 %1323, %v1294
        %v1325 = vpop.permute.xlu0 %1324
        %1326 = vset.pattern.permute.xlu0 0
        %1327 = vperm.xlu0 %1326, %v1296
        %v1328 = vpop.permute.xlu0 %1327
        %v1329 = vlaneseq
        %v1330 = vshrl.u32 %v1329, 7
        %v1331 = vsub.s32 %v1180, %v1330
        %v1332 = vrot.slane %v1307, %v1331
        %v1333 = vlaneseq
        %v1334 = vshrl.u32 %v1333, 7
        %v1335 = vsub.s32 %v1180, %v1334
        %v1336 = vrot.slane %v1310, %v1335
        %v1337 = vlaneseq
        %v1338 = vshrl.u32 %v1337, 7
        %v1339 = vsub.s32 %v1180, %v1338
        %v1340 = vrot.slane %v1313, %v1339
        %v1341 = vlaneseq
        %v1342 = vshrl.u32 %v1341, 7
        %v1343 = vsub.s32 %v1180, %v1342
        %v1344 = vrot.slane %v1316, %v1343
        %v1345 = vlaneseq
        %v1346 = vshrl.u32 %v1345, 7
        %v1347 = vsub.s32 %v1180, %v1346
        %v1348 = vrot.slane %v1319, %v1347
        %v1349 = vlaneseq
        %v1350 = vshrl.u32 %v1349, 7
        %v1351 = vsub.s32 %v1180, %v1350
        %v1352 = vrot.slane %v1322, %v1351
        %v1353 = vlaneseq
        %v1354 = vshrl.u32 %v1353, 7
        %v1355 = vsub.s32 %v1180, %v1354
        %v1356 = vrot.slane %v1325, %v1355
        %v1357 = vlaneseq
        %v1358 = vshrl.u32 %v1357, 7
        %v1359 = vsub.s32 %v1180, %v1358
        %v1360 = vrot.slane %v1328, %v1359
        %v1361 = vsel %vm1213, %v1336, %v1332
        %v1362 = vsel %vm1215, %v1340, %v1361
        %v1363 = vsel %vm1217, %v1344, %v1362
        %v1364 = vsel %vm1219, %v1348, %v1363
        %v1365 = vsel %vm1221, %v1352, %v1364
        %v1366 = vsel %vm1223, %v1356, %v1365
        %v1367 = vsel %vm1225, %v1360, %v1366
        %v1369 = vsel %vm1228, %v1367, 0.0
        %1370 = vadd.xlane.f32.xlu0 %v1369
        %v1371 = vpop.xlane.xlu0 %1370
        %v1372 = vrcp.pop %v1371
        %v1374 = vlaneseq
        %v1375 = vshrl.u32 %v1374, 7
        %v1376 = vsub.s32 0, %v1375
        %v1377 = vrot.slane %v1372, %v1376
        %v1378 = vlaneseq
        %v1379 = vshrl.u32 %v1378, 7
        %v1380 = vsub.s32 1, %v1379
        %v1381 = vrot.slane %v1372, %v1380
        %v1382 = vlaneseq
        %v1383 = vshrl.u32 %v1382, 7
        %v1384 = vsub.s32 2, %v1383
        %v1385 = vrot.slane %v1372, %v1384
        %v1386 = vlaneseq
        %v1387 = vshrl.u32 %v1386, 7
        %v1388 = vsub.s32 3, %v1387
        %v1389 = vrot.slane %v1372, %v1388
        %v1390 = vlaneseq
        %v1391 = vshrl.u32 %v1390, 7
        %v1392 = vsub.s32 4, %v1391
        %v1393 = vrot.slane %v1372, %v1392
        %v1394 = vlaneseq
        %v1395 = vshrl.u32 %v1394, 7
        %v1396 = vsub.s32 5, %v1395
        %v1397 = vrot.slane %v1372, %v1396
        %v1398 = vlaneseq
        %v1399 = vshrl.u32 %v1398, 7
        %v1400 = vsub.s32 6, %v1399
        %v1401 = vrot.slane %v1372, %v1400
        %v1402 = vlaneseq
        %v1403 = vshrl.u32 %v1402, 7
        %v1404 = vsub.s32 7, %v1403
        %v1405 = vrot.slane %v1372, %v1404
        %v1414 = vmul.f32 %v1282, %v1377
        %v1415 = vmul.f32 %v1284, %v1381
        %v1416 = vmul.f32 %v1286, %v1385
        %v1417 = vmul.f32 %v1288, %v1389
        %v1418 = vmul.f32 %v1290, %v1393
        %v1419 = vmul.f32 %v1292, %v1397
        %v1420 = vmul.f32 %v1294, %v1401
        %v1421 = vmul.f32 %v1296, %v1405
        %1430 = vset.pattern.permute.xlu0 0
        %1431 = vperm.xlu0 %1430, %v1414
        %v1432 = vpop.permute.xlu0 %1431
        %1433 = vset.pattern.permute.xlu0 0
        %1434 = vperm.xlu0 %1433, %v1415
        %v1435 = vpop.permute.xlu0 %1434
        %1436 = vset.pattern.permute.xlu0 0
        %1437 = vperm.xlu0 %1436, %v1416
        %v1438 = vpop.permute.xlu0 %1437
        %1439 = vset.pattern.permute.xlu0 0
        %1440 = vperm.xlu0 %1439, %v1417
        %v1441 = vpop.permute.xlu0 %1440
        %1442 = vset.pattern.permute.xlu0 0
        %1443 = vperm.xlu0 %1442, %v1418
        %v1444 = vpop.permute.xlu0 %1443
        %1445 = vset.pattern.permute.xlu0 0
        %1446 = vperm.xlu0 %1445, %v1419
        %v1447 = vpop.permute.xlu0 %1446
        %1448 = vset.pattern.permute.xlu0 0
        %1449 = vperm.xlu0 %1448, %v1420
        %v1450 = vpop.permute.xlu0 %1449
        %1451 = vset.pattern.permute.xlu0 0
        %1452 = vperm.xlu0 %1451, %v1421
        %v1453 = vpop.permute.xlu0 %1452
        %v1454 = vlaneseq
        %v1455 = vshrl.u32 %v1454, 7
        %v1456 = vsub.s32 %v1180, %v1455
        %v1457 = vrot.slane %v1432, %v1456
        %v1458 = vlaneseq
        %v1459 = vshrl.u32 %v1458, 7
        %v1460 = vsub.s32 %v1180, %v1459
        %v1461 = vrot.slane %v1435, %v1460
        %v1462 = vlaneseq
        %v1463 = vshrl.u32 %v1462, 7
        %v1464 = vsub.s32 %v1180, %v1463
        %v1465 = vrot.slane %v1438, %v1464
        %v1466 = vlaneseq
        %v1467 = vshrl.u32 %v1466, 7
        %v1468 = vsub.s32 %v1180, %v1467
        %v1469 = vrot.slane %v1441, %v1468
        %v1470 = vlaneseq
        %v1471 = vshrl.u32 %v1470, 7
        %v1472 = vsub.s32 %v1180, %v1471
        %v1473 = vrot.slane %v1444, %v1472
        %v1474 = vlaneseq
        %v1475 = vshrl.u32 %v1474, 7
        %v1476 = vsub.s32 %v1180, %v1475
        %v1477 = vrot.slane %v1447, %v1476
        %v1478 = vlaneseq
        %v1479 = vshrl.u32 %v1478, 7
        %v1480 = vsub.s32 %v1180, %v1479
        %v1481 = vrot.slane %v1450, %v1480
        %v1482 = vlaneseq
        %v1483 = vshrl.u32 %v1482, 7
        %v1484 = vsub.s32 %v1180, %v1483
        %v1485 = vrot.slane %v1453, %v1484
        %v1486 = vsel %vm1213, %v1461, %v1457
        %v1487 = vsel %vm1215, %v1465, %v1486
        %v1488 = vsel %vm1217, %v1469, %v1487
        %v1489 = vsel %vm1219, %v1473, %v1488
        %v1490 = vsel %vm1221, %v1477, %v1489
        %v1491 = vsel %vm1223, %v1481, %v1490
        %v1492 = vsel %vm1225, %v1485, %v1491
        %v1493 = vsel %vm1228, %v1492, 0
        %1495 = vmatprep.subr.mxu0 0.0
        %1496 = vmatpush1.msra.mxu0 0.0
        %1497 = vmatprep.subr.mxu0 0.0
        %1498 = vmatpush1.msra.mxu0 0.0
        %1499 = vmatprep.subr.mxu0 0.0
        %1500 = vmatpush1.msra.mxu0 0.0
        %1501 = vmatprep.subr.mxu0 0.0
        %1502 = vmatpush1.msra.mxu0 0.0
        %1503 = vmatprep.subr.mxu0 0.0
        %1504 = vmatpush1.msra.mxu0 0.0
        %1505 = vmatprep.subr.mxu0 0.0
        %1506 = vmatpush1.msra.mxu0 0.0
        %1507 = vmatprep.subr.mxu0 0.0
        %1508 = vmatpush1.msra.mxu0 0.0
        %1509 = vmatprep.subr.mxu0 0.0
        %1510 = vmatpush1.msra.mxu0 0.0
        %1511 = vmatprep.subr.mxu0 0.0
        %1512 = vmatpush1.msra.mxu0 0.0
        %1513 = vmatprep.subr.mxu0 0.0
        %1514 = vmatpush1.msra.mxu0 0.0
        %1515 = vmatprep.subr.mxu0 0.0
        %1516 = vmatpush1.msra.mxu0 0.0
        %1517 = vmatprep.subr.mxu0 0.0
        %1518 = vmatpush1.msra.mxu0 0.0
        %1519 = vmatprep.subr.mxu0 0.0
        %1520 = vmatpush1.msra.mxu0 0.0
        %1521 = vmatprep.subr.mxu0 0.0
        %1522 = vmatpush1.msra.mxu0 0.0
        %1523 = vmatprep.subr.mxu0 0.0
        %1524 = vmatpush1.msra.mxu0 0.0
        %1525 = vmatprep.subr.mxu0 0.0
        %1526 = vmatpush1.msra.mxu0 %v740
        %1527 = vmatprep.subr.mxu0 0.0
        %1528 = vmatpush2.msra.mxu0 0.0
        %1529 = vmatprep.subr.mxu0 0.0
        %1530 = vmatpush2.msra.mxu0 0.0
        %1531 = vmatprep.subr.mxu0 0.0
        %1532 = vmatpush2.msra.mxu0 0.0
        %1533 = vmatprep.subr.mxu0 0.0
        %1534 = vmatpush2.msra.mxu0 0.0
        %1535 = vmatprep.subr.mxu0 0.0
        %1536 = vmatpush2.msra.mxu0 0.0
        %1537 = vmatprep.subr.mxu0 0.0
        %1538 = vmatpush2.msra.mxu0 0.0
        %1539 = vmatprep.subr.mxu0 0.0
        %1540 = vmatpush2.msra.mxu0 0.0
        %1541 = vmatprep.subr.mxu0 0.0
        %1542 = vmatpush2.msra.mxu0 0.0
        %1543 = vmatprep.subr.mxu0 0.0
        %1544 = vmatpush2.msra.mxu0 0.0
        %1545 = vmatprep.subr.mxu0 0.0
        %1546 = vmatpush2.msra.mxu0 0.0
        %1547 = vmatprep.subr.mxu0 0.0
        %1548 = vmatpush2.msra.mxu0 0.0
        %1549 = vmatprep.subr.mxu0 0.0
        %1550 = vmatpush2.msra.mxu0 0.0
        %1551 = vmatprep.subr.mxu0 0.0
        %1552 = vmatpush2.msra.mxu0 0.0
        %1553 = vmatprep.subr.mxu0 0.0
        %1554 = vmatpush2.msra.mxu0 0.0
        %1555 = vmatprep.subr.mxu0 0.0
        %1556 = vmatpush2.msra.mxu0 0.0
        %1557 = vmatprep.subr.mxu0 0.0
        %1558 = vmatpush2.msra.mxu0 0.0
        %1559 = vmatprep.mubr.f32.mxu0 0.0
        %1560 = vmatmul.mubr.f32.gmra.mxu0 %v1493
        %v1561 = vpop.f32.mrf.mxu0
        %v1562 = vadd.f32 0.0, %v1561
        %v1563 = vpop.f32.mrf.mxu0
        %1564 = vdwg.mxu0
        %v1565 = vxor.u32 %v1562, 2147483648
        %v1566 = vmul.f32 %v1565, 1.442695
        %v1567 = vpow.pop %v1566
        %v1568 = vadd.f32 %v1567, 1.0
        %v1569 = vrcp.pop %v1568
        %v1570 = vmul.f32 1.0, %v1569
        %v1571 = vld [vmem:[%s6] sm:$0xff]
        %v1572 = vld [vmem:[%s6 + $0x8] sm:$0xff]
        %1573 = vmatprep.subr.mxu0 0.0
        %1574 = vmatpush1.msra.mxu0 0.0
        %1575 = vmatprep.subr.mxu0 0.0
        %1576 = vmatpush1.msra.mxu0 0.0
        %1577 = vmatprep.subr.mxu0 0.0
        %1578 = vmatpush1.msra.mxu0 0.0
        %1579 = vmatprep.subr.mxu0 0.0
        %1580 = vmatpush1.msra.mxu0 0.0
        %1581 = vmatprep.subr.mxu0 0.0
        %1582 = vmatpush1.msra.mxu0 0.0
        %1583 = vmatprep.subr.mxu0 0.0
        %1584 = vmatpush1.msra.mxu0 0.0
        %1585 = vmatprep.subr.mxu0 0.0
        %1586 = vmatpush1.msra.mxu0 0.0
        %1587 = vmatprep.subr.mxu0 0.0
        %1588 = vmatpush1.msra.mxu0 0.0
        %1589 = vmatprep.subr.mxu0 0.0
        %1590 = vmatpush1.msra.mxu0 0.0
        %1591 = vmatprep.subr.mxu0 0.0
        %1592 = vmatpush1.msra.mxu0 0.0
        %1593 = vmatprep.subr.mxu0 0.0
        %1594 = vmatpush1.msra.mxu0 0.0
        %1595 = vmatprep.subr.mxu0 0.0
        %1596 = vmatpush1.msra.mxu0 0.0
        %1597 = vmatprep.subr.mxu0 0.0
        %1598 = vmatpush1.msra.mxu0 0.0
        %1599 = vmatprep.subr.mxu0 0.0
        %1600 = vmatpush1.msra.mxu0 0.0
        %1601 = vmatprep.subr.mxu0 0.0
        %1602 = vmatpush1.msra.mxu0 %v1572
        %1603 = vmatprep.subr.mxu0 0.0
        %1604 = vmatpush1.msra.mxu0 %v1571
        %1605 = vmatprep.subr.mxu0 0.0
        %1606 = vmatpush2.msra.mxu0 0.0
        %1607 = vmatprep.subr.mxu0 0.0
        %1608 = vmatpush2.msra.mxu0 0.0
        %1609 = vmatprep.subr.mxu0 0.0
        %1610 = vmatpush2.msra.mxu0 0.0
        %1611 = vmatprep.subr.mxu0 0.0
        %1612 = vmatpush2.msra.mxu0 0.0
        %1613 = vmatprep.subr.mxu0 0.0
        %1614 = vmatpush2.msra.mxu0 0.0
        %1615 = vmatprep.subr.mxu0 0.0
        %1616 = vmatpush2.msra.mxu0 0.0
        %1617 = vmatprep.subr.mxu0 0.0
        %1618 = vmatpush2.msra.mxu0 0.0
        %1619 = vmatprep.subr.mxu0 0.0
        %1620 = vmatpush2.msra.mxu0 0.0
        %1621 = vmatprep.subr.mxu0 0.0
        %1622 = vmatpush2.msra.mxu0 0.0
        %1623 = vmatprep.subr.mxu0 0.0
        %1624 = vmatpush2.msra.mxu0 0.0
        %1625 = vmatprep.subr.mxu0 0.0
        %1626 = vmatpush2.msra.mxu0 0.0
        %1627 = vmatprep.subr.mxu0 0.0
        %1628 = vmatpush2.msra.mxu0 0.0
        %1629 = vmatprep.subr.mxu0 0.0
        %1630 = vmatpush2.msra.mxu0 0.0
        %1631 = vmatprep.subr.mxu0 0.0
        %1632 = vmatpush2.msra.mxu0 0.0
        %1633 = vmatprep.subr.mxu0 0.0
        %1634 = vmatpush2.msra.mxu0 0.0
        %1635 = vmatprep.subr.mxu0 0.0
        %1636 = vmatpush2.msra.mxu0 0.0
        %1637 = vmatprep.mubr.f32.mxu0 0.0
        %1638 = vmatmul.mubr.f32.gmra.mxu0 %v760
        %v1639 = vpop.f32.mrf.mxu0
        %v1640 = vadd.f32 0.0, %v1639
        %v1641 = vpop.f32.mrf.mxu0
        %1642 = vdwg.mxu0
        %v1643 = vld [vmem:[%s7] sm:$0xff]
        %v1644 = vld [vmem:[%s7 + $0x8] sm:$0xff]
        %v1645 = vld [vmem:[%s8] sm:$0x1]
        %v1646 = vld [vmem:[%s9] sm:$0x1]
        %v1647 = vld [vmem:[%s10] sm:$0x1]
        %v1649 = vsel %vm758, 0.0, 0
        %1651 = vmatprep.subr.mxu0 0.0
        %1652 = vmatpush1.msra.mxu0 0.0
        %1653 = vmatprep.subr.mxu0 0.0
        %1654 = vmatpush1.msra.mxu0 0.0
        %1655 = vmatprep.subr.mxu0 0.0
        %1656 = vmatpush1.msra.mxu0 0.0
        %1657 = vmatprep.subr.mxu0 0.0
        %1658 = vmatpush1.msra.mxu0 0.0
        %1659 = vmatprep.subr.mxu0 0.0
        %1660 = vmatpush1.msra.mxu0 0.0
        %1661 = vmatprep.subr.mxu0 0.0
        %1662 = vmatpush1.msra.mxu0 0.0
        %1663 = vmatprep.subr.mxu0 0.0
        %1664 = vmatpush1.msra.mxu0 0.0
        %1665 = vmatprep.subr.mxu0 0.0
        %1666 = vmatpush1.msra.mxu0 0.0
        %1667 = vmatprep.subr.mxu0 0.0
        %1668 = vmatpush1.msra.mxu0 0.0
        %1669 = vmatprep.subr.mxu0 0.0
        %1670 = vmatpush1.msra.mxu0 0.0
        %1671 = vmatprep.subr.mxu0 0.0
        %1672 = vmatpush1.msra.mxu0 0.0
        %1673 = vmatprep.subr.mxu0 0.0
        %1674 = vmatpush1.msra.mxu0 0.0
        %1675 = vmatprep.subr.mxu0 0.0
        %1676 = vmatpush1.msra.mxu0 0.0
        %1677 = vmatprep.subr.mxu0 0.0
        %1678 = vmatpush1.msra.mxu0 0.0
        %1679 = vmatprep.subr.mxu0 0.0
        %1680 = vmatpush1.msra.mxu0 %v1644
        %1681 = vmatprep.subr.mxu0 0.0
        %1682 = vmatpush1.msra.mxu0 %v1643
        %1683 = vmatprep.subr.mxu0 0.0
        %1684 = vmatpush2.msra.mxu0 0.0
        %1685 = vmatprep.subr.mxu0 0.0
        %1686 = vmatpush2.msra.mxu0 0.0
        %1687 = vmatprep.subr.mxu0 0.0
        %1688 = vmatpush2.msra.mxu0 0.0
        %1689 = vmatprep.subr.mxu0 0.0
        %1690 = vmatpush2.msra.mxu0 0.0
        %1691 = vmatprep.subr.mxu0 0.0
        %1692 = vmatpush2.msra.mxu0 0.0
        %1693 = vmatprep.subr.mxu0 0.0
        %1694 = vmatpush2.msra.mxu0 0.0
        %1695 = vmatprep.subr.mxu0 0.0
        %1696 = vmatpush2.msra.mxu0 0.0
        %1697 = vmatprep.subr.mxu0 0.0
        %1698 = vmatpush2.msra.mxu0 0.0
        %1699 = vmatprep.subr.mxu0 0.0
        %1700 = vmatpush2.msra.mxu0 0.0
        %1701 = vmatprep.subr.mxu0 0.0
        %1702 = vmatpush2.msra.mxu0 0.0
        %1703 = vmatprep.subr.mxu0 0.0
        %1704 = vmatpush2.msra.mxu0 0.0
        %1705 = vmatprep.subr.mxu0 0.0
        %1706 = vmatpush2.msra.mxu0 0.0
        %1707 = vmatprep.subr.mxu0 0.0
        %1708 = vmatpush2.msra.mxu0 0.0
        %1709 = vmatprep.subr.mxu0 0.0
        %1710 = vmatpush2.msra.mxu0 0.0
        %1711 = vmatprep.subr.mxu0 0.0
        %1712 = vmatpush2.msra.mxu0 0.0
        %1713 = vmatprep.subr.mxu0 0.0
        %1714 = vmatpush2.msra.mxu0 0.0
        %1715 = vmatprep.mubr.f32.mxu0 0.0
        %1716 = vmatmul.mubr.f32.gmra.mxu0 %v1649
        %v1717 = vpop.f32.mrf.mxu0
        %v1718 = vadd.f32 0.0, %v1717
        %v1719 = vpop.f32.mrf.mxu0
        %1720 = vdwg.mxu0
        %v1721 = vadd.f32 %v1640, %v1718
        %v1722 = vadd.f32 %v1721, %v1645
        %v1723 = vxor.u32 %v1722, 2147483648
        %v1724 = vmul.f32 %v1723, 1.442695
        %v1725 = vpow.pop %v1724
        %v1726 = vadd.f32 %v1725, 1.0
        %v1727 = vrcp.pop %v1726
        %v1728 = vmul.f32 1.0, %v1727
        %v1730 = vlaneseq
        %v1731 = vshrl.u32 %v1730, 7
        %v1732 = vsub.s32 0, %v1731
        %v1733 = vrot.slane %v1646, %v1732
        %1734 = vrot.lane.b32.xlu0 %v1733, 32
        %v1735 = vpop.permute.xlu0 %1734
        %v1737 = vadd.f32 %v1640, %v1735
        %v1739 = vlaneseq
        %v1740 = vshrl.u32 %v1739, 7
        %v1741 = vsub.s32 0, %v1740
        %v1742 = vrot.slane %v1647, %v1741
        %1743 = vrot.lane.b32.xlu0 %v1742, 32
        %v1744 = vpop.permute.xlu0 %1743
        %v1746 = vadd.f32 %v1718, %v1744
        %1748 = vrot.lane.b32.xlu0 %v1746, 96
        %v1749 = vpop.permute.xlu0 %1748
        %v1751 = vmul.f32 %v1728, %v1749
        %1753 = vrot.lane.b32.xlu0 %v1751, 32
        %v1754 = vpop.permute.xlu0 %1753
        %v1756 = vadd.f32 %v1737, %v1754
        %v1757 = vtanh.pop %v1756
        %v1758 = vsub.f32 1.0, %v1728
        %1760 = vrot.lane.b32.xlu0 %v1757, 112
        %v1761 = vpop.permute.xlu0 %1760
        %v1763 = vmul.f32 %v1758, %v1761
        %v1764 = vmul.f32 %v1728, 0.0
        %v1765 = vadd.f32 %v1763, %v1764
        %1767 = vrot.lane.b32.xlu0 %v1765, 112
        %v1768 = vpop.permute.xlu0 %1767
        %vm1770 = vcmask 122880
        %1771 = vst.msk [vmem:[#allocation2] sm:$0x1] %vm1770, %v1768
        %v1772 = vsel %vm758, %v1768, 0
        %1774 = vmatprep.subr.mxu0 0.0
        %1775 = vmatpush1.msra.mxu0 0.0
        %1776 = vmatprep.subr.mxu0 0.0
        %1777 = vmatpush1.msra.mxu0 0.0
        %1778 = vmatprep.subr.mxu0 0.0
        %1779 = vmatpush1.msra.mxu0 0.0
        %1780 = vmatprep.subr.mxu0 0.0
        %1781 = vmatpush1.msra.mxu0 0.0
        %1782 = vmatprep.subr.mxu0 0.0
        %1783 = vmatpush1.msra.mxu0 0.0
        %1784 = vmatprep.subr.mxu0 0.0
        %1785 = vmatpush1.msra.mxu0 0.0
        %1786 = vmatprep.subr.mxu0 0.0
        %1787 = vmatpush1.msra.mxu0 0.0
        %1788 = vmatprep.subr.mxu0 0.0
        %1789 = vmatpush1.msra.mxu0 0.0
        %1790 = vmatprep.subr.mxu0 0.0
        %1791 = vmatpush1.msra.mxu0 0.0
        %1792 = vmatprep.subr.mxu0 0.0
        %1793 = vmatpush1.msra.mxu0 0.0
        %1794 = vmatprep.subr.mxu0 0.0
        %1795 = vmatpush1.msra.mxu0 0.0
        %1796 = vmatprep.subr.mxu0 0.0
        %1797 = vmatpush1.msra.mxu0 0.0
        %1798 = vmatprep.subr.mxu0 0.0
        %1799 = vmatpush1.msra.mxu0 0.0
        %1800 = vmatprep.subr.mxu0 0.0
        %1801 = vmatpush1.msra.mxu0 0.0
        %1802 = vmatprep.subr.mxu0 0.0
        %1803 = vmatpush1.msra.mxu0 %v1644
        %1804 = vmatprep.subr.mxu0 0.0
        %1805 = vmatpush1.msra.mxu0 %v1643
        %1806 = vmatprep.subr.mxu0 0.0
        %1807 = vmatpush2.msra.mxu0 0.0
        %1808 = vmatprep.subr.mxu0 0.0
        %1809 = vmatpush2.msra.mxu0 0.0
        %1810 = vmatprep.subr.mxu0 0.0
        %1811 = vmatpush2.msra.mxu0 0.0
        %1812 = vmatprep.subr.mxu0 0.0
        %1813 = vmatpush2.msra.mxu0 0.0
        %1814 = vmatprep.subr.mxu0 0.0
        %1815 = vmatpush2.msra.mxu0 0.0
        %1816 = vmatprep.subr.mxu0 0.0
        %1817 = vmatpush2.msra.mxu0 0.0
        %1818 = vmatprep.subr.mxu0 0.0
        %1819 = vmatpush2.msra.mxu0 0.0
        %1820 = vmatprep.subr.mxu0 0.0
        %1821 = vmatpush2.msra.mxu0 0.0
        %1822 = vmatprep.subr.mxu0 0.0
        %1823 = vmatpush2.msra.mxu0 0.0
        %1824 = vmatprep.subr.mxu0 0.0
        %1825 = vmatpush2.msra.mxu0 0.0
        %1826 = vmatprep.subr.mxu0 0.0
        %1827 = vmatpush2.msra.mxu0 0.0
        %1828 = vmatprep.subr.mxu0 0.0
        %1829 = vmatpush2.msra.mxu0 0.0
        %1830 = vmatprep.subr.mxu0 0.0
        %1831 = vmatpush2.msra.mxu0 0.0
        %1832 = vmatprep.subr.mxu0 0.0
        %1833 = vmatpush2.msra.mxu0 0.0
        %1834 = vmatprep.subr.mxu0 0.0
        %1835 = vmatpush2.msra.mxu0 0.0
        %1836 = vmatprep.subr.mxu0 0.0
        %1837 = vmatpush2.msra.mxu0 0.0
        %1838 = vmatprep.mubr.f32.mxu0 0.0
        %1839 = vmatmul.mubr.f32.gmra.mxu0 %v1772
        %v1840 = vpop.f32.mrf.mxu0
        %v1841 = vadd.f32 0.0, %v1840
        %v1842 = vpop.f32.mrf.mxu0
        %1843 = vdwg.mxu0
        %v1845 = vrot.slane %v1841, 7
        %v1847 = vadd.f32 %v1640, %v1845
        %v1849 = vlaneseq
        %v1850 = vshrl.u32 %v1849, 7
        %v1851 = vsub.s32 0, %v1850
        %v1852 = vrot.slane %v1645, %v1851
        %v1854 = vadd.f32 %v1847, %v1852
        %v1855 = vxor.u32 %v1854, 2147483648
        %v1856 = vmul.f32 %v1855, 1.442695
        %v1857 = vpow.pop %v1856
        %v1858 = vadd.f32 %v1857, 1.0
        %v1859 = vrcp.pop %v1858
        %v1860 = vmul.f32 1.0, %v1859
        %v1861 = vadd.f32 %v1841, %v1744
        %v1863 = vrot.slane %v1861, 7
        %1864 = vrot.lane.b32.xlu0 %v1863, 96
        %v1865 = vpop.permute.xlu0 %1864
        %v1867 = vmul.f32 %v1860, %v1865
        %1869 = vrot.lane.b32.xlu0 %v1867, 32
        %v1870 = vpop.permute.xlu0 %1869
        %v1872 = vadd.f32 %v1737, %v1870
        %v1873 = vtanh.pop %v1872
        %v1874 = vsub.f32 1.0, %v1860
        %1876 = vrot.lane.b32.xlu0 %v1873, 112
        %v1877 = vpop.permute.xlu0 %1876
        %v1879 = vmul.f32 %v1874, %v1877
        %v1880 = vrot.slane %v1765, 7
        %v1882 = vmul.f32 %v1860, %v1880
        %v1883 = vadd.f32 %v1879, %v1882
        %1885 = vrot.lane.b32.xlu0 %v1883, 112
        %v1886 = vpop.permute.xlu0 %1885
        %vm1888 = vcmask 123905
        %1889 = vst.msk [vmem:[#allocation2] sm:$0x2] %vm1888, %v1886
        %v1890 = vrot.slane %v1883, 1
        %1891 = vrot.lane.b32.xlu0 %v1890, 112
        %v1892 = vpop.permute.xlu0 %1891
        %v1893 = vsel %vm758, %v1892, 0
        %1895 = vmatprep.subr.mxu0 0.0
        %1896 = vmatpush1.msra.mxu0 0.0
        %1897 = vmatprep.subr.mxu0 0.0
        %1898 = vmatpush1.msra.mxu0 0.0
        %1899 = vmatprep.subr.mxu0 0.0
        %1900 = vmatpush1.msra.mxu0 0.0
        %1901 = vmatprep.subr.mxu0 0.0
        %1902 = vmatpush1.msra.mxu0 0.0
        %1903 = vmatprep.subr.mxu0 0.0
        %1904 = vmatpush1.msra.mxu0 0.0
        %1905 = vmatprep.subr.mxu0 0.0
        %1906 = vmatpush1.msra.mxu0 0.0
        %1907 = vmatprep.subr.mxu0 0.0
        %1908 = vmatpush1.msra.mxu0 0.0
        %1909 = vmatprep.subr.mxu0 0.0
        %1910 = vmatpush1.msra.mxu0 0.0
        %1911 = vmatprep.subr.mxu0 0.0
        %1912 = vmatpush1.msra.mxu0 0.0
        %1913 = vmatprep.subr.mxu0 0.0
        %1914 = vmatpush1.msra.mxu0 0.0
        %1915 = vmatprep.subr.mxu0 0.0
        %1916 = vmatpush1.msra.mxu0 0.0
        %1917 = vmatprep.subr.mxu0 0.0
        %1918 = vmatpush1.msra.mxu0 0.0
        %1919 = vmatprep.subr.mxu0 0.0
        %1920 = vmatpush1.msra.mxu0 0.0
        %1921 = vmatprep.subr.mxu0 0.0
        %1922 = vmatpush1.msra.mxu0 0.0
        %1923 = vmatprep.subr.mxu0 0.0
        %1924 = vmatpush1.msra.mxu0 %v1644
        %1925 = vmatprep.subr.mxu0 0.0
        %1926 = vmatpush1.msra.mxu0 %v1643
        %1927 = vmatprep.subr.mxu0 0.0
        %1928 = vmatpush2.msra.mxu0 0.0
        %1929 = vmatprep.subr.mxu0 0.0
        %1930 = vmatpush2.msra.mxu0 0.0
        %1931 = vmatprep.subr.mxu0 0.0
        %1932 = vmatpush2.msra.mxu0 0.0
        %1933 = vmatprep.subr.mxu0 0.0
        %1934 = vmatpush2.msra.mxu0 0.0
        %1935 = vmatprep.subr.mxu0 0.0
        %1936 = vmatpush2.msra.mxu0 0.0
        %1937 = vmatprep.subr.mxu0 0.0
        %1938 = vmatpush2.msra.mxu0 0.0
        %1939 = vmatprep.subr.mxu0 0.0
        %1940 = vmatpush2.msra.mxu0 0.0
        %1941 = vmatprep.subr.mxu0 0.0
        %1942 = vmatpush2.msra.mxu0 0.0
        %1943 = vmatprep.subr.mxu0 0.0
        %1944 = vmatpush2.msra.mxu0 0.0
        %1945 = vmatprep.subr.mxu0 0.0
        %1946 = vmatpush2.msra.mxu0 0.0
        %1947 = vmatprep.subr.mxu0 0.0
        %1948 = vmatpush2.msra.mxu0 0.0
        %1949 = vmatprep.subr.mxu0 0.0
        %1950 = vmatpush2.msra.mxu0 0.0
        %1951 = vmatprep.subr.mxu0 0.0
        %1952 = vmatpush2.msra.mxu0 0.0
        %1953 = vmatprep.subr.mxu0 0.0
        %1954 = vmatpush2.msra.mxu0 0.0
        %1955 = vmatprep.subr.mxu0 0.0
        %1956 = vmatpush2.msra.mxu0 0.0
        %1957 = vmatprep.subr.mxu0 0.0
        %1958 = vmatpush2.msra.mxu0 0.0
        %1959 = vmatprep.mubr.f32.mxu0 0.0
        %1960 = vmatmul.mubr.f32.gmra.mxu0 %v1893
        %v1961 = vpop.f32.mrf.mxu0
        %v1962 = vadd.f32 0.0, %v1961
        %v1963 = vpop.f32.mrf.mxu0
        %1964 = vdwg.mxu0
        %v1966 = vrot.slane %v1962, 6
        %v1968 = vadd.f32 %v1640, %v1966
        %v1969 = vadd.f32 %v1968, %v1852
        %v1970 = vxor.u32 %v1969, 2147483648
        %v1971 = vmul.f32 %v1970, 1.442695
        %v1972 = vpow.pop %v1971
        %v1973 = vadd.f32 %v1972, 1.0
        %v1974 = vrcp.pop %v1973
        %v1975 = vmul.f32 1.0, %v1974
        %v1976 = vadd.f32 %v1962, %v1744
        %v1978 = vrot.slane %v1976, 6
        %1979 = vrot.lane.b32.xlu0 %v1978, 96
        %v1980 = vpop.permute.xlu0 %1979
        %v1982 = vmul.f32 %v1975, %v1980
        %1984 = vrot.lane.b32.xlu0 %v1982, 32
        %v1985 = vpop.permute.xlu0 %1984
        %v1987 = vadd.f32 %v1737, %v1985
        %v1988 = vtanh.pop %v1987
        %v1989 = vsub.f32 1.0, %v1975
        %1991 = vrot.lane.b32.xlu0 %v1988, 112
        %v1992 = vpop.permute.xlu0 %1991
        %v1994 = vmul.f32 %v1989, %v1992
        %v1995 = vrot.slane %v1883, 7
        %v1997 = vmul.f32 %v1975, %v1995
        %v1998 = vadd.f32 %v1994, %v1997
        %2000 = vrot.lane.b32.xlu0 %v1998, 112
        %v2001 = vpop.permute.xlu0 %2000
        %vm2003 = vcmask 124930
        %2004 = vst.msk [vmem:[#allocation2] sm:$0x4] %vm2003, %v2001
        %v2005 = vrot.slane %v1998, 2
        %2006 = vrot.lane.b32.xlu0 %v2005, 112
        %v2007 = vpop.permute.xlu0 %2006
        %v2008 = vsel %vm758, %v2007, 0
        %2010 = vmatprep.subr.mxu0 0.0
        %2011 = vmatpush1.msra.mxu0 0.0
        %2012 = vmatprep.subr.mxu0 0.0
        %2013 = vmatpush1.msra.mxu0 0.0
        %2014 = vmatprep.subr.mxu0 0.0
        %2015 = vmatpush1.msra.mxu0 0.0
        %2016 = vmatprep.subr.mxu0 0.0
        %2017 = vmatpush1.msra.mxu0 0.0
        %2018 = vmatprep.subr.mxu0 0.0
        %2019 = vmatpush1.msra.mxu0 0.0
        %2020 = vmatprep.subr.mxu0 0.0
        %2021 = vmatpush1.msra.mxu0 0.0
        %2022 = vmatprep.subr.mxu0 0.0
        %2023 = vmatpush1.msra.mxu0 0.0
        %2024 = vmatprep.subr.mxu0 0.0
        %2025 = vmatpush1.msra.mxu0 0.0
        %2026 = vmatprep.subr.mxu0 0.0
        %2027 = vmatpush1.msra.mxu0 0.0
        %2028 = vmatprep.subr.mxu0 0.0
        %2029 = vmatpush1.msra.mxu0 0.0
        %2030 = vmatprep.subr.mxu0 0.0
        %2031 = vmatpush1.msra.mxu0 0.0
        %2032 = vmatprep.subr.mxu0 0.0
        %2033 = vmatpush1.msra.mxu0 0.0
        %2034 = vmatprep.subr.mxu0 0.0
        %2035 = vmatpush1.msra.mxu0 0.0
        %2036 = vmatprep.subr.mxu0 0.0
        %2037 = vmatpush1.msra.mxu0 0.0
        %2038 = vmatprep.subr.mxu0 0.0
        %2039 = vmatpush1.msra.mxu0 %v1644
        %2040 = vmatprep.subr.mxu0 0.0
        %2041 = vmatpush1.msra.mxu0 %v1643
        %2042 = vmatprep.subr.mxu0 0.0
        %2043 = vmatpush2.msra.mxu0 0.0
        %2044 = vmatprep.subr.mxu0 0.0
        %2045 = vmatpush2.msra.mxu0 0.0
        %2046 = vmatprep.subr.mxu0 0.0
        %2047 = vmatpush2.msra.mxu0 0.0
        %2048 = vmatprep.subr.mxu0 0.0
        %2049 = vmatpush2.msra.mxu0 0.0
        %2050 = vmatprep.subr.mxu0 0.0
        %2051 = vmatpush2.msra.mxu0 0.0
        %2052 = vmatprep.subr.mxu0 0.0
        %2053 = vmatpush2.msra.mxu0 0.0
        %2054 = vmatprep.subr.mxu0 0.0
        %2055 = vmatpush2.msra.mxu0 0.0
        %2056 = vmatprep.subr.mxu0 0.0
        %2057 = vmatpush2.msra.mxu0 0.0
        %2058 = vmatprep.subr.mxu0 0.0
        %2059 = vmatpush2.msra.mxu0 0.0
        %2060 = vmatprep.subr.mxu0 0.0
        %2061 = vmatpush2.msra.mxu0 0.0
        %2062 = vmatprep.subr.mxu0 0.0
        %2063 = vmatpush2.msra.mxu0 0.0
        %2064 = vmatprep.subr.mxu0 0.0
        %2065 = vmatpush2.msra.mxu0 0.0
        %2066 = vmatprep.subr.mxu0 0.0
        %2067 = vmatpush2.msra.mxu0 0.0
        %2068 = vmatprep.subr.mxu0 0.0
        %2069 = vmatpush2.msra.mxu0 0.0
        %2070 = vmatprep.subr.mxu0 0.0
        %2071 = vmatpush2.msra.mxu0 0.0
        %2072 = vmatprep.subr.mxu0 0.0
        %2073 = vmatpush2.msra.mxu0 0.0
        %2074 = vmatprep.mubr.f32.mxu0 0.0
        %2075 = vmatmul.mubr.f32.gmra.mxu0 %v2008
        %v2076 = vpop.f32.mrf.mxu0
        %v2077 = vadd.f32 0.0, %v2076
        %v2078 = vpop.f32.mrf.mxu0
        %2079 = vdwg.mxu0
        %v2081 = vrot.slane %v2077, 5
        %v2083 = vadd.f32 %v1640, %v2081
        %v2084 = vadd.f32 %v2083, %v1852
        %v2085 = vxor.u32 %v2084, 2147483648
        %v2086 = vmul.f32 %v2085, 1.442695
        %v2087 = vpow.pop %v2086
        %v2088 = vadd.f32 %v2087, 1.0
        %v2089 = vrcp.pop %v2088
        %v2090 = vmul.f32 1.0, %v2089
        %v2091 = vadd.f32 %v2077, %v1744
        %v2093 = vrot.slane %v2091, 5
        %2094 = vrot.lane.b32.xlu0 %v2093, 96
        %v2095 = vpop.permute.xlu0 %2094
        %v2097 = vmul.f32 %v2090, %v2095
        %2099 = vrot.lane.b32.xlu0 %v2097, 32
        %v2100 = vpop.permute.xlu0 %2099
        %v2102 = vadd.f32 %v1737, %v2100
        %v2103 = vtanh.pop %v2102
        %v2104 = vsub.f32 1.0, %v2090
        %2106 = vrot.lane.b32.xlu0 %v2103, 112
        %v2107 = vpop.permute.xlu0 %2106
        %v2109 = vmul.f32 %v2104, %v2107
        %v2110 = vrot.slane %v1998, 7
        %v2112 = vmul.f32 %v2090, %v2110
        %v2113 = vadd.f32 %v2109, %v2112
        %2115 = vrot.lane.b32.xlu0 %v2113, 112
        %v2116 = vpop.permute.xlu0 %2115
        %vm2118 = vcmask 125955
        %2119 = vst.msk [vmem:[#allocation2] sm:$0x8] %vm2118, %v2116
        %v2120 = vrot.slane %v2113, 3
        %2121 = vrot.lane.b32.xlu0 %v2120, 112
        %v2122 = vpop.permute.xlu0 %2121
        %v2123 = vsel %vm758, %v2122, 0
        %2125 = vmatprep.subr.mxu0 0.0
        %2126 = vmatpush1.msra.mxu0 0.0
        %2127 = vmatprep.subr.mxu0 0.0
        %2128 = vmatpush1.msra.mxu0 0.0
        %2129 = vmatprep.subr.mxu0 0.0
        %2130 = vmatpush1.msra.mxu0 0.0
        %2131 = vmatprep.subr.mxu0 0.0
        %2132 = vmatpush1.msra.mxu0 0.0
        %2133 = vmatprep.subr.mxu0 0.0
        %2134 = vmatpush1.msra.mxu0 0.0
        %2135 = vmatprep.subr.mxu0 0.0
        %2136 = vmatpush1.msra.mxu0 0.0
        %2137 = vmatprep.subr.mxu0 0.0
        %2138 = vmatpush1.msra.mxu0 0.0
        %2139 = vmatprep.subr.mxu0 0.0
        %2140 = vmatpush1.msra.mxu0 0.0
        %2141 = vmatprep.subr.mxu0 0.0
        %2142 = vmatpush1.msra.mxu0 0.0
        %2143 = vmatprep.subr.mxu0 0.0
        %2144 = vmatpush1.msra.mxu0 0.0
        %2145 = vmatprep.subr.mxu0 0.0
        %2146 = vmatpush1.msra.mxu0 0.0
        %2147 = vmatprep.subr.mxu0 0.0
        %2148 = vmatpush1.msra.mxu0 0.0
        %2149 = vmatprep.subr.mxu0 0.0
        %2150 = vmatpush1.msra.mxu0 0.0
        %2151 = vmatprep.subr.mxu0 0.0
        %2152 = vmatpush1.msra.mxu0 0.0
        %2153 = vmatprep.subr.mxu0 0.0
        %2154 = vmatpush1.msra.mxu0 %v1644
        %2155 = vmatprep.subr.mxu0 0.0
        %2156 = vmatpush1.msra.mxu0 %v1643
        %2157 = vmatprep.subr.mxu0 0.0
        %2158 = vmatpush2.msra.mxu0 0.0
        %2159 = vmatprep.subr.mxu0 0.0
        %2160 = vmatpush2.msra.mxu0 0.0
        %2161 = vmatprep.subr.mxu0 0.0
        %2162 = vmatpush2.msra.mxu0 0.0
        %2163 = vmatprep.subr.mxu0 0.0
        %2164 = vmatpush2.msra.mxu0 0.0
        %2165 = vmatprep.subr.mxu0 0.0
        %2166 = vmatpush2.msra.mxu0 0.0
        %2167 = vmatprep.subr.mxu0 0.0
        %2168 = vmatpush2.msra.mxu0 0.0
        %2169 = vmatprep.subr.mxu0 0.0
        %2170 = vmatpush2.msra.mxu0 0.0
        %2171 = vmatprep.subr.mxu0 0.0
        %2172 = vmatpush2.msra.mxu0 0.0
        %2173 = vmatprep.subr.mxu0 0.0
        %2174 = vmatpush2.msra.mxu0 0.0
        %2175 = vmatprep.subr.mxu0 0.0
        %2176 = vmatpush2.msra.mxu0 0.0
        %2177 = vmatprep.subr.mxu0 0.0
        %2178 = vmatpush2.msra.mxu0 0.0
        %2179 = vmatprep.subr.mxu0 0.0
        %2180 = vmatpush2.msra.mxu0 0.0
        %2181 = vmatprep.subr.mxu0 0.0
        %2182 = vmatpush2.msra.mxu0 0.0
        %2183 = vmatprep.subr.mxu0 0.0
        %2184 = vmatpush2.msra.mxu0 0.0
        %2185 = vmatprep.subr.mxu0 0.0
        %2186 = vmatpush2.msra.mxu0 0.0
        %2187 = vmatprep.subr.mxu0 0.0
        %2188 = vmatpush2.msra.mxu0 0.0
        %2189 = vmatprep.mubr.f32.mxu0 0.0
        %2190 = vmatmul.mubr.f32.gmra.mxu0 %v2123
        %v2191 = vpop.f32.mrf.mxu0
        %v2192 = vadd.f32 0.0, %v2191
        %v2193 = vpop.f32.mrf.mxu0
        %2194 = vdwg.mxu0
        %v2196 = vrot.slane %v2192, 4
        %v2198 = vadd.f32 %v1640, %v2196
        %v2199 = vadd.f32 %v2198, %v1852
        %v2200 = vxor.u32 %v2199, 2147483648
        %v2201 = vmul.f32 %v2200, 1.442695
        %v2202 = vpow.pop %v2201
        %v2203 = vadd.f32 %v2202, 1.0
        %v2204 = vrcp.pop %v2203
        %v2205 = vmul.f32 1.0, %v2204
        %v2206 = vadd.f32 %v2192, %v1744
        %v2208 = vrot.slane %v2206, 4
        %2209 = vrot.lane.b32.xlu0 %v2208, 96
        %v2210 = vpop.permute.xlu0 %2209
        %v2212 = vmul.f32 %v2205, %v2210
        %2214 = vrot.lane.b32.xlu0 %v2212, 32
        %v2215 = vpop.permute.xlu0 %2214
        %v2217 = vadd.f32 %v1737, %v2215
        %v2218 = vtanh.pop %v2217
        %v2219 = vsub.f32 1.0, %v2205
        %2221 = vrot.lane.b32.xlu0 %v2218, 112
        %v2222 = vpop.permute.xlu0 %2221
        %v2224 = vmul.f32 %v2219, %v2222
        %v2225 = vrot.slane %v2113, 7
        %v2227 = vmul.f32 %v2205, %v2225
        %v2228 = vadd.f32 %v2224, %v2227
        %2230 = vrot.lane.b32.xlu0 %v2228, 112
        %v2231 = vpop.permute.xlu0 %2230
        %vm2233 = vcmask 126980
        %2234 = vst.msk [vmem:[#allocation2] sm:$0x10] %vm2233, %v2231
        %v2235 = vrot.slane %v2228, 4
        %2236 = vrot.lane.b32.xlu0 %v2235, 112
        %v2237 = vpop.permute.xlu0 %2236
        %v2238 = vsel %vm758, %v2237, 0
        %2240 = vmatprep.subr.mxu0 0.0
        %2241 = vmatpush1.msra.mxu0 0.0
        %2242 = vmatprep.subr.mxu0 0.0
        %2243 = vmatpush1.msra.mxu0 0.0
        %2244 = vmatprep.subr.mxu0 0.0
        %2245 = vmatpush1.msra.mxu0 0.0
        %2246 = vmatprep.subr.mxu0 0.0
        %2247 = vmatpush1.msra.mxu0 0.0
        %2248 = vmatprep.subr.mxu0 0.0
        %2249 = vmatpush1.msra.mxu0 0.0
        %2250 = vmatprep.subr.mxu0 0.0
        %2251 = vmatpush1.msra.mxu0 0.0
        %2252 = vmatprep.subr.mxu0 0.0
        %2253 = vmatpush1.msra.mxu0 0.0
        %2254 = vmatprep.subr.mxu0 0.0
        %2255 = vmatpush1.msra.mxu0 0.0
        %2256 = vmatprep.subr.mxu0 0.0
        %2257 = vmatpush1.msra.mxu0 0.0
        %2258 = vmatprep.subr.mxu0 0.0
        %2259 = vmatpush1.msra.mxu0 0.0
        %2260 = vmatprep.subr.mxu0 0.0
        %2261 = vmatpush1.msra.mxu0 0.0
        %2262 = vmatprep.subr.mxu0 0.0
        %2263 = vmatpush1.msra.mxu0 0.0
        %2264 = vmatprep.subr.mxu0 0.0
        %2265 = vmatpush1.msra.mxu0 0.0
        %2266 = vmatprep.subr.mxu0 0.0
        %2267 = vmatpush1.msra.mxu0 0.0
        %2268 = vmatprep.subr.mxu0 0.0
        %2269 = vmatpush1.msra.mxu0 %v1644
        %2270 = vmatprep.subr.mxu0 0.0
        %2271 = vmatpush1.msra.mxu0 %v1643
        %2272 = vmatprep.subr.mxu0 0.0
        %2273 = vmatpush2.msra.mxu0 0.0
        %2274 = vmatprep.subr.mxu0 0.0
        %2275 = vmatpush2.msra.mxu0 0.0
        %2276 = vmatprep.subr.mxu0 0.0
        %2277 = vmatpush2.msra.mxu0 0.0
        %2278 = vmatprep.subr.mxu0 0.0
        %2279 = vmatpush2.msra.mxu0 0.0
        %2280 = vmatprep.subr.mxu0 0.0
        %2281 = vmatpush2.msra.mxu0 0.0
        %2282 = vmatprep.subr.mxu0 0.0
        %2283 = vmatpush2.msra.mxu0 0.0
        %2284 = vmatprep.subr.mxu0 0.0
        %2285 = vmatpush2.msra.mxu0 0.0
        %2286 = vmatprep.subr.mxu0 0.0
        %2287 = vmatpush2.msra.mxu0 0.0
        %2288 = vmatprep.subr.mxu0 0.0
        %2289 = vmatpush2.msra.mxu0 0.0
        %2290 = vmatprep.subr.mxu0 0.0
        %2291 = vmatpush2.msra.mxu0 0.0
        %2292 = vmatprep.subr.mxu0 0.0
        %2293 = vmatpush2.msra.mxu0 0.0
        %2294 = vmatprep.subr.mxu0 0.0
        %2295 = vmatpush2.msra.mxu0 0.0
        %2296 = vmatprep.subr.mxu0 0.0
        %2297 = vmatpush2.msra.mxu0 0.0
        %2298 = vmatprep.subr.mxu0 0.0
        %2299 = vmatpush2.msra.mxu0 0.0
        %2300 = vmatprep.subr.mxu0 0.0
        %2301 = vmatpush2.msra.mxu0 0.0
        %2302 = vmatprep.subr.mxu0 0.0
        %2303 = vmatpush2.msra.mxu0 0.0
        %2304 = vmatprep.mubr.f32.mxu0 0.0
        %2305 = vmatmul.mubr.f32.gmra.mxu0 %v2238
        %v2306 = vpop.f32.mrf.mxu0
        %v2307 = vadd.f32 0.0, %v2306
        %v2308 = vpop.f32.mrf.mxu0
        %2309 = vdwg.mxu0
        %v2311 = vrot.slane %v2307, 3
        %v2313 = vadd.f32 %v1640, %v2311
        %v2314 = vadd.f32 %v2313, %v1852
        %v2315 = vxor.u32 %v2314, 2147483648
        %v2316 = vmul.f32 %v2315, 1.442695
        %v2317 = vpow.pop %v2316
        %v2318 = vadd.f32 %v2317, 1.0
        %v2319 = vrcp.pop %v2318
        %v2320 = vmul.f32 1.0, %v2319
        %v2321 = vadd.f32 %v2307, %v1744
        %v2323 = vrot.slane %v2321, 3
        %2324 = vrot.lane.b32.xlu0 %v2323, 96
        %v2325 = vpop.permute.xlu0 %2324
        %v2327 = vmul.f32 %v2320, %v2325
        %2329 = vrot.lane.b32.xlu0 %v2327, 32
        %v2330 = vpop.permute.xlu0 %2329
        %v2332 = vadd.f32 %v1737, %v2330
        %v2333 = vtanh.pop %v2332
        %v2334 = vsub.f32 1.0, %v2320
        %2336 = vrot.lane.b32.xlu0 %v2333, 112
        %v2337 = vpop.permute.xlu0 %2336
        %v2339 = vmul.f32 %v2334, %v2337
        %v2340 = vrot.slane %v2228, 7
        %v2342 = vmul.f32 %v2320, %v2340
        %v2343 = vadd.f32 %v2339, %v2342
        %2345 = vrot.lane.b32.xlu0 %v2343, 112
        %v2346 = vpop.permute.xlu0 %2345
        %vm2348 = vcmask 128005
        %2349 = vst.msk [vmem:[#allocation2] sm:$0x20] %vm2348, %v2346
        %v2350 = vrot.slane %v2343, 5
        %2351 = vrot.lane.b32.xlu0 %v2350, 112
        %v2352 = vpop.permute.xlu0 %2351
        %v2353 = vsel %vm758, %v2352, 0
        %2355 = vmatprep.subr.mxu0 0.0
        %2356 = vmatpush1.msra.mxu0 0.0
        %2357 = vmatprep.subr.mxu0 0.0
        %2358 = vmatpush1.msra.mxu0 0.0
        %2359 = vmatprep.subr.mxu0 0.0
        %2360 = vmatpush1.msra.mxu0 0.0
        %2361 = vmatprep.subr.mxu0 0.0
        %2362 = vmatpush1.msra.mxu0 0.0
        %2363 = vmatprep.subr.mxu0 0.0
        %2364 = vmatpush1.msra.mxu0 0.0
        %2365 = vmatprep.subr.mxu0 0.0
        %2366 = vmatpush1.msra.mxu0 0.0
        %2367 = vmatprep.subr.mxu0 0.0
        %2368 = vmatpush1.msra.mxu0 0.0
        %2369 = vmatprep.subr.mxu0 0.0
        %2370 = vmatpush1.msra.mxu0 0.0
        %2371 = vmatprep.subr.mxu0 0.0
        %2372 = vmatpush1.msra.mxu0 0.0
        %2373 = vmatprep.subr.mxu0 0.0
        %2374 = vmatpush1.msra.mxu0 0.0
        %2375 = vmatprep.subr.mxu0 0.0
        %2376 = vmatpush1.msra.mxu0 0.0
        %2377 = vmatprep.subr.mxu0 0.0
        %2378 = vmatpush1.msra.mxu0 0.0
        %2379 = vmatprep.subr.mxu0 0.0
        %2380 = vmatpush1.msra.mxu0 0.0
        %2381 = vmatprep.subr.mxu0 0.0
        %2382 = vmatpush1.msra.mxu0 0.0
        %2383 = vmatprep.subr.mxu0 0.0
        %2384 = vmatpush1.msra.mxu0 %v1644
        %2385 = vmatprep.subr.mxu0 0.0
        %2386 = vmatpush1.msra.mxu0 %v1643
        %2387 = vmatprep.subr.mxu0 0.0
        %2388 = vmatpush2.msra.mxu0 0.0
        %2389 = vmatprep.subr.mxu0 0.0
        %2390 = vmatpush2.msra.mxu0 0.0
        %2391 = vmatprep.subr.mxu0 0.0
        %2392 = vmatpush2.msra.mxu0 0.0
        %2393 = vmatprep.subr.mxu0 0.0
        %2394 = vmatpush2.msra.mxu0 0.0
        %2395 = vmatprep.subr.mxu0 0.0
        %2396 = vmatpush2.msra.mxu0 0.0
        %2397 = vmatprep.subr.mxu0 0.0
        %2398 = vmatpush2.msra.mxu0 0.0
        %2399 = vmatprep.subr.mxu0 0.0
        %2400 = vmatpush2.msra.mxu0 0.0
        %2401 = vmatprep.subr.mxu0 0.0
        %2402 = vmatpush2.msra.mxu0 0.0
        %2403 = vmatprep.subr.mxu0 0.0
        %2404 = vmatpush2.msra.mxu0 0.0
        %2405 = vmatprep.subr.mxu0 0.0
        %2406 = vmatpush2.msra.mxu0 0.0
        %2407 = vmatprep.subr.mxu0 0.0
        %2408 = vmatpush2.msra.mxu0 0.0
        %2409 = vmatprep.subr.mxu0 0.0
        %2410 = vmatpush2.msra.mxu0 0.0
        %2411 = vmatprep.subr.mxu0 0.0
        %2412 = vmatpush2.msra.mxu0 0.0
        %2413 = vmatprep.subr.mxu0 0.0
        %2414 = vmatpush2.msra.mxu0 0.0
        %2415 = vmatprep.subr.mxu0 0.0
        %2416 = vmatpush2.msra.mxu0 0.0
        %2417 = vmatprep.subr.mxu0 0.0
        %2418 = vmatpush2.msra.mxu0 0.0
        %2419 = vmatprep.mubr.f32.mxu0 0.0
        %2420 = vmatmul.mubr.f32.gmra.mxu0 %v2353
        %v2421 = vpop.f32.mrf.mxu0
        %v2422 = vadd.f32 0.0, %v2421
        %v2423 = vpop.f32.mrf.mxu0
        %2424 = vdwg.mxu0
        %v2426 = vrot.slane %v2422, 2
        %v2428 = vadd.f32 %v1640, %v2426
        %v2429 = vadd.f32 %v2428, %v1852
        %v2430 = vxor.u32 %v2429, 2147483648
        %v2431 = vmul.f32 %v2430, 1.442695
        %v2432 = vpow.pop %v2431
        %v2433 = vadd.f32 %v2432, 1.0
        %v2434 = vrcp.pop %v2433
        %v2435 = vmul.f32 1.0, %v2434
        %v2436 = vadd.f32 %v2422, %v1744
        %v2438 = vrot.slane %v2436, 2
        %2439 = vrot.lane.b32.xlu0 %v2438, 96
        %v2440 = vpop.permute.xlu0 %2439
        %v2442 = vmul.f32 %v2435, %v2440
        %2444 = vrot.lane.b32.xlu0 %v2442, 32
        %v2445 = vpop.permute.xlu0 %2444
        %v2447 = vadd.f32 %v1737, %v2445
        %v2448 = vtanh.pop %v2447
        %v2449 = vsub.f32 1.0, %v2435
        %2451 = vrot.lane.b32.xlu0 %v2448, 112
        %v2452 = vpop.permute.xlu0 %2451
        %v2454 = vmul.f32 %v2449, %v2452
        %v2455 = vrot.slane %v2343, 7
        %v2457 = vmul.f32 %v2435, %v2455
        %v2458 = vadd.f32 %v2454, %v2457
        %2460 = vrot.lane.b32.xlu0 %v2458, 112
        %v2461 = vpop.permute.xlu0 %2460
        %vm2463 = vcmask 129030
        %2464 = vst.msk [vmem:[#allocation2] sm:$0x40] %vm2463, %v2461
        %v2465 = vrot.slane %v2458, 6
        %2466 = vrot.lane.b32.xlu0 %v2465, 112
        %v2467 = vpop.permute.xlu0 %2466
        %v2468 = vsel %vm758, %v2467, 0
        %2470 = vmatprep.subr.mxu0 0.0
        %2471 = vmatpush1.msra.mxu0 0.0
        %2472 = vmatprep.subr.mxu0 0.0
        %2473 = vmatpush1.msra.mxu0 0.0
        %2474 = vmatprep.subr.mxu0 0.0
        %2475 = vmatpush1.msra.mxu0 0.0
        %2476 = vmatprep.subr.mxu0 0.0
        %2477 = vmatpush1.msra.mxu0 0.0
        %2478 = vmatprep.subr.mxu0 0.0
        %2479 = vmatpush1.msra.mxu0 0.0
        %2480 = vmatprep.subr.mxu0 0.0
        %2481 = vmatpush1.msra.mxu0 0.0
        %2482 = vmatprep.subr.mxu0 0.0
        %2483 = vmatpush1.msra.mxu0 0.0
        %2484 = vmatprep.subr.mxu0 0.0
        %2485 = vmatpush1.msra.mxu0 0.0
        %2486 = vmatprep.subr.mxu0 0.0
        %2487 = vmatpush1.msra.mxu0 0.0
        %2488 = vmatprep.subr.mxu0 0.0
        %2489 = vmatpush1.msra.mxu0 0.0
        %2490 = vmatprep.subr.mxu0 0.0
        %2491 = vmatpush1.msra.mxu0 0.0
        %2492 = vmatprep.subr.mxu0 0.0
        %2493 = vmatpush1.msra.mxu0 0.0
        %2494 = vmatprep.subr.mxu0 0.0
        %2495 = vmatpush1.msra.mxu0 0.0
        %2496 = vmatprep.subr.mxu0 0.0
        %2497 = vmatpush1.msra.mxu0 0.0
        %2498 = vmatprep.subr.mxu0 0.0
        %2499 = vmatpush1.msra.mxu0 %v1644
        %2500 = vmatprep.subr.mxu0 0.0
        %2501 = vmatpush1.msra.mxu0 %v1643
        %2502 = vmatprep.subr.mxu0 0.0
        %2503 = vmatpush2.msra.mxu0 0.0
        %2504 = vmatprep.subr.mxu0 0.0
        %2505 = vmatpush2.msra.mxu0 0.0
        %2506 = vmatprep.subr.mxu0 0.0
        %2507 = vmatpush2.msra.mxu0 0.0
        %2508 = vmatprep.subr.mxu0 0.0
        %2509 = vmatpush2.msra.mxu0 0.0
        %2510 = vmatprep.subr.mxu0 0.0
        %2511 = vmatpush2.msra.mxu0 0.0
        %2512 = vmatprep.subr.mxu0 0.0
        %2513 = vmatpush2.msra.mxu0 0.0
        %2514 = vmatprep.subr.mxu0 0.0
        %2515 = vmatpush2.msra.mxu0 0.0
        %2516 = vmatprep.subr.mxu0 0.0
        %2517 = vmatpush2.msra.mxu0 0.0
        %2518 = vmatprep.subr.mxu0 0.0
        %2519 = vmatpush2.msra.mxu0 0.0
        %2520 = vmatprep.subr.mxu0 0.0
        %2521 = vmatpush2.msra.mxu0 0.0
        %2522 = vmatprep.subr.mxu0 0.0
        %2523 = vmatpush2.msra.mxu0 0.0
        %2524 = vmatprep.subr.mxu0 0.0
        %2525 = vmatpush2.msra.mxu0 0.0
        %2526 = vmatprep.subr.mxu0 0.0
        %2527 = vmatpush2.msra.mxu0 0.0
        %2528 = vmatprep.subr.mxu0 0.0
        %2529 = vmatpush2.msra.mxu0 0.0
        %2530 = vmatprep.subr.mxu0 0.0
        %2531 = vmatpush2.msra.mxu0 0.0
        %2532 = vmatprep.subr.mxu0 0.0
        %2533 = vmatpush2.msra.mxu0 0.0
        %2534 = vmatprep.mubr.f32.mxu0 0.0
        %2535 = vmatmul.mubr.f32.gmra.mxu0 %v2468
        %v2536 = vpop.f32.mrf.mxu0
        %v2537 = vadd.f32 0.0, %v2536
        %v2538 = vpop.f32.mrf.mxu0
        %2539 = vdwg.mxu0
        %v2541 = vrot.slane %v2537, 1
        %v2543 = vadd.f32 %v1640, %v2541
        %v2544 = vadd.f32 %v2543, %v1852
        %v2545 = vxor.u32 %v2544, 2147483648
        %v2546 = vmul.f32 %v2545, 1.442695
        %v2547 = vpow.pop %v2546
        %v2548 = vadd.f32 %v2547, 1.0
        %v2549 = vrcp.pop %v2548
        %v2550 = vmul.f32 1.0, %v2549
        %v2551 = vadd.f32 %v2537, %v1744
        %v2553 = vrot.slane %v2551, 1
        %2554 = vrot.lane.b32.xlu0 %v2553, 96
        %v2555 = vpop.permute.xlu0 %2554
        %v2557 = vmul.f32 %v2550, %v2555
        %2559 = vrot.lane.b32.xlu0 %v2557, 32
        %v2560 = vpop.permute.xlu0 %2559
        %v2562 = vadd.f32 %v1737, %v2560
        %v2563 = vtanh.pop %v2562
        %v2564 = vsub.f32 1.0, %v2550
        %2566 = vrot.lane.b32.xlu0 %v2563, 112
        %v2567 = vpop.permute.xlu0 %2566
        %v2569 = vmul.f32 %v2564, %v2567
        %v2570 = vrot.slane %v2458, 7
        %v2572 = vmul.f32 %v2550, %v2570
        %v2573 = vadd.f32 %v2569, %v2572
        %2575 = vrot.lane.b32.xlu0 %v2573, 112
        %v2576 = vpop.permute.xlu0 %2575
        %vm2578 = vcmask 130055
        %2579 = vst.msk [vmem:[#allocation2] sm:$0x80] %vm2578, %v2576
        %v2580 = vld [vmem:[#allocation2] sm:$0xff]
        %2582 = vrot.lane.b32.xlu0 %v2580, 16
        %v2583 = vpop.permute.xlu0 %2582
        %v2585 = vsel %vm758, %v1570, %v2583
        %v2586 = vld [vmem:[%s11] sm:$0xff]
        %v2587 = vld [vmem:[%s11 + $0x8] sm:$0xff]
        %v2588 = vld [vmem:[%s11 + $0x10] sm:$0xff]
        %v2589 = vld [vmem:[%s11 + $0x18] sm:$0xff]
        %v2590 = vld [vmem:[%s12] sm:$0x1]
        %v2592 = vlaneseq
        %v2593 = vshrl.u32 %v2592, 7
        %v2594 = vsub.s32 0, %v2593
        %v2595 = vrot.slane %v2590, %v2594
        %v2598 = vsel %vm1048, %v2585, 0
        %2600 = vmatprep.subr.mxu0 0.0
        %2601 = vmatpush1.msra.mxu0 0.0
        %2602 = vmatprep.subr.mxu0 0.0
        %2603 = vmatpush1.msra.mxu0 0.0
        %2604 = vmatprep.subr.mxu0 0.0
        %2605 = vmatpush1.msra.mxu0 0.0
        %2606 = vmatprep.subr.mxu0 0.0
        %2607 = vmatpush1.msra.mxu0 0.0
        %2608 = vmatprep.subr.mxu0 0.0
        %2609 = vmatpush1.msra.mxu0 0.0
        %2610 = vmatprep.subr.mxu0 0.0
        %2611 = vmatpush1.msra.mxu0 0.0
        %2612 = vmatprep.subr.mxu0 0.0
        %2613 = vmatpush1.msra.mxu0 0.0
        %2614 = vmatprep.subr.mxu0 0.0
        %2615 = vmatpush1.msra.mxu0 0.0
        %2616 = vmatprep.subr.mxu0 0.0
        %2617 = vmatpush1.msra.mxu0 0.0
        %2618 = vmatprep.subr.mxu0 0.0
        %2619 = vmatpush1.msra.mxu0 0.0
        %2620 = vmatprep.subr.mxu0 0.0
        %2621 = vmatpush1.msra.mxu0 0.0
        %2622 = vmatprep.subr.mxu0 0.0
        %2623 = vmatpush1.msra.mxu0 0.0
        %2624 = vmatprep.subr.mxu0 0.0
        %2625 = vmatpush1.msra.mxu0 %v2589
        %2626 = vmatprep.subr.mxu0 0.0
        %2627 = vmatpush1.msra.mxu0 %v2588
        %2628 = vmatprep.subr.mxu0 0.0
        %2629 = vmatpush1.msra.mxu0 %v2587
        %2630 = vmatprep.subr.mxu0 0.0
        %2631 = vmatpush1.msra.mxu0 %v2586
        %2632 = vmatprep.subr.mxu0 0.0
        %2633 = vmatpush2.msra.mxu0 0.0
        %2634 = vmatprep.subr.mxu0 0.0
        %2635 = vmatpush2.msra.mxu0 0.0
        %2636 = vmatprep.subr.mxu0 0.0
        %2637 = vmatpush2.msra.mxu0 0.0
        %2638 = vmatprep.subr.mxu0 0.0
        %2639 = vmatpush2.msra.mxu0 0.0
        %2640 = vmatprep.subr.mxu0 0.0
        %2641 = vmatpush2.msra.mxu0 0.0
        %2642 = vmatprep.subr.mxu0 0.0
        %2643 = vmatpush2.msra.mxu0 0.0
        %2644 = vmatprep.subr.mxu0 0.0
        %2645 = vmatpush2.msra.mxu0 0.0
        %2646 = vmatprep.subr.mxu0 0.0
        %2647 = vmatpush2.msra.mxu0 0.0
        %2648 = vmatprep.subr.mxu0 0.0
        %2649 = vmatpush2.msra.mxu0 0.0
        %2650 = vmatprep.subr.mxu0 0.0
        %2651 = vmatpush2.msra.mxu0 0.0
        %2652 = vmatprep.subr.mxu0 0.0
        %2653 = vmatpush2.msra.mxu0 0.0
        %2654 = vmatprep.subr.mxu0 0.0
        %2655 = vmatpush2.msra.mxu0 0.0
        %2656 = vmatprep.subr.mxu0 0.0
        %2657 = vmatpush2.msra.mxu0 0.0
        %2658 = vmatprep.subr.mxu0 0.0
        %2659 = vmatpush2.msra.mxu0 0.0
        %2660 = vmatprep.subr.mxu0 0.0
        %2661 = vmatpush2.msra.mxu0 0.0
        %2662 = vmatprep.subr.mxu0 0.0
        %2663 = vmatpush2.msra.mxu0 0.0
        %2664 = vmatprep.mubr.f32.mxu0 0.0
        %2665 = vmatmul.mubr.f32.gmra.mxu0 %v2598
        %v2666 = vpop.f32.mrf.mxu0
        %v2667 = vadd.f32 %v2595, %v2666
        %v2668 = vpop.f32.mrf.mxu0
        %2669 = vdwg.mxu0
        %v2670 = vmax.f32 %v2667, 0.0
        %v2671 = vld [vmem:[%s13] sm:$0xff]
        %v2672 = vld [vmem:[%s13 + $0x8] sm:$0xff]
        %v2673 = vld [vmem:[%s13 + $0x10] sm:$0xff]
        %v2674 = vld [vmem:[%s13 + $0x18] sm:$0xff]
        %v2675 = vld [vmem:[%s14] sm:$0x1]
        %v2677 = vlaneseq
        %v2678 = vshrl.u32 %v2677, 7
        %v2679 = vsub.s32 0, %v2678
        %v2680 = vrot.slane %v2675, %v2679
        %v2683 = vsel %vm1048, %v2670, 0
        %2685 = vmatprep.subr.mxu0 0.0
        %2686 = vmatpush1.msra.mxu0 0.0
        %2687 = vmatprep.subr.mxu0 0.0
        %2688 = vmatpush1.msra.mxu0 0.0
        %2689 = vmatprep.subr.mxu0 0.0
        %2690 = vmatpush1.msra.mxu0 0.0
        %2691 = vmatprep.subr.mxu0 0.0
        %2692 = vmatpush1.msra.mxu0 0.0
        %2693 = vmatprep.subr.mxu0 0.0
        %2694 = vmatpush1.msra.mxu0 0.0
        %2695 = vmatprep.subr.mxu0 0.0
        %2696 = vmatpush1.msra.mxu0 0.0
        %2697 = vmatprep.subr.mxu0 0.0
        %2698 = vmatpush1.msra.mxu0 0.0
        %2699 = vmatprep.subr.mxu0 0.0
        %2700 = vmatpush1.msra.mxu0 0.0
        %2701 = vmatprep.subr.mxu0 0.0
        %2702 = vmatpush1.msra.mxu0 0.0
        %2703 = vmatprep.subr.mxu0 0.0
        %2704 = vmatpush1.msra.mxu0 0.0
        %2705 = vmatprep.subr.mxu0 0.0
        %2706 = vmatpush1.msra.mxu0 0.0
        %2707 = vmatprep.subr.mxu0 0.0
        %2708 = vmatpush1.msra.mxu0 0.0
        %2709 = vmatprep.subr.mxu0 0.0
        %2710 = vmatpush1.msra.mxu0 %v2674
        %2711 = vmatprep.subr.mxu0 0.0
        %2712 = vmatpush1.msra.mxu0 %v2673
        %2713 = vmatprep.subr.mxu0 0.0
        %2714 = vmatpush1.msra.mxu0 %v2672
        %2715 = vmatprep.subr.mxu0 0.0
        %2716 = vmatpush1.msra.mxu0 %v2671
        %2717 = vmatprep.subr.mxu0 0.0
        %2718 = vmatpush2.msra.mxu0 0.0
        %2719 = vmatprep.subr.mxu0 0.0
        %2720 = vmatpush2.msra.mxu0 0.0
        %2721 = vmatprep.subr.mxu0 0.0
        %2722 = vmatpush2.msra.mxu0 0.0
        %2723 = vmatprep.subr.mxu0 0.0
        %2724 = vmatpush2.msra.mxu0 0.0
        %2725 = vmatprep.subr.mxu0 0.0
        %2726 = vmatpush2.msra.mxu0 0.0
        %2727 = vmatprep.subr.mxu0 0.0
        %2728 = vmatpush2.msra.mxu0 0.0
        %2729 = vmatprep.subr.mxu0 0.0
        %2730 = vmatpush2.msra.mxu0 0.0
        %2731 = vmatprep.subr.mxu0 0.0
        %2732 = vmatpush2.msra.mxu0 0.0
        %2733 = vmatprep.subr.mxu0 0.0
        %2734 = vmatpush2.msra.mxu0 0.0
        %2735 = vmatprep.subr.mxu0 0.0
        %2736 = vmatpush2.msra.mxu0 0.0
        %2737 = vmatprep.subr.mxu0 0.0
        %2738 = vmatpush2.msra.mxu0 0.0
        %2739 = vmatprep.subr.mxu0 0.0
        %2740 = vmatpush2.msra.mxu0 0.0
        %2741 = vmatprep.subr.mxu0 0.0
        %2742 = vmatpush2.msra.mxu0 0.0
        %2743 = vmatprep.subr.mxu0 0.0
        %2744 = vmatpush2.msra.mxu0 0.0
        %2745 = vmatprep.subr.mxu0 0.0
        %2746 = vmatpush2.msra.mxu0 0.0
        %2747 = vmatprep.subr.mxu0 0.0
        %2748 = vmatpush2.msra.mxu0 0.0
        %2749 = vmatprep.mubr.f32.mxu0 0.0
        %2750 = vmatmul.mubr.f32.gmra.mxu0 %v2683
        %v2751 = vpop.f32.mrf.mxu0
        %v2752 = vadd.f32 %v2680, %v2751
        %v2753 = vpop.f32.mrf.mxu0
        %2754 = vdwg.mxu0
        %2755 = vxpose.xlu0.b32.start [1/16] %v2752, 128
        %2756 = vxpose.xlu0.b32.cont [2/16] 0.0, 128
        %2757 = vxpose.xlu0.b32.cont [3/16] 0.0, 128
        %2758 = vxpose.xlu0.b32.cont [4/16] 0.0, 128
        %2759 = vxpose.xlu0.b32.cont [5/16] 0.0, 128
        %2760 = vxpose.xlu0.b32.cont [6/16] 0.0, 128
        %2761 = vxpose.xlu0.b32.cont [7/16] 0.0, 128
        %2762 = vxpose.xlu0.b32.cont [8/16] 0.0, 128
        %2763 = vxpose.xlu0.b32.cont [9/16] 0.0, 128
        %2764 = vxpose.xlu0.b32.cont [10/16] 0.0, 128
        %2765 = vxpose.xlu0.b32.cont [11/16] 0.0, 128
        %2766 = vxpose.xlu0.b32.cont [12/16] 0.0, 128
        %2767 = vxpose.xlu0.b32.cont [13/16] 0.0, 128
        %2768 = vxpose.xlu0.b32.cont [14/16] 0.0, 128
        %2769 = vxpose.xlu0.b32.cont [15/16] 0.0, 128
        %2770 = vxpose.xlu0.b32.end [16/16] 0.0, 128
        %v2771 = vpop.trf.xlu0
        %v2772 = vpop.trf.xlu0
        %v2773 = vpop.trf.xlu0
        %v2774 = vpop.trf.xlu0
        %v2775 = vpop.trf.xlu0
        %v2776 = vpop.trf.xlu0
        %v2777 = vpop.trf.xlu0
        %v2778 = vpop.trf.xlu0
        %v2779 = vpop.trf.xlu0
        %v2780 = vpop.trf.xlu0
        %v2781 = vpop.trf.xlu0
        %v2782 = vpop.trf.xlu0
        %v2783 = vpop.trf.xlu0
        %v2784 = vpop.trf.xlu0
        %v2785 = vpop.trf.xlu0
        %v2786 = vpop.trf.xlu0
        %2787 = vst.msk [vmem:[%s704] sm:$0xff] %vm1228, %v2771
        %v2788 = vld [vmem:[%s15] sm:$0xff]
        %v2789 = vld [vmem:[%s15 + $0x8] sm:$0xff]
        %v2790 = vld [vmem:[%s15 + $0x10] sm:$0xff]
        %v2791 = vld [vmem:[%s15 + $0x18] sm:$0xff]
        %s2792 = scalar_lea.vmem %s15, 32
        %v2793 = vld [vmem:[%s2792] sm:$0xff]
        %v2794 = vld [vmem:[%s2792 + $0x8] sm:$0xff]
        %v2795 = vld [vmem:[%s2792 + $0x10] sm:$0xff]
        %v2796 = vld [vmem:[%s2792 + $0x18] sm:$0xff]
        %v2797 = vrot.slane %v2585, 1
        %v2798 = vsel %vm1048, %v2797, 0
        %2800 = vmatprep.subr.mxu0 0.0
        %2801 = vmatpush1.msra.mxu0 0.0
        %2802 = vmatprep.subr.mxu0 0.0
        %2803 = vmatpush1.msra.mxu0 0.0
        %2804 = vmatprep.subr.mxu0 0.0
        %2805 = vmatpush1.msra.mxu0 0.0
        %2806 = vmatprep.subr.mxu0 0.0
        %2807 = vmatpush1.msra.mxu0 0.0
        %2808 = vmatprep.subr.mxu0 0.0
        %2809 = vmatpush1.msra.mxu0 0.0
        %2810 = vmatprep.subr.mxu0 0.0
        %2811 = vmatpush1.msra.mxu0 0.0
        %2812 = vmatprep.subr.mxu0 0.0
        %2813 = vmatpush1.msra.mxu0 0.0
        %2814 = vmatprep.subr.mxu0 0.0
        %2815 = vmatpush1.msra.mxu0 0.0
        %2816 = vmatprep.subr.mxu0 0.0
        %2817 = vmatpush1.msra.mxu0 0.0
        %2818 = vmatprep.subr.mxu0 0.0
        %2819 = vmatpush1.msra.mxu0 0.0
        %2820 = vmatprep.subr.mxu0 0.0
        %2821 = vmatpush1.msra.mxu0 0.0
        %2822 = vmatprep.subr.mxu0 0.0
        %2823 = vmatpush1.msra.mxu0 0.0
        %2824 = vmatprep.subr.mxu0 0.0
        %2825 = vmatpush1.msra.mxu0 %v2796
        %2826 = vmatprep.subr.mxu0 0.0
        %2827 = vmatpush1.msra.mxu0 %v2795
        %2828 = vmatprep.subr.mxu0 0.0
        %2829 = vmatpush1.msra.mxu0 %v2794
        %2830 = vmatprep.subr.mxu0 0.0
        %2831 = vmatpush1.msra.mxu0 %v2793
        %2832 = vmatprep.subr.mxu0 0.0
        %2833 = vmatpush2.msra.mxu0 0.0
        %2834 = vmatprep.subr.mxu0 0.0
        %2835 = vmatpush2.msra.mxu0 0.0
        %2836 = vmatprep.subr.mxu0 0.0
        %2837 = vmatpush2.msra.mxu0 0.0
        %2838 = vmatprep.subr.mxu0 0.0
        %2839 = vmatpush2.msra.mxu0 0.0
        %2840 = vmatprep.subr.mxu0 0.0
        %2841 = vmatpush2.msra.mxu0 0.0
        %2842 = vmatprep.subr.mxu0 0.0
        %2843 = vmatpush2.msra.mxu0 0.0
        %2844 = vmatprep.subr.mxu0 0.0
        %2845 = vmatpush2.msra.mxu0 0.0
        %2846 = vmatprep.subr.mxu0 0.0
        %2847 = vmatpush2.msra.mxu0 0.0
        %2848 = vmatprep.subr.mxu0 0.0
        %2849 = vmatpush2.msra.mxu0 0.0
        %2850 = vmatprep.subr.mxu0 0.0
        %2851 = vmatpush2.msra.mxu0 0.0
        %2852 = vmatprep.subr.mxu0 0.0
        %2853 = vmatpush2.msra.mxu0 0.0
        %2854 = vmatprep.subr.mxu0 0.0
        %2855 = vmatpush2.msra.mxu0 0.0
        %2856 = vmatprep.subr.mxu0 0.0
        %2857 = vmatpush2.msra.mxu0 0.0
        %2858 = vmatprep.subr.mxu0 0.0
        %2859 = vmatpush2.msra.mxu0 0.0
        %2860 = vmatprep.subr.mxu0 0.0
        %2861 = vmatpush2.msra.mxu0 0.0
        %2862 = vmatprep.subr.mxu0 0.0
        %2863 = vmatpush2.msra.mxu0 0.0
        %2864 = vmatprep.mubr.f32.mxu0 0.0
        %2865 = vmatmul.mubr.f32.gmra.mxu0 %v2798
        %v2866 = vpop.f32.mrf.mxu0
        %v2867 = vadd.f32 0.0, %v2866
        %v2868 = vpop.f32.mrf.mxu0
        %2869 = vdwg.mxu0
        %2870 = vmatprep.subr.mxu0 0.0
        %2871 = vmatpush1.msra.mxu0 0.0
        %2872 = vmatprep.subr.mxu0 0.0
        %2873 = vmatpush1.msra.mxu0 0.0
        %2874 = vmatprep.subr.mxu0 0.0
        %2875 = vmatpush1.msra.mxu0 0.0
        %2876 = vmatprep.subr.mxu0 0.0
        %2877 = vmatpush1.msra.mxu0 0.0
        %2878 = vmatprep.subr.mxu0 0.0
        %2879 = vmatpush1.msra.mxu0 0.0
        %2880 = vmatprep.subr.mxu0 0.0
        %2881 = vmatpush1.msra.mxu0 0.0
        %2882 = vmatprep.subr.mxu0 0.0
        %2883 = vmatpush1.msra.mxu0 0.0
        %2884 = vmatprep.subr.mxu0 0.0
        %2885 = vmatpush1.msra.mxu0 0.0
        %2886 = vmatprep.subr.mxu0 0.0
        %2887 = vmatpush1.msra.mxu0 0.0
        %2888 = vmatprep.subr.mxu0 0.0
        %2889 = vmatpush1.msra.mxu0 0.0
        %2890 = vmatprep.subr.mxu0 0.0
        %2891 = vmatpush1.msra.mxu0 0.0
        %2892 = vmatprep.subr.mxu0 0.0
        %2893 = vmatpush1.msra.mxu0 0.0
        %2894 = vmatprep.subr.mxu0 0.0
        %2895 = vmatpush1.msra.mxu0 %v2791
        %2896 = vmatprep.subr.mxu0 0.0
        %2897 = vmatpush1.msra.mxu0 %v2790
        %2898 = vmatprep.subr.mxu0 0.0
        %2899 = vmatpush1.msra.mxu0 %v2789
        %2900 = vmatprep.subr.mxu0 0.0
        %2901 = vmatpush1.msra.mxu0 %v2788
        %2902 = vmatprep.subr.mxu0 0.0
        %2903 = vmatpush2.msra.mxu0 0.0
        %2904 = vmatprep.subr.mxu0 0.0
        %2905 = vmatpush2.msra.mxu0 0.0
        %2906 = vmatprep.subr.mxu0 0.0
        %2907 = vmatpush2.msra.mxu0 0.0
        %2908 = vmatprep.subr.mxu0 0.0
        %2909 = vmatpush2.msra.mxu0 0.0
        %2910 = vmatprep.subr.mxu0 0.0
        %2911 = vmatpush2.msra.mxu0 0.0
        %2912 = vmatprep.subr.mxu0 0.0
        %2913 = vmatpush2.msra.mxu0 0.0
        %2914 = vmatprep.subr.mxu0 0.0
        %2915 = vmatpush2.msra.mxu0 0.0
        %2916 = vmatprep.subr.mxu0 0.0
        %2917 = vmatpush2.msra.mxu0 0.0
        %2918 = vmatprep.subr.mxu0 0.0
        %2919 = vmatpush2.msra.mxu0 0.0
        %2920 = vmatprep.subr.mxu0 0.0
        %2921 = vmatpush2.msra.mxu0 0.0
        %2922 = vmatprep.subr.mxu0 0.0
        %2923 = vmatpush2.msra.mxu0 0.0
        %2924 = vmatprep.subr.mxu0 0.0
        %2925 = vmatpush2.msra.mxu0 0.0
        %2926 = vmatprep.subr.mxu0 0.0
        %2927 = vmatpush2.msra.mxu0 0.0
        %2928 = vmatprep.subr.mxu0 0.0
        %2929 = vmatpush2.msra.mxu0 0.0
        %2930 = vmatprep.subr.mxu0 0.0
        %2931 = vmatpush2.msra.mxu0 0.0
        %2932 = vmatprep.subr.mxu0 0.0
        %2933 = vmatpush2.msra.mxu0 0.0
        %2934 = vmatprep.mubr.f32.mxu0 0.0
        %2935 = vmatmul.mubr.f32.gmra.mxu0 %v2598
        %v2936 = vpop.f32.mrf.mxu0
        %v2937 = vadd.f32 %v2867, %v2936
        %v2938 = vpop.f32.mrf.mxu0
        %2939 = vdwg.mxu0
        %s2940 = scalar_lea.vmem %s15, 64
        %v2941 = vld [vmem:[%s2940] sm:$0xff]
        %v2942 = vld [vmem:[%s2940 + $0x8] sm:$0xff]
        %v2943 = vld [vmem:[%s2940 + $0x10] sm:$0xff]
        %v2944 = vld [vmem:[%s2940 + $0x18] sm:$0xff]
        %v2945 = vrot.slane %v2585, 2
        %v2946 = vsel %vm1048, %v2945, 0
        %2948 = vmatprep.subr.mxu0 0.0
        %2949 = vmatpush1.msra.mxu0 0.0
        %2950 = vmatprep.subr.mxu0 0.0
        %2951 = vmatpush1.msra.mxu0 0.0
        %2952 = vmatprep.subr.mxu0 0.0
        %2953 = vmatpush1.msra.mxu0 0.0
        %2954 = vmatprep.subr.mxu0 0.0
        %2955 = vmatpush1.msra.mxu0 0.0
        %2956 = vmatprep.subr.mxu0 0.0
        %2957 = vmatpush1.msra.mxu0 0.0
        %2958 = vmatprep.subr.mxu0 0.0
        %2959 = vmatpush1.msra.mxu0 0.0
        %2960 = vmatprep.subr.mxu0 0.0
        %2961 = vmatpush1.msra.mxu0 0.0
        %2962 = vmatprep.subr.mxu0 0.0
        %2963 = vmatpush1.msra.mxu0 0.0
        %2964 = vmatprep.subr.mxu0 0.0
        %2965 = vmatpush1.msra.mxu0 0.0
        %2966 = vmatprep.subr.mxu0 0.0
        %2967 = vmatpush1.msra.mxu0 0.0
        %2968 = vmatprep.subr.mxu0 0.0
        %2969 = vmatpush1.msra.mxu0 0.0
        %2970 = vmatprep.subr.mxu0 0.0
        %2971 = vmatpush1.msra.mxu0 0.0
        %2972 = vmatprep.subr.mxu0 0.0
        %2973 = vmatpush1.msra.mxu0 %v2944
        %2974 = vmatprep.subr.mxu0 0.0
        %2975 = vmatpush1.msra.mxu0 %v2943
        %2976 = vmatprep.subr.mxu0 0.0
        %2977 = vmatpush1.msra.mxu0 %v2942
        %2978 = vmatprep.subr.mxu0 0.0
        %2979 = vmatpush1.msra.mxu0 %v2941
        %2980 = vmatprep.subr.mxu0 0.0
        %2981 = vmatpush2.msra.mxu0 0.0
        %2982 = vmatprep.subr.mxu0 0.0
        %2983 = vmatpush2.msra.mxu0 0.0
        %2984 = vmatprep.subr.mxu0 0.0
        %2985 = vmatpush2.msra.mxu0 0.0
        %2986 = vmatprep.subr.mxu0 0.0
        %2987 = vmatpush2.msra.mxu0 0.0
        %2988 = vmatprep.subr.mxu0 0.0
        %2989 = vmatpush2.msra.mxu0 0.0
        %2990 = vmatprep.subr.mxu0 0.0
        %2991 = vmatpush2.msra.mxu0 0.0
        %2992 = vmatprep.subr.mxu0 0.0
        %2993 = vmatpush2.msra.mxu0 0.0
        %2994 = vmatprep.subr.mxu0 0.0
        %2995 = vmatpush2.msra.mxu0 0.0
        %2996 = vmatprep.subr.mxu0 0.0
        %2997 = vmatpush2.msra.mxu0 0.0
        %2998 = vmatprep.subr.mxu0 0.0
        %2999 = vmatpush2.msra.mxu0 0.0
        %3000 = vmatprep.subr.mxu0 0.0
        %3001 = vmatpush2.msra.mxu0 0.0
        %3002 = vmatprep.subr.mxu0 0.0
        %3003 = vmatpush2.msra.mxu0 0.0
        %3004 = vmatprep.subr.mxu0 0.0
        %3005 = vmatpush2.msra.mxu0 0.0
        %3006 = vmatprep.subr.mxu0 0.0
        %3007 = vmatpush2.msra.mxu0 0.0
        %3008 = vmatprep.subr.mxu0 0.0
        %3009 = vmatpush2.msra.mxu0 0.0
        %3010 = vmatprep.subr.mxu0 0.0
        %3011 = vmatpush2.msra.mxu0 0.0
        %3012 = vmatprep.mubr.f32.mxu0 0.0
        %3013 = vmatmul.mubr.f32.gmra.mxu0 %v2946
        %v3014 = vpop.f32.mrf.mxu0
        %v3015 = vadd.f32 0.0, %v3014
        %v3016 = vpop.f32.mrf.mxu0
        %3017 = vdwg.mxu0
        %v3018 = vadd.f32 %v2937, %v3015
        %s3019 = scalar_lea.vmem %s15, 96
        %v3020 = vld [vmem:[%s3019] sm:$0xff]
        %v3021 = vld [vmem:[%s3019 + $0x8] sm:$0xff]
        %v3022 = vld [vmem:[%s3019 + $0x10] sm:$0xff]
        %v3023 = vld [vmem:[%s3019 + $0x18] sm:$0xff]
        %v3024 = vrot.slane %v2585, 3
        %v3025 = vsel %vm1048, %v3024, 0
        %3027 = vmatprep.subr.mxu0 0.0
        %3028 = vmatpush1.msra.mxu0 0.0
        %3029 = vmatprep.subr.mxu0 0.0
        %3030 = vmatpush1.msra.mxu0 0.0
        %3031 = vmatprep.subr.mxu0 0.0
        %3032 = vmatpush1.msra.mxu0 0.0
        %3033 = vmatprep.subr.mxu0 0.0
        %3034 = vmatpush1.msra.mxu0 0.0
        %3035 = vmatprep.subr.mxu0 0.0
        %3036 = vmatpush1.msra.mxu0 0.0
        %3037 = vmatprep.subr.mxu0 0.0
        %3038 = vmatpush1.msra.mxu0 0.0
        %3039 = vmatprep.subr.mxu0 0.0
        %3040 = vmatpush1.msra.mxu0 0.0
        %3041 = vmatprep.subr.mxu0 0.0
        %3042 = vmatpush1.msra.mxu0 0.0
        %3043 = vmatprep.subr.mxu0 0.0
        %3044 = vmatpush1.msra.mxu0 0.0
        %3045 = vmatprep.subr.mxu0 0.0
        %3046 = vmatpush1.msra.mxu0 0.0
        %3047 = vmatprep.subr.mxu0 0.0
        %3048 = vmatpush1.msra.mxu0 0.0
        %3049 = vmatprep.subr.mxu0 0.0
        %3050 = vmatpush1.msra.mxu0 0.0
        %3051 = vmatprep.subr.mxu0 0.0
        %3052 = vmatpush1.msra.mxu0 %v3023
        %3053 = vmatprep.subr.mxu0 0.0
        %3054 = vmatpush1.msra.mxu0 %v3022
        %3055 = vmatprep.subr.mxu0 0.0
        %3056 = vmatpush1.msra.mxu0 %v3021
        %3057 = vmatprep.subr.mxu0 0.0
        %3058 = vmatpush1.msra.mxu0 %v3020
        %3059 = vmatprep.subr.mxu0 0.0
        %3060 = vmatpush2.msra.mxu0 0.0
        %3061 = vmatprep.subr.mxu0 0.0
        %3062 = vmatpush2.msra.mxu0 0.0
        %3063 = vmatprep.subr.mxu0 0.0
        %3064 = vmatpush2.msra.mxu0 0.0
        %3065 = vmatprep.subr.mxu0 0.0
        %3066 = vmatpush2.msra.mxu0 0.0
        %3067 = vmatprep.subr.mxu0 0.0
        %3068 = vmatpush2.msra.mxu0 0.0
        %3069 = vmatprep.subr.mxu0 0.0
        %3070 = vmatpush2.msra.mxu0 0.0
        %3071 = vmatprep.subr.mxu0 0.0
        %3072 = vmatpush2.msra.mxu0 0.0
        %3073 = vmatprep.subr.mxu0 0.0
        %3074 = vmatpush2.msra.mxu0 0.0
        %3075 = vmatprep.subr.mxu0 0.0
        %3076 = vmatpush2.msra.mxu0 0.0
        %3077 = vmatprep.subr.mxu0 0.0
        %3078 = vmatpush2.msra.mxu0 0.0
        %3079 = vmatprep.subr.mxu0 0.0
        %3080 = vmatpush2.msra.mxu0 0.0
        %3081 = vmatprep.subr.mxu0 0.0
        %3082 = vmatpush2.msra.mxu0 0.0
        %3083 = vmatprep.subr.mxu0 0.0
        %3084 = vmatpush2.msra.mxu0 0.0
        %3085 = vmatprep.subr.mxu0 0.0
        %3086 = vmatpush2.msra.mxu0 0.0
        %3087 = vmatprep.subr.mxu0 0.0
        %3088 = vmatpush2.msra.mxu0 0.0
        %3089 = vmatprep.subr.mxu0 0.0
        %3090 = vmatpush2.msra.mxu0 0.0
        %3091 = vmatprep.mubr.f32.mxu0 0.0
        %3092 = vmatmul.mubr.f32.gmra.mxu0 %v3025
        %v3093 = vpop.f32.mrf.mxu0
        %v3094 = vadd.f32 0.0, %v3093
        %v3095 = vpop.f32.mrf.mxu0
        %3096 = vdwg.mxu0
        %v3097 = vadd.f32 %v3018, %v3094
        %s3098 = scalar_lea.vmem %s15, 128
        %v3099 = vld [vmem:[%s3098] sm:$0xff]
        %v3100 = vld [vmem:[%s3098 + $0x8] sm:$0xff]
        %v3101 = vld [vmem:[%s3098 + $0x10] sm:$0xff]
        %v3102 = vld [vmem:[%s3098 + $0x18] sm:$0xff]
        %v3103 = vrot.slane %v2585, 4
        %v3104 = vsel %vm1048, %v3103, 0
        %3106 = vmatprep.subr.mxu0 0.0
        %3107 = vmatpush1.msra.mxu0 0.0
        %3108 = vmatprep.subr.mxu0 0.0
        %3109 = vmatpush1.msra.mxu0 0.0
        %3110 = vmatprep.subr.mxu0 0.0
        %3111 = vmatpush1.msra.mxu0 0.0
        %3112 = vmatprep.subr.mxu0 0.0
        %3113 = vmatpush1.msra.mxu0 0.0
        %3114 = vmatprep.subr.mxu0 0.0
        %3115 = vmatpush1.msra.mxu0 0.0
        %3116 = vmatprep.subr.mxu0 0.0
        %3117 = vmatpush1.msra.mxu0 0.0
        %3118 = vmatprep.subr.mxu0 0.0
        %3119 = vmatpush1.msra.mxu0 0.0
        %3120 = vmatprep.subr.mxu0 0.0
        %3121 = vmatpush1.msra.mxu0 0.0
        %3122 = vmatprep.subr.mxu0 0.0
        %3123 = vmatpush1.msra.mxu0 0.0
        %3124 = vmatprep.subr.mxu0 0.0
        %3125 = vmatpush1.msra.mxu0 0.0
        %3126 = vmatprep.subr.mxu0 0.0
        %3127 = vmatpush1.msra.mxu0 0.0
        %3128 = vmatprep.subr.mxu0 0.0
        %3129 = vmatpush1.msra.mxu0 0.0
        %3130 = vmatprep.subr.mxu0 0.0
        %3131 = vmatpush1.msra.mxu0 %v3102
        %3132 = vmatprep.subr.mxu0 0.0
        %3133 = vmatpush1.msra.mxu0 %v3101
        %3134 = vmatprep.subr.mxu0 0.0
        %3135 = vmatpush1.msra.mxu0 %v3100
        %3136 = vmatprep.subr.mxu0 0.0
        %3137 = vmatpush1.msra.mxu0 %v3099
        %3138 = vmatprep.subr.mxu0 0.0
        %3139 = vmatpush2.msra.mxu0 0.0
        %3140 = vmatprep.subr.mxu0 0.0
        %3141 = vmatpush2.msra.mxu0 0.0
        %3142 = vmatprep.subr.mxu0 0.0
        %3143 = vmatpush2.msra.mxu0 0.0
        %3144 = vmatprep.subr.mxu0 0.0
        %3145 = vmatpush2.msra.mxu0 0.0
        %3146 = vmatprep.subr.mxu0 0.0
        %3147 = vmatpush2.msra.mxu0 0.0
        %3148 = vmatprep.subr.mxu0 0.0
        %3149 = vmatpush2.msra.mxu0 0.0
        %3150 = vmatprep.subr.mxu0 0.0
        %3151 = vmatpush2.msra.mxu0 0.0
        %3152 = vmatprep.subr.mxu0 0.0
        %3153 = vmatpush2.msra.mxu0 0.0
        %3154 = vmatprep.subr.mxu0 0.0
        %3155 = vmatpush2.msra.mxu0 0.0
        %3156 = vmatprep.subr.mxu0 0.0
        %3157 = vmatpush2.msra.mxu0 0.0
        %3158 = vmatprep.subr.mxu0 0.0
        %3159 = vmatpush2.msra.mxu0 0.0
        %3160 = vmatprep.subr.mxu0 0.0
        %3161 = vmatpush2.msra.mxu0 0.0
        %3162 = vmatprep.subr.mxu0 0.0
        %3163 = vmatpush2.msra.mxu0 0.0
        %3164 = vmatprep.subr.mxu0 0.0
        %3165 = vmatpush2.msra.mxu0 0.0
        %3166 = vmatprep.subr.mxu0 0.0
        %3167 = vmatpush2.msra.mxu0 0.0
        %3168 = vmatprep.subr.mxu0 0.0
        %3169 = vmatpush2.msra.mxu0 0.0
        %3170 = vmatprep.mubr.f32.mxu0 0.0
        %3171 = vmatmul.mubr.f32.gmra.mxu0 %v3104
        %v3172 = vpop.f32.mrf.mxu0
        %v3173 = vadd.f32 0.0, %v3172
        %v3174 = vpop.f32.mrf.mxu0
        %3175 = vdwg.mxu0
        %v3176 = vadd.f32 %v3097, %v3173
        %s3177 = scalar_lea.vmem %s15, 160
        %v3178 = vld [vmem:[%s3177] sm:$0xff]
        %v3179 = vld [vmem:[%s3177 + $0x8] sm:$0xff]
        %v3180 = vld [vmem:[%s3177 + $0x10] sm:$0xff]
        %v3181 = vld [vmem:[%s3177 + $0x18] sm:$0xff]
        %v3182 = vrot.slane %v2585, 5
        %v3183 = vsel %vm1048, %v3182, 0
        %3185 = vmatprep.subr.mxu0 0.0
        %3186 = vmatpush1.msra.mxu0 0.0
        %3187 = vmatprep.subr.mxu0 0.0
        %3188 = vmatpush1.msra.mxu0 0.0
        %3189 = vmatprep.subr.mxu0 0.0
        %3190 = vmatpush1.msra.mxu0 0.0
        %3191 = vmatprep.subr.mxu0 0.0
        %3192 = vmatpush1.msra.mxu0 0.0
        %3193 = vmatprep.subr.mxu0 0.0
        %3194 = vmatpush1.msra.mxu0 0.0
        %3195 = vmatprep.subr.mxu0 0.0
        %3196 = vmatpush1.msra.mxu0 0.0
        %3197 = vmatprep.subr.mxu0 0.0
        %3198 = vmatpush1.msra.mxu0 0.0
        %3199 = vmatprep.subr.mxu0 0.0
        %3200 = vmatpush1.msra.mxu0 0.0
        %3201 = vmatprep.subr.mxu0 0.0
        %3202 = vmatpush1.msra.mxu0 0.0
        %3203 = vmatprep.subr.mxu0 0.0
        %3204 = vmatpush1.msra.mxu0 0.0
        %3205 = vmatprep.subr.mxu0 0.0
        %3206 = vmatpush1.msra.mxu0 0.0
        %3207 = vmatprep.subr.mxu0 0.0
        %3208 = vmatpush1.msra.mxu0 0.0
        %3209 = vmatprep.subr.mxu0 0.0
        %3210 = vmatpush1.msra.mxu0 %v3181
        %3211 = vmatprep.subr.mxu0 0.0
        %3212 = vmatpush1.msra.mxu0 %v3180
        %3213 = vmatprep.subr.mxu0 0.0
        %3214 = vmatpush1.msra.mxu0 %v3179
        %3215 = vmatprep.subr.mxu0 0.0
        %3216 = vmatpush1.msra.mxu0 %v3178
        %3217 = vmatprep.subr.mxu0 0.0
        %3218 = vmatpush2.msra.mxu0 0.0
        %3219 = vmatprep.subr.mxu0 0.0
        %3220 = vmatpush2.msra.mxu0 0.0
        %3221 = vmatprep.subr.mxu0 0.0
        %3222 = vmatpush2.msra.mxu0 0.0
        %3223 = vmatprep.subr.mxu0 0.0
        %3224 = vmatpush2.msra.mxu0 0.0
        %3225 = vmatprep.subr.mxu0 0.0
        %3226 = vmatpush2.msra.mxu0 0.0
        %3227 = vmatprep.subr.mxu0 0.0
        %3228 = vmatpush2.msra.mxu0 0.0
        %3229 = vmatprep.subr.mxu0 0.0
        %3230 = vmatpush2.msra.mxu0 0.0
        %3231 = vmatprep.subr.mxu0 0.0
        %3232 = vmatpush2.msra.mxu0 0.0
        %3233 = vmatprep.subr.mxu0 0.0
        %3234 = vmatpush2.msra.mxu0 0.0
        %3235 = vmatprep.subr.mxu0 0.0
        %3236 = vmatpush2.msra.mxu0 0.0
        %3237 = vmatprep.subr.mxu0 0.0
        %3238 = vmatpush2.msra.mxu0 0.0
        %3239 = vmatprep.subr.mxu0 0.0
        %3240 = vmatpush2.msra.mxu0 0.0
        %3241 = vmatprep.subr.mxu0 0.0
        %3242 = vmatpush2.msra.mxu0 0.0
        %3243 = vmatprep.subr.mxu0 0.0
        %3244 = vmatpush2.msra.mxu0 0.0
        %3245 = vmatprep.subr.mxu0 0.0
        %3246 = vmatpush2.msra.mxu0 0.0
        %3247 = vmatprep.subr.mxu0 0.0
        %3248 = vmatpush2.msra.mxu0 0.0
        %3249 = vmatprep.mubr.f32.mxu0 0.0
        %3250 = vmatmul.mubr.f32.gmra.mxu0 %v3183
        %v3251 = vpop.f32.mrf.mxu0
        %v3252 = vadd.f32 0.0, %v3251
        %v3253 = vpop.f32.mrf.mxu0
        %3254 = vdwg.mxu0
        %v3255 = vadd.f32 %v3176, %v3252
        %s3256 = scalar_lea.vmem %s15, 192
        %v3257 = vld [vmem:[%s3256] sm:$0xff]
        %v3258 = vld [vmem:[%s3256 + $0x8] sm:$0xff]
        %v3259 = vld [vmem:[%s3256 + $0x10] sm:$0xff]
        %v3260 = vld [vmem:[%s3256 + $0x18] sm:$0xff]
        %v3261 = vrot.slane %v2585, 6
        %v3262 = vsel %vm1048, %v3261, 0
        %3264 = vmatprep.subr.mxu0 0.0
        %3265 = vmatpush1.msra.mxu0 0.0
        %3266 = vmatprep.subr.mxu0 0.0
        %3267 = vmatpush1.msra.mxu0 0.0
        %3268 = vmatprep.subr.mxu0 0.0
        %3269 = vmatpush1.msra.mxu0 0.0
        %3270 = vmatprep.subr.mxu0 0.0
        %3271 = vmatpush1.msra.mxu0 0.0
        %3272 = vmatprep.subr.mxu0 0.0
        %3273 = vmatpush1.msra.mxu0 0.0
        %3274 = vmatprep.subr.mxu0 0.0
        %3275 = vmatpush1.msra.mxu0 0.0
        %3276 = vmatprep.subr.mxu0 0.0
        %3277 = vmatpush1.msra.mxu0 0.0
        %3278 = vmatprep.subr.mxu0 0.0
        %3279 = vmatpush1.msra.mxu0 0.0
        %3280 = vmatprep.subr.mxu0 0.0
        %3281 = vmatpush1.msra.mxu0 0.0
        %3282 = vmatprep.subr.mxu0 0.0
        %3283 = vmatpush1.msra.mxu0 0.0
        %3284 = vmatprep.subr.mxu0 0.0
        %3285 = vmatpush1.msra.mxu0 0.0
        %3286 = vmatprep.subr.mxu0 0.0
        %3287 = vmatpush1.msra.mxu0 0.0
        %3288 = vmatprep.subr.mxu0 0.0
        %3289 = vmatpush1.msra.mxu0 %v3260
        %3290 = vmatprep.subr.mxu0 0.0
        %3291 = vmatpush1.msra.mxu0 %v3259
        %3292 = vmatprep.subr.mxu0 0.0
        %3293 = vmatpush1.msra.mxu0 %v3258
        %3294 = vmatprep.subr.mxu0 0.0
        %3295 = vmatpush1.msra.mxu0 %v3257
        %3296 = vmatprep.subr.mxu0 0.0
        %3297 = vmatpush2.msra.mxu0 0.0
        %3298 = vmatprep.subr.mxu0 0.0
        %3299 = vmatpush2.msra.mxu0 0.0
        %3300 = vmatprep.subr.mxu0 0.0
        %3301 = vmatpush2.msra.mxu0 0.0
        %3302 = vmatprep.subr.mxu0 0.0
        %3303 = vmatpush2.msra.mxu0 0.0
        %3304 = vmatprep.subr.mxu0 0.0
        %3305 = vmatpush2.msra.mxu0 0.0
        %3306 = vmatprep.subr.mxu0 0.0
        %3307 = vmatpush2.msra.mxu0 0.0
        %3308 = vmatprep.subr.mxu0 0.0
        %3309 = vmatpush2.msra.mxu0 0.0
        %3310 = vmatprep.subr.mxu0 0.0
        %3311 = vmatpush2.msra.mxu0 0.0
        %3312 = vmatprep.subr.mxu0 0.0
        %3313 = vmatpush2.msra.mxu0 0.0
        %3314 = vmatprep.subr.mxu0 0.0
        %3315 = vmatpush2.msra.mxu0 0.0
        %3316 = vmatprep.subr.mxu0 0.0
        %3317 = vmatpush2.msra.mxu0 0.0
        %3318 = vmatprep.subr.mxu0 0.0
        %3319 = vmatpush2.msra.mxu0 0.0
        %3320 = vmatprep.subr.mxu0 0.0
        %3321 = vmatpush2.msra.mxu0 0.0
        %3322 = vmatprep.subr.mxu0 0.0
        %3323 = vmatpush2.msra.mxu0 0.0
        %3324 = vmatprep.subr.mxu0 0.0
        %3325 = vmatpush2.msra.mxu0 0.0
        %3326 = vmatprep.subr.mxu0 0.0
        %3327 = vmatpush2.msra.mxu0 0.0
        %3328 = vmatprep.mubr.f32.mxu0 0.0
        %3329 = vmatmul.mubr.f32.gmra.mxu0 %v3262
        %v3330 = vpop.f32.mrf.mxu0
        %v3331 = vadd.f32 0.0, %v3330
        %v3332 = vpop.f32.mrf.mxu0
        %3333 = vdwg.mxu0
        %v3334 = vadd.f32 %v3255, %v3331
        %s3335 = scalar_lea.vmem %s15, 224
        %v3336 = vld [vmem:[%s3335] sm:$0xff]
        %v3337 = vld [vmem:[%s3335 + $0x8] sm:$0xff]
        %v3338 = vld [vmem:[%s3335 + $0x10] sm:$0xff]
        %v3339 = vld [vmem:[%s3335 + $0x18] sm:$0xff]
        %v3340 = vrot.slane %v2585, 7
        %v3341 = vsel %vm1048, %v3340, 0
        %3343 = vmatprep.subr.mxu0 0.0
        %3344 = vmatpush1.msra.mxu0 0.0
        %3345 = vmatprep.subr.mxu0 0.0
        %3346 = vmatpush1.msra.mxu0 0.0
        %3347 = vmatprep.subr.mxu0 0.0
        %3348 = vmatpush1.msra.mxu0 0.0
        %3349 = vmatprep.subr.mxu0 0.0
        %3350 = vmatpush1.msra.mxu0 0.0
        %3351 = vmatprep.subr.mxu0 0.0
        %3352 = vmatpush1.msra.mxu0 0.0
        %3353 = vmatprep.subr.mxu0 0.0
        %3354 = vmatpush1.msra.mxu0 0.0
        %3355 = vmatprep.subr.mxu0 0.0
        %3356 = vmatpush1.msra.mxu0 0.0
        %3357 = vmatprep.subr.mxu0 0.0
        %3358 = vmatpush1.msra.mxu0 0.0
        %3359 = vmatprep.subr.mxu0 0.0
        %3360 = vmatpush1.msra.mxu0 0.0
        %3361 = vmatprep.subr.mxu0 0.0
        %3362 = vmatpush1.msra.mxu0 0.0
        %3363 = vmatprep.subr.mxu0 0.0
        %3364 = vmatpush1.msra.mxu0 0.0
        %3365 = vmatprep.subr.mxu0 0.0
        %3366 = vmatpush1.msra.mxu0 0.0
        %3367 = vmatprep.subr.mxu0 0.0
        %3368 = vmatpush1.msra.mxu0 %v3339
        %3369 = vmatprep.subr.mxu0 0.0
        %3370 = vmatpush1.msra.mxu0 %v3338
        %3371 = vmatprep.subr.mxu0 0.0
        %3372 = vmatpush1.msra.mxu0 %v3337
        %3373 = vmatprep.subr.mxu0 0.0
        %3374 = vmatpush1.msra.mxu0 %v3336
        %3375 = vmatprep.subr.mxu0 0.0
        %3376 = vmatpush2.msra.mxu0 0.0
        %3377 = vmatprep.subr.mxu0 0.0
        %3378 = vmatpush2.msra.mxu0 0.0
        %3379 = vmatprep.subr.mxu0 0.0
        %3380 = vmatpush2.msra.mxu0 0.0
        %3381 = vmatprep.subr.mxu0 0.0
        %3382 = vmatpush2.msra.mxu0 0.0
        %3383 = vmatprep.subr.mxu0 0.0
        %3384 = vmatpush2.msra.mxu0 0.0
        %3385 = vmatprep.subr.mxu0 0.0
        %3386 = vmatpush2.msra.mxu0 0.0
        %3387 = vmatprep.subr.mxu0 0.0
        %3388 = vmatpush2.msra.mxu0 0.0
        %3389 = vmatprep.subr.mxu0 0.0
        %3390 = vmatpush2.msra.mxu0 0.0
        %3391 = vmatprep.subr.mxu0 0.0
        %3392 = vmatpush2.msra.mxu0 0.0
        %3393 = vmatprep.subr.mxu0 0.0
        %3394 = vmatpush2.msra.mxu0 0.0
        %3395 = vmatprep.subr.mxu0 0.0
        %3396 = vmatpush2.msra.mxu0 0.0
        %3397 = vmatprep.subr.mxu0 0.0
        %3398 = vmatpush2.msra.mxu0 0.0
        %3399 = vmatprep.subr.mxu0 0.0
        %3400 = vmatpush2.msra.mxu0 0.0
        %3401 = vmatprep.subr.mxu0 0.0
        %3402 = vmatpush2.msra.mxu0 0.0
        %3403 = vmatprep.subr.mxu0 0.0
        %3404 = vmatpush2.msra.mxu0 0.0
        %3405 = vmatprep.subr.mxu0 0.0
        %3406 = vmatpush2.msra.mxu0 0.0
        %3407 = vmatprep.mubr.f32.mxu0 0.0
        %3408 = vmatmul.mubr.f32.gmra.mxu0 %v3341
        %v3409 = vpop.f32.mrf.mxu0
        %v3410 = vadd.f32 0.0, %v3409
        %v3411 = vpop.f32.mrf.mxu0
        %3412 = vdwg.mxu0
        %v3413 = vadd.f32 %v3334, %v3410
        %v3414 = vld [vmem:[%s16] sm:$0xff]
        %v3415 = vld [vmem:[%s16 + $0x8] sm:$0xff]
        %v3416 = vld [vmem:[%s16 + $0x10] sm:$0xff]
        %v3417 = vld [vmem:[%s16 + $0x18] sm:$0xff]
        %v3418 = vld [vmem:[%s17] sm:$0x1]
        %v3419 = vld [vmem:[%s18] sm:$0x1]
        %v3420 = vld [vmem:[%s19] sm:$0x1]
        %v3421 = vsel %vm1048, 0.0, 0
        %3423 = vmatprep.subr.mxu0 0.0
        %3424 = vmatpush1.msra.mxu0 0.0
        %3425 = vmatprep.subr.mxu0 0.0
        %3426 = vmatpush1.msra.mxu0 0.0
        %3427 = vmatprep.subr.mxu0 0.0
        %3428 = vmatpush1.msra.mxu0 0.0
        %3429 = vmatprep.subr.mxu0 0.0
        %3430 = vmatpush1.msra.mxu0 0.0
        %3431 = vmatprep.subr.mxu0 0.0
        %3432 = vmatpush1.msra.mxu0 0.0
        %3433 = vmatprep.subr.mxu0 0.0
        %3434 = vmatpush1.msra.mxu0 0.0
        %3435 = vmatprep.subr.mxu0 0.0
        %3436 = vmatpush1.msra.mxu0 0.0
        %3437 = vmatprep.subr.mxu0 0.0
        %3438 = vmatpush1.msra.mxu0 0.0
        %3439 = vmatprep.subr.mxu0 0.0
        %3440 = vmatpush1.msra.mxu0 0.0
        %3441 = vmatprep.subr.mxu0 0.0
        %3442 = vmatpush1.msra.mxu0 0.0
        %3443 = vmatprep.subr.mxu0 0.0
        %3444 = vmatpush1.msra.mxu0 0.0
        %3445 = vmatprep.subr.mxu0 0.0
        %3446 = vmatpush1.msra.mxu0 0.0
        %3447 = vmatprep.subr.mxu0 0.0
        %3448 = vmatpush1.msra.mxu0 %v3417
        %3449 = vmatprep.subr.mxu0 0.0
        %3450 = vmatpush1.msra.mxu0 %v3416
        %3451 = vmatprep.subr.mxu0 0.0
        %3452 = vmatpush1.msra.mxu0 %v3415
        %3453 = vmatprep.subr.mxu0 0.0
        %3454 = vmatpush1.msra.mxu0 %v3414
        %3455 = vmatprep.subr.mxu0 0.0
        %3456 = vmatpush2.msra.mxu0 0.0
        %3457 = vmatprep.subr.mxu0 0.0
        %3458 = vmatpush2.msra.mxu0 0.0
        %3459 = vmatprep.subr.mxu0 0.0
        %3460 = vmatpush2.msra.mxu0 0.0
        %3461 = vmatprep.subr.mxu0 0.0
        %3462 = vmatpush2.msra.mxu0 0.0
        %3463 = vmatprep.subr.mxu0 0.0
        %3464 = vmatpush2.msra.mxu0 0.0
        %3465 = vmatprep.subr.mxu0 0.0
        %3466 = vmatpush2.msra.mxu0 0.0
        %3467 = vmatprep.subr.mxu0 0.0
        %3468 = vmatpush2.msra.mxu0 0.0
        %3469 = vmatprep.subr.mxu0 0.0
        %3470 = vmatpush2.msra.mxu0 0.0
        %3471 = vmatprep.subr.mxu0 0.0
        %3472 = vmatpush2.msra.mxu0 0.0
        %3473 = vmatprep.subr.mxu0 0.0
        %3474 = vmatpush2.msra.mxu0 0.0
        %3475 = vmatprep.subr.mxu0 0.0
        %3476 = vmatpush2.msra.mxu0 0.0
        %3477 = vmatprep.subr.mxu0 0.0
        %3478 = vmatpush2.msra.mxu0 0.0
        %3479 = vmatprep.subr.mxu0 0.0
        %3480 = vmatpush2.msra.mxu0 0.0
        %3481 = vmatprep.subr.mxu0 0.0
        %3482 = vmatpush2.msra.mxu0 0.0
        %3483 = vmatprep.subr.mxu0 0.0
        %3484 = vmatpush2.msra.mxu0 0.0
        %3485 = vmatprep.subr.mxu0 0.0
        %3486 = vmatpush2.msra.mxu0 0.0
        %3487 = vmatprep.mubr.f32.mxu0 0.0
        %3488 = vmatmul.mubr.f32.gmra.mxu0 %v3421
        %v3489 = vpop.f32.mrf.mxu0
        %v3490 = vadd.f32 0.0, %v3489
        %v3491 = vpop.f32.mrf.mxu0
        %3492 = vdwg.mxu0
        %v3493 = vadd.f32 %v3413, %v3490
        %v3494 = vadd.f32 %v3493, %v3418
        %v3495 = vxor.u32 %v3494, 2147483648
        %v3496 = vmul.f32 %v3495, 1.442695
        %v3497 = vpow.pop %v3496
        %v3498 = vadd.f32 %v3497, 1.0
        %v3499 = vrcp.pop %v3498
        %v3500 = vmul.f32 1.0, %v3499
        %v3502 = vlaneseq
        %v3503 = vshrl.u32 %v3502, 7
        %v3504 = vsub.s32 0, %v3503
        %v3505 = vrot.slane %v3419, %v3504
        %3506 = vrot.lane.b32.xlu0 %v3505, 64
        %v3507 = vpop.permute.xlu0 %3506
        %v3509 = vadd.f32 %v3413, %v3507
        %v3511 = vlaneseq
        %v3512 = vshrl.u32 %v3511, 7
        %v3513 = vsub.s32 0, %v3512
        %v3514 = vrot.slane %v3420, %v3513
        %3515 = vrot.lane.b32.xlu0 %v3514, 64
        %v3516 = vpop.permute.xlu0 %3515
        %v3518 = vadd.f32 %v3490, %v3516
        %3520 = vrot.lane.b32.xlu0 %v3518, 64
        %v3521 = vpop.permute.xlu0 %3520
        %v3523 = vmul.f32 %v3500, %v3521
        %3525 = vrot.lane.b32.xlu0 %v3523, 64
        %v3526 = vpop.permute.xlu0 %3525
        %v3528 = vadd.f32 %v3509, %v3526
        %v3529 = vtanh.pop %v3528
        %v3530 = vsub.f32 1.0, %v3500
        %3532 = vrot.lane.b32.xlu0 %v3529, 96
        %v3533 = vpop.permute.xlu0 %3532
        %v3535 = vmul.f32 %v3530, %v3533
        %v3536 = vmul.f32 %v3500, 0.0
        %v3537 = vadd.f32 %v3535, %v3536
        %3539 = vrot.lane.b32.xlu0 %v3537, 96
        %v3540 = vpop.permute.xlu0 %3539
        %vm3542 = vcmask 253952
        %3543 = vst.msk [vmem:[#allocation3] sm:$0x1] %vm3542, %v3540
        %v3544 = vsel %vm1048, %v3540, 0
        %3546 = vmatprep.subr.mxu0 0.0
        %3547 = vmatpush1.msra.mxu0 0.0
        %3548 = vmatprep.subr.mxu0 0.0
        %3549 = vmatpush1.msra.mxu0 0.0
        %3550 = vmatprep.subr.mxu0 0.0
        %3551 = vmatpush1.msra.mxu0 0.0
        %3552 = vmatprep.subr.mxu0 0.0
        %3553 = vmatpush1.msra.mxu0 0.0
        %3554 = vmatprep.subr.mxu0 0.0
        %3555 = vmatpush1.msra.mxu0 0.0
        %3556 = vmatprep.subr.mxu0 0.0
        %3557 = vmatpush1.msra.mxu0 0.0
        %3558 = vmatprep.subr.mxu0 0.0
        %3559 = vmatpush1.msra.mxu0 0.0
        %3560 = vmatprep.subr.mxu0 0.0
        %3561 = vmatpush1.msra.mxu0 0.0
        %3562 = vmatprep.subr.mxu0 0.0
        %3563 = vmatpush1.msra.mxu0 0.0
        %3564 = vmatprep.subr.mxu0 0.0
        %3565 = vmatpush1.msra.mxu0 0.0
        %3566 = vmatprep.subr.mxu0 0.0
        %3567 = vmatpush1.msra.mxu0 0.0
        %3568 = vmatprep.subr.mxu0 0.0
        %3569 = vmatpush1.msra.mxu0 0.0
        %3570 = vmatprep.subr.mxu0 0.0
        %3571 = vmatpush1.msra.mxu0 %v3417
        %3572 = vmatprep.subr.mxu0 0.0
        %3573 = vmatpush1.msra.mxu0 %v3416
        %3574 = vmatprep.subr.mxu0 0.0
        %3575 = vmatpush1.msra.mxu0 %v3415
        %3576 = vmatprep.subr.mxu0 0.0
        %3577 = vmatpush1.msra.mxu0 %v3414
        %3578 = vmatprep.subr.mxu0 0.0
        %3579 = vmatpush2.msra.mxu0 0.0
        %3580 = vmatprep.subr.mxu0 0.0
        %3581 = vmatpush2.msra.mxu0 0.0
        %3582 = vmatprep.subr.mxu0 0.0
        %3583 = vmatpush2.msra.mxu0 0.0
        %3584 = vmatprep.subr.mxu0 0.0
        %3585 = vmatpush2.msra.mxu0 0.0
        %3586 = vmatprep.subr.mxu0 0.0
        %3587 = vmatpush2.msra.mxu0 0.0
        %3588 = vmatprep.subr.mxu0 0.0
        %3589 = vmatpush2.msra.mxu0 0.0
        %3590 = vmatprep.subr.mxu0 0.0
        %3591 = vmatpush2.msra.mxu0 0.0
        %3592 = vmatprep.subr.mxu0 0.0
        %3593 = vmatpush2.msra.mxu0 0.0
        %3594 = vmatprep.subr.mxu0 0.0
        %3595 = vmatpush2.msra.mxu0 0.0
        %3596 = vmatprep.subr.mxu0 0.0
        %3597 = vmatpush2.msra.mxu0 0.0
        %3598 = vmatprep.subr.mxu0 0.0
        %3599 = vmatpush2.msra.mxu0 0.0
        %3600 = vmatprep.subr.mxu0 0.0
        %3601 = vmatpush2.msra.mxu0 0.0
        %3602 = vmatprep.subr.mxu0 0.0
        %3603 = vmatpush2.msra.mxu0 0.0
        %3604 = vmatprep.subr.mxu0 0.0
        %3605 = vmatpush2.msra.mxu0 0.0
        %3606 = vmatprep.subr.mxu0 0.0
        %3607 = vmatpush2.msra.mxu0 0.0
        %3608 = vmatprep.subr.mxu0 0.0
        %3609 = vmatpush2.msra.mxu0 0.0
        %3610 = vmatprep.mubr.f32.mxu0 0.0
        %3611 = vmatmul.mubr.f32.gmra.mxu0 %v3544
        %v3612 = vpop.f32.mrf.mxu0
        %v3613 = vadd.f32 0.0, %v3612
        %v3614 = vpop.f32.mrf.mxu0
        %3615 = vdwg.mxu0
        %v3616 = vadd.f32 %v3413, %v3613
        %v3617 = vadd.f32 %v3616, %v3418
        %v3618 = vxor.u32 %v3617, 2147483648
        %v3619 = vmul.f32 %v3618, 1.442695
        %v3620 = vpow.pop %v3619
        %v3621 = vadd.f32 %v3620, 1.0
        %v3622 = vrcp.pop %v3621
        %v3623 = vmul.f32 1.0, %v3622
        %v3624 = vadd.f32 %v3613, %v3516
        %3626 = vrot.lane.b32.xlu0 %v3624, 64
        %v3627 = vpop.permute.xlu0 %3626
        %v3629 = vmul.f32 %v3623, %v3627
        %3631 = vrot.lane.b32.xlu0 %v3629, 64
        %v3632 = vpop.permute.xlu0 %3631
        %v3634 = vadd.f32 %v3509, %v3632
        %v3635 = vtanh.pop %v3634
        %v3636 = vsub.f32 1.0, %v3623
        %3638 = vrot.lane.b32.xlu0 %v3635, 96
        %v3639 = vpop.permute.xlu0 %3638
        %v3641 = vmul.f32 %v3636, %v3639
        %v3642 = vmul.f32 %v3623, %v3537
        %v3643 = vadd.f32 %v3641, %v3642
        %3645 = vrot.lane.b32.xlu0 %v3643, 96
        %v3646 = vpop.permute.xlu0 %3645
        %3648 = vst.msk [vmem:[#allocation3 + $0x1] sm:$0x1] %vm3542, %v3646
        %v3649 = vsel %vm1048, %v3646, 0
        %3651 = vmatprep.subr.mxu0 0.0
        %3652 = vmatpush1.msra.mxu0 0.0
        %3653 = vmatprep.subr.mxu0 0.0
        %3654 = vmatpush1.msra.mxu0 0.0
        %3655 = vmatprep.subr.mxu0 0.0
        %3656 = vmatpush1.msra.mxu0 0.0
        %3657 = vmatprep.subr.mxu0 0.0
        %3658 = vmatpush1.msra.mxu0 0.0
        %3659 = vmatprep.subr.mxu0 0.0
        %3660 = vmatpush1.msra.mxu0 0.0
        %3661 = vmatprep.subr.mxu0 0.0
        %3662 = vmatpush1.msra.mxu0 0.0
        %3663 = vmatprep.subr.mxu0 0.0
        %3664 = vmatpush1.msra.mxu0 0.0
        %3665 = vmatprep.subr.mxu0 0.0
        %3666 = vmatpush1.msra.mxu0 0.0
        %3667 = vmatprep.subr.mxu0 0.0
        %3668 = vmatpush1.msra.mxu0 0.0
        %3669 = vmatprep.subr.mxu0 0.0
        %3670 = vmatpush1.msra.mxu0 0.0
        %3671 = vmatprep.subr.mxu0 0.0
        %3672 = vmatpush1.msra.mxu0 0.0
        %3673 = vmatprep.subr.mxu0 0.0
        %3674 = vmatpush1.msra.mxu0 0.0
        %3675 = vmatprep.subr.mxu0 0.0
        %3676 = vmatpush1.msra.mxu0 %v3417
        %3677 = vmatprep.subr.mxu0 0.0
        %3678 = vmatpush1.msra.mxu0 %v3416
        %3679 = vmatprep.subr.mxu0 0.0
        %3680 = vmatpush1.msra.mxu0 %v3415
        %3681 = vmatprep.subr.mxu0 0.0
        %3682 = vmatpush1.msra.mxu0 %v3414
        %3683 = vmatprep.subr.mxu0 0.0
        %3684 = vmatpush2.msra.mxu0 0.0
        %3685 = vmatprep.subr.mxu0 0.0
        %3686 = vmatpush2.msra.mxu0 0.0
        %3687 = vmatprep.subr.mxu0 0.0
        %3688 = vmatpush2.msra.mxu0 0.0
        %3689 = vmatprep.subr.mxu0 0.0
        %3690 = vmatpush2.msra.mxu0 0.0
        %3691 = vmatprep.subr.mxu0 0.0
        %3692 = vmatpush2.msra.mxu0 0.0
        %3693 = vmatprep.subr.mxu0 0.0
        %3694 = vmatpush2.msra.mxu0 0.0
        %3695 = vmatprep.subr.mxu0 0.0
        %3696 = vmatpush2.msra.mxu0 0.0
        %3697 = vmatprep.subr.mxu0 0.0
        %3698 = vmatpush2.msra.mxu0 0.0
        %3699 = vmatprep.subr.mxu0 0.0
        %3700 = vmatpush2.msra.mxu0 0.0
        %3701 = vmatprep.subr.mxu0 0.0
        %3702 = vmatpush2.msra.mxu0 0.0
        %3703 = vmatprep.subr.mxu0 0.0
        %3704 = vmatpush2.msra.mxu0 0.0
        %3705 = vmatprep.subr.mxu0 0.0
        %3706 = vmatpush2.msra.mxu0 0.0
        %3707 = vmatprep.subr.mxu0 0.0
        %3708 = vmatpush2.msra.mxu0 0.0
        %3709 = vmatprep.subr.mxu0 0.0
        %3710 = vmatpush2.msra.mxu0 0.0
        %3711 = vmatprep.subr.mxu0 0.0
        %3712 = vmatpush2.msra.mxu0 0.0
        %3713 = vmatprep.subr.mxu0 0.0
        %3714 = vmatpush2.msra.mxu0 0.0
        %3715 = vmatprep.mubr.f32.mxu0 0.0
        %3716 = vmatmul.mubr.f32.gmra.mxu0 %v3649
        %v3717 = vpop.f32.mrf.mxu0
        %v3718 = vadd.f32 0.0, %v3717
        %v3719 = vpop.f32.mrf.mxu0
        %3720 = vdwg.mxu0
        %v3721 = vadd.f32 %v3413, %v3718
        %v3722 = vadd.f32 %v3721, %v3418
        %v3723 = vxor.u32 %v3722, 2147483648
        %v3724 = vmul.f32 %v3723, 1.442695
        %v3725 = vpow.pop %v3724
        %v3726 = vadd.f32 %v3725, 1.0
        %v3727 = vrcp.pop %v3726
        %v3728 = vmul.f32 1.0, %v3727
        %v3729 = vadd.f32 %v3718, %v3516
        %3731 = vrot.lane.b32.xlu0 %v3729, 64
        %v3732 = vpop.permute.xlu0 %3731
        %v3734 = vmul.f32 %v3728, %v3732
        %3736 = vrot.lane.b32.xlu0 %v3734, 64
        %v3737 = vpop.permute.xlu0 %3736
        %v3739 = vadd.f32 %v3509, %v3737
        %v3740 = vtanh.pop %v3739
        %v3741 = vsub.f32 1.0, %v3728
        %3743 = vrot.lane.b32.xlu0 %v3740, 96
        %v3744 = vpop.permute.xlu0 %3743
        %v3746 = vmul.f32 %v3741, %v3744
        %v3747 = vmul.f32 %v3728, %v3643
        %v3748 = vadd.f32 %v3746, %v3747
        %3750 = vrot.lane.b32.xlu0 %v3748, 96
        %v3751 = vpop.permute.xlu0 %3750
        %3753 = vst.msk [vmem:[#allocation3 + $0x2] sm:$0x1] %vm3542, %v3751
        %v3754 = vsel %vm1048, %v3751, 0
        %3756 = vmatprep.subr.mxu0 0.0
        %3757 = vmatpush1.msra.mxu0 0.0
        %3758 = vmatprep.subr.mxu0 0.0
        %3759 = vmatpush1.msra.mxu0 0.0
        %3760 = vmatprep.subr.mxu0 0.0
        %3761 = vmatpush1.msra.mxu0 0.0
        %3762 = vmatprep.subr.mxu0 0.0
        %3763 = vmatpush1.msra.mxu0 0.0
        %3764 = vmatprep.subr.mxu0 0.0
        %3765 = vmatpush1.msra.mxu0 0.0
        %3766 = vmatprep.subr.mxu0 0.0
        %3767 = vmatpush1.msra.mxu0 0.0
        %3768 = vmatprep.subr.mxu0 0.0
        %3769 = vmatpush1.msra.mxu0 0.0
        %3770 = vmatprep.subr.mxu0 0.0
        %3771 = vmatpush1.msra.mxu0 0.0
        %3772 = vmatprep.subr.mxu0 0.0
        %3773 = vmatpush1.msra.mxu0 0.0
        %3774 = vmatprep.subr.mxu0 0.0
        %3775 = vmatpush1.msra.mxu0 0.0
        %3776 = vmatprep.subr.mxu0 0.0
        %3777 = vmatpush1.msra.mxu0 0.0
        %3778 = vmatprep.subr.mxu0 0.0
        %3779 = vmatpush1.msra.mxu0 0.0
        %3780 = vmatprep.subr.mxu0 0.0
        %3781 = vmatpush1.msra.mxu0 %v3417
        %3782 = vmatprep.subr.mxu0 0.0
        %3783 = vmatpush1.msra.mxu0 %v3416
        %3784 = vmatprep.subr.mxu0 0.0
        %3785 = vmatpush1.msra.mxu0 %v3415
        %3786 = vmatprep.subr.mxu0 0.0
        %3787 = vmatpush1.msra.mxu0 %v3414
        %3788 = vmatprep.subr.mxu0 0.0
        %3789 = vmatpush2.msra.mxu0 0.0
        %3790 = vmatprep.subr.mxu0 0.0
        %3791 = vmatpush2.msra.mxu0 0.0
        %3792 = vmatprep.subr.mxu0 0.0
        %3793 = vmatpush2.msra.mxu0 0.0
        %3794 = vmatprep.subr.mxu0 0.0
        %3795 = vmatpush2.msra.mxu0 0.0
        %3796 = vmatprep.subr.mxu0 0.0
        %3797 = vmatpush2.msra.mxu0 0.0
        %3798 = vmatprep.subr.mxu0 0.0
        %3799 = vmatpush2.msra.mxu0 0.0
        %3800 = vmatprep.subr.mxu0 0.0
        %3801 = vmatpush2.msra.mxu0 0.0
        %3802 = vmatprep.subr.mxu0 0.0
        %3803 = vmatpush2.msra.mxu0 0.0
        %3804 = vmatprep.subr.mxu0 0.0
        %3805 = vmatpush2.msra.mxu0 0.0
        %3806 = vmatprep.subr.mxu0 0.0
        %3807 = vmatpush2.msra.mxu0 0.0
        %3808 = vmatprep.subr.mxu0 0.0
        %3809 = vmatpush2.msra.mxu0 0.0
        %3810 = vmatprep.subr.mxu0 0.0
        %3811 = vmatpush2.msra.mxu0 0.0
        %3812 = vmatprep.subr.mxu0 0.0
        %3813 = vmatpush2.msra.mxu0 0.0
        %3814 = vmatprep.subr.mxu0 0.0
        %3815 = vmatpush2.msra.mxu0 0.0
        %3816 = vmatprep.subr.mxu0 0.0
        %3817 = vmatpush2.msra.mxu0 0.0
        %3818 = vmatprep.subr.mxu0 0.0
        %3819 = vmatpush2.msra.mxu0 0.0
        %3820 = vmatprep.mubr.f32.mxu0 0.0
        %3821 = vmatmul.mubr.f32.gmra.mxu0 %v3754
        %v3822 = vpop.f32.mrf.mxu0
        %v3823 = vadd.f32 0.0, %v3822
        %v3824 = vpop.f32.mrf.mxu0
        %3825 = vdwg.mxu0
        %v3826 = vadd.f32 %v3413, %v3823
        %v3827 = vadd.f32 %v3826, %v3418
        %v3828 = vxor.u32 %v3827, 2147483648
        %v3829 = vmul.f32 %v3828, 1.442695
        %v3830 = vpow.pop %v3829
        %v3831 = vadd.f32 %v3830, 1.0
        %v3832 = vrcp.pop %v3831
        %v3833 = vmul.f32 1.0, %v3832
        %v3834 = vadd.f32 %v3823, %v3516
        %3836 = vrot.lane.b32.xlu0 %v3834, 64
        %v3837 = vpop.permute.xlu0 %3836
        %v3839 = vmul.f32 %v3833, %v3837
        %3841 = vrot.lane.b32.xlu0 %v3839, 64
        %v3842 = vpop.permute.xlu0 %3841
        %v3844 = vadd.f32 %v3509, %v3842
        %v3845 = vtanh.pop %v3844
        %v3846 = vsub.f32 1.0, %v3833
        %3848 = vrot.lane.b32.xlu0 %v3845, 96
        %v3849 = vpop.permute.xlu0 %3848
        %v3851 = vmul.f32 %v3846, %v3849
        %v3852 = vmul.f32 %v3833, %v3748
        %v3853 = vadd.f32 %v3851, %v3852
        %3855 = vrot.lane.b32.xlu0 %v3853, 96
        %v3856 = vpop.permute.xlu0 %3855
        %3858 = vst.msk [vmem:[#allocation3 + $0x3] sm:$0x1] %vm3542, %v3856
        %v3859 = vsel %vm1048, %v3856, 0
        %3861 = vmatprep.subr.mxu0 0.0
        %3862 = vmatpush1.msra.mxu0 0.0
        %3863 = vmatprep.subr.mxu0 0.0
        %3864 = vmatpush1.msra.mxu0 0.0
        %3865 = vmatprep.subr.mxu0 0.0
        %3866 = vmatpush1.msra.mxu0 0.0
        %3867 = vmatprep.subr.mxu0 0.0
        %3868 = vmatpush1.msra.mxu0 0.0
        %3869 = vmatprep.subr.mxu0 0.0
        %3870 = vmatpush1.msra.mxu0 0.0
        %3871 = vmatprep.subr.mxu0 0.0
        %3872 = vmatpush1.msra.mxu0 0.0
        %3873 = vmatprep.subr.mxu0 0.0
        %3874 = vmatpush1.msra.mxu0 0.0
        %3875 = vmatprep.subr.mxu0 0.0
        %3876 = vmatpush1.msra.mxu0 0.0
        %3877 = vmatprep.subr.mxu0 0.0
        %3878 = vmatpush1.msra.mxu0 0.0
        %3879 = vmatprep.subr.mxu0 0.0
        %3880 = vmatpush1.msra.mxu0 0.0
        %3881 = vmatprep.subr.mxu0 0.0
        %3882 = vmatpush1.msra.mxu0 0.0
        %3883 = vmatprep.subr.mxu0 0.0
        %3884 = vmatpush1.msra.mxu0 0.0
        %3885 = vmatprep.subr.mxu0 0.0
        %3886 = vmatpush1.msra.mxu0 %v3417
        %3887 = vmatprep.subr.mxu0 0.0
        %3888 = vmatpush1.msra.mxu0 %v3416
        %3889 = vmatprep.subr.mxu0 0.0
        %3890 = vmatpush1.msra.mxu0 %v3415
        %3891 = vmatprep.subr.mxu0 0.0
        %3892 = vmatpush1.msra.mxu0 %v3414
        %3893 = vmatprep.subr.mxu0 0.0
        %3894 = vmatpush2.msra.mxu0 0.0
        %3895 = vmatprep.subr.mxu0 0.0
        %3896 = vmatpush2.msra.mxu0 0.0
        %3897 = vmatprep.subr.mxu0 0.0
        %3898 = vmatpush2.msra.mxu0 0.0
        %3899 = vmatprep.subr.mxu0 0.0
        %3900 = vmatpush2.msra.mxu0 0.0
        %3901 = vmatprep.subr.mxu0 0.0
        %3902 = vmatpush2.msra.mxu0 0.0
        %3903 = vmatprep.subr.mxu0 0.0
        %3904 = vmatpush2.msra.mxu0 0.0
        %3905 = vmatprep.subr.mxu0 0.0
        %3906 = vmatpush2.msra.mxu0 0.0
        %3907 = vmatprep.subr.mxu0 0.0
        %3908 = vmatpush2.msra.mxu0 0.0
        %3909 = vmatprep.subr.mxu0 0.0
        %3910 = vmatpush2.msra.mxu0 0.0
        %3911 = vmatprep.subr.mxu0 0.0
        %3912 = vmatpush2.msra.mxu0 0.0
        %3913 = vmatprep.subr.mxu0 0.0
        %3914 = vmatpush2.msra.mxu0 0.0
        %3915 = vmatprep.subr.mxu0 0.0
        %3916 = vmatpush2.msra.mxu0 0.0
        %3917 = vmatprep.subr.mxu0 0.0
        %3918 = vmatpush2.msra.mxu0 0.0
        %3919 = vmatprep.subr.mxu0 0.0
        %3920 = vmatpush2.msra.mxu0 0.0
        %3921 = vmatprep.subr.mxu0 0.0
        %3922 = vmatpush2.msra.mxu0 0.0
        %3923 = vmatprep.subr.mxu0 0.0
        %3924 = vmatpush2.msra.mxu0 0.0
        %3925 = vmatprep.mubr.f32.mxu0 0.0
        %3926 = vmatmul.mubr.f32.gmra.mxu0 %v3859
        %v3927 = vpop.f32.mrf.mxu0
        %v3928 = vadd.f32 0.0, %v3927
        %v3929 = vpop.f32.mrf.mxu0
        %3930 = vdwg.mxu0
        %v3931 = vadd.f32 %v3413, %v3928
        %v3932 = vadd.f32 %v3931, %v3418
        %v3933 = vxor.u32 %v3932, 2147483648
        %v3934 = vmul.f32 %v3933, 1.442695
        %v3935 = vpow.pop %v3934
        %v3936 = vadd.f32 %v3935, 1.0
        %v3937 = vrcp.pop %v3936
        %v3938 = vmul.f32 1.0, %v3937
        %v3939 = vadd.f32 %v3928, %v3516
        %3941 = vrot.lane.b32.xlu0 %v3939, 64
        %v3942 = vpop.permute.xlu0 %3941
        %v3944 = vmul.f32 %v3938, %v3942
        %3946 = vrot.lane.b32.xlu0 %v3944, 64
        %v3947 = vpop.permute.xlu0 %3946
        %v3949 = vadd.f32 %v3509, %v3947
        %v3950 = vtanh.pop %v3949
        %v3951 = vsub.f32 1.0, %v3938
        %3953 = vrot.lane.b32.xlu0 %v3950, 96
        %v3954 = vpop.permute.xlu0 %3953
        %v3956 = vmul.f32 %v3951, %v3954
        %v3957 = vmul.f32 %v3938, %v3853
        %v3958 = vadd.f32 %v3956, %v3957
        %3960 = vrot.lane.b32.xlu0 %v3958, 96
        %v3961 = vpop.permute.xlu0 %3960
        %3963 = vst.msk [vmem:[#allocation3 + $0x4] sm:$0x1] %vm3542, %v3961
        %v3964 = vsel %vm1048, %v3961, 0
        %3966 = vmatprep.subr.mxu0 0.0
        %3967 = vmatpush1.msra.mxu0 0.0
        %3968 = vmatprep.subr.mxu0 0.0
        %3969 = vmatpush1.msra.mxu0 0.0
        %3970 = vmatprep.subr.mxu0 0.0
        %3971 = vmatpush1.msra.mxu0 0.0
        %3972 = vmatprep.subr.mxu0 0.0
        %3973 = vmatpush1.msra.mxu0 0.0
        %3974 = vmatprep.subr.mxu0 0.0
        %3975 = vmatpush1.msra.mxu0 0.0
        %3976 = vmatprep.subr.mxu0 0.0
        %3977 = vmatpush1.msra.mxu0 0.0
        %3978 = vmatprep.subr.mxu0 0.0
        %3979 = vmatpush1.msra.mxu0 0.0
        %3980 = vmatprep.subr.mxu0 0.0
        %3981 = vmatpush1.msra.mxu0 0.0
        %3982 = vmatprep.subr.mxu0 0.0
        %3983 = vmatpush1.msra.mxu0 0.0
        %3984 = vmatprep.subr.mxu0 0.0
        %3985 = vmatpush1.msra.mxu0 0.0
        %3986 = vmatprep.subr.mxu0 0.0
        %3987 = vmatpush1.msra.mxu0 0.0
        %3988 = vmatprep.subr.mxu0 0.0
        %3989 = vmatpush1.msra.mxu0 0.0
        %3990 = vmatprep.subr.mxu0 0.0
        %3991 = vmatpush1.msra.mxu0 %v3417
        %3992 = vmatprep.subr.mxu0 0.0
        %3993 = vmatpush1.msra.mxu0 %v3416
        %3994 = vmatprep.subr.mxu0 0.0
        %3995 = vmatpush1.msra.mxu0 %v3415
        %3996 = vmatprep.subr.mxu0 0.0
        %3997 = vmatpush1.msra.mxu0 %v3414
        %3998 = vmatprep.subr.mxu0 0.0
        %3999 = vmatpush2.msra.mxu0 0.0
        %4000 = vmatprep.subr.mxu0 0.0
        %4001 = vmatpush2.msra.mxu0 0.0
        %4002 = vmatprep.subr.mxu0 0.0
        %4003 = vmatpush2.msra.mxu0 0.0
        %4004 = vmatprep.subr.mxu0 0.0
        %4005 = vmatpush2.msra.mxu0 0.0
        %4006 = vmatprep.subr.mxu0 0.0
        %4007 = vmatpush2.msra.mxu0 0.0
        %4008 = vmatprep.subr.mxu0 0.0
        %4009 = vmatpush2.msra.mxu0 0.0
        %4010 = vmatprep.subr.mxu0 0.0
        %4011 = vmatpush2.msra.mxu0 0.0
        %4012 = vmatprep.subr.mxu0 0.0
        %4013 = vmatpush2.msra.mxu0 0.0
        %4014 = vmatprep.subr.mxu0 0.0
        %4015 = vmatpush2.msra.mxu0 0.0
        %4016 = vmatprep.subr.mxu0 0.0
        %4017 = vmatpush2.msra.mxu0 0.0
        %4018 = vmatprep.subr.mxu0 0.0
        %4019 = vmatpush2.msra.mxu0 0.0
        %4020 = vmatprep.subr.mxu0 0.0
        %4021 = vmatpush2.msra.mxu0 0.0
        %4022 = vmatprep.subr.mxu0 0.0
        %4023 = vmatpush2.msra.mxu0 0.0
        %4024 = vmatprep.subr.mxu0 0.0
        %4025 = vmatpush2.msra.mxu0 0.0
        %4026 = vmatprep.subr.mxu0 0.0
        %4027 = vmatpush2.msra.mxu0 0.0
        %4028 = vmatprep.subr.mxu0 0.0
        %4029 = vmatpush2.msra.mxu0 0.0
        %4030 = vmatprep.mubr.f32.mxu0 0.0
        %4031 = vmatmul.mubr.f32.gmra.mxu0 %v3964
        %v4032 = vpop.f32.mrf.mxu0
        %v4033 = vadd.f32 0.0, %v4032
        %v4034 = vpop.f32.mrf.mxu0
        %4035 = vdwg.mxu0
        %v4036 = vadd.f32 %v3413, %v4033
        %v4037 = vadd.f32 %v4036, %v3418
        %v4038 = vxor.u32 %v4037, 2147483648
        %v4039 = vmul.f32 %v4038, 1.442695
        %v4040 = vpow.pop %v4039
        %v4041 = vadd.f32 %v4040, 1.0
        %v4042 = vrcp.pop %v4041
        %v4043 = vmul.f32 1.0, %v4042
        %v4044 = vadd.f32 %v4033, %v3516
        %4046 = vrot.lane.b32.xlu0 %v4044, 64
        %v4047 = vpop.permute.xlu0 %4046
        %v4049 = vmul.f32 %v4043, %v4047
        %4051 = vrot.lane.b32.xlu0 %v4049, 64
        %v4052 = vpop.permute.xlu0 %4051
        %v4054 = vadd.f32 %v3509, %v4052
        %v4055 = vtanh.pop %v4054
        %v4056 = vsub.f32 1.0, %v4043
        %4058 = vrot.lane.b32.xlu0 %v4055, 96
        %v4059 = vpop.permute.xlu0 %4058
        %v4061 = vmul.f32 %v4056, %v4059
        %v4062 = vmul.f32 %v4043, %v3958
        %v4063 = vadd.f32 %v4061, %v4062
        %4065 = vrot.lane.b32.xlu0 %v4063, 96
        %v4066 = vpop.permute.xlu0 %4065
        %4068 = vst.msk [vmem:[#allocation3 + $0x5] sm:$0x1] %vm3542, %v4066
        %v4069 = vsel %vm1048, %v4066, 0
        %4071 = vmatprep.subr.mxu0 0.0
        %4072 = vmatpush1.msra.mxu0 0.0
        %4073 = vmatprep.subr.mxu0 0.0
        %4074 = vmatpush1.msra.mxu0 0.0
        %4075 = vmatprep.subr.mxu0 0.0
        %4076 = vmatpush1.msra.mxu0 0.0
        %4077 = vmatprep.subr.mxu0 0.0
        %4078 = vmatpush1.msra.mxu0 0.0
        %4079 = vmatprep.subr.mxu0 0.0
        %4080 = vmatpush1.msra.mxu0 0.0
        %4081 = vmatprep.subr.mxu0 0.0
        %4082 = vmatpush1.msra.mxu0 0.0
        %4083 = vmatprep.subr.mxu0 0.0
        %4084 = vmatpush1.msra.mxu0 0.0
        %4085 = vmatprep.subr.mxu0 0.0
        %4086 = vmatpush1.msra.mxu0 0.0
        %4087 = vmatprep.subr.mxu0 0.0
        %4088 = vmatpush1.msra.mxu0 0.0
        %4089 = vmatprep.subr.mxu0 0.0
        %4090 = vmatpush1.msra.mxu0 0.0
        %4091 = vmatprep.subr.mxu0 0.0
        %4092 = vmatpush1.msra.mxu0 0.0
        %4093 = vmatprep.subr.mxu0 0.0
        %4094 = vmatpush1.msra.mxu0 0.0
        %4095 = vmatprep.subr.mxu0 0.0
        %4096 = vmatpush1.msra.mxu0 %v3417
        %4097 = vmatprep.subr.mxu0 0.0
        %4098 = vmatpush1.msra.mxu0 %v3416
        %4099 = vmatprep.subr.mxu0 0.0
        %4100 = vmatpush1.msra.mxu0 %v3415
        %4101 = vmatprep.subr.mxu0 0.0
        %4102 = vmatpush1.msra.mxu0 %v3414
        %4103 = vmatprep.subr.mxu0 0.0
        %4104 = vmatpush2.msra.mxu0 0.0
        %4105 = vmatprep.subr.mxu0 0.0
        %4106 = vmatpush2.msra.mxu0 0.0
        %4107 = vmatprep.subr.mxu0 0.0
        %4108 = vmatpush2.msra.mxu0 0.0
        %4109 = vmatprep.subr.mxu0 0.0
        %4110 = vmatpush2.msra.mxu0 0.0
        %4111 = vmatprep.subr.mxu0 0.0
        %4112 = vmatpush2.msra.mxu0 0.0
        %4113 = vmatprep.subr.mxu0 0.0
        %4114 = vmatpush2.msra.mxu0 0.0
        %4115 = vmatprep.subr.mxu0 0.0
        %4116 = vmatpush2.msra.mxu0 0.0
        %4117 = vmatprep.subr.mxu0 0.0
        %4118 = vmatpush2.msra.mxu0 0.0
        %4119 = vmatprep.subr.mxu0 0.0
        %4120 = vmatpush2.msra.mxu0 0.0
        %4121 = vmatprep.subr.mxu0 0.0
        %4122 = vmatpush2.msra.mxu0 0.0
        %4123 = vmatprep.subr.mxu0 0.0
        %4124 = vmatpush2.msra.mxu0 0.0
        %4125 = vmatprep.subr.mxu0 0.0
        %4126 = vmatpush2.msra.mxu0 0.0
        %4127 = vmatprep.subr.mxu0 0.0
        %4128 = vmatpush2.msra.mxu0 0.0
        %4129 = vmatprep.subr.mxu0 0.0
        %4130 = vmatpush2.msra.mxu0 0.0
        %4131 = vmatprep.subr.mxu0 0.0
        %4132 = vmatpush2.msra.mxu0 0.0
        %4133 = vmatprep.subr.mxu0 0.0
        %4134 = vmatpush2.msra.mxu0 0.0
        %4135 = vmatprep.mubr.f32.mxu0 0.0
        %4136 = vmatmul.mubr.f32.gmra.mxu0 %v4069
        %v4137 = vpop.f32.mrf.mxu0
        %v4138 = vadd.f32 0.0, %v4137
        %v4139 = vpop.f32.mrf.mxu0
        %4140 = vdwg.mxu0
        %v4141 = vadd.f32 %v3413, %v4138
        %v4142 = vadd.f32 %v4141, %v3418
        %v4143 = vxor.u32 %v4142, 2147483648
        %v4144 = vmul.f32 %v4143, 1.442695
        %v4145 = vpow.pop %v4144
        %v4146 = vadd.f32 %v4145, 1.0
        %v4147 = vrcp.pop %v4146
        %v4148 = vmul.f32 1.0, %v4147
        %v4149 = vadd.f32 %v4138, %v3516
        %4151 = vrot.lane.b32.xlu0 %v4149, 64
        %v4152 = vpop.permute.xlu0 %4151
        %v4154 = vmul.f32 %v4148, %v4152
        %4156 = vrot.lane.b32.xlu0 %v4154, 64
        %v4157 = vpop.permute.xlu0 %4156
        %v4159 = vadd.f32 %v3509, %v4157
        %v4160 = vtanh.pop %v4159
        %v4161 = vsub.f32 1.0, %v4148
        %4163 = vrot.lane.b32.xlu0 %v4160, 96
        %v4164 = vpop.permute.xlu0 %4163
        %v4166 = vmul.f32 %v4161, %v4164
        %v4167 = vmul.f32 %v4148, %v4063
        %v4168 = vadd.f32 %v4166, %v4167
        %4170 = vrot.lane.b32.xlu0 %v4168, 96
        %v4171 = vpop.permute.xlu0 %4170
        %4173 = vst.msk [vmem:[#allocation3 + $0x6] sm:$0x1] %vm3542, %v4171
        %v4174 = vsel %vm1048, %v4171, 0
        %4176 = vmatprep.subr.mxu0 0.0
        %4177 = vmatpush1.msra.mxu0 0.0
        %4178 = vmatprep.subr.mxu0 0.0
        %4179 = vmatpush1.msra.mxu0 0.0
        %4180 = vmatprep.subr.mxu0 0.0
        %4181 = vmatpush1.msra.mxu0 0.0
        %4182 = vmatprep.subr.mxu0 0.0
        %4183 = vmatpush1.msra.mxu0 0.0
        %4184 = vmatprep.subr.mxu0 0.0
        %4185 = vmatpush1.msra.mxu0 0.0
        %4186 = vmatprep.subr.mxu0 0.0
        %4187 = vmatpush1.msra.mxu0 0.0
        %4188 = vmatprep.subr.mxu0 0.0
        %4189 = vmatpush1.msra.mxu0 0.0
        %4190 = vmatprep.subr.mxu0 0.0
        %4191 = vmatpush1.msra.mxu0 0.0
        %4192 = vmatprep.subr.mxu0 0.0
        %4193 = vmatpush1.msra.mxu0 0.0
        %4194 = vmatprep.subr.mxu0 0.0
        %4195 = vmatpush1.msra.mxu0 0.0
        %4196 = vmatprep.subr.mxu0 0.0
        %4197 = vmatpush1.msra.mxu0 0.0
        %4198 = vmatprep.subr.mxu0 0.0
        %4199 = vmatpush1.msra.mxu0 0.0
        %4200 = vmatprep.subr.mxu0 0.0
        %4201 = vmatpush1.msra.mxu0 %v3417
        %4202 = vmatprep.subr.mxu0 0.0
        %4203 = vmatpush1.msra.mxu0 %v3416
        %4204 = vmatprep.subr.mxu0 0.0
        %4205 = vmatpush1.msra.mxu0 %v3415
        %4206 = vmatprep.subr.mxu0 0.0
        %4207 = vmatpush1.msra.mxu0 %v3414
        %4208 = vmatprep.subr.mxu0 0.0
        %4209 = vmatpush2.msra.mxu0 0.0
        %4210 = vmatprep.subr.mxu0 0.0
        %4211 = vmatpush2.msra.mxu0 0.0
        %4212 = vmatprep.subr.mxu0 0.0
        %4213 = vmatpush2.msra.mxu0 0.0
        %4214 = vmatprep.subr.mxu0 0.0
        %4215 = vmatpush2.msra.mxu0 0.0
        %4216 = vmatprep.subr.mxu0 0.0
        %4217 = vmatpush2.msra.mxu0 0.0
        %4218 = vmatprep.subr.mxu0 0.0
        %4219 = vmatpush2.msra.mxu0 0.0
        %4220 = vmatprep.subr.mxu0 0.0
        %4221 = vmatpush2.msra.mxu0 0.0
        %4222 = vmatprep.subr.mxu0 0.0
        %4223 = vmatpush2.msra.mxu0 0.0
        %4224 = vmatprep.subr.mxu0 0.0
        %4225 = vmatpush2.msra.mxu0 0.0
        %4226 = vmatprep.subr.mxu0 0.0
        %4227 = vmatpush2.msra.mxu0 0.0
        %4228 = vmatprep.subr.mxu0 0.0
        %4229 = vmatpush2.msra.mxu0 0.0
        %4230 = vmatprep.subr.mxu0 0.0
        %4231 = vmatpush2.msra.mxu0 0.0
        %4232 = vmatprep.subr.mxu0 0.0
        %4233 = vmatpush2.msra.mxu0 0.0
        %4234 = vmatprep.subr.mxu0 0.0
        %4235 = vmatpush2.msra.mxu0 0.0
        %4236 = vmatprep.subr.mxu0 0.0
        %4237 = vmatpush2.msra.mxu0 0.0
        %4238 = vmatprep.subr.mxu0 0.0
        %4239 = vmatpush2.msra.mxu0 0.0
        %4240 = vmatprep.mubr.f32.mxu0 0.0
        %4241 = vmatmul.mubr.f32.gmra.mxu0 %v4174
        %v4242 = vpop.f32.mrf.mxu0
        %v4243 = vadd.f32 0.0, %v4242
        %v4244 = vpop.f32.mrf.mxu0
        %4245 = vdwg.mxu0
        %v4246 = vadd.f32 %v3413, %v4243
        %v4247 = vadd.f32 %v4246, %v3418
        %v4248 = vxor.u32 %v4247, 2147483648
        %v4249 = vmul.f32 %v4248, 1.442695
        %v4250 = vpow.pop %v4249
        %v4251 = vadd.f32 %v4250, 1.0
        %v4252 = vrcp.pop %v4251
        %v4253 = vmul.f32 1.0, %v4252
        %v4254 = vadd.f32 %v4243, %v3516
        %4256 = vrot.lane.b32.xlu0 %v4254, 64
        %v4257 = vpop.permute.xlu0 %4256
        %v4259 = vmul.f32 %v4253, %v4257
        %4261 = vrot.lane.b32.xlu0 %v4259, 64
        %v4262 = vpop.permute.xlu0 %4261
        %v4264 = vadd.f32 %v3509, %v4262
        %v4265 = vtanh.pop %v4264
        %v4266 = vsub.f32 1.0, %v4253
        %4268 = vrot.lane.b32.xlu0 %v4265, 96
        %v4269 = vpop.permute.xlu0 %4268
        %v4271 = vmul.f32 %v4266, %v4269
        %v4272 = vmul.f32 %v4253, %v4168
        %v4273 = vadd.f32 %v4271, %v4272
        %4275 = vrot.lane.b32.xlu0 %v4273, 96
        %v4276 = vpop.permute.xlu0 %4275
        %4278 = vst.msk [vmem:[#allocation3 + $0x7] sm:$0x1] %vm3542, %v4276
        %v4279 = vsel %vm1048, %v4276, 0
        %4281 = vmatprep.subr.mxu0 0.0
        %4282 = vmatpush1.msra.mxu0 0.0
        %4283 = vmatprep.subr.mxu0 0.0
        %4284 = vmatpush1.msra.mxu0 0.0
        %4285 = vmatprep.subr.mxu0 0.0
        %4286 = vmatpush1.msra.mxu0 0.0
        %4287 = vmatprep.subr.mxu0 0.0
        %4288 = vmatpush1.msra.mxu0 0.0
        %4289 = vmatprep.subr.mxu0 0.0
        %4290 = vmatpush1.msra.mxu0 0.0
        %4291 = vmatprep.subr.mxu0 0.0
        %4292 = vmatpush1.msra.mxu0 0.0
        %4293 = vmatprep.subr.mxu0 0.0
        %4294 = vmatpush1.msra.mxu0 0.0
        %4295 = vmatprep.subr.mxu0 0.0
        %4296 = vmatpush1.msra.mxu0 0.0
        %4297 = vmatprep.subr.mxu0 0.0
        %4298 = vmatpush1.msra.mxu0 0.0
        %4299 = vmatprep.subr.mxu0 0.0
        %4300 = vmatpush1.msra.mxu0 0.0
        %4301 = vmatprep.subr.mxu0 0.0
        %4302 = vmatpush1.msra.mxu0 0.0
        %4303 = vmatprep.subr.mxu0 0.0
        %4304 = vmatpush1.msra.mxu0 0.0
        %4305 = vmatprep.subr.mxu0 0.0
        %4306 = vmatpush1.msra.mxu0 %v3417
        %4307 = vmatprep.subr.mxu0 0.0
        %4308 = vmatpush1.msra.mxu0 %v3416
        %4309 = vmatprep.subr.mxu0 0.0
        %4310 = vmatpush1.msra.mxu0 %v3415
        %4311 = vmatprep.subr.mxu0 0.0
        %4312 = vmatpush1.msra.mxu0 %v3414
        %4313 = vmatprep.subr.mxu0 0.0
        %4314 = vmatpush2.msra.mxu0 0.0
        %4315 = vmatprep.subr.mxu0 0.0
        %4316 = vmatpush2.msra.mxu0 0.0
        %4317 = vmatprep.subr.mxu0 0.0
        %4318 = vmatpush2.msra.mxu0 0.0
        %4319 = vmatprep.subr.mxu0 0.0
        %4320 = vmatpush2.msra.mxu0 0.0
        %4321 = vmatprep.subr.mxu0 0.0
        %4322 = vmatpush2.msra.mxu0 0.0
        %4323 = vmatprep.subr.mxu0 0.0
        %4324 = vmatpush2.msra.mxu0 0.0
        %4325 = vmatprep.subr.mxu0 0.0
        %4326 = vmatpush2.msra.mxu0 0.0
        %4327 = vmatprep.subr.mxu0 0.0
        %4328 = vmatpush2.msra.mxu0 0.0
        %4329 = vmatprep.subr.mxu0 0.0
        %4330 = vmatpush2.msra.mxu0 0.0
        %4331 = vmatprep.subr.mxu0 0.0
        %4332 = vmatpush2.msra.mxu0 0.0
        %4333 = vmatprep.subr.mxu0 0.0
        %4334 = vmatpush2.msra.mxu0 0.0
        %4335 = vmatprep.subr.mxu0 0.0
        %4336 = vmatpush2.msra.mxu0 0.0
        %4337 = vmatprep.subr.mxu0 0.0
        %4338 = vmatpush2.msra.mxu0 0.0
        %4339 = vmatprep.subr.mxu0 0.0
        %4340 = vmatpush2.msra.mxu0 0.0
        %4341 = vmatprep.subr.mxu0 0.0
        %4342 = vmatpush2.msra.mxu0 0.0
        %4343 = vmatprep.subr.mxu0 0.0
        %4344 = vmatpush2.msra.mxu0 0.0
        %4345 = vmatprep.mubr.f32.mxu0 0.0
        %4346 = vmatmul.mubr.f32.gmra.mxu0 %v4279
        %v4347 = vpop.f32.mrf.mxu0
        %v4348 = vadd.f32 0.0, %v4347
        %v4349 = vpop.f32.mrf.mxu0
        %4350 = vdwg.mxu0
        %v4351 = vadd.f32 %v3413, %v4348
        %v4352 = vadd.f32 %v4351, %v3418
        %v4353 = vxor.u32 %v4352, 2147483648
        %v4354 = vmul.f32 %v4353, 1.442695
        %v4355 = vpow.pop %v4354
        %v4356 = vadd.f32 %v4355, 1.0
        %v4357 = vrcp.pop %v4356
        %v4358 = vmul.f32 1.0, %v4357
        %v4359 = vadd.f32 %v4348, %v3516
        %4361 = vrot.lane.b32.xlu0 %v4359, 64
        %v4362 = vpop.permute.xlu0 %4361
        %v4364 = vmul.f32 %v4358, %v4362
        %4366 = vrot.lane.b32.xlu0 %v4364, 64
        %v4367 = vpop.permute.xlu0 %4366
        %v4369 = vadd.f32 %v3509, %v4367
        %v4370 = vtanh.pop %v4369
        %v4371 = vsub.f32 1.0, %v4358
        %4373 = vrot.lane.b32.xlu0 %v4370, 96
        %v4374 = vpop.permute.xlu0 %4373
        %v4376 = vmul.f32 %v4371, %v4374
        %v4377 = vmul.f32 %v4358, %v4273
        %v4378 = vadd.f32 %v4376, %v4377
        %4380 = vrot.lane.b32.xlu0 %v4378, 96
        %v4381 = vpop.permute.xlu0 %4380
        %4383 = vst.msk [vmem:[#allocation3 + $0x8] sm:$0x1] %vm3542, %v4381
        %v4384 = vsel %vm1048, %v4381, 0
        %4386 = vmatprep.subr.mxu0 0.0
        %4387 = vmatpush1.msra.mxu0 0.0
        %4388 = vmatprep.subr.mxu0 0.0
        %4389 = vmatpush1.msra.mxu0 0.0
        %4390 = vmatprep.subr.mxu0 0.0
        %4391 = vmatpush1.msra.mxu0 0.0
        %4392 = vmatprep.subr.mxu0 0.0
        %4393 = vmatpush1.msra.mxu0 0.0
        %4394 = vmatprep.subr.mxu0 0.0
        %4395 = vmatpush1.msra.mxu0 0.0
        %4396 = vmatprep.subr.mxu0 0.0
        %4397 = vmatpush1.msra.mxu0 0.0
        %4398 = vmatprep.subr.mxu0 0.0
        %4399 = vmatpush1.msra.mxu0 0.0
        %4400 = vmatprep.subr.mxu0 0.0
        %4401 = vmatpush1.msra.mxu0 0.0
        %4402 = vmatprep.subr.mxu0 0.0
        %4403 = vmatpush1.msra.mxu0 0.0
        %4404 = vmatprep.subr.mxu0 0.0
        %4405 = vmatpush1.msra.mxu0 0.0
        %4406 = vmatprep.subr.mxu0 0.0
        %4407 = vmatpush1.msra.mxu0 0.0
        %4408 = vmatprep.subr.mxu0 0.0
        %4409 = vmatpush1.msra.mxu0 0.0
        %4410 = vmatprep.subr.mxu0 0.0
        %4411 = vmatpush1.msra.mxu0 %v3417
        %4412 = vmatprep.subr.mxu0 0.0
        %4413 = vmatpush1.msra.mxu0 %v3416
        %4414 = vmatprep.subr.mxu0 0.0
        %4415 = vmatpush1.msra.mxu0 %v3415
        %4416 = vmatprep.subr.mxu0 0.0
        %4417 = vmatpush1.msra.mxu0 %v3414
        %4418 = vmatprep.subr.mxu0 0.0
        %4419 = vmatpush2.msra.mxu0 0.0
        %4420 = vmatprep.subr.mxu0 0.0
        %4421 = vmatpush2.msra.mxu0 0.0
        %4422 = vmatprep.subr.mxu0 0.0
        %4423 = vmatpush2.msra.mxu0 0.0
        %4424 = vmatprep.subr.mxu0 0.0
        %4425 = vmatpush2.msra.mxu0 0.0
        %4426 = vmatprep.subr.mxu0 0.0
        %4427 = vmatpush2.msra.mxu0 0.0
        %4428 = vmatprep.subr.mxu0 0.0
        %4429 = vmatpush2.msra.mxu0 0.0
        %4430 = vmatprep.subr.mxu0 0.0
        %4431 = vmatpush2.msra.mxu0 0.0
        %4432 = vmatprep.subr.mxu0 0.0
        %4433 = vmatpush2.msra.mxu0 0.0
        %4434 = vmatprep.subr.mxu0 0.0
        %4435 = vmatpush2.msra.mxu0 0.0
        %4436 = vmatprep.subr.mxu0 0.0
        %4437 = vmatpush2.msra.mxu0 0.0
        %4438 = vmatprep.subr.mxu0 0.0
        %4439 = vmatpush2.msra.mxu0 0.0
        %4440 = vmatprep.subr.mxu0 0.0
        %4441 = vmatpush2.msra.mxu0 0.0
        %4442 = vmatprep.subr.mxu0 0.0
        %4443 = vmatpush2.msra.mxu0 0.0
        %4444 = vmatprep.subr.mxu0 0.0
        %4445 = vmatpush2.msra.mxu0 0.0
        %4446 = vmatprep.subr.mxu0 0.0
        %4447 = vmatpush2.msra.mxu0 0.0
        %4448 = vmatprep.subr.mxu0 0.0
        %4449 = vmatpush2.msra.mxu0 0.0
        %4450 = vmatprep.mubr.f32.mxu0 0.0
        %4451 = vmatmul.mubr.f32.gmra.mxu0 %v4384
        %v4452 = vpop.f32.mrf.mxu0
        %v4453 = vadd.f32 0.0, %v4452
        %v4454 = vpop.f32.mrf.mxu0
        %4455 = vdwg.mxu0
        %v4456 = vadd.f32 %v3413, %v4453
        %v4457 = vadd.f32 %v4456, %v3418
        %v4458 = vxor.u32 %v4457, 2147483648
        %v4459 = vmul.f32 %v4458, 1.442695
        %v4460 = vpow.pop %v4459
        %v4461 = vadd.f32 %v4460, 1.0
        %v4462 = vrcp.pop %v4461
        %v4463 = vmul.f32 1.0, %v4462
        %v4464 = vadd.f32 %v4453, %v3516
        %4466 = vrot.lane.b32.xlu0 %v4464, 64
        %v4467 = vpop.permute.xlu0 %4466
        %v4469 = vmul.f32 %v4463, %v4467
        %4471 = vrot.lane.b32.xlu0 %v4469, 64
        %v4472 = vpop.permute.xlu0 %4471
        %v4474 = vadd.f32 %v3509, %v4472
        %v4475 = vtanh.pop %v4474
        %v4476 = vsub.f32 1.0, %v4463
        %4478 = vrot.lane.b32.xlu0 %v4475, 96
        %v4479 = vpop.permute.xlu0 %4478
        %v4481 = vmul.f32 %v4476, %v4479
        %v4482 = vmul.f32 %v4463, %v4378
        %v4483 = vadd.f32 %v4481, %v4482
        %4485 = vrot.lane.b32.xlu0 %v4483, 96
        %v4486 = vpop.permute.xlu0 %4485
        %4488 = vst.msk [vmem:[#allocation3 + $0x9] sm:$0x1] %vm3542, %v4486
        %v4489 = vsel %vm1048, %v4486, 0
        %4491 = vmatprep.subr.mxu0 0.0
        %4492 = vmatpush1.msra.mxu0 0.0
        %4493 = vmatprep.subr.mxu0 0.0
        %4494 = vmatpush1.msra.mxu0 0.0
        %4495 = vmatprep.subr.mxu0 0.0
        %4496 = vmatpush1.msra.mxu0 0.0
        %4497 = vmatprep.subr.mxu0 0.0
        %4498 = vmatpush1.msra.mxu0 0.0
        %4499 = vmatprep.subr.mxu0 0.0
        %4500 = vmatpush1.msra.mxu0 0.0
        %4501 = vmatprep.subr.mxu0 0.0
        %4502 = vmatpush1.msra.mxu0 0.0
        %4503 = vmatprep.subr.mxu0 0.0
        %4504 = vmatpush1.msra.mxu0 0.0
        %4505 = vmatprep.subr.mxu0 0.0
        %4506 = vmatpush1.msra.mxu0 0.0
        %4507 = vmatprep.subr.mxu0 0.0
        %4508 = vmatpush1.msra.mxu0 0.0
        %4509 = vmatprep.subr.mxu0 0.0
        %4510 = vmatpush1.msra.mxu0 0.0
        %4511 = vmatprep.subr.mxu0 0.0
        %4512 = vmatpush1.msra.mxu0 0.0
        %4513 = vmatprep.subr.mxu0 0.0
        %4514 = vmatpush1.msra.mxu0 0.0
        %4515 = vmatprep.subr.mxu0 0.0
        %4516 = vmatpush1.msra.mxu0 %v3417
        %4517 = vmatprep.subr.mxu0 0.0
        %4518 = vmatpush1.msra.mxu0 %v3416
        %4519 = vmatprep.subr.mxu0 0.0
        %4520 = vmatpush1.msra.mxu0 %v3415
        %4521 = vmatprep.subr.mxu0 0.0
        %4522 = vmatpush1.msra.mxu0 %v3414
        %4523 = vmatprep.subr.mxu0 0.0
        %4524 = vmatpush2.msra.mxu0 0.0
        %4525 = vmatprep.subr.mxu0 0.0
        %4526 = vmatpush2.msra.mxu0 0.0
        %4527 = vmatprep.subr.mxu0 0.0
        %4528 = vmatpush2.msra.mxu0 0.0
        %4529 = vmatprep.subr.mxu0 0.0
        %4530 = vmatpush2.msra.mxu0 0.0
        %4531 = vmatprep.subr.mxu0 0.0
        %4532 = vmatpush2.msra.mxu0 0.0
        %4533 = vmatprep.subr.mxu0 0.0
        %4534 = vmatpush2.msra.mxu0 0.0
        %4535 = vmatprep.subr.mxu0 0.0
        %4536 = vmatpush2.msra.mxu0 0.0
        %4537 = vmatprep.subr.mxu0 0.0
        %4538 = vmatpush2.msra.mxu0 0.0
        %4539 = vmatprep.subr.mxu0 0.0
        %4540 = vmatpush2.msra.mxu0 0.0
        %4541 = vmatprep.subr.mxu0 0.0
        %4542 = vmatpush2.msra.mxu0 0.0
        %4543 = vmatprep.subr.mxu0 0.0
        %4544 = vmatpush2.msra.mxu0 0.0
        %4545 = vmatprep.subr.mxu0 0.0
        %4546 = vmatpush2.msra.mxu0 0.0
        %4547 = vmatprep.subr.mxu0 0.0
        %4548 = vmatpush2.msra.mxu0 0.0
        %4549 = vmatprep.subr.mxu0 0.0
        %4550 = vmatpush2.msra.mxu0 0.0
        %4551 = vmatprep.subr.mxu0 0.0
        %4552 = vmatpush2.msra.mxu0 0.0
        %4553 = vmatprep.subr.mxu0 0.0
        %4554 = vmatpush2.msra.mxu0 0.0
        %4555 = vmatprep.mubr.f32.mxu0 0.0
        %4556 = vmatmul.mubr.f32.gmra.mxu0 %v4489
        %v4557 = vpop.f32.mrf.mxu0
        %v4558 = vadd.f32 0.0, %v4557
        %v4559 = vpop.f32.mrf.mxu0
        %4560 = vdwg.mxu0
        %v4561 = vadd.f32 %v3413, %v4558
        %v4562 = vadd.f32 %v4561, %v3418
        %v4563 = vxor.u32 %v4562, 2147483648
        %v4564 = vmul.f32 %v4563, 1.442695
        %v4565 = vpow.pop %v4564
        %v4566 = vadd.f32 %v4565, 1.0
        %v4567 = vrcp.pop %v4566
        %v4568 = vmul.f32 1.0, %v4567
        %v4569 = vadd.f32 %v4558, %v3516
        %4571 = vrot.lane.b32.xlu0 %v4569, 64
        %v4572 = vpop.permute.xlu0 %4571
        %v4574 = vmul.f32 %v4568, %v4572
        %4576 = vrot.lane.b32.xlu0 %v4574, 64
        %v4577 = vpop.permute.xlu0 %4576
        %v4579 = vadd.f32 %v3509, %v4577
        %v4580 = vtanh.pop %v4579
        %v4581 = vsub.f32 1.0, %v4568
        %4583 = vrot.lane.b32.xlu0 %v4580, 96
        %v4584 = vpop.permute.xlu0 %4583
        %v4586 = vmul.f32 %v4581, %v4584
        %v4587 = vmul.f32 %v4568, %v4483
        %v4588 = vadd.f32 %v4586, %v4587
        %4590 = vrot.lane.b32.xlu0 %v4588, 96
        %v4591 = vpop.permute.xlu0 %4590
        %4593 = vst.msk [vmem:[#allocation3 + $0xa] sm:$0x1] %vm3542, %v4591
        %v4594 = vsel %vm1048, %v4591, 0
        %4596 = vmatprep.subr.mxu0 0.0
        %4597 = vmatpush1.msra.mxu0 0.0
        %4598 = vmatprep.subr.mxu0 0.0
        %4599 = vmatpush1.msra.mxu0 0.0
        %4600 = vmatprep.subr.mxu0 0.0
        %4601 = vmatpush1.msra.mxu0 0.0
        %4602 = vmatprep.subr.mxu0 0.0
        %4603 = vmatpush1.msra.mxu0 0.0
        %4604 = vmatprep.subr.mxu0 0.0
        %4605 = vmatpush1.msra.mxu0 0.0
        %4606 = vmatprep.subr.mxu0 0.0
        %4607 = vmatpush1.msra.mxu0 0.0
        %4608 = vmatprep.subr.mxu0 0.0
        %4609 = vmatpush1.msra.mxu0 0.0
        %4610 = vmatprep.subr.mxu0 0.0
        %4611 = vmatpush1.msra.mxu0 0.0
        %4612 = vmatprep.subr.mxu0 0.0
        %4613 = vmatpush1.msra.mxu0 0.0
        %4614 = vmatprep.subr.mxu0 0.0
        %4615 = vmatpush1.msra.mxu0 0.0
        %4616 = vmatprep.subr.mxu0 0.0
        %4617 = vmatpush1.msra.mxu0 0.0
        %4618 = vmatprep.subr.mxu0 0.0
        %4619 = vmatpush1.msra.mxu0 0.0
        %4620 = vmatprep.subr.mxu0 0.0
        %4621 = vmatpush1.msra.mxu0 %v3417
        %4622 = vmatprep.subr.mxu0 0.0
        %4623 = vmatpush1.msra.mxu0 %v3416
        %4624 = vmatprep.subr.mxu0 0.0
        %4625 = vmatpush1.msra.mxu0 %v3415
        %4626 = vmatprep.subr.mxu0 0.0
        %4627 = vmatpush1.msra.mxu0 %v3414
        %4628 = vmatprep.subr.mxu0 0.0
        %4629 = vmatpush2.msra.mxu0 0.0
        %4630 = vmatprep.subr.mxu0 0.0
        %4631 = vmatpush2.msra.mxu0 0.0
        %4632 = vmatprep.subr.mxu0 0.0
        %4633 = vmatpush2.msra.mxu0 0.0
        %4634 = vmatprep.subr.mxu0 0.0
        %4635 = vmatpush2.msra.mxu0 0.0
        %4636 = vmatprep.subr.mxu0 0.0
        %4637 = vmatpush2.msra.mxu0 0.0
        %4638 = vmatprep.subr.mxu0 0.0
        %4639 = vmatpush2.msra.mxu0 0.0
        %4640 = vmatprep.subr.mxu0 0.0
        %4641 = vmatpush2.msra.mxu0 0.0
        %4642 = vmatprep.subr.mxu0 0.0
        %4643 = vmatpush2.msra.mxu0 0.0
        %4644 = vmatprep.subr.mxu0 0.0
        %4645 = vmatpush2.msra.mxu0 0.0
        %4646 = vmatprep.subr.mxu0 0.0
        %4647 = vmatpush2.msra.mxu0 0.0
        %4648 = vmatprep.subr.mxu0 0.0
        %4649 = vmatpush2.msra.mxu0 0.0
        %4650 = vmatprep.subr.mxu0 0.0
        %4651 = vmatpush2.msra.mxu0 0.0
        %4652 = vmatprep.subr.mxu0 0.0
        %4653 = vmatpush2.msra.mxu0 0.0
        %4654 = vmatprep.subr.mxu0 0.0
        %4655 = vmatpush2.msra.mxu0 0.0
        %4656 = vmatprep.subr.mxu0 0.0
        %4657 = vmatpush2.msra.mxu0 0.0
        %4658 = vmatprep.subr.mxu0 0.0
        %4659 = vmatpush2.msra.mxu0 0.0
        %4660 = vmatprep.mubr.f32.mxu0 0.0
        %4661 = vmatmul.mubr.f32.gmra.mxu0 %v4594
        %v4662 = vpop.f32.mrf.mxu0
        %v4663 = vadd.f32 0.0, %v4662
        %v4664 = vpop.f32.mrf.mxu0
        %4665 = vdwg.mxu0
        %v4666 = vadd.f32 %v3413, %v4663
        %v4667 = vadd.f32 %v4666, %v3418
        %v4668 = vxor.u32 %v4667, 2147483648
        %v4669 = vmul.f32 %v4668, 1.442695
        %v4670 = vpow.pop %v4669
        %v4671 = vadd.f32 %v4670, 1.0
        %v4672 = vrcp.pop %v4671
        %v4673 = vmul.f32 1.0, %v4672
        %v4674 = vadd.f32 %v4663, %v3516
        %4676 = vrot.lane.b32.xlu0 %v4674, 64
        %v4677 = vpop.permute.xlu0 %4676
        %v4679 = vmul.f32 %v4673, %v4677
        %4681 = vrot.lane.b32.xlu0 %v4679, 64
        %v4682 = vpop.permute.xlu0 %4681
        %v4684 = vadd.f32 %v3509, %v4682
        %v4685 = vtanh.pop %v4684
        %v4686 = vsub.f32 1.0, %v4673
        %4688 = vrot.lane.b32.xlu0 %v4685, 96
        %v4689 = vpop.permute.xlu0 %4688
        %v4691 = vmul.f32 %v4686, %v4689
        %v4692 = vmul.f32 %v4673, %v4588
        %v4693 = vadd.f32 %v4691, %v4692
        %4695 = vrot.lane.b32.xlu0 %v4693, 96
        %v4696 = vpop.permute.xlu0 %4695
        %4698 = vst.msk [vmem:[#allocation3 + $0xb] sm:$0x1] %vm3542, %v4696
        %v4699 = vsel %vm1048, %v4696, 0
        %4701 = vmatprep.subr.mxu0 0.0
        %4702 = vmatpush1.msra.mxu0 0.0
        %4703 = vmatprep.subr.mxu0 0.0
        %4704 = vmatpush1.msra.mxu0 0.0
        %4705 = vmatprep.subr.mxu0 0.0
        %4706 = vmatpush1.msra.mxu0 0.0
        %4707 = vmatprep.subr.mxu0 0.0
        %4708 = vmatpush1.msra.mxu0 0.0
        %4709 = vmatprep.subr.mxu0 0.0
        %4710 = vmatpush1.msra.mxu0 0.0
        %4711 = vmatprep.subr.mxu0 0.0
        %4712 = vmatpush1.msra.mxu0 0.0
        %4713 = vmatprep.subr.mxu0 0.0
        %4714 = vmatpush1.msra.mxu0 0.0
        %4715 = vmatprep.subr.mxu0 0.0
        %4716 = vmatpush1.msra.mxu0 0.0
        %4717 = vmatprep.subr.mxu0 0.0
        %4718 = vmatpush1.msra.mxu0 0.0
        %4719 = vmatprep.subr.mxu0 0.0
        %4720 = vmatpush1.msra.mxu0 0.0
        %4721 = vmatprep.subr.mxu0 0.0
        %4722 = vmatpush1.msra.mxu0 0.0
        %4723 = vmatprep.subr.mxu0 0.0
        %4724 = vmatpush1.msra.mxu0 0.0
        %4725 = vmatprep.subr.mxu0 0.0
        %4726 = vmatpush1.msra.mxu0 %v3417
        %4727 = vmatprep.subr.mxu0 0.0
        %4728 = vmatpush1.msra.mxu0 %v3416
        %4729 = vmatprep.subr.mxu0 0.0
        %4730 = vmatpush1.msra.mxu0 %v3415
        %4731 = vmatprep.subr.mxu0 0.0
        %4732 = vmatpush1.msra.mxu0 %v3414
        %4733 = vmatprep.subr.mxu0 0.0
        %4734 = vmatpush2.msra.mxu0 0.0
        %4735 = vmatprep.subr.mxu0 0.0
        %4736 = vmatpush2.msra.mxu0 0.0
        %4737 = vmatprep.subr.mxu0 0.0
        %4738 = vmatpush2.msra.mxu0 0.0
        %4739 = vmatprep.subr.mxu0 0.0
        %4740 = vmatpush2.msra.mxu0 0.0
        %4741 = vmatprep.subr.mxu0 0.0
        %4742 = vmatpush2.msra.mxu0 0.0
        %4743 = vmatprep.subr.mxu0 0.0
        %4744 = vmatpush2.msra.mxu0 0.0
        %4745 = vmatprep.subr.mxu0 0.0
        %4746 = vmatpush2.msra.mxu0 0.0
        %4747 = vmatprep.subr.mxu0 0.0
        %4748 = vmatpush2.msra.mxu0 0.0
        %4749 = vmatprep.subr.mxu0 0.0
        %4750 = vmatpush2.msra.mxu0 0.0
        %4751 = vmatprep.subr.mxu0 0.0
        %4752 = vmatpush2.msra.mxu0 0.0
        %4753 = vmatprep.subr.mxu0 0.0
        %4754 = vmatpush2.msra.mxu0 0.0
        %4755 = vmatprep.subr.mxu0 0.0
        %4756 = vmatpush2.msra.mxu0 0.0
        %4757 = vmatprep.subr.mxu0 0.0
        %4758 = vmatpush2.msra.mxu0 0.0
        %4759 = vmatprep.subr.mxu0 0.0
        %4760 = vmatpush2.msra.mxu0 0.0
        %4761 = vmatprep.subr.mxu0 0.0
        %4762 = vmatpush2.msra.mxu0 0.0
        %4763 = vmatprep.subr.mxu0 0.0
        %4764 = vmatpush2.msra.mxu0 0.0
        %4765 = vmatprep.mubr.f32.mxu0 0.0
        %4766 = vmatmul.mubr.f32.gmra.mxu0 %v4699
        %v4767 = vpop.f32.mrf.mxu0
        %v4768 = vadd.f32 0.0, %v4767
        %v4769 = vpop.f32.mrf.mxu0
        %4770 = vdwg.mxu0
        %v4771 = vadd.f32 %v3413, %v4768
        %v4772 = vadd.f32 %v4771, %v3418
        %v4773 = vxor.u32 %v4772, 2147483648
        %v4774 = vmul.f32 %v4773, 1.442695
        %v4775 = vpow.pop %v4774
        %v4776 = vadd.f32 %v4775, 1.0
        %v4777 = vrcp.pop %v4776
        %v4778 = vmul.f32 1.0, %v4777
        %v4779 = vadd.f32 %v4768, %v3516
        %4781 = vrot.lane.b32.xlu0 %v4779, 64
        %v4782 = vpop.permute.xlu0 %4781
        %v4784 = vmul.f32 %v4778, %v4782
        %4786 = vrot.lane.b32.xlu0 %v4784, 64
        %v4787 = vpop.permute.xlu0 %4786
        %v4789 = vadd.f32 %v3509, %v4787
        %v4790 = vtanh.pop %v4789
        %v4791 = vsub.f32 1.0, %v4778
        %4793 = vrot.lane.b32.xlu0 %v4790, 96
        %v4794 = vpop.permute.xlu0 %4793
        %v4796 = vmul.f32 %v4791, %v4794
        %v4797 = vmul.f32 %v4778, %v4693
        %v4798 = vadd.f32 %v4796, %v4797
        %4800 = vrot.lane.b32.xlu0 %v4798, 96
        %v4801 = vpop.permute.xlu0 %4800
        %4803 = vst.msk [vmem:[#allocation3 + $0xc] sm:$0x1] %vm3542, %v4801
        %v4804 = vsel %vm1048, %v4801, 0
        %4806 = vmatprep.subr.mxu0 0.0
        %4807 = vmatpush1.msra.mxu0 0.0
        %4808 = vmatprep.subr.mxu0 0.0
        %4809 = vmatpush1.msra.mxu0 0.0
        %4810 = vmatprep.subr.mxu0 0.0
        %4811 = vmatpush1.msra.mxu0 0.0
        %4812 = vmatprep.subr.mxu0 0.0
        %4813 = vmatpush1.msra.mxu0 0.0
        %4814 = vmatprep.subr.mxu0 0.0
        %4815 = vmatpush1.msra.mxu0 0.0
        %4816 = vmatprep.subr.mxu0 0.0
        %4817 = vmatpush1.msra.mxu0 0.0
        %4818 = vmatprep.subr.mxu0 0.0
        %4819 = vmatpush1.msra.mxu0 0.0
        %4820 = vmatprep.subr.mxu0 0.0
        %4821 = vmatpush1.msra.mxu0 0.0
        %4822 = vmatprep.subr.mxu0 0.0
        %4823 = vmatpush1.msra.mxu0 0.0
        %4824 = vmatprep.subr.mxu0 0.0
        %4825 = vmatpush1.msra.mxu0 0.0
        %4826 = vmatprep.subr.mxu0 0.0
        %4827 = vmatpush1.msra.mxu0 0.0
        %4828 = vmatprep.subr.mxu0 0.0
        %4829 = vmatpush1.msra.mxu0 0.0
        %4830 = vmatprep.subr.mxu0 0.0
        %4831 = vmatpush1.msra.mxu0 %v3417
        %4832 = vmatprep.subr.mxu0 0.0
        %4833 = vmatpush1.msra.mxu0 %v3416
        %4834 = vmatprep.subr.mxu0 0.0
        %4835 = vmatpush1.msra.mxu0 %v3415
        %4836 = vmatprep.subr.mxu0 0.0
        %4837 = vmatpush1.msra.mxu0 %v3414
        %4838 = vmatprep.subr.mxu0 0.0
        %4839 = vmatpush2.msra.mxu0 0.0
        %4840 = vmatprep.subr.mxu0 0.0
        %4841 = vmatpush2.msra.mxu0 0.0
        %4842 = vmatprep.subr.mxu0 0.0
        %4843 = vmatpush2.msra.mxu0 0.0
        %4844 = vmatprep.subr.mxu0 0.0
        %4845 = vmatpush2.msra.mxu0 0.0
        %4846 = vmatprep.subr.mxu0 0.0
        %4847 = vmatpush2.msra.mxu0 0.0
        %4848 = vmatprep.subr.mxu0 0.0
        %4849 = vmatpush2.msra.mxu0 0.0
        %4850 = vmatprep.subr.mxu0 0.0
        %4851 = vmatpush2.msra.mxu0 0.0
        %4852 = vmatprep.subr.mxu0 0.0
        %4853 = vmatpush2.msra.mxu0 0.0
        %4854 = vmatprep.subr.mxu0 0.0
        %4855 = vmatpush2.msra.mxu0 0.0
        %4856 = vmatprep.subr.mxu0 0.0
        %4857 = vmatpush2.msra.mxu0 0.0
        %4858 = vmatprep.subr.mxu0 0.0
        %4859 = vmatpush2.msra.mxu0 0.0
        %4860 = vmatprep.subr.mxu0 0.0
        %4861 = vmatpush2.msra.mxu0 0.0
        %4862 = vmatprep.subr.mxu0 0.0
        %4863 = vmatpush2.msra.mxu0 0.0
        %4864 = vmatprep.subr.mxu0 0.0
        %4865 = vmatpush2.msra.mxu0 0.0
        %4866 = vmatprep.subr.mxu0 0.0
        %4867 = vmatpush2.msra.mxu0 0.0
        %4868 = vmatprep.subr.mxu0 0.0
        %4869 = vmatpush2.msra.mxu0 0.0
        %4870 = vmatprep.mubr.f32.mxu0 0.0
        %4871 = vmatmul.mubr.f32.gmra.mxu0 %v4804
        %v4872 = vpop.f32.mrf.mxu0
        %v4873 = vadd.f32 0.0, %v4872
        %v4874 = vpop.f32.mrf.mxu0
        %4875 = vdwg.mxu0
        %v4876 = vadd.f32 %v3413, %v4873
        %v4877 = vadd.f32 %v4876, %v3418
        %v4878 = vxor.u32 %v4877, 2147483648
        %v4879 = vmul.f32 %v4878, 1.442695
        %v4880 = vpow.pop %v4879
        %v4881 = vadd.f32 %v4880, 1.0
        %v4882 = vrcp.pop %v4881
        %v4883 = vmul.f32 1.0, %v4882
        %v4884 = vadd.f32 %v4873, %v3516
        %4886 = vrot.lane.b32.xlu0 %v4884, 64
        %v4887 = vpop.permute.xlu0 %4886
        %v4889 = vmul.f32 %v4883, %v4887
        %4891 = vrot.lane.b32.xlu0 %v4889, 64
        %v4892 = vpop.permute.xlu0 %4891
        %v4894 = vadd.f32 %v3509, %v4892
        %v4895 = vtanh.pop %v4894
        %v4896 = vsub.f32 1.0, %v4883
        %4898 = vrot.lane.b32.xlu0 %v4895, 96
        %v4899 = vpop.permute.xlu0 %4898
        %v4901 = vmul.f32 %v4896, %v4899
        %v4902 = vmul.f32 %v4883, %v4798
        %v4903 = vadd.f32 %v4901, %v4902
        %4905 = vrot.lane.b32.xlu0 %v4903, 96
        %v4906 = vpop.permute.xlu0 %4905
        %4908 = vst.msk [vmem:[#allocation3 + $0xd] sm:$0x1] %vm3542, %v4906
        %v4909 = vsel %vm1048, %v4906, 0
        %4911 = vmatprep.subr.mxu0 0.0
        %4912 = vmatpush1.msra.mxu0 0.0
        %4913 = vmatprep.subr.mxu0 0.0
        %4914 = vmatpush1.msra.mxu0 0.0
        %4915 = vmatprep.subr.mxu0 0.0
        %4916 = vmatpush1.msra.mxu0 0.0
        %4917 = vmatprep.subr.mxu0 0.0
        %4918 = vmatpush1.msra.mxu0 0.0
        %4919 = vmatprep.subr.mxu0 0.0
        %4920 = vmatpush1.msra.mxu0 0.0
        %4921 = vmatprep.subr.mxu0 0.0
        %4922 = vmatpush1.msra.mxu0 0.0
        %4923 = vmatprep.subr.mxu0 0.0
        %4924 = vmatpush1.msra.mxu0 0.0
        %4925 = vmatprep.subr.mxu0 0.0
        %4926 = vmatpush1.msra.mxu0 0.0
        %4927 = vmatprep.subr.mxu0 0.0
        %4928 = vmatpush1.msra.mxu0 0.0
        %4929 = vmatprep.subr.mxu0 0.0
        %4930 = vmatpush1.msra.mxu0 0.0
        %4931 = vmatprep.subr.mxu0 0.0
        %4932 = vmatpush1.msra.mxu0 0.0
        %4933 = vmatprep.subr.mxu0 0.0
        %4934 = vmatpush1.msra.mxu0 0.0
        %4935 = vmatprep.subr.mxu0 0.0
        %4936 = vmatpush1.msra.mxu0 %v3417
        %4937 = vmatprep.subr.mxu0 0.0
        %4938 = vmatpush1.msra.mxu0 %v3416
        %4939 = vmatprep.subr.mxu0 0.0
        %4940 = vmatpush1.msra.mxu0 %v3415
        %4941 = vmatprep.subr.mxu0 0.0
        %4942 = vmatpush1.msra.mxu0 %v3414
        %4943 = vmatprep.subr.mxu0 0.0
        %4944 = vmatpush2.msra.mxu0 0.0
        %4945 = vmatprep.subr.mxu0 0.0
        %4946 = vmatpush2.msra.mxu0 0.0
        %4947 = vmatprep.subr.mxu0 0.0
        %4948 = vmatpush2.msra.mxu0 0.0
        %4949 = vmatprep.subr.mxu0 0.0
        %4950 = vmatpush2.msra.mxu0 0.0
        %4951 = vmatprep.subr.mxu0 0.0
        %4952 = vmatpush2.msra.mxu0 0.0
        %4953 = vmatprep.subr.mxu0 0.0
        %4954 = vmatpush2.msra.mxu0 0.0
        %4955 = vmatprep.subr.mxu0 0.0
        %4956 = vmatpush2.msra.mxu0 0.0
        %4957 = vmatprep.subr.mxu0 0.0
        %4958 = vmatpush2.msra.mxu0 0.0
        %4959 = vmatprep.subr.mxu0 0.0
        %4960 = vmatpush2.msra.mxu0 0.0
        %4961 = vmatprep.subr.mxu0 0.0
        %4962 = vmatpush2.msra.mxu0 0.0
        %4963 = vmatprep.subr.mxu0 0.0
        %4964 = vmatpush2.msra.mxu0 0.0
        %4965 = vmatprep.subr.mxu0 0.0
        %4966 = vmatpush2.msra.mxu0 0.0
        %4967 = vmatprep.subr.mxu0 0.0
        %4968 = vmatpush2.msra.mxu0 0.0
        %4969 = vmatprep.subr.mxu0 0.0
        %4970 = vmatpush2.msra.mxu0 0.0
        %4971 = vmatprep.subr.mxu0 0.0
        %4972 = vmatpush2.msra.mxu0 0.0
        %4973 = vmatprep.subr.mxu0 0.0
        %4974 = vmatpush2.msra.mxu0 0.0
        %4975 = vmatprep.mubr.f32.mxu0 0.0
        %4976 = vmatmul.mubr.f32.gmra.mxu0 %v4909
        %v4977 = vpop.f32.mrf.mxu0
        %v4978 = vadd.f32 0.0, %v4977
        %v4979 = vpop.f32.mrf.mxu0
        %4980 = vdwg.mxu0
        %v4981 = vadd.f32 %v3413, %v4978
        %v4982 = vadd.f32 %v4981, %v3418
        %v4983 = vxor.u32 %v4982, 2147483648
        %v4984 = vmul.f32 %v4983, 1.442695
        %v4985 = vpow.pop %v4984
        %v4986 = vadd.f32 %v4985, 1.0
        %v4987 = vrcp.pop %v4986
        %v4988 = vmul.f32 1.0, %v4987
        %v4989 = vadd.f32 %v4978, %v3516
        %4991 = vrot.lane.b32.xlu0 %v4989, 64
        %v4992 = vpop.permute.xlu0 %4991
        %v4994 = vmul.f32 %v4988, %v4992
        %4996 = vrot.lane.b32.xlu0 %v4994, 64
        %v4997 = vpop.permute.xlu0 %4996
        %v4999 = vadd.f32 %v3509, %v4997
        %v5000 = vtanh.pop %v4999
        %v5001 = vsub.f32 1.0, %v4988
        %5003 = vrot.lane.b32.xlu0 %v5000, 96
        %v5004 = vpop.permute.xlu0 %5003
        %v5006 = vmul.f32 %v5001, %v5004
        %v5007 = vmul.f32 %v4988, %v4903
        %v5008 = vadd.f32 %v5006, %v5007
        %5010 = vrot.lane.b32.xlu0 %v5008, 96
        %v5011 = vpop.permute.xlu0 %5010
        %5013 = vst.msk [vmem:[#allocation3 + $0xe] sm:$0x1] %vm3542, %v5011
        %v5014 = vsel %vm1048, %v5011, 0
        %5016 = vmatprep.subr.mxu0 0.0
        %5017 = vmatpush1.msra.mxu0 0.0
        %5018 = vmatprep.subr.mxu0 0.0
        %5019 = vmatpush1.msra.mxu0 0.0
        %5020 = vmatprep.subr.mxu0 0.0
        %5021 = vmatpush1.msra.mxu0 0.0
        %5022 = vmatprep.subr.mxu0 0.0
        %5023 = vmatpush1.msra.mxu0 0.0
        %5024 = vmatprep.subr.mxu0 0.0
        %5025 = vmatpush1.msra.mxu0 0.0
        %5026 = vmatprep.subr.mxu0 0.0
        %5027 = vmatpush1.msra.mxu0 0.0
        %5028 = vmatprep.subr.mxu0 0.0
        %5029 = vmatpush1.msra.mxu0 0.0
        %5030 = vmatprep.subr.mxu0 0.0
        %5031 = vmatpush1.msra.mxu0 0.0
        %5032 = vmatprep.subr.mxu0 0.0
        %5033 = vmatpush1.msra.mxu0 0.0
        %5034 = vmatprep.subr.mxu0 0.0
        %5035 = vmatpush1.msra.mxu0 0.0
        %5036 = vmatprep.subr.mxu0 0.0
        %5037 = vmatpush1.msra.mxu0 0.0
        %5038 = vmatprep.subr.mxu0 0.0
        %5039 = vmatpush1.msra.mxu0 0.0
        %5040 = vmatprep.subr.mxu0 0.0
        %5041 = vmatpush1.msra.mxu0 %v3417
        %5042 = vmatprep.subr.mxu0 0.0
        %5043 = vmatpush1.msra.mxu0 %v3416
        %5044 = vmatprep.subr.mxu0 0.0
        %5045 = vmatpush1.msra.mxu0 %v3415
        %5046 = vmatprep.subr.mxu0 0.0
        %5047 = vmatpush1.msra.mxu0 %v3414
        %5048 = vmatprep.subr.mxu0 0.0
        %5049 = vmatpush2.msra.mxu0 0.0
        %5050 = vmatprep.subr.mxu0 0.0
        %5051 = vmatpush2.msra.mxu0 0.0
        %5052 = vmatprep.subr.mxu0 0.0
        %5053 = vmatpush2.msra.mxu0 0.0
        %5054 = vmatprep.subr.mxu0 0.0
        %5055 = vmatpush2.msra.mxu0 0.0
        %5056 = vmatprep.subr.mxu0 0.0
        %5057 = vmatpush2.msra.mxu0 0.0
        %5058 = vmatprep.subr.mxu0 0.0
        %5059 = vmatpush2.msra.mxu0 0.0
        %5060 = vmatprep.subr.mxu0 0.0
        %5061 = vmatpush2.msra.mxu0 0.0
        %5062 = vmatprep.subr.mxu0 0.0
        %5063 = vmatpush2.msra.mxu0 0.0
        %5064 = vmatprep.subr.mxu0 0.0
        %5065 = vmatpush2.msra.mxu0 0.0
        %5066 = vmatprep.subr.mxu0 0.0
        %5067 = vmatpush2.msra.mxu0 0.0
        %5068 = vmatprep.subr.mxu0 0.0
        %5069 = vmatpush2.msra.mxu0 0.0
        %5070 = vmatprep.subr.mxu0 0.0
        %5071 = vmatpush2.msra.mxu0 0.0
        %5072 = vmatprep.subr.mxu0 0.0
        %5073 = vmatpush2.msra.mxu0 0.0
        %5074 = vmatprep.subr.mxu0 0.0
        %5075 = vmatpush2.msra.mxu0 0.0
        %5076 = vmatprep.subr.mxu0 0.0
        %5077 = vmatpush2.msra.mxu0 0.0
        %5078 = vmatprep.subr.mxu0 0.0
        %5079 = vmatpush2.msra.mxu0 0.0
        %5080 = vmatprep.mubr.f32.mxu0 0.0
        %5081 = vmatmul.mubr.f32.gmra.mxu0 %v5014
        %v5082 = vpop.f32.mrf.mxu0
        %v5083 = vadd.f32 0.0, %v5082
        %v5084 = vpop.f32.mrf.mxu0
        %5085 = vdwg.mxu0
        %v5086 = vadd.f32 %v3413, %v5083
        %v5087 = vadd.f32 %v5086, %v3418
        %v5088 = vxor.u32 %v5087, 2147483648
        %v5089 = vmul.f32 %v5088, 1.442695
        %v5090 = vpow.pop %v5089
        %v5091 = vadd.f32 %v5090, 1.0
        %v5092 = vrcp.pop %v5091
        %v5093 = vmul.f32 1.0, %v5092
        %v5094 = vadd.f32 %v5083, %v3516
        %5096 = vrot.lane.b32.xlu0 %v5094, 64
        %v5097 = vpop.permute.xlu0 %5096
        %v5099 = vmul.f32 %v5093, %v5097
        %5101 = vrot.lane.b32.xlu0 %v5099, 64
        %v5102 = vpop.permute.xlu0 %5101
        %v5104 = vadd.f32 %v3509, %v5102
        %v5105 = vtanh.pop %v5104
        %v5106 = vsub.f32 1.0, %v5093
        %5108 = vrot.lane.b32.xlu0 %v5105, 96
        %v5109 = vpop.permute.xlu0 %5108
        %v5111 = vmul.f32 %v5106, %v5109
        %v5112 = vmul.f32 %v5093, %v5008
        %v5113 = vadd.f32 %v5111, %v5112
        %5115 = vrot.lane.b32.xlu0 %v5113, 96
        %v5116 = vpop.permute.xlu0 %5115
        %5118 = vst.msk [vmem:[#allocation3 + $0xf] sm:$0x1] %vm3542, %v5116
        %v5119 = vld [vmem:[#allocation3] sm:$0xff]
        %v5120 = vld [vmem:[#allocation3 + $0x8] sm:$0xff]
        %v5121 = vld [vmem:[%s20] sm:$0xff]
        %v5122 = vld [vmem:[%s20 + $0x8] sm:$0xff]
        %v5123 = vld [vmem:[%s20 + $0x10] sm:$0xff]
        %v5124 = vld [vmem:[%s20 + $0x18] sm:$0xff]
        %v5125 = vld [vmem:[%s21] sm:$0x1]
        %v5127 = vlaneseq
        %v5128 = vshrl.u32 %v5127, 7
        %v5129 = vsub.s32 0, %v5128
        %v5130 = vrot.slane %v5125, %v5129
        %v5133 = vsel %vm1048, %v5119, 0
        %v5136 = vsel %vm1048, %v5120, 0
        %5138 = vmatprep.subr.mxu0 0.0
        %5139 = vmatpush1.msra.mxu0 0.0
        %5140 = vmatprep.subr.mxu0 0.0
        %5141 = vmatpush1.msra.mxu0 0.0
        %5142 = vmatprep.subr.mxu0 0.0
        %5143 = vmatpush1.msra.mxu0 0.0
        %5144 = vmatprep.subr.mxu0 0.0
        %5145 = vmatpush1.msra.mxu0 0.0
        %5146 = vmatprep.subr.mxu0 0.0
        %5147 = vmatpush1.msra.mxu0 0.0
        %5148 = vmatprep.subr.mxu0 0.0
        %5149 = vmatpush1.msra.mxu0 0.0
        %5150 = vmatprep.subr.mxu0 0.0
        %5151 = vmatpush1.msra.mxu0 0.0
        %5152 = vmatprep.subr.mxu0 0.0
        %5153 = vmatpush1.msra.mxu0 0.0
        %5154 = vmatprep.subr.mxu0 0.0
        %5155 = vmatpush1.msra.mxu0 0.0
        %5156 = vmatprep.subr.mxu0 0.0
        %5157 = vmatpush1.msra.mxu0 0.0
        %5158 = vmatprep.subr.mxu0 0.0
        %5159 = vmatpush1.msra.mxu0 0.0
        %5160 = vmatprep.subr.mxu0 0.0
        %5161 = vmatpush1.msra.mxu0 0.0
        %5162 = vmatprep.subr.mxu0 0.0
        %5163 = vmatpush1.msra.mxu0 %v5124
        %5164 = vmatprep.subr.mxu0 0.0
        %5165 = vmatpush1.msra.mxu0 %v5123
        %5166 = vmatprep.subr.mxu0 0.0
        %5167 = vmatpush1.msra.mxu0 %v5122
        %5168 = vmatprep.subr.mxu0 0.0
        %5169 = vmatpush1.msra.mxu0 %v5121
        %5170 = vmatprep.subr.mxu0 0.0
        %5171 = vmatpush2.msra.mxu0 0.0
        %5172 = vmatprep.subr.mxu0 0.0
        %5173 = vmatpush2.msra.mxu0 0.0
        %5174 = vmatprep.subr.mxu0 0.0
        %5175 = vmatpush2.msra.mxu0 0.0
        %5176 = vmatprep.subr.mxu0 0.0
        %5177 = vmatpush2.msra.mxu0 0.0
        %5178 = vmatprep.subr.mxu0 0.0
        %5179 = vmatpush2.msra.mxu0 0.0
        %5180 = vmatprep.subr.mxu0 0.0
        %5181 = vmatpush2.msra.mxu0 0.0
        %5182 = vmatprep.subr.mxu0 0.0
        %5183 = vmatpush2.msra.mxu0 0.0
        %5184 = vmatprep.subr.mxu0 0.0
        %5185 = vmatpush2.msra.mxu0 0.0
        %5186 = vmatprep.subr.mxu0 0.0
        %5187 = vmatpush2.msra.mxu0 0.0
        %5188 = vmatprep.subr.mxu0 0.0
        %5189 = vmatpush2.msra.mxu0 0.0
        %5190 = vmatprep.subr.mxu0 0.0
        %5191 = vmatpush2.msra.mxu0 0.0
        %5192 = vmatprep.subr.mxu0 0.0
        %5193 = vmatpush2.msra.mxu0 0.0
        %5194 = vmatprep.subr.mxu0 0.0
        %5195 = vmatpush2.msra.mxu0 0.0
        %5196 = vmatprep.subr.mxu0 0.0
        %5197 = vmatpush2.msra.mxu0 0.0
        %5198 = vmatprep.subr.mxu0 0.0
        %5199 = vmatpush2.msra.mxu0 0.0
        %5200 = vmatprep.subr.mxu0 0.0
        %5201 = vmatpush2.msra.mxu0 0.0
        %5202 = vmatprep.mubr.f32.mxu0 0.0
        %5203 = vmatmul.mubr.f32.gmra.mxu0 %v5133
        %v5204 = vpop.f32.mrf.mxu0
        %v5205 = vadd.f32 %v5130, %v5204
        %v5206 = vpop.f32.mrf.mxu0
        %5207 = vmatprep.mubr.f32.mxu0 0.0
        %5208 = vmatmul.mubr.f32.gmra.mxu0 %v5136
        %v5209 = vpop.f32.mrf.mxu0
        %v5210 = vadd.f32 %v5130, %v5209
        %v5211 = vpop.f32.mrf.mxu0
        %5212 = vdwg.mxu0
        %5213 = vst.msk [vmem:[%s721] sm:$0xff] %vm1228, %v5205
        %5214 = vst.msk [vmem:[%s721 + $0x8] sm:$0xff] %vm1228, %v5210
        %s5215 = sand.u32 %s513, 1
        %s5216 = scalar_lea.sflag [#allocation5], %s5215
        %s5217 = sand.u32 %s513, 1
        %s5218 = smul.addr %s5217, 8
        %s5219 = scalar_lea.vmem [#allocation4], %s5218
        %p5220 = scmp.lt.s32.totalorder %s38, 1
        %s5221 = scalar_select %p5220, %s38, 1
        %s5222 = smul.addr %s5221, 2
        %s5223 = smul.addr %s5222, 8
        %s5224 = scalar_lea.vmem %s23, %s5223
        // Predicated region
        $region109: #{_lambda_.1} parent=107 // pred_check
          %p5225 = pneg %p523
        $region110: #{_lambda_.1} parent=107 // pred_check_branch
          %5227 = sbr.rel (%p5225) target = $region112
        $region111: #{_lambda_.1} parent=107 // pred_region
          %s5229 = ssub.s32 128, 128
          %5230 = vsyncadd %s5216, %s5229
          %s5231 = smul.addr %s38, 128
          %s5232 = scalar_lea.hbm %s22, %s5231
          %s5234 = sshll.u32 %s5219, 4
          %s5235 = int_to_ptr.vmem [resolvable:$true] %s5234
          %5237 = dma.vmem_to_hbm [thread:$0]  %s5235, 128, %s5232, %s5216
        $region112: #{_lambda_.1} parent=107 // pred_fallthru
          _
        // Predicated region
        $region113: #{_lambda_.1} parent=107 // pred_check
          %p5238 = pneg %p549
        $region114: #{_lambda_.1} parent=107 // pred_check_branch
          %5240 = sbr.rel (%p5238) target = $region116
        $region115: #{_lambda_.1} parent=107 // pred_region
          _
        $region116: #{_lambda_.1} parent=107 // pred_fallthru
          _
      $region108: #{_lambda_.1} parent=5 // pred_fallthru
        _
      %p5241 = scmp.le.s32.totalorder 2, %s33
      // Predicated region
      $region117: #{_lambda_.1} parent=5 // pred_check
        %p5242 = pneg %p5241
      $region118: #{_lambda_.1} parent=5 // pred_check_branch
        %5244 = sbr.rel (%p5242) target = $region120
      $region119: #{_lambda_.1} parent=5 // pred_region
        %s5245 = ssub.s32 %s33, 2
        // Predicated region
        $region121: #{_lambda_.1} parent=119 // pred_check
          %p5246 = pneg %p529
        $region122: #{_lambda_.1} parent=119 // pred_check_branch
          %5248 = sbr.rel (%p5246) target = $region124
        $region123: #{_lambda_.1} parent=119 // pred_region
          %s5249 = sand.u32 %s514, 1
          %s5250 = scalar_lea.sflag [#allocation5], %s5249
          %s5251 = sand.u32 %s514, 1
          %s5252 = smul.addr %s5251, 8
          %s5253 = scalar_lea.vmem [#allocation4], %s5252
          %5254 = dma.done %s5250, 128
        $region124: #{_lambda_.1} parent=119 // pred_fallthru
          _
        // Predicated region
        $region125: #{_lambda_.1} parent=119 // pred_check
          %p5255 = pneg %p555
        $region126: #{_lambda_.1} parent=119 // pred_check_branch
          %5257 = sbr.rel (%p5255) target = $region128
        $region127: #{_lambda_.1} parent=119 // pred_region
          %p5258 = scmp.lt.s32.totalorder %s39, 1
          %s5259 = scalar_select %p5258, %s39, 1
          %s5260 = smul.addr %s5259, 2
          %s5261 = smul.addr %s5260, 8
          %s5262 = scalar_lea.vmem %s23, %s5261
        $region128: #{_lambda_.1} parent=119 // pred_fallthru
          _
      $region120: #{_lambda_.1} parent=5 // pred_fallthru
        _
    $region6: #{_lambda_.1} parent=1 // loop_footer
      %s37 = sadd.s32 1, %s33
    $region7: #{_lambda_.1} parent=1 // loop_footer_branch
      %32 = sbr.rel target = $region3
    $region8: #{_lambda_.1} parent=1 // loop_exit
      _
    %5263 = vsyncpa [#allocation5], 1
    %s5264 = scalar_lea.sflag [#allocation5], 1
    %5265 = vsyncpa %s5264, 1

</llo_original>
